<compile_context>
chip_gen: v7x
topology: tpu7x:2x2x1
jax: 0.10.0
libtpu: 0.0.40
codegen_flags: <defaults>
</compile_context>

<pallas_src>
import jax
import jax.numpy as jnp
from jax import lax
from jax.experimental import pallas as pl
from jax.experimental.pallas import tpu as pltpu

# Lane-dense padded feature sizes.
C1P = 128   # conv1 out channels (10 real)
C2P = 128   # conv2 out channels (20 real)
HP = 128    # fc1 hidden (50 real)
CP = 128    # classes (10 real)
K1P = 32    # conv1 im2col K (25 real)
NUM_CLASSES = 10


# ---------------------------------------------------------------------------
# The single fused Pallas kernel
# ---------------------------------------------------------------------------

def fused_net_kernel(p1_ref, w1_ref, b1_ref, w2_ref, b2_ref,
                     w3_ref, b3_ref, w4_ref, b4_ref, out_ref):
    B = out_ref.shape[0]
    R1 = p1_ref.shape[1]            # B * 256 rows ordered (b, ph(16), pw(16))

    # ---- conv1 as one matmul per 2x2-pooling parity; maxpool = elementwise max ----
    y1 = None
    for p in range(4):              # p = (dh, dw) parity of the pooling window
        cand = jnp.dot(p1_ref[p], w1_ref[...],
                       preferred_element_type=jnp.float32)            # (R1, C1P)
        y1 = cand if y1 is None else jnp.maximum(y1, cand)
    y1 = jnp.maximum(y1 + b1_ref[...], 0.0)         # relu(maxpool(conv1(x)))
    y1 = y1.reshape(B, 16, 16, C1P)                 # channel-last, 12x12 valid (padded 16x16)

    # ---- conv2 (5x5) as 25 shifted matmuls accumulated in f32 ----
    # conv2_drop (Dropout2d) is identity in eval mode.
    acc2 = jnp.zeros((B * 64, C2P), jnp.float32) + b2_ref[...]
    for i in range(5):
        for j in range(5):
            slab = y1[:, i:i + 8, j:j + 8, :].reshape(B * 64, C1P)
            acc2 = acc2 + jnp.dot(slab.astype(jnp.bfloat16), w2_ref[i * 5 + j],
                                  preferred_element_type=jnp.float32)
    z2 = acc2.reshape(B, 8, 8, C2P)                 # channel-last 8x8 conv2 output

    # ---- maxpool 2x2 + relu fused with fc1: one matmul per pooled position ----
    h = jnp.zeros((B, HP), jnp.float32) + b3_ref[...]
    for u in range(4):
        for v in range(4):
            m = jnp.maximum(
                jnp.maximum(z2[:, 2 * u, 2 * v, :], z2[:, 2 * u, 2 * v + 1, :]),
                jnp.maximum(z2[:, 2 * u + 1, 2 * v, :], z2[:, 2 * u + 1, 2 * v + 1, :]))
            t = jnp.maximum(m, 0.0)                                    # (B, C2P)
            h = h + jnp.dot(t.astype(jnp.bfloat16), w3_ref[u * 4 + v],
                            preferred_element_type=jnp.float32)
    h = jnp.maximum(h, 0.0)         # relu(fc1); F.dropout is identity in eval mode

    # ---- fc2 + numerically stable log_softmax over the 10 real classes ----
    z = jnp.dot(h.astype(jnp.bfloat16), w4_ref[...],
                preferred_element_type=jnp.float32) + b4_ref[...]      # (B, CP)
    col = lax.broadcasted_iota(jnp.int32, z.shape, 1)
    z = jnp.where(col < NUM_CLASSES, z, -1e30)      # mask padded lanes out of softmax
    zmax = jnp.max(z, axis=1, keepdims=True)
    lse = jnp.log(jnp.sum(jnp.exp(z - zmax), axis=1, keepdims=True))
    out_ref[...] = z - zmax - lse


# ---------------------------------------------------------------------------
# JAX glue: parameter repacking (once) and conv1 patch gather (tiny)
# ---------------------------------------------------------------------------

def build_conv1_patches(x):
    """im2col for conv1 at pooled resolution, one row block per 2x2-pool parity.

    Returns (4, B*256, K1P) bf16; rows ordered (b, ph, pw) with the 12x12 pooled
    spatial grid zero-padded to 16x16 (padded rows are never read downstream).
    """
    B = x.shape[0]
    x = x.reshape(B, 28, 28)
    xp = jnp.pad(x, ((0, 0), (0, 9), (0, 9)))                 # (B, 37, 37)
    blocks = []
    for dh in range(2):
        for dw in range(2):
            taps = [xp[:, dh + i: dh + i + 32: 2, dw + j: dw + j + 32: 2]
                    for i in range(5) for j in range(5)]      # each (B, 16, 16)
            pat = jnp.stack(taps, axis=-1)                    # (B, 16, 16, 25)
            pat = jnp.pad(pat, ((0, 0), (0, 0), (0, 0), (0, K1P - 25)))
            blocks.append(pat.reshape(B * 256, K1P))
    return jnp.stack(blocks, axis=0).astype(jnp.bfloat16)     # (4, B*256, K1P)


def prepare_params(params):
    w1c, b1c, w2c, b2c, w1f, b1f, w2f, b2f = params
    # conv1: (10,1,5,5) -> (K1P, C1P), tap index k = i*5 + j
    w1 = jnp.pad(w1c.reshape(10, 25).T, ((0, K1P - 25), (0, C1P - 10)))
    b1 = jnp.pad(b1c, (0, C1P - 10)).reshape(1, C1P)
    # conv2: (20,10,5,5) -> (25, C1P, C2P) as [tap, cin, cout]
    w2 = jnp.transpose(w2c, (2, 3, 1, 0)).reshape(25, 10, 20)
    w2 = jnp.pad(w2, ((0, 0), (0, C1P - 10), (0, C2P - 20)))
    b2 = jnp.pad(b2c, (0, C2P - 20)).reshape(1, C2P)
    # fc1: (50, 320) with PyTorch input index c*16 + u*4 + v  ->  (16, C2P, HP)
    w3 = w1f.T.reshape(20, 4, 4, 50)
    w3 = jnp.transpose(w3, (1, 2, 0, 3)).reshape(16, 20, 50)
    w3 = jnp.pad(w3, ((0, 0), (0, C2P - 20), (0, HP - 50)))
    b3 = jnp.pad(b1f, (0, HP - 50)).reshape(1, HP)
    # fc2: (10, 50) -> (HP, CP)
    w4 = jnp.pad(w2f.T, ((0, HP - 50), (0, CP - 10)))
    b4 = jnp.pad(b2f, (0, CP - 10)).reshape(1, CP)
    bf = lambda a: a.astype(jnp.bfloat16)
    f32 = lambda a: a.astype(jnp.float32)
    return (bf(w1), f32(b1), bf(w2), f32(b2), bf(w3), f32(b3), bf(w4), f32(b4))


def fused_forward(patches1, kparams, batch):
    def full_spec(shape):
        return pl.BlockSpec(shape, lambda i: (0,) * len(shape))

    args = (patches1,) + tuple(kparams)
    return pl.pallas_call(
        fused_net_kernel,
        out_shape=jax.ShapeDtypeStruct((batch, CP), jnp.float32),
        grid=(1,),
        in_specs=[full_spec(a.shape) for a in args],
        out_specs=full_spec((batch, CP)),
        compiler_params=pltpu.CompilerParams(dimension_semantics=("arbitrary",)),
    )(*args)


def net_forward(x, params):
    batch = x.shape[0]
    kparams = prepare_params(params)
    patches1 = build_conv1_patches(x)
    logp = fused_forward(patches1, kparams, batch)
    return logp[:, :NUM_CLASSES]


# ---------------------------------------------------------------------------
# Pure-JAX reference (f32) for a loose numerical cross-check
# ---------------------------------------------------------------------------

def reference_forward(x, params):
    w1c, b1c, w2c, b2c, w1f, b1f, w2f, b2f = params
    dn = ("NCHW", "OIHW", "NCHW")
    y = lax.conv_general_dilated(x, w1c, (1, 1), "VALID", dimension_numbers=dn)
    y = y + b1c[None, :, None, None]
    y = lax.reduce_window(y, -jnp.inf, lax.max, (1, 1, 2, 2), (1, 1, 2, 2), "VALID")
    y = jnp.maximum(y, 0.0)
    y = lax.conv_general_dilated(y, w2c, (1, 1), "VALID", dimension_numbers=dn)
    y = y + b2c[None, :, None, None]
    y = lax.reduce_window(y, -jnp.inf, lax.max, (1, 1, 2, 2), (1, 1, 2, 2), "VALID")
    y = jnp.maximum(y, 0.0)
    flat = y.reshape(y.shape[0], -1)
    h = jnp.maximum(flat @ w1f.T + b1f, 0.0)
    z = h @ w2f.T + b2f
    return jax.nn.log_softmax(z, axis=1)


# ---------------------------------------------------------------------------
# Main
# ---------------------------------------------------------------------------

if __name__ == "__main__":
    key = jax.random.PRNGKey(0)
    ks = jax.random.split(key, 9)

    # Deterministic synthetic parameters (PyTorch layout shapes).
    w1c = 0.1 * jax.random.normal(ks[0], (10, 1, 5, 5), jnp.float32)
    b1c = 0.1 * jax.random.normal(ks[1], (10,), jnp.float32)
    w2c = 0.1 * jax.random.normal(ks[2], (20, 10, 5, 5), jnp.float32)
    b2c = 0.1 * jax.random.normal(ks[3], (20,), jnp.float32)
    w1f = 0.1 * jax.random.normal(ks[4], (50, 320), jnp.float32)   # nn.Linear weight (out, in)
    b1f = 0.1 * jax.random.normal(ks[5], (50,), jnp.float32)
    w2f = 0.1 * jax.random.normal(ks[6], (10, 50), jnp.float32)
    b2f = 0.1 * jax.random.normal(ks[7], (10,), jnp.float32)
    params = (w1c, b1c, w2c, b2c, w1f, b1f, w2f, b2f)

    # Input: MNIST-shaped NCHW batch (fc1=320 forces 28x28 input).
    x = jax.random.normal(ks[8], (2, 1, 28, 28), jnp.float32)

    logp = jax.jit(net_forward)(x, params)
    logp = jax.block_until_ready(logp)

    assert logp.shape == (2, 10)
    # log_softmax rows must exponentiate-sum to 1
    row_sums = jnp.exp(logp).sum(axis=1)
    assert bool(jnp.all(jnp.abs(row_sums - 1.0) < 1e-4))

    # Loose cross-check vs pure-JAX f32 reference (kernel uses bf16 MXU operands).
    ref = reference_forward(x, params)
    max_err = float(jnp.max(jnp.abs(logp - ref)))
    assert max_err < 0.3, f"mismatch vs reference: {max_err}"

    print("KERNEL_OK")
</pallas_src>

<mosaic_0001>
module attributes {stable_mosaic.version = 11 : i64} {
  func.func @fused_net_kernel(%arg0: i32, %arg1: memref<4x512x32xbf16, #tpu.memory_space<vmem>>, %arg2: memref<32x128xbf16, #tpu.memory_space<vmem>>, %arg3: memref<1x128xf32, #tpu.memory_space<vmem>>, %arg4: memref<25x128x128xbf16, #tpu.memory_space<vmem>>, %arg5: memref<1x128xf32, #tpu.memory_space<vmem>>, %arg6: memref<16x128x128xbf16, #tpu.memory_space<vmem>>, %arg7: memref<1x128xf32, #tpu.memory_space<vmem>>, %arg8: memref<128x128xbf16, #tpu.memory_space<vmem>>, %arg9: memref<1x128xf32, #tpu.memory_space<vmem>>, %arg10: memref<2x128xf32, #tpu.memory_space<vmem>>) attributes {dimension_semantics = [#tpu.dimension_semantics<arbitrary>], iteration_bounds = array<i64: 1>, scalar_prefetch = 0 : i64, scratch_operands = 0 : i64, tpu.core_type = #tpu.core_type<tc>, window_params = [{pipeline_mode = #tpu.pipeline_mode<synchronous>, transform_indices = @transform_0, window_bounds = array<i64: 4, 512, 32>}, {pipeline_mode = #tpu.pipeline_mode<synchronous>, transform_indices = @transform_1, window_bounds = array<i64: 32, 128>}, {pipeline_mode = #tpu.pipeline_mode<synchronous>, transform_indices = @transform_2, window_bounds = array<i64: 1, 128>}, {pipeline_mode = #tpu.pipeline_mode<synchronous>, transform_indices = @transform_3, window_bounds = array<i64: 25, 128, 128>}, {pipeline_mode = #tpu.pipeline_mode<synchronous>, transform_indices = @transform_4, window_bounds = array<i64: 1, 128>}, {pipeline_mode = #tpu.pipeline_mode<synchronous>, transform_indices = @transform_5, window_bounds = array<i64: 16, 128, 128>}, {pipeline_mode = #tpu.pipeline_mode<synchronous>, transform_indices = @transform_6, window_bounds = array<i64: 1, 128>}, {pipeline_mode = #tpu.pipeline_mode<synchronous>, transform_indices = @transform_7, window_bounds = array<i64: 128, 128>}, {pipeline_mode = #tpu.pipeline_mode<synchronous>, transform_indices = @transform_8, window_bounds = array<i64: 1, 128>}, {pipeline_mode = #tpu.pipeline_mode<synchronous>, transform_indices = @transform_9, window_bounds = array<i64: 2, 128>}]} {
    %c0 = arith.constant 0 : index
    %c0_0 = arith.constant 0 : index
    %c0_1 = arith.constant 0 : index
    %0 = vector.load %arg1[%c0, %c0_0, %c0_1] : memref<4x512x32xbf16, #tpu.memory_space<vmem>>, vector<1x512x32xbf16>
    %1 = vector.shape_cast %0 : vector<1x512x32xbf16> to vector<512x32xbf16>
    %c0_2 = arith.constant 0 : index
    %c0_3 = arith.constant 0 : index
    %2 = vector.load %arg2[%c0_2, %c0_3] : memref<32x128xbf16, #tpu.memory_space<vmem>>, vector<32x128xbf16>
    %cst = arith.constant dense<0.000000e+00> : vector<512x128xf32>
    %3 = tpu.matmul %1, %2, %cst {dimension_numbers = #tpu.dot_dimension_numbers<[1], [0], [0], [1], [0, 0, 1, 1], [], []>} : vector<512x32xbf16>, vector<32x128xbf16>, vector<512x128xf32> -> vector<512x128xf32>
    %c1 = arith.constant 1 : index
    %c0_4 = arith.constant 0 : index
    %c0_5 = arith.constant 0 : index
    %4 = vector.load %arg1[%c1, %c0_4, %c0_5] : memref<4x512x32xbf16, #tpu.memory_space<vmem>>, vector<1x512x32xbf16>
    %5 = vector.shape_cast %4 : vector<1x512x32xbf16> to vector<512x32xbf16>
    %c0_6 = arith.constant 0 : index
    %c0_7 = arith.constant 0 : index
    %6 = vector.load %arg2[%c0_6, %c0_7] : memref<32x128xbf16, #tpu.memory_space<vmem>>, vector<32x128xbf16>
    %cst_8 = arith.constant dense<0.000000e+00> : vector<512x128xf32>
    %7 = tpu.matmul %5, %6, %cst_8 {dimension_numbers = #tpu.dot_dimension_numbers<[1], [0], [0], [1], [0, 0, 1, 1], [], []>} : vector<512x32xbf16>, vector<32x128xbf16>, vector<512x128xf32> -> vector<512x128xf32>
    %8 = arith.maximumf %3, %7 : vector<512x128xf32>
    %c2 = arith.constant 2 : index
    %c0_9 = arith.constant 0 : index
    %c0_10 = arith.constant 0 : index
    %9 = vector.load %arg1[%c2, %c0_9, %c0_10] : memref<4x512x32xbf16, #tpu.memory_space<vmem>>, vector<1x512x32xbf16>
    %10 = vector.shape_cast %9 : vector<1x512x32xbf16> to vector<512x32xbf16>
    %c0_11 = arith.constant 0 : index
    %c0_12 = arith.constant 0 : index
    %11 = vector.load %arg2[%c0_11, %c0_12] : memref<32x128xbf16, #tpu.memory_space<vmem>>, vector<32x128xbf16>
    %cst_13 = arith.constant dense<0.000000e+00> : vector<512x128xf32>
    %12 = tpu.matmul %10, %11, %cst_13 {dimension_numbers = #tpu.dot_dimension_numbers<[1], [0], [0], [1], [0, 0, 1, 1], [], []>} : vector<512x32xbf16>, vector<32x128xbf16>, vector<512x128xf32> -> vector<512x128xf32>
    %13 = arith.maximumf %8, %12 : vector<512x128xf32>
    %c3 = arith.constant 3 : index
    %c0_14 = arith.constant 0 : index
    %c0_15 = arith.constant 0 : index
    %14 = vector.load %arg1[%c3, %c0_14, %c0_15] : memref<4x512x32xbf16, #tpu.memory_space<vmem>>, vector<1x512x32xbf16>
    %15 = vector.shape_cast %14 : vector<1x512x32xbf16> to vector<512x32xbf16>
    %c0_16 = arith.constant 0 : index
    %c0_17 = arith.constant 0 : index
    %16 = vector.load %arg2[%c0_16, %c0_17] : memref<32x128xbf16, #tpu.memory_space<vmem>>, vector<32x128xbf16>
    %cst_18 = arith.constant dense<0.000000e+00> : vector<512x128xf32>
    %17 = tpu.matmul %15, %16, %cst_18 {dimension_numbers = #tpu.dot_dimension_numbers<[1], [0], [0], [1], [0, 0, 1, 1], [], []>} : vector<512x32xbf16>, vector<32x128xbf16>, vector<512x128xf32> -> vector<512x128xf32>
    %18 = arith.maximumf %13, %17 : vector<512x128xf32>
    %c0_19 = arith.constant 0 : index
    %c0_20 = arith.constant 0 : index
    %19 = vector.load %arg3[%c0_19, %c0_20] : memref<1x128xf32, #tpu.memory_space<vmem>>, vector<1x128xf32>
    %20 = vector.broadcast %19 : vector<1x128xf32> to vector<512x128xf32>
    %21 = arith.addf %18, %20 : vector<512x128xf32>
    %cst_21 = arith.constant 0.000000e+00 : f32
    %22 = vector.broadcast %cst_21 : f32 to vector<512x128xf32>
    %23 = arith.maximumf %21, %22 : vector<512x128xf32>
    %24 = vector.shape_cast %23 : vector<512x128xf32> to vector<2x16x16x128xf32>
    %cst_22 = arith.constant 0.000000e+00 : f32
    %25 = vector.broadcast %cst_22 : f32 to vector<128x128xf32>
    %c0_23 = arith.constant 0 : index
    %c0_24 = arith.constant 0 : index
    %26 = vector.load %arg5[%c0_23, %c0_24] : memref<1x128xf32, #tpu.memory_space<vmem>>, vector<1x128xf32>
    %27 = vector.broadcast %26 : vector<1x128xf32> to vector<128x128xf32>
    %28 = arith.addf %25, %27 : vector<128x128xf32>
    %29 = vector.extract_strided_slice %24 {offsets = [0, 0, 0, 0], sizes = [2, 8, 8, 128], strides = [1, 1, 1, 1]} : vector<2x16x16x128xf32> to vector<2x8x8x128xf32>
    %30 = vector.shape_cast %29 : vector<2x8x8x128xf32> to vector<128x128xf32>
    %31 = arith.truncf %30 : vector<128x128xf32> to vector<128x128xbf16>
    %c0_25 = arith.constant 0 : index
    %c0_26 = arith.constant 0 : index
    %c0_27 = arith.constant 0 : index
    %32 = vector.load %arg4[%c0_25, %c0_26, %c0_27] : memref<25x128x128xbf16, #tpu.memory_space<vmem>>, vector<1x128x128xbf16>
    %33 = vector.shape_cast %32 : vector<1x128x128xbf16> to vector<128x128xbf16>
    %cst_28 = arith.constant dense<0.000000e+00> : vector<128x128xf32>
    %34 = tpu.matmul %31, %33, %cst_28 {dimension_numbers = #tpu.dot_dimension_numbers<[1], [0], [0], [1], [0, 0, 1, 1], [], []>} : vector<128x128xbf16>, vector<128x128xbf16>, vector<128x128xf32> -> vector<128x128xf32>
    %35 = arith.addf %28, %34 : vector<128x128xf32>
    %36 = vector.extract_strided_slice %24 {offsets = [0, 0, 1, 0], sizes = [2, 8, 8, 128], strides = [1, 1, 1, 1]} : vector<2x16x16x128xf32> to vector<2x8x8x128xf32>
    %37 = vector.shape_cast %36 : vector<2x8x8x128xf32> to vector<128x128xf32>
    %38 = arith.truncf %37 : vector<128x128xf32> to vector<128x128xbf16>
    %c1_29 = arith.constant 1 : index
    %c0_30 = arith.constant 0 : index
    %c0_31 = arith.constant 0 : index
    %39 = vector.load %arg4[%c1_29, %c0_30, %c0_31] : memref<25x128x128xbf16, #tpu.memory_space<vmem>>, vector<1x128x128xbf16>
    %40 = vector.shape_cast %39 : vector<1x128x128xbf16> to vector<128x128xbf16>
    %cst_32 = arith.constant dense<0.000000e+00> : vector<128x128xf32>
    %41 = tpu.matmul %38, %40, %cst_32 {dimension_numbers = #tpu.dot_dimension_numbers<[1], [0], [0], [1], [0, 0, 1, 1], [], []>} : vector<128x128xbf16>, vector<128x128xbf16>, vector<128x128xf32> -> vector<128x128xf32>
    %42 = arith.addf %35, %41 : vector<128x128xf32>
    %43 = vector.extract_strided_slice %24 {offsets = [0, 0, 2, 0], sizes = [2, 8, 8, 128], strides = [1, 1, 1, 1]} : vector<2x16x16x128xf32> to vector<2x8x8x128xf32>
    %44 = vector.shape_cast %43 : vector<2x8x8x128xf32> to vector<128x128xf32>
    %45 = arith.truncf %44 : vector<128x128xf32> to vector<128x128xbf16>
    %c2_33 = arith.constant 2 : index
    %c0_34 = arith.constant 0 : index
    %c0_35 = arith.constant 0 : index
    %46 = vector.load %arg4[%c2_33, %c0_34, %c0_35] : memref<25x128x128xbf16, #tpu.memory_space<vmem>>, vector<1x128x128xbf16>
    %47 = vector.shape_cast %46 : vector<1x128x128xbf16> to vector<128x128xbf16>
    %cst_36 = arith.constant dense<0.000000e+00> : vector<128x128xf32>
    %48 = tpu.matmul %45, %47, %cst_36 {dimension_numbers = #tpu.dot_dimension_numbers<[1], [0], [0], [1], [0, 0, 1, 1], [], []>} : vector<128x128xbf16>, vector<128x128xbf16>, vector<128x128xf32> -> vector<128x128xf32>
    %49 = arith.addf %42, %48 : vector<128x128xf32>
    %50 = vector.extract_strided_slice %24 {offsets = [0, 0, 3, 0], sizes = [2, 8, 8, 128], strides = [1, 1, 1, 1]} : vector<2x16x16x128xf32> to vector<2x8x8x128xf32>
    %51 = vector.shape_cast %50 : vector<2x8x8x128xf32> to vector<128x128xf32>
    %52 = arith.truncf %51 : vector<128x128xf32> to vector<128x128xbf16>
    %c3_37 = arith.constant 3 : index
    %c0_38 = arith.constant 0 : index
    %c0_39 = arith.constant 0 : index
    %53 = vector.load %arg4[%c3_37, %c0_38, %c0_39] : memref<25x128x128xbf16, #tpu.memory_space<vmem>>, vector<1x128x128xbf16>
    %54 = vector.shape_cast %53 : vector<1x128x128xbf16> to vector<128x128xbf16>
    %cst_40 = arith.constant dense<0.000000e+00> : vector<128x128xf32>
    %55 = tpu.matmul %52, %54, %cst_40 {dimension_numbers = #tpu.dot_dimension_numbers<[1], [0], [0], [1], [0, 0, 1, 1], [], []>} : vector<128x128xbf16>, vector<128x128xbf16>, vector<128x128xf32> -> vector<128x128xf32>
    %56 = arith.addf %49, %55 : vector<128x128xf32>
    %57 = vector.extract_strided_slice %24 {offsets = [0, 0, 4, 0], sizes = [2, 8, 8, 128], strides = [1, 1, 1, 1]} : vector<2x16x16x128xf32> to vector<2x8x8x128xf32>
    %58 = vector.shape_cast %57 : vector<2x8x8x128xf32> to vector<128x128xf32>
    %59 = arith.truncf %58 : vector<128x128xf32> to vector<128x128xbf16>
    %c4 = arith.constant 4 : index
    %c0_41 = arith.constant 0 : index
    %c0_42 = arith.constant 0 : index
    %60 = vector.load %arg4[%c4, %c0_41, %c0_42] : memref<25x128x128xbf16, #tpu.memory_space<vmem>>, vector<1x128x128xbf16>
    %61 = vector.shape_cast %60 : vector<1x128x128xbf16> to vector<128x128xbf16>
    %cst_43 = arith.constant dense<0.000000e+00> : vector<128x128xf32>
    %62 = tpu.matmul %59, %61, %cst_43 {dimension_numbers = #tpu.dot_dimension_numbers<[1], [0], [0], [1], [0, 0, 1, 1], [], []>} : vector<128x128xbf16>, vector<128x128xbf16>, vector<128x128xf32> -> vector<128x128xf32>
    %63 = arith.addf %56, %62 : vector<128x128xf32>
    %64 = vector.extract_strided_slice %24 {offsets = [0, 1, 0, 0], sizes = [2, 8, 8, 128], strides = [1, 1, 1, 1]} : vector<2x16x16x128xf32> to vector<2x8x8x128xf32>
    %65 = vector.shape_cast %64 : vector<2x8x8x128xf32> to vector<128x128xf32>
    %66 = arith.truncf %65 : vector<128x128xf32> to vector<128x128xbf16>
    %c5 = arith.constant 5 : index
    %c0_44 = arith.constant 0 : index
    %c0_45 = arith.constant 0 : index
    %67 = vector.load %arg4[%c5, %c0_44, %c0_45] : memref<25x128x128xbf16, #tpu.memory_space<vmem>>, vector<1x128x128xbf16>
    %68 = vector.shape_cast %67 : vector<1x128x128xbf16> to vector<128x128xbf16>
    %cst_46 = arith.constant dense<0.000000e+00> : vector<128x128xf32>
    %69 = tpu.matmul %66, %68, %cst_46 {dimension_numbers = #tpu.dot_dimension_numbers<[1], [0], [0], [1], [0, 0, 1, 1], [], []>} : vector<128x128xbf16>, vector<128x128xbf16>, vector<128x128xf32> -> vector<128x128xf32>
    %70 = arith.addf %63, %69 : vector<128x128xf32>
    %71 = vector.extract_strided_slice %24 {offsets = [0, 1, 1, 0], sizes = [2, 8, 8, 128], strides = [1, 1, 1, 1]} : vector<2x16x16x128xf32> to vector<2x8x8x128xf32>
    %72 = vector.shape_cast %71 : vector<2x8x8x128xf32> to vector<128x128xf32>
    %73 = arith.truncf %72 : vector<128x128xf32> to vector<128x128xbf16>
    %c6 = arith.constant 6 : index
    %c0_47 = arith.constant 0 : index
    %c0_48 = arith.constant 0 : index
    %74 = vector.load %arg4[%c6, %c0_47, %c0_48] : memref<25x128x128xbf16, #tpu.memory_space<vmem>>, vector<1x128x128xbf16>
    %75 = vector.shape_cast %74 : vector<1x128x128xbf16> to vector<128x128xbf16>
    %cst_49 = arith.constant dense<0.000000e+00> : vector<128x128xf32>
    %76 = tpu.matmul %73, %75, %cst_49 {dimension_numbers = #tpu.dot_dimension_numbers<[1], [0], [0], [1], [0, 0, 1, 1], [], []>} : vector<128x128xbf16>, vector<128x128xbf16>, vector<128x128xf32> -> vector<128x128xf32>
    %77 = arith.addf %70, %76 : vector<128x128xf32>
    %78 = vector.extract_strided_slice %24 {offsets = [0, 1, 2, 0], sizes = [2, 8, 8, 128], strides = [1, 1, 1, 1]} : vector<2x16x16x128xf32> to vector<2x8x8x128xf32>
    %79 = vector.shape_cast %78 : vector<2x8x8x128xf32> to vector<128x128xf32>
    %80 = arith.truncf %79 : vector<128x128xf32> to vector<128x128xbf16>
    %c7 = arith.constant 7 : index
    %c0_50 = arith.constant 0 : index
    %c0_51 = arith.constant 0 : index
    %81 = vector.load %arg4[%c7, %c0_50, %c0_51] : memref<25x128x128xbf16, #tpu.memory_space<vmem>>, vector<1x128x128xbf16>
    %82 = vector.shape_cast %81 : vector<1x128x128xbf16> to vector<128x128xbf16>
    %cst_52 = arith.constant dense<0.000000e+00> : vector<128x128xf32>
    %83 = tpu.matmul %80, %82, %cst_52 {dimension_numbers = #tpu.dot_dimension_numbers<[1], [0], [0], [1], [0, 0, 1, 1], [], []>} : vector<128x128xbf16>, vector<128x128xbf16>, vector<128x128xf32> -> vector<128x128xf32>
    %84 = arith.addf %77, %83 : vector<128x128xf32>
    %85 = vector.extract_strided_slice %24 {offsets = [0, 1, 3, 0], sizes = [2, 8, 8, 128], strides = [1, 1, 1, 1]} : vector<2x16x16x128xf32> to vector<2x8x8x128xf32>
    %86 = vector.shape_cast %85 : vector<2x8x8x128xf32> to vector<128x128xf32>
    %87 = arith.truncf %86 : vector<128x128xf32> to vector<128x128xbf16>
    %c8 = arith.constant 8 : index
    %c0_53 = arith.constant 0 : index
    %c0_54 = arith.constant 0 : index
    %88 = vector.load %arg4[%c8, %c0_53, %c0_54] : memref<25x128x128xbf16, #tpu.memory_space<vmem>>, vector<1x128x128xbf16>
    %89 = vector.shape_cast %88 : vector<1x128x128xbf16> to vector<128x128xbf16>
    %cst_55 = arith.constant dense<0.000000e+00> : vector<128x128xf32>
    %90 = tpu.matmul %87, %89, %cst_55 {dimension_numbers = #tpu.dot_dimension_numbers<[1], [0], [0], [1], [0, 0, 1, 1], [], []>} : vector<128x128xbf16>, vector<128x128xbf16>, vector<128x128xf32> -> vector<128x128xf32>
    %91 = arith.addf %84, %90 : vector<128x128xf32>
    %92 = vector.extract_strided_slice %24 {offsets = [0, 1, 4, 0], sizes = [2, 8, 8, 128], strides = [1, 1, 1, 1]} : vector<2x16x16x128xf32> to vector<2x8x8x128xf32>
    %93 = vector.shape_cast %92 : vector<2x8x8x128xf32> to vector<128x128xf32>
    %94 = arith.truncf %93 : vector<128x128xf32> to vector<128x128xbf16>
    %c9 = arith.constant 9 : index
    %c0_56 = arith.constant 0 : index
    %c0_57 = arith.constant 0 : index
    %95 = vector.load %arg4[%c9, %c0_56, %c0_57] : memref<25x128x128xbf16, #tpu.memory_space<vmem>>, vector<1x128x128xbf16>
    %96 = vector.shape_cast %95 : vector<1x128x128xbf16> to vector<128x128xbf16>
    %cst_58 = arith.constant dense<0.000000e+00> : vector<128x128xf32>
    %97 = tpu.matmul %94, %96, %cst_58 {dimension_numbers = #tpu.dot_dimension_numbers<[1], [0], [0], [1], [0, 0, 1, 1], [], []>} : vector<128x128xbf16>, vector<128x128xbf16>, vector<128x128xf32> -> vector<128x128xf32>
    %98 = arith.addf %91, %97 : vector<128x128xf32>
    %99 = vector.extract_strided_slice %24 {offsets = [0, 2, 0, 0], sizes = [2, 8, 8, 128], strides = [1, 1, 1, 1]} : vector<2x16x16x128xf32> to vector<2x8x8x128xf32>
    %100 = vector.shape_cast %99 : vector<2x8x8x128xf32> to vector<128x128xf32>
    %101 = arith.truncf %100 : vector<128x128xf32> to vector<128x128xbf16>
    %c10 = arith.constant 10 : index
    %c0_59 = arith.constant 0 : index
    %c0_60 = arith.constant 0 : index
    %102 = vector.load %arg4[%c10, %c0_59, %c0_60] : memref<25x128x128xbf16, #tpu.memory_space<vmem>>, vector<1x128x128xbf16>
    %103 = vector.shape_cast %102 : vector<1x128x128xbf16> to vector<128x128xbf16>
    %cst_61 = arith.constant dense<0.000000e+00> : vector<128x128xf32>
    %104 = tpu.matmul %101, %103, %cst_61 {dimension_numbers = #tpu.dot_dimension_numbers<[1], [0], [0], [1], [0, 0, 1, 1], [], []>} : vector<128x128xbf16>, vector<128x128xbf16>, vector<128x128xf32> -> vector<128x128xf32>
    %105 = arith.addf %98, %104 : vector<128x128xf32>
    %106 = vector.extract_strided_slice %24 {offsets = [0, 2, 1, 0], sizes = [2, 8, 8, 128], strides = [1, 1, 1, 1]} : vector<2x16x16x128xf32> to vector<2x8x8x128xf32>
    %107 = vector.shape_cast %106 : vector<2x8x8x128xf32> to vector<128x128xf32>
    %108 = arith.truncf %107 : vector<128x128xf32> to vector<128x128xbf16>
    %c11 = arith.constant 11 : index
    %c0_62 = arith.constant 0 : index
    %c0_63 = arith.constant 0 : index
    %109 = vector.load %arg4[%c11, %c0_62, %c0_63] : memref<25x128x128xbf16, #tpu.memory_space<vmem>>, vector<1x128x128xbf16>
    %110 = vector.shape_cast %109 : vector<1x128x128xbf16> to vector<128x128xbf16>
    %cst_64 = arith.constant dense<0.000000e+00> : vector<128x128xf32>
    %111 = tpu.matmul %108, %110, %cst_64 {dimension_numbers = #tpu.dot_dimension_numbers<[1], [0], [0], [1], [0, 0, 1, 1], [], []>} : vector<128x128xbf16>, vector<128x128xbf16>, vector<128x128xf32> -> vector<128x128xf32>
    %112 = arith.addf %105, %111 : vector<128x128xf32>
    %113 = vector.extract_strided_slice %24 {offsets = [0, 2, 2, 0], sizes = [2, 8, 8, 128], strides = [1, 1, 1, 1]} : vector<2x16x16x128xf32> to vector<2x8x8x128xf32>
    %114 = vector.shape_cast %113 : vector<2x8x8x128xf32> to vector<128x128xf32>
    %115 = arith.truncf %114 : vector<128x128xf32> to vector<128x128xbf16>
    %c12 = arith.constant 12 : index
    %c0_65 = arith.constant 0 : index
    %c0_66 = arith.constant 0 : index
    %116 = vector.load %arg4[%c12, %c0_65, %c0_66] : memref<25x128x128xbf16, #tpu.memory_space<vmem>>, vector<1x128x128xbf16>
    %117 = vector.shape_cast %116 : vector<1x128x128xbf16> to vector<128x128xbf16>
    %cst_67 = arith.constant dense<0.000000e+00> : vector<128x128xf32>
    %118 = tpu.matmul %115, %117, %cst_67 {dimension_numbers = #tpu.dot_dimension_numbers<[1], [0], [0], [1], [0, 0, 1, 1], [], []>} : vector<128x128xbf16>, vector<128x128xbf16>, vector<128x128xf32> -> vector<128x128xf32>
    %119 = arith.addf %112, %118 : vector<128x128xf32>
    %120 = vector.extract_strided_slice %24 {offsets = [0, 2, 3, 0], sizes = [2, 8, 8, 128], strides = [1, 1, 1, 1]} : vector<2x16x16x128xf32> to vector<2x8x8x128xf32>
    %121 = vector.shape_cast %120 : vector<2x8x8x128xf32> to vector<128x128xf32>
    %122 = arith.truncf %121 : vector<128x128xf32> to vector<128x128xbf16>
    %c13 = arith.constant 13 : index
    %c0_68 = arith.constant 0 : index
    %c0_69 = arith.constant 0 : index
    %123 = vector.load %arg4[%c13, %c0_68, %c0_69] : memref<25x128x128xbf16, #tpu.memory_space<vmem>>, vector<1x128x128xbf16>
    %124 = vector.shape_cast %123 : vector<1x128x128xbf16> to vector<128x128xbf16>
    %cst_70 = arith.constant dense<0.000000e+00> : vector<128x128xf32>
    %125 = tpu.matmul %122, %124, %cst_70 {dimension_numbers = #tpu.dot_dimension_numbers<[1], [0], [0], [1], [0, 0, 1, 1], [], []>} : vector<128x128xbf16>, vector<128x128xbf16>, vector<128x128xf32> -> vector<128x128xf32>
    %126 = arith.addf %119, %125 : vector<128x128xf32>
    %127 = vector.extract_strided_slice %24 {offsets = [0, 2, 4, 0], sizes = [2, 8, 8, 128], strides = [1, 1, 1, 1]} : vector<2x16x16x128xf32> to vector<2x8x8x128xf32>
    %128 = vector.shape_cast %127 : vector<2x8x8x128xf32> to vector<128x128xf32>
    %129 = arith.truncf %128 : vector<128x128xf32> to vector<128x128xbf16>
    %c14 = arith.constant 14 : index
    %c0_71 = arith.constant 0 : index
    %c0_72 = arith.constant 0 : index
    %130 = vector.load %arg4[%c14, %c0_71, %c0_72] : memref<25x128x128xbf16, #tpu.memory_space<vmem>>, vector<1x128x128xbf16>
    %131 = vector.shape_cast %130 : vector<1x128x128xbf16> to vector<128x128xbf16>
    %cst_73 = arith.constant dense<0.000000e+00> : vector<128x128xf32>
    %132 = tpu.matmul %129, %131, %cst_73 {dimension_numbers = #tpu.dot_dimension_numbers<[1], [0], [0], [1], [0, 0, 1, 1], [], []>} : vector<128x128xbf16>, vector<128x128xbf16>, vector<128x128xf32> -> vector<128x128xf32>
    %133 = arith.addf %126, %132 : vector<128x128xf32>
    %134 = vector.extract_strided_slice %24 {offsets = [0, 3, 0, 0], sizes = [2, 8, 8, 128], strides = [1, 1, 1, 1]} : vector<2x16x16x128xf32> to vector<2x8x8x128xf32>
    %135 = vector.shape_cast %134 : vector<2x8x8x128xf32> to vector<128x128xf32>
    %136 = arith.truncf %135 : vector<128x128xf32> to vector<128x128xbf16>
    %c15 = arith.constant 15 : index
    %c0_74 = arith.constant 0 : index
    %c0_75 = arith.constant 0 : index
    %137 = vector.load %arg4[%c15, %c0_74, %c0_75] : memref<25x128x128xbf16, #tpu.memory_space<vmem>>, vector<1x128x128xbf16>
    %138 = vector.shape_cast %137 : vector<1x128x128xbf16> to vector<128x128xbf16>
    %cst_76 = arith.constant dense<0.000000e+00> : vector<128x128xf32>
    %139 = tpu.matmul %136, %138, %cst_76 {dimension_numbers = #tpu.dot_dimension_numbers<[1], [0], [0], [1], [0, 0, 1, 1], [], []>} : vector<128x128xbf16>, vector<128x128xbf16>, vector<128x128xf32> -> vector<128x128xf32>
    %140 = arith.addf %133, %139 : vector<128x128xf32>
    %141 = vector.extract_strided_slice %24 {offsets = [0, 3, 1, 0], sizes = [2, 8, 8, 128], strides = [1, 1, 1, 1]} : vector<2x16x16x128xf32> to vector<2x8x8x128xf32>
    %142 = vector.shape_cast %141 : vector<2x8x8x128xf32> to vector<128x128xf32>
    %143 = arith.truncf %142 : vector<128x128xf32> to vector<128x128xbf16>
    %c16 = arith.constant 16 : index
    %c0_77 = arith.constant 0 : index
    %c0_78 = arith.constant 0 : index
    %144 = vector.load %arg4[%c16, %c0_77, %c0_78] : memref<25x128x128xbf16, #tpu.memory_space<vmem>>, vector<1x128x128xbf16>
    %145 = vector.shape_cast %144 : vector<1x128x128xbf16> to vector<128x128xbf16>
    %cst_79 = arith.constant dense<0.000000e+00> : vector<128x128xf32>
    %146 = tpu.matmul %143, %145, %cst_79 {dimension_numbers = #tpu.dot_dimension_numbers<[1], [0], [0], [1], [0, 0, 1, 1], [], []>} : vector<128x128xbf16>, vector<128x128xbf16>, vector<128x128xf32> -> vector<128x128xf32>
    %147 = arith.addf %140, %146 : vector<128x128xf32>
    %148 = vector.extract_strided_slice %24 {offsets = [0, 3, 2, 0], sizes = [2, 8, 8, 128], strides = [1, 1, 1, 1]} : vector<2x16x16x128xf32> to vector<2x8x8x128xf32>
    %149 = vector.shape_cast %148 : vector<2x8x8x128xf32> to vector<128x128xf32>
    %150 = arith.truncf %149 : vector<128x128xf32> to vector<128x128xbf16>
    %c17 = arith.constant 17 : index
    %c0_80 = arith.constant 0 : index
    %c0_81 = arith.constant 0 : index
    %151 = vector.load %arg4[%c17, %c0_80, %c0_81] : memref<25x128x128xbf16, #tpu.memory_space<vmem>>, vector<1x128x128xbf16>
    %152 = vector.shape_cast %151 : vector<1x128x128xbf16> to vector<128x128xbf16>
    %cst_82 = arith.constant dense<0.000000e+00> : vector<128x128xf32>
    %153 = tpu.matmul %150, %152, %cst_82 {dimension_numbers = #tpu.dot_dimension_numbers<[1], [0], [0], [1], [0, 0, 1, 1], [], []>} : vector<128x128xbf16>, vector<128x128xbf16>, vector<128x128xf32> -> vector<128x128xf32>
    %154 = arith.addf %147, %153 : vector<128x128xf32>
    %155 = vector.extract_strided_slice %24 {offsets = [0, 3, 3, 0], sizes = [2, 8, 8, 128], strides = [1, 1, 1, 1]} : vector<2x16x16x128xf32> to vector<2x8x8x128xf32>
    %156 = vector.shape_cast %155 : vector<2x8x8x128xf32> to vector<128x128xf32>
    %157 = arith.truncf %156 : vector<128x128xf32> to vector<128x128xbf16>
    %c18 = arith.constant 18 : index
    %c0_83 = arith.constant 0 : index
    %c0_84 = arith.constant 0 : index
    %158 = vector.load %arg4[%c18, %c0_83, %c0_84] : memref<25x128x128xbf16, #tpu.memory_space<vmem>>, vector<1x128x128xbf16>
    %159 = vector.shape_cast %158 : vector<1x128x128xbf16> to vector<128x128xbf16>
    %cst_85 = arith.constant dense<0.000000e+00> : vector<128x128xf32>
    %160 = tpu.matmul %157, %159, %cst_85 {dimension_numbers = #tpu.dot_dimension_numbers<[1], [0], [0], [1], [0, 0, 1, 1], [], []>} : vector<128x128xbf16>, vector<128x128xbf16>, vector<128x128xf32> -> vector<128x128xf32>
    %161 = arith.addf %154, %160 : vector<128x128xf32>
    %162 = vector.extract_strided_slice %24 {offsets = [0, 3, 4, 0], sizes = [2, 8, 8, 128], strides = [1, 1, 1, 1]} : vector<2x16x16x128xf32> to vector<2x8x8x128xf32>
    %163 = vector.shape_cast %162 : vector<2x8x8x128xf32> to vector<128x128xf32>
    %164 = arith.truncf %163 : vector<128x128xf32> to vector<128x128xbf16>
    %c19 = arith.constant 19 : index
    %c0_86 = arith.constant 0 : index
    %c0_87 = arith.constant 0 : index
    %165 = vector.load %arg4[%c19, %c0_86, %c0_87] : memref<25x128x128xbf16, #tpu.memory_space<vmem>>, vector<1x128x128xbf16>
    %166 = vector.shape_cast %165 : vector<1x128x128xbf16> to vector<128x128xbf16>
    %cst_88 = arith.constant dense<0.000000e+00> : vector<128x128xf32>
    %167 = tpu.matmul %164, %166, %cst_88 {dimension_numbers = #tpu.dot_dimension_numbers<[1], [0], [0], [1], [0, 0, 1, 1], [], []>} : vector<128x128xbf16>, vector<128x128xbf16>, vector<128x128xf32> -> vector<128x128xf32>
    %168 = arith.addf %161, %167 : vector<128x128xf32>
    %169 = vector.extract_strided_slice %24 {offsets = [0, 4, 0, 0], sizes = [2, 8, 8, 128], strides = [1, 1, 1, 1]} : vector<2x16x16x128xf32> to vector<2x8x8x128xf32>
    %170 = vector.shape_cast %169 : vector<2x8x8x128xf32> to vector<128x128xf32>
    %171 = arith.truncf %170 : vector<128x128xf32> to vector<128x128xbf16>
    %c20 = arith.constant 20 : index
    %c0_89 = arith.constant 0 : index
    %c0_90 = arith.constant 0 : index
    %172 = vector.load %arg4[%c20, %c0_89, %c0_90] : memref<25x128x128xbf16, #tpu.memory_space<vmem>>, vector<1x128x128xbf16>
    %173 = vector.shape_cast %172 : vector<1x128x128xbf16> to vector<128x128xbf16>
    %cst_91 = arith.constant dense<0.000000e+00> : vector<128x128xf32>
    %174 = tpu.matmul %171, %173, %cst_91 {dimension_numbers = #tpu.dot_dimension_numbers<[1], [0], [0], [1], [0, 0, 1, 1], [], []>} : vector<128x128xbf16>, vector<128x128xbf16>, vector<128x128xf32> -> vector<128x128xf32>
    %175 = arith.addf %168, %174 : vector<128x128xf32>
    %176 = vector.extract_strided_slice %24 {offsets = [0, 4, 1, 0], sizes = [2, 8, 8, 128], strides = [1, 1, 1, 1]} : vector<2x16x16x128xf32> to vector<2x8x8x128xf32>
    %177 = vector.shape_cast %176 : vector<2x8x8x128xf32> to vector<128x128xf32>
    %178 = arith.truncf %177 : vector<128x128xf32> to vector<128x128xbf16>
    %c21 = arith.constant 21 : index
    %c0_92 = arith.constant 0 : index
    %c0_93 = arith.constant 0 : index
    %179 = vector.load %arg4[%c21, %c0_92, %c0_93] : memref<25x128x128xbf16, #tpu.memory_space<vmem>>, vector<1x128x128xbf16>
    %180 = vector.shape_cast %179 : vector<1x128x128xbf16> to vector<128x128xbf16>
    %cst_94 = arith.constant dense<0.000000e+00> : vector<128x128xf32>
    %181 = tpu.matmul %178, %180, %cst_94 {dimension_numbers = #tpu.dot_dimension_numbers<[1], [0], [0], [1], [0, 0, 1, 1], [], []>} : vector<128x128xbf16>, vector<128x128xbf16>, vector<128x128xf32> -> vector<128x128xf32>
    %182 = arith.addf %175, %181 : vector<128x128xf32>
    %183 = vector.extract_strided_slice %24 {offsets = [0, 4, 2, 0], sizes = [2, 8, 8, 128], strides = [1, 1, 1, 1]} : vector<2x16x16x128xf32> to vector<2x8x8x128xf32>
    %184 = vector.shape_cast %183 : vector<2x8x8x128xf32> to vector<128x128xf32>
    %185 = arith.truncf %184 : vector<128x128xf32> to vector<128x128xbf16>
    %c22 = arith.constant 22 : index
    %c0_95 = arith.constant 0 : index
    %c0_96 = arith.constant 0 : index
    %186 = vector.load %arg4[%c22, %c0_95, %c0_96] : memref<25x128x128xbf16, #tpu.memory_space<vmem>>, vector<1x128x128xbf16>
    %187 = vector.shape_cast %186 : vector<1x128x128xbf16> to vector<128x128xbf16>
    %cst_97 = arith.constant dense<0.000000e+00> : vector<128x128xf32>
    %188 = tpu.matmul %185, %187, %cst_97 {dimension_numbers = #tpu.dot_dimension_numbers<[1], [0], [0], [1], [0, 0, 1, 1], [], []>} : vector<128x128xbf16>, vector<128x128xbf16>, vector<128x128xf32> -> vector<128x128xf32>
    %189 = arith.addf %182, %188 : vector<128x128xf32>
    %190 = vector.extract_strided_slice %24 {offsets = [0, 4, 3, 0], sizes = [2, 8, 8, 128], strides = [1, 1, 1, 1]} : vector<2x16x16x128xf32> to vector<2x8x8x128xf32>
    %191 = vector.shape_cast %190 : vector<2x8x8x128xf32> to vector<128x128xf32>
    %192 = arith.truncf %191 : vector<128x128xf32> to vector<128x128xbf16>
    %c23 = arith.constant 23 : index
    %c0_98 = arith.constant 0 : index
    %c0_99 = arith.constant 0 : index
    %193 = vector.load %arg4[%c23, %c0_98, %c0_99] : memref<25x128x128xbf16, #tpu.memory_space<vmem>>, vector<1x128x128xbf16>
    %194 = vector.shape_cast %193 : vector<1x128x128xbf16> to vector<128x128xbf16>
    %cst_100 = arith.constant dense<0.000000e+00> : vector<128x128xf32>
    %195 = tpu.matmul %192, %194, %cst_100 {dimension_numbers = #tpu.dot_dimension_numbers<[1], [0], [0], [1], [0, 0, 1, 1], [], []>} : vector<128x128xbf16>, vector<128x128xbf16>, vector<128x128xf32> -> vector<128x128xf32>
    %196 = arith.addf %189, %195 : vector<128x128xf32>
    %197 = vector.extract_strided_slice %24 {offsets = [0, 4, 4, 0], sizes = [2, 8, 8, 128], strides = [1, 1, 1, 1]} : vector<2x16x16x128xf32> to vector<2x8x8x128xf32>
    %198 = vector.shape_cast %197 : vector<2x8x8x128xf32> to vector<128x128xf32>
    %199 = arith.truncf %198 : vector<128x128xf32> to vector<128x128xbf16>
    %c24 = arith.constant 24 : index
    %c0_101 = arith.constant 0 : index
    %c0_102 = arith.constant 0 : index
    %200 = vector.load %arg4[%c24, %c0_101, %c0_102] : memref<25x128x128xbf16, #tpu.memory_space<vmem>>, vector<1x128x128xbf16>
    %201 = vector.shape_cast %200 : vector<1x128x128xbf16> to vector<128x128xbf16>
    %cst_103 = arith.constant dense<0.000000e+00> : vector<128x128xf32>
    %202 = tpu.matmul %199, %201, %cst_103 {dimension_numbers = #tpu.dot_dimension_numbers<[1], [0], [0], [1], [0, 0, 1, 1], [], []>} : vector<128x128xbf16>, vector<128x128xbf16>, vector<128x128xf32> -> vector<128x128xf32>
    %203 = arith.addf %196, %202 : vector<128x128xf32>
    %204 = vector.shape_cast %203 : vector<128x128xf32> to vector<2x8x8x128xf32>
    %cst_104 = arith.constant 0.000000e+00 : f32
    %205 = vector.broadcast %cst_104 : f32 to vector<2x128xf32>
    %c0_105 = arith.constant 0 : index
    %c0_106 = arith.constant 0 : index
    %206 = vector.load %arg7[%c0_105, %c0_106] : memref<1x128xf32, #tpu.memory_space<vmem>>, vector<1x128xf32>
    %207 = vector.broadcast %206 : vector<1x128xf32> to vector<2x128xf32>
    %208 = arith.addf %205, %207 : vector<2x128xf32>
    %209 = vector.extract_strided_slice %204 {offsets = [0, 0, 0, 0], sizes = [2, 1, 1, 128], strides = [1, 1, 1, 1]} : vector<2x8x8x128xf32> to vector<2x1x1x128xf32>
    %210 = vector.shape_cast %209 : vector<2x1x1x128xf32> to vector<2x128xf32>
    %211 = vector.extract_strided_slice %204 {offsets = [0, 0, 1, 0], sizes = [2, 1, 1, 128], strides = [1, 1, 1, 1]} : vector<2x8x8x128xf32> to vector<2x1x1x128xf32>
    %212 = vector.shape_cast %211 : vector<2x1x1x128xf32> to vector<2x128xf32>
    %213 = arith.maximumf %210, %212 : vector<2x128xf32>
    %214 = vector.extract_strided_slice %204 {offsets = [0, 1, 0, 0], sizes = [2, 1, 1, 128], strides = [1, 1, 1, 1]} : vector<2x8x8x128xf32> to vector<2x1x1x128xf32>
    %215 = vector.shape_cast %214 : vector<2x1x1x128xf32> to vector<2x128xf32>
    %216 = vector.extract_strided_slice %204 {offsets = [0, 1, 1, 0], sizes = [2, 1, 1, 128], strides = [1, 1, 1, 1]} : vector<2x8x8x128xf32> to vector<2x1x1x128xf32>
    %217 = vector.shape_cast %216 : vector<2x1x1x128xf32> to vector<2x128xf32>
    %218 = arith.maximumf %215, %217 : vector<2x128xf32>
    %219 = arith.maximumf %213, %218 : vector<2x128xf32>
    %cst_107 = arith.constant 0.000000e+00 : f32
    %220 = vector.broadcast %cst_107 : f32 to vector<2x128xf32>
    %221 = arith.maximumf %219, %220 : vector<2x128xf32>
    %222 = arith.truncf %221 : vector<2x128xf32> to vector<2x128xbf16>
    %c0_108 = arith.constant 0 : index
    %c0_109 = arith.constant 0 : index
    %c0_110 = arith.constant 0 : index
    %223 = vector.load %arg6[%c0_108, %c0_109, %c0_110] : memref<16x128x128xbf16, #tpu.memory_space<vmem>>, vector<1x128x128xbf16>
    %224 = vector.shape_cast %223 : vector<1x128x128xbf16> to vector<128x128xbf16>
    %cst_111 = arith.constant dense<0.000000e+00> : vector<2x128xf32>
    %225 = tpu.matmul %222, %224, %cst_111 {dimension_numbers = #tpu.dot_dimension_numbers<[1], [0], [0], [1], [0, 0, 1, 1], [], []>} : vector<2x128xbf16>, vector<128x128xbf16>, vector<2x128xf32> -> vector<2x128xf32>
    %226 = arith.addf %208, %225 : vector<2x128xf32>
    %227 = vector.extract_strided_slice %204 {offsets = [0, 0, 2, 0], sizes = [2, 1, 1, 128], strides = [1, 1, 1, 1]} : vector<2x8x8x128xf32> to vector<2x1x1x128xf32>
    %228 = vector.shape_cast %227 : vector<2x1x1x128xf32> to vector<2x128xf32>
    %229 = vector.extract_strided_slice %204 {offsets = [0, 0, 3, 0], sizes = [2, 1, 1, 128], strides = [1, 1, 1, 1]} : vector<2x8x8x128xf32> to vector<2x1x1x128xf32>
    %230 = vector.shape_cast %229 : vector<2x1x1x128xf32> to vector<2x128xf32>
    %231 = arith.maximumf %228, %230 : vector<2x128xf32>
    %232 = vector.extract_strided_slice %204 {offsets = [0, 1, 2, 0], sizes = [2, 1, 1, 128], strides = [1, 1, 1, 1]} : vector<2x8x8x128xf32> to vector<2x1x1x128xf32>
    %233 = vector.shape_cast %232 : vector<2x1x1x128xf32> to vector<2x128xf32>
    %234 = vector.extract_strided_slice %204 {offsets = [0, 1, 3, 0], sizes = [2, 1, 1, 128], strides = [1, 1, 1, 1]} : vector<2x8x8x128xf32> to vector<2x1x1x128xf32>
    %235 = vector.shape_cast %234 : vector<2x1x1x128xf32> to vector<2x128xf32>
    %236 = arith.maximumf %233, %235 : vector<2x128xf32>
    %237 = arith.maximumf %231, %236 : vector<2x128xf32>
    %cst_112 = arith.constant 0.000000e+00 : f32
    %238 = vector.broadcast %cst_112 : f32 to vector<2x128xf32>
    %239 = arith.maximumf %237, %238 : vector<2x128xf32>
    %240 = arith.truncf %239 : vector<2x128xf32> to vector<2x128xbf16>
    %c1_113 = arith.constant 1 : index
    %c0_114 = arith.constant 0 : index
    %c0_115 = arith.constant 0 : index
    %241 = vector.load %arg6[%c1_113, %c0_114, %c0_115] : memref<16x128x128xbf16, #tpu.memory_space<vmem>>, vector<1x128x128xbf16>
    %242 = vector.shape_cast %241 : vector<1x128x128xbf16> to vector<128x128xbf16>
    %cst_116 = arith.constant dense<0.000000e+00> : vector<2x128xf32>
    %243 = tpu.matmul %240, %242, %cst_116 {dimension_numbers = #tpu.dot_dimension_numbers<[1], [0], [0], [1], [0, 0, 1, 1], [], []>} : vector<2x128xbf16>, vector<128x128xbf16>, vector<2x128xf32> -> vector<2x128xf32>
    %244 = arith.addf %226, %243 : vector<2x128xf32>
    %245 = vector.extract_strided_slice %204 {offsets = [0, 0, 4, 0], sizes = [2, 1, 1, 128], strides = [1, 1, 1, 1]} : vector<2x8x8x128xf32> to vector<2x1x1x128xf32>
    %246 = vector.shape_cast %245 : vector<2x1x1x128xf32> to vector<2x128xf32>
    %247 = vector.extract_strided_slice %204 {offsets = [0, 0, 5, 0], sizes = [2, 1, 1, 128], strides = [1, 1, 1, 1]} : vector<2x8x8x128xf32> to vector<2x1x1x128xf32>
    %248 = vector.shape_cast %247 : vector<2x1x1x128xf32> to vector<2x128xf32>
    %249 = arith.maximumf %246, %248 : vector<2x128xf32>
    %250 = vector.extract_strided_slice %204 {offsets = [0, 1, 4, 0], sizes = [2, 1, 1, 128], strides = [1, 1, 1, 1]} : vector<2x8x8x128xf32> to vector<2x1x1x128xf32>
    %251 = vector.shape_cast %250 : vector<2x1x1x128xf32> to vector<2x128xf32>
    %252 = vector.extract_strided_slice %204 {offsets = [0, 1, 5, 0], sizes = [2, 1, 1, 128], strides = [1, 1, 1, 1]} : vector<2x8x8x128xf32> to vector<2x1x1x128xf32>
    %253 = vector.shape_cast %252 : vector<2x1x1x128xf32> to vector<2x128xf32>
    %254 = arith.maximumf %251, %253 : vector<2x128xf32>
    %255 = arith.maximumf %249, %254 : vector<2x128xf32>
    %cst_117 = arith.constant 0.000000e+00 : f32
    %256 = vector.broadcast %cst_117 : f32 to vector<2x128xf32>
    %257 = arith.maximumf %255, %256 : vector<2x128xf32>
    %258 = arith.truncf %257 : vector<2x128xf32> to vector<2x128xbf16>
    %c2_118 = arith.constant 2 : index
    %c0_119 = arith.constant 0 : index
    %c0_120 = arith.constant 0 : index
    %259 = vector.load %arg6[%c2_118, %c0_119, %c0_120] : memref<16x128x128xbf16, #tpu.memory_space<vmem>>, vector<1x128x128xbf16>
    %260 = vector.shape_cast %259 : vector<1x128x128xbf16> to vector<128x128xbf16>
    %cst_121 = arith.constant dense<0.000000e+00> : vector<2x128xf32>
    %261 = tpu.matmul %258, %260, %cst_121 {dimension_numbers = #tpu.dot_dimension_numbers<[1], [0], [0], [1], [0, 0, 1, 1], [], []>} : vector<2x128xbf16>, vector<128x128xbf16>, vector<2x128xf32> -> vector<2x128xf32>
    %262 = arith.addf %244, %261 : vector<2x128xf32>
    %263 = vector.extract_strided_slice %204 {offsets = [0, 0, 6, 0], sizes = [2, 1, 1, 128], strides = [1, 1, 1, 1]} : vector<2x8x8x128xf32> to vector<2x1x1x128xf32>
    %264 = vector.shape_cast %263 : vector<2x1x1x128xf32> to vector<2x128xf32>
    %265 = vector.extract_strided_slice %204 {offsets = [0, 0, 7, 0], sizes = [2, 1, 1, 128], strides = [1, 1, 1, 1]} : vector<2x8x8x128xf32> to vector<2x1x1x128xf32>
    %266 = vector.shape_cast %265 : vector<2x1x1x128xf32> to vector<2x128xf32>
    %267 = arith.maximumf %264, %266 : vector<2x128xf32>
    %268 = vector.extract_strided_slice %204 {offsets = [0, 1, 6, 0], sizes = [2, 1, 1, 128], strides = [1, 1, 1, 1]} : vector<2x8x8x128xf32> to vector<2x1x1x128xf32>
    %269 = vector.shape_cast %268 : vector<2x1x1x128xf32> to vector<2x128xf32>
    %270 = vector.extract_strided_slice %204 {offsets = [0, 1, 7, 0], sizes = [2, 1, 1, 128], strides = [1, 1, 1, 1]} : vector<2x8x8x128xf32> to vector<2x1x1x128xf32>
    %271 = vector.shape_cast %270 : vector<2x1x1x128xf32> to vector<2x128xf32>
    %272 = arith.maximumf %269, %271 : vector<2x128xf32>
    %273 = arith.maximumf %267, %272 : vector<2x128xf32>
    %cst_122 = arith.constant 0.000000e+00 : f32
    %274 = vector.broadcast %cst_122 : f32 to vector<2x128xf32>
    %275 = arith.maximumf %273, %274 : vector<2x128xf32>
    %276 = arith.truncf %275 : vector<2x128xf32> to vector<2x128xbf16>
    %c3_123 = arith.constant 3 : index
    %c0_124 = arith.constant 0 : index
    %c0_125 = arith.constant 0 : index
    %277 = vector.load %arg6[%c3_123, %c0_124, %c0_125] : memref<16x128x128xbf16, #tpu.memory_space<vmem>>, vector<1x128x128xbf16>
    %278 = vector.shape_cast %277 : vector<1x128x128xbf16> to vector<128x128xbf16>
    %cst_126 = arith.constant dense<0.000000e+00> : vector<2x128xf32>
    %279 = tpu.matmul %276, %278, %cst_126 {dimension_numbers = #tpu.dot_dimension_numbers<[1], [0], [0], [1], [0, 0, 1, 1], [], []>} : vector<2x128xbf16>, vector<128x128xbf16>, vector<2x128xf32> -> vector<2x128xf32>
    %280 = arith.addf %262, %279 : vector<2x128xf32>
    %281 = vector.extract_strided_slice %204 {offsets = [0, 2, 0, 0], sizes = [2, 1, 1, 128], strides = [1, 1, 1, 1]} : vector<2x8x8x128xf32> to vector<2x1x1x128xf32>
    %282 = vector.shape_cast %281 : vector<2x1x1x128xf32> to vector<2x128xf32>
    %283 = vector.extract_strided_slice %204 {offsets = [0, 2, 1, 0], sizes = [2, 1, 1, 128], strides = [1, 1, 1, 1]} : vector<2x8x8x128xf32> to vector<2x1x1x128xf32>
    %284 = vector.shape_cast %283 : vector<2x1x1x128xf32> to vector<2x128xf32>
    %285 = arith.maximumf %282, %284 : vector<2x128xf32>
    %286 = vector.extract_strided_slice %204 {offsets = [0, 3, 0, 0], sizes = [2, 1, 1, 128], strides = [1, 1, 1, 1]} : vector<2x8x8x128xf32> to vector<2x1x1x128xf32>
    %287 = vector.shape_cast %286 : vector<2x1x1x128xf32> to vector<2x128xf32>
    %288 = vector.extract_strided_slice %204 {offsets = [0, 3, 1, 0], sizes = [2, 1, 1, 128], strides = [1, 1, 1, 1]} : vector<2x8x8x128xf32> to vector<2x1x1x128xf32>
    %289 = vector.shape_cast %288 : vector<2x1x1x128xf32> to vector<2x128xf32>
    %290 = arith.maximumf %287, %289 : vector<2x128xf32>
    %291 = arith.maximumf %285, %290 : vector<2x128xf32>
    %cst_127 = arith.constant 0.000000e+00 : f32
    %292 = vector.broadcast %cst_127 : f32 to vector<2x128xf32>
    %293 = arith.maximumf %291, %292 : vector<2x128xf32>
    %294 = arith.truncf %293 : vector<2x128xf32> to vector<2x128xbf16>
    %c4_128 = arith.constant 4 : index
    %c0_129 = arith.constant 0 : index
    %c0_130 = arith.constant 0 : index
    %295 = vector.load %arg6[%c4_128, %c0_129, %c0_130] : memref<16x128x128xbf16, #tpu.memory_space<vmem>>, vector<1x128x128xbf16>
    %296 = vector.shape_cast %295 : vector<1x128x128xbf16> to vector<128x128xbf16>
    %cst_131 = arith.constant dense<0.000000e+00> : vector<2x128xf32>
    %297 = tpu.matmul %294, %296, %cst_131 {dimension_numbers = #tpu.dot_dimension_numbers<[1], [0], [0], [1], [0, 0, 1, 1], [], []>} : vector<2x128xbf16>, vector<128x128xbf16>, vector<2x128xf32> -> vector<2x128xf32>
    %298 = arith.addf %280, %297 : vector<2x128xf32>
    %299 = vector.extract_strided_slice %204 {offsets = [0, 2, 2, 0], sizes = [2, 1, 1, 128], strides = [1, 1, 1, 1]} : vector<2x8x8x128xf32> to vector<2x1x1x128xf32>
    %300 = vector.shape_cast %299 : vector<2x1x1x128xf32> to vector<2x128xf32>
    %301 = vector.extract_strided_slice %204 {offsets = [0, 2, 3, 0], sizes = [2, 1, 1, 128], strides = [1, 1, 1, 1]} : vector<2x8x8x128xf32> to vector<2x1x1x128xf32>
    %302 = vector.shape_cast %301 : vector<2x1x1x128xf32> to vector<2x128xf32>
    %303 = arith.maximumf %300, %302 : vector<2x128xf32>
    %304 = vector.extract_strided_slice %204 {offsets = [0, 3, 2, 0], sizes = [2, 1, 1, 128], strides = [1, 1, 1, 1]} : vector<2x8x8x128xf32> to vector<2x1x1x128xf32>
    %305 = vector.shape_cast %304 : vector<2x1x1x128xf32> to vector<2x128xf32>
    %306 = vector.extract_strided_slice %204 {offsets = [0, 3, 3, 0], sizes = [2, 1, 1, 128], strides = [1, 1, 1, 1]} : vector<2x8x8x128xf32> to vector<2x1x1x128xf32>
    %307 = vector.shape_cast %306 : vector<2x1x1x128xf32> to vector<2x128xf32>
    %308 = arith.maximumf %305, %307 : vector<2x128xf32>
    %309 = arith.maximumf %303, %308 : vector<2x128xf32>
    %cst_132 = arith.constant 0.000000e+00 : f32
    %310 = vector.broadcast %cst_132 : f32 to vector<2x128xf32>
    %311 = arith.maximumf %309, %310 : vector<2x128xf32>
    %312 = arith.truncf %311 : vector<2x128xf32> to vector<2x128xbf16>
    %c5_133 = arith.constant 5 : index
    %c0_134 = arith.constant 0 : index
    %c0_135 = arith.constant 0 : index
    %313 = vector.load %arg6[%c5_133, %c0_134, %c0_135] : memref<16x128x128xbf16, #tpu.memory_space<vmem>>, vector<1x128x128xbf16>
    %314 = vector.shape_cast %313 : vector<1x128x128xbf16> to vector<128x128xbf16>
    %cst_136 = arith.constant dense<0.000000e+00> : vector<2x128xf32>
    %315 = tpu.matmul %312, %314, %cst_136 {dimension_numbers = #tpu.dot_dimension_numbers<[1], [0], [0], [1], [0, 0, 1, 1], [], []>} : vector<2x128xbf16>, vector<128x128xbf16>, vector<2x128xf32> -> vector<2x128xf32>
    %316 = arith.addf %298, %315 : vector<2x128xf32>
    %317 = vector.extract_strided_slice %204 {offsets = [0, 2, 4, 0], sizes = [2, 1, 1, 128], strides = [1, 1, 1, 1]} : vector<2x8x8x128xf32> to vector<2x1x1x128xf32>
    %318 = vector.shape_cast %317 : vector<2x1x1x128xf32> to vector<2x128xf32>
    %319 = vector.extract_strided_slice %204 {offsets = [0, 2, 5, 0], sizes = [2, 1, 1, 128], strides = [1, 1, 1, 1]} : vector<2x8x8x128xf32> to vector<2x1x1x128xf32>
    %320 = vector.shape_cast %319 : vector<2x1x1x128xf32> to vector<2x128xf32>
    %321 = arith.maximumf %318, %320 : vector<2x128xf32>
    %322 = vector.extract_strided_slice %204 {offsets = [0, 3, 4, 0], sizes = [2, 1, 1, 128], strides = [1, 1, 1, 1]} : vector<2x8x8x128xf32> to vector<2x1x1x128xf32>
    %323 = vector.shape_cast %322 : vector<2x1x1x128xf32> to vector<2x128xf32>
    %324 = vector.extract_strided_slice %204 {offsets = [0, 3, 5, 0], sizes = [2, 1, 1, 128], strides = [1, 1, 1, 1]} : vector<2x8x8x128xf32> to vector<2x1x1x128xf32>
    %325 = vector.shape_cast %324 : vector<2x1x1x128xf32> to vector<2x128xf32>
    %326 = arith.maximumf %323, %325 : vector<2x128xf32>
    %327 = arith.maximumf %321, %326 : vector<2x128xf32>
    %cst_137 = arith.constant 0.000000e+00 : f32
    %328 = vector.broadcast %cst_137 : f32 to vector<2x128xf32>
    %329 = arith.maximumf %327, %328 : vector<2x128xf32>
    %330 = arith.truncf %329 : vector<2x128xf32> to vector<2x128xbf16>
    %c6_138 = arith.constant 6 : index
    %c0_139 = arith.constant 0 : index
    %c0_140 = arith.constant 0 : index
    %331 = vector.load %arg6[%c6_138, %c0_139, %c0_140] : memref<16x128x128xbf16, #tpu.memory_space<vmem>>, vector<1x128x128xbf16>
    %332 = vector.shape_cast %331 : vector<1x128x128xbf16> to vector<128x128xbf16>
    %cst_141 = arith.constant dense<0.000000e+00> : vector<2x128xf32>
    %333 = tpu.matmul %330, %332, %cst_141 {dimension_numbers = #tpu.dot_dimension_numbers<[1], [0], [0], [1], [0, 0, 1, 1], [], []>} : vector<2x128xbf16>, vector<128x128xbf16>, vector<2x128xf32> -> vector<2x128xf32>
    %334 = arith.addf %316, %333 : vector<2x128xf32>
    %335 = vector.extract_strided_slice %204 {offsets = [0, 2, 6, 0], sizes = [2, 1, 1, 128], strides = [1, 1, 1, 1]} : vector<2x8x8x128xf32> to vector<2x1x1x128xf32>
    %336 = vector.shape_cast %335 : vector<2x1x1x128xf32> to vector<2x128xf32>
    %337 = vector.extract_strided_slice %204 {offsets = [0, 2, 7, 0], sizes = [2, 1, 1, 128], strides = [1, 1, 1, 1]} : vector<2x8x8x128xf32> to vector<2x1x1x128xf32>
    %338 = vector.shape_cast %337 : vector<2x1x1x128xf32> to vector<2x128xf32>
    %339 = arith.maximumf %336, %338 : vector<2x128xf32>
    %340 = vector.extract_strided_slice %204 {offsets = [0, 3, 6, 0], sizes = [2, 1, 1, 128], strides = [1, 1, 1, 1]} : vector<2x8x8x128xf32> to vector<2x1x1x128xf32>
    %341 = vector.shape_cast %340 : vector<2x1x1x128xf32> to vector<2x128xf32>
    %342 = vector.extract_strided_slice %204 {offsets = [0, 3, 7, 0], sizes = [2, 1, 1, 128], strides = [1, 1, 1, 1]} : vector<2x8x8x128xf32> to vector<2x1x1x128xf32>
    %343 = vector.shape_cast %342 : vector<2x1x1x128xf32> to vector<2x128xf32>
    %344 = arith.maximumf %341, %343 : vector<2x128xf32>
    %345 = arith.maximumf %339, %344 : vector<2x128xf32>
    %cst_142 = arith.constant 0.000000e+00 : f32
    %346 = vector.broadcast %cst_142 : f32 to vector<2x128xf32>
    %347 = arith.maximumf %345, %346 : vector<2x128xf32>
    %348 = arith.truncf %347 : vector<2x128xf32> to vector<2x128xbf16>
    %c7_143 = arith.constant 7 : index
    %c0_144 = arith.constant 0 : index
    %c0_145 = arith.constant 0 : index
    %349 = vector.load %arg6[%c7_143, %c0_144, %c0_145] : memref<16x128x128xbf16, #tpu.memory_space<vmem>>, vector<1x128x128xbf16>
    %350 = vector.shape_cast %349 : vector<1x128x128xbf16> to vector<128x128xbf16>
    %cst_146 = arith.constant dense<0.000000e+00> : vector<2x128xf32>
    %351 = tpu.matmul %348, %350, %cst_146 {dimension_numbers = #tpu.dot_dimension_numbers<[1], [0], [0], [1], [0, 0, 1, 1], [], []>} : vector<2x128xbf16>, vector<128x128xbf16>, vector<2x128xf32> -> vector<2x128xf32>
    %352 = arith.addf %334, %351 : vector<2x128xf32>
    %353 = vector.extract_strided_slice %204 {offsets = [0, 4, 0, 0], sizes = [2, 1, 1, 128], strides = [1, 1, 1, 1]} : vector<2x8x8x128xf32> to vector<2x1x1x128xf32>
    %354 = vector.shape_cast %353 : vector<2x1x1x128xf32> to vector<2x128xf32>
    %355 = vector.extract_strided_slice %204 {offsets = [0, 4, 1, 0], sizes = [2, 1, 1, 128], strides = [1, 1, 1, 1]} : vector<2x8x8x128xf32> to vector<2x1x1x128xf32>
    %356 = vector.shape_cast %355 : vector<2x1x1x128xf32> to vector<2x128xf32>
    %357 = arith.maximumf %354, %356 : vector<2x128xf32>
    %358 = vector.extract_strided_slice %204 {offsets = [0, 5, 0, 0], sizes = [2, 1, 1, 128], strides = [1, 1, 1, 1]} : vector<2x8x8x128xf32> to vector<2x1x1x128xf32>
    %359 = vector.shape_cast %358 : vector<2x1x1x128xf32> to vector<2x128xf32>
    %360 = vector.extract_strided_slice %204 {offsets = [0, 5, 1, 0], sizes = [2, 1, 1, 128], strides = [1, 1, 1, 1]} : vector<2x8x8x128xf32> to vector<2x1x1x128xf32>
    %361 = vector.shape_cast %360 : vector<2x1x1x128xf32> to vector<2x128xf32>
    %362 = arith.maximumf %359, %361 : vector<2x128xf32>
    %363 = arith.maximumf %357, %362 : vector<2x128xf32>
    %cst_147 = arith.constant 0.000000e+00 : f32
    %364 = vector.broadcast %cst_147 : f32 to vector<2x128xf32>
    %365 = arith.maximumf %363, %364 : vector<2x128xf32>
    %366 = arith.truncf %365 : vector<2x128xf32> to vector<2x128xbf16>
    %c8_148 = arith.constant 8 : index
    %c0_149 = arith.constant 0 : index
    %c0_150 = arith.constant 0 : index
    %367 = vector.load %arg6[%c8_148, %c0_149, %c0_150] : memref<16x128x128xbf16, #tpu.memory_space<vmem>>, vector<1x128x128xbf16>
    %368 = vector.shape_cast %367 : vector<1x128x128xbf16> to vector<128x128xbf16>
    %cst_151 = arith.constant dense<0.000000e+00> : vector<2x128xf32>
    %369 = tpu.matmul %366, %368, %cst_151 {dimension_numbers = #tpu.dot_dimension_numbers<[1], [0], [0], [1], [0, 0, 1, 1], [], []>} : vector<2x128xbf16>, vector<128x128xbf16>, vector<2x128xf32> -> vector<2x128xf32>
    %370 = arith.addf %352, %369 : vector<2x128xf32>
    %371 = vector.extract_strided_slice %204 {offsets = [0, 4, 2, 0], sizes = [2, 1, 1, 128], strides = [1, 1, 1, 1]} : vector<2x8x8x128xf32> to vector<2x1x1x128xf32>
    %372 = vector.shape_cast %371 : vector<2x1x1x128xf32> to vector<2x128xf32>
    %373 = vector.extract_strided_slice %204 {offsets = [0, 4, 3, 0], sizes = [2, 1, 1, 128], strides = [1, 1, 1, 1]} : vector<2x8x8x128xf32> to vector<2x1x1x128xf32>
    %374 = vector.shape_cast %373 : vector<2x1x1x128xf32> to vector<2x128xf32>
    %375 = arith.maximumf %372, %374 : vector<2x128xf32>
    %376 = vector.extract_strided_slice %204 {offsets = [0, 5, 2, 0], sizes = [2, 1, 1, 128], strides = [1, 1, 1, 1]} : vector<2x8x8x128xf32> to vector<2x1x1x128xf32>
    %377 = vector.shape_cast %376 : vector<2x1x1x128xf32> to vector<2x128xf32>
    %378 = vector.extract_strided_slice %204 {offsets = [0, 5, 3, 0], sizes = [2, 1, 1, 128], strides = [1, 1, 1, 1]} : vector<2x8x8x128xf32> to vector<2x1x1x128xf32>
    %379 = vector.shape_cast %378 : vector<2x1x1x128xf32> to vector<2x128xf32>
    %380 = arith.maximumf %377, %379 : vector<2x128xf32>
    %381 = arith.maximumf %375, %380 : vector<2x128xf32>
    %cst_152 = arith.constant 0.000000e+00 : f32
    %382 = vector.broadcast %cst_152 : f32 to vector<2x128xf32>
    %383 = arith.maximumf %381, %382 : vector<2x128xf32>
    %384 = arith.truncf %383 : vector<2x128xf32> to vector<2x128xbf16>
    %c9_153 = arith.constant 9 : index
    %c0_154 = arith.constant 0 : index
    %c0_155 = arith.constant 0 : index
    %385 = vector.load %arg6[%c9_153, %c0_154, %c0_155] : memref<16x128x128xbf16, #tpu.memory_space<vmem>>, vector<1x128x128xbf16>
    %386 = vector.shape_cast %385 : vector<1x128x128xbf16> to vector<128x128xbf16>
    %cst_156 = arith.constant dense<0.000000e+00> : vector<2x128xf32>
    %387 = tpu.matmul %384, %386, %cst_156 {dimension_numbers = #tpu.dot_dimension_numbers<[1], [0], [0], [1], [0, 0, 1, 1], [], []>} : vector<2x128xbf16>, vector<128x128xbf16>, vector<2x128xf32> -> vector<2x128xf32>
    %388 = arith.addf %370, %387 : vector<2x128xf32>
    %389 = vector.extract_strided_slice %204 {offsets = [0, 4, 4, 0], sizes = [2, 1, 1, 128], strides = [1, 1, 1, 1]} : vector<2x8x8x128xf32> to vector<2x1x1x128xf32>
    %390 = vector.shape_cast %389 : vector<2x1x1x128xf32> to vector<2x128xf32>
    %391 = vector.extract_strided_slice %204 {offsets = [0, 4, 5, 0], sizes = [2, 1, 1, 128], strides = [1, 1, 1, 1]} : vector<2x8x8x128xf32> to vector<2x1x1x128xf32>
    %392 = vector.shape_cast %391 : vector<2x1x1x128xf32> to vector<2x128xf32>
    %393 = arith.maximumf %390, %392 : vector<2x128xf32>
    %394 = vector.extract_strided_slice %204 {offsets = [0, 5, 4, 0], sizes = [2, 1, 1, 128], strides = [1, 1, 1, 1]} : vector<2x8x8x128xf32> to vector<2x1x1x128xf32>
    %395 = vector.shape_cast %394 : vector<2x1x1x128xf32> to vector<2x128xf32>
    %396 = vector.extract_strided_slice %204 {offsets = [0, 5, 5, 0], sizes = [2, 1, 1, 128], strides = [1, 1, 1, 1]} : vector<2x8x8x128xf32> to vector<2x1x1x128xf32>
    %397 = vector.shape_cast %396 : vector<2x1x1x128xf32> to vector<2x128xf32>
    %398 = arith.maximumf %395, %397 : vector<2x128xf32>
    %399 = arith.maximumf %393, %398 : vector<2x128xf32>
    %cst_157 = arith.constant 0.000000e+00 : f32
    %400 = vector.broadcast %cst_157 : f32 to vector<2x128xf32>
    %401 = arith.maximumf %399, %400 : vector<2x128xf32>
    %402 = arith.truncf %401 : vector<2x128xf32> to vector<2x128xbf16>
    %c10_158 = arith.constant 10 : index
    %c0_159 = arith.constant 0 : index
    %c0_160 = arith.constant 0 : index
    %403 = vector.load %arg6[%c10_158, %c0_159, %c0_160] : memref<16x128x128xbf16, #tpu.memory_space<vmem>>, vector<1x128x128xbf16>
    %404 = vector.shape_cast %403 : vector<1x128x128xbf16> to vector<128x128xbf16>
    %cst_161 = arith.constant dense<0.000000e+00> : vector<2x128xf32>
    %405 = tpu.matmul %402, %404, %cst_161 {dimension_numbers = #tpu.dot_dimension_numbers<[1], [0], [0], [1], [0, 0, 1, 1], [], []>} : vector<2x128xbf16>, vector<128x128xbf16>, vector<2x128xf32> -> vector<2x128xf32>
    %406 = arith.addf %388, %405 : vector<2x128xf32>
    %407 = vector.extract_strided_slice %204 {offsets = [0, 4, 6, 0], sizes = [2, 1, 1, 128], strides = [1, 1, 1, 1]} : vector<2x8x8x128xf32> to vector<2x1x1x128xf32>
    %408 = vector.shape_cast %407 : vector<2x1x1x128xf32> to vector<2x128xf32>
    %409 = vector.extract_strided_slice %204 {offsets = [0, 4, 7, 0], sizes = [2, 1, 1, 128], strides = [1, 1, 1, 1]} : vector<2x8x8x128xf32> to vector<2x1x1x128xf32>
    %410 = vector.shape_cast %409 : vector<2x1x1x128xf32> to vector<2x128xf32>
    %411 = arith.maximumf %408, %410 : vector<2x128xf32>
    %412 = vector.extract_strided_slice %204 {offsets = [0, 5, 6, 0], sizes = [2, 1, 1, 128], strides = [1, 1, 1, 1]} : vector<2x8x8x128xf32> to vector<2x1x1x128xf32>
    %413 = vector.shape_cast %412 : vector<2x1x1x128xf32> to vector<2x128xf32>
    %414 = vector.extract_strided_slice %204 {offsets = [0, 5, 7, 0], sizes = [2, 1, 1, 128], strides = [1, 1, 1, 1]} : vector<2x8x8x128xf32> to vector<2x1x1x128xf32>
    %415 = vector.shape_cast %414 : vector<2x1x1x128xf32> to vector<2x128xf32>
    %416 = arith.maximumf %413, %415 : vector<2x128xf32>
    %417 = arith.maximumf %411, %416 : vector<2x128xf32>
    %cst_162 = arith.constant 0.000000e+00 : f32
    %418 = vector.broadcast %cst_162 : f32 to vector<2x128xf32>
    %419 = arith.maximumf %417, %418 : vector<2x128xf32>
    %420 = arith.truncf %419 : vector<2x128xf32> to vector<2x128xbf16>
    %c11_163 = arith.constant 11 : index
    %c0_164 = arith.constant 0 : index
    %c0_165 = arith.constant 0 : index
    %421 = vector.load %arg6[%c11_163, %c0_164, %c0_165] : memref<16x128x128xbf16, #tpu.memory_space<vmem>>, vector<1x128x128xbf16>
    %422 = vector.shape_cast %421 : vector<1x128x128xbf16> to vector<128x128xbf16>
    %cst_166 = arith.constant dense<0.000000e+00> : vector<2x128xf32>
    %423 = tpu.matmul %420, %422, %cst_166 {dimension_numbers = #tpu.dot_dimension_numbers<[1], [0], [0], [1], [0, 0, 1, 1], [], []>} : vector<2x128xbf16>, vector<128x128xbf16>, vector<2x128xf32> -> vector<2x128xf32>
    %424 = arith.addf %406, %423 : vector<2x128xf32>
    %425 = vector.extract_strided_slice %204 {offsets = [0, 6, 0, 0], sizes = [2, 1, 1, 128], strides = [1, 1, 1, 1]} : vector<2x8x8x128xf32> to vector<2x1x1x128xf32>
    %426 = vector.shape_cast %425 : vector<2x1x1x128xf32> to vector<2x128xf32>
    %427 = vector.extract_strided_slice %204 {offsets = [0, 6, 1, 0], sizes = [2, 1, 1, 128], strides = [1, 1, 1, 1]} : vector<2x8x8x128xf32> to vector<2x1x1x128xf32>
    %428 = vector.shape_cast %427 : vector<2x1x1x128xf32> to vector<2x128xf32>
    %429 = arith.maximumf %426, %428 : vector<2x128xf32>
    %430 = vector.extract_strided_slice %204 {offsets = [0, 7, 0, 0], sizes = [2, 1, 1, 128], strides = [1, 1, 1, 1]} : vector<2x8x8x128xf32> to vector<2x1x1x128xf32>
    %431 = vector.shape_cast %430 : vector<2x1x1x128xf32> to vector<2x128xf32>
    %432 = vector.extract_strided_slice %204 {offsets = [0, 7, 1, 0], sizes = [2, 1, 1, 128], strides = [1, 1, 1, 1]} : vector<2x8x8x128xf32> to vector<2x1x1x128xf32>
    %433 = vector.shape_cast %432 : vector<2x1x1x128xf32> to vector<2x128xf32>
    %434 = arith.maximumf %431, %433 : vector<2x128xf32>
    %435 = arith.maximumf %429, %434 : vector<2x128xf32>
    %cst_167 = arith.constant 0.000000e+00 : f32
    %436 = vector.broadcast %cst_167 : f32 to vector<2x128xf32>
    %437 = arith.maximumf %435, %436 : vector<2x128xf32>
    %438 = arith.truncf %437 : vector<2x128xf32> to vector<2x128xbf16>
    %c12_168 = arith.constant 12 : index
    %c0_169 = arith.constant 0 : index
    %c0_170 = arith.constant 0 : index
    %439 = vector.load %arg6[%c12_168, %c0_169, %c0_170] : memref<16x128x128xbf16, #tpu.memory_space<vmem>>, vector<1x128x128xbf16>
    %440 = vector.shape_cast %439 : vector<1x128x128xbf16> to vector<128x128xbf16>
    %cst_171 = arith.constant dense<0.000000e+00> : vector<2x128xf32>
    %441 = tpu.matmul %438, %440, %cst_171 {dimension_numbers = #tpu.dot_dimension_numbers<[1], [0], [0], [1], [0, 0, 1, 1], [], []>} : vector<2x128xbf16>, vector<128x128xbf16>, vector<2x128xf32> -> vector<2x128xf32>
    %442 = arith.addf %424, %441 : vector<2x128xf32>
    %443 = vector.extract_strided_slice %204 {offsets = [0, 6, 2, 0], sizes = [2, 1, 1, 128], strides = [1, 1, 1, 1]} : vector<2x8x8x128xf32> to vector<2x1x1x128xf32>
    %444 = vector.shape_cast %443 : vector<2x1x1x128xf32> to vector<2x128xf32>
    %445 = vector.extract_strided_slice %204 {offsets = [0, 6, 3, 0], sizes = [2, 1, 1, 128], strides = [1, 1, 1, 1]} : vector<2x8x8x128xf32> to vector<2x1x1x128xf32>
    %446 = vector.shape_cast %445 : vector<2x1x1x128xf32> to vector<2x128xf32>
    %447 = arith.maximumf %444, %446 : vector<2x128xf32>
    %448 = vector.extract_strided_slice %204 {offsets = [0, 7, 2, 0], sizes = [2, 1, 1, 128], strides = [1, 1, 1, 1]} : vector<2x8x8x128xf32> to vector<2x1x1x128xf32>
    %449 = vector.shape_cast %448 : vector<2x1x1x128xf32> to vector<2x128xf32>
    %450 = vector.extract_strided_slice %204 {offsets = [0, 7, 3, 0], sizes = [2, 1, 1, 128], strides = [1, 1, 1, 1]} : vector<2x8x8x128xf32> to vector<2x1x1x128xf32>
    %451 = vector.shape_cast %450 : vector<2x1x1x128xf32> to vector<2x128xf32>
    %452 = arith.maximumf %449, %451 : vector<2x128xf32>
    %453 = arith.maximumf %447, %452 : vector<2x128xf32>
    %cst_172 = arith.constant 0.000000e+00 : f32
    %454 = vector.broadcast %cst_172 : f32 to vector<2x128xf32>
    %455 = arith.maximumf %453, %454 : vector<2x128xf32>
    %456 = arith.truncf %455 : vector<2x128xf32> to vector<2x128xbf16>
    %c13_173 = arith.constant 13 : index
    %c0_174 = arith.constant 0 : index
    %c0_175 = arith.constant 0 : index
    %457 = vector.load %arg6[%c13_173, %c0_174, %c0_175] : memref<16x128x128xbf16, #tpu.memory_space<vmem>>, vector<1x128x128xbf16>
    %458 = vector.shape_cast %457 : vector<1x128x128xbf16> to vector<128x128xbf16>
    %cst_176 = arith.constant dense<0.000000e+00> : vector<2x128xf32>
    %459 = tpu.matmul %456, %458, %cst_176 {dimension_numbers = #tpu.dot_dimension_numbers<[1], [0], [0], [1], [0, 0, 1, 1], [], []>} : vector<2x128xbf16>, vector<128x128xbf16>, vector<2x128xf32> -> vector<2x128xf32>
    %460 = arith.addf %442, %459 : vector<2x128xf32>
    %461 = vector.extract_strided_slice %204 {offsets = [0, 6, 4, 0], sizes = [2, 1, 1, 128], strides = [1, 1, 1, 1]} : vector<2x8x8x128xf32> to vector<2x1x1x128xf32>
    %462 = vector.shape_cast %461 : vector<2x1x1x128xf32> to vector<2x128xf32>
    %463 = vector.extract_strided_slice %204 {offsets = [0, 6, 5, 0], sizes = [2, 1, 1, 128], strides = [1, 1, 1, 1]} : vector<2x8x8x128xf32> to vector<2x1x1x128xf32>
    %464 = vector.shape_cast %463 : vector<2x1x1x128xf32> to vector<2x128xf32>
    %465 = arith.maximumf %462, %464 : vector<2x128xf32>
    %466 = vector.extract_strided_slice %204 {offsets = [0, 7, 4, 0], sizes = [2, 1, 1, 128], strides = [1, 1, 1, 1]} : vector<2x8x8x128xf32> to vector<2x1x1x128xf32>
    %467 = vector.shape_cast %466 : vector<2x1x1x128xf32> to vector<2x128xf32>
    %468 = vector.extract_strided_slice %204 {offsets = [0, 7, 5, 0], sizes = [2, 1, 1, 128], strides = [1, 1, 1, 1]} : vector<2x8x8x128xf32> to vector<2x1x1x128xf32>
    %469 = vector.shape_cast %468 : vector<2x1x1x128xf32> to vector<2x128xf32>
    %470 = arith.maximumf %467, %469 : vector<2x128xf32>
    %471 = arith.maximumf %465, %470 : vector<2x128xf32>
    %cst_177 = arith.constant 0.000000e+00 : f32
    %472 = vector.broadcast %cst_177 : f32 to vector<2x128xf32>
    %473 = arith.maximumf %471, %472 : vector<2x128xf32>
    %474 = arith.truncf %473 : vector<2x128xf32> to vector<2x128xbf16>
    %c14_178 = arith.constant 14 : index
    %c0_179 = arith.constant 0 : index
    %c0_180 = arith.constant 0 : index
    %475 = vector.load %arg6[%c14_178, %c0_179, %c0_180] : memref<16x128x128xbf16, #tpu.memory_space<vmem>>, vector<1x128x128xbf16>
    %476 = vector.shape_cast %475 : vector<1x128x128xbf16> to vector<128x128xbf16>
    %cst_181 = arith.constant dense<0.000000e+00> : vector<2x128xf32>
    %477 = tpu.matmul %474, %476, %cst_181 {dimension_numbers = #tpu.dot_dimension_numbers<[1], [0], [0], [1], [0, 0, 1, 1], [], []>} : vector<2x128xbf16>, vector<128x128xbf16>, vector<2x128xf32> -> vector<2x128xf32>
    %478 = arith.addf %460, %477 : vector<2x128xf32>
    %479 = vector.extract_strided_slice %204 {offsets = [0, 6, 6, 0], sizes = [2, 1, 1, 128], strides = [1, 1, 1, 1]} : vector<2x8x8x128xf32> to vector<2x1x1x128xf32>
    %480 = vector.shape_cast %479 : vector<2x1x1x128xf32> to vector<2x128xf32>
    %481 = vector.extract_strided_slice %204 {offsets = [0, 6, 7, 0], sizes = [2, 1, 1, 128], strides = [1, 1, 1, 1]} : vector<2x8x8x128xf32> to vector<2x1x1x128xf32>
    %482 = vector.shape_cast %481 : vector<2x1x1x128xf32> to vector<2x128xf32>
    %483 = arith.maximumf %480, %482 : vector<2x128xf32>
    %484 = vector.extract_strided_slice %204 {offsets = [0, 7, 6, 0], sizes = [2, 1, 1, 128], strides = [1, 1, 1, 1]} : vector<2x8x8x128xf32> to vector<2x1x1x128xf32>
    %485 = vector.shape_cast %484 : vector<2x1x1x128xf32> to vector<2x128xf32>
    %486 = vector.extract_strided_slice %204 {offsets = [0, 7, 7, 0], sizes = [2, 1, 1, 128], strides = [1, 1, 1, 1]} : vector<2x8x8x128xf32> to vector<2x1x1x128xf32>
    %487 = vector.shape_cast %486 : vector<2x1x1x128xf32> to vector<2x128xf32>
    %488 = arith.maximumf %485, %487 : vector<2x128xf32>
    %489 = arith.maximumf %483, %488 : vector<2x128xf32>
    %cst_182 = arith.constant 0.000000e+00 : f32
    %490 = vector.broadcast %cst_182 : f32 to vector<2x128xf32>
    %491 = arith.maximumf %489, %490 : vector<2x128xf32>
    %492 = arith.truncf %491 : vector<2x128xf32> to vector<2x128xbf16>
    %c15_183 = arith.constant 15 : index
    %c0_184 = arith.constant 0 : index
    %c0_185 = arith.constant 0 : index
    %493 = vector.load %arg6[%c15_183, %c0_184, %c0_185] : memref<16x128x128xbf16, #tpu.memory_space<vmem>>, vector<1x128x128xbf16>
    %494 = vector.shape_cast %493 : vector<1x128x128xbf16> to vector<128x128xbf16>
    %cst_186 = arith.constant dense<0.000000e+00> : vector<2x128xf32>
    %495 = tpu.matmul %492, %494, %cst_186 {dimension_numbers = #tpu.dot_dimension_numbers<[1], [0], [0], [1], [0, 0, 1, 1], [], []>} : vector<2x128xbf16>, vector<128x128xbf16>, vector<2x128xf32> -> vector<2x128xf32>
    %496 = arith.addf %478, %495 : vector<2x128xf32>
    %cst_187 = arith.constant 0.000000e+00 : f32
    %497 = vector.broadcast %cst_187 : f32 to vector<2x128xf32>
    %498 = arith.maximumf %496, %497 : vector<2x128xf32>
    %499 = arith.truncf %498 : vector<2x128xf32> to vector<2x128xbf16>
    %c0_188 = arith.constant 0 : index
    %c0_189 = arith.constant 0 : index
    %500 = vector.load %arg8[%c0_188, %c0_189] : memref<128x128xbf16, #tpu.memory_space<vmem>>, vector<128x128xbf16>
    %cst_190 = arith.constant dense<0.000000e+00> : vector<2x128xf32>
    %501 = tpu.matmul %499, %500, %cst_190 {dimension_numbers = #tpu.dot_dimension_numbers<[1], [0], [0], [1], [0, 0, 1, 1], [], []>} : vector<2x128xbf16>, vector<128x128xbf16>, vector<2x128xf32> -> vector<2x128xf32>
    %c0_191 = arith.constant 0 : index
    %c0_192 = arith.constant 0 : index
    %502 = vector.load %arg9[%c0_191, %c0_192] : memref<1x128xf32, #tpu.memory_space<vmem>>, vector<1x128xf32>
    %503 = vector.broadcast %502 : vector<1x128xf32> to vector<2x128xf32>
    %504 = arith.addf %501, %503 : vector<2x128xf32>
    %505 = tpu.iota {dimensions = array<i32: 1>} : vector<2x128xi32>
    %c10_i32 = arith.constant 10 : i32
    %506 = vector.broadcast %c10_i32 : i32 to vector<2x128xi32>
    %507 = arith.cmpi slt, %505, %506 : vector<2x128xi32>
    %cst_193 = arith.constant -1.000000e+30 : f32
    %508 = vector.broadcast %cst_193 : f32 to vector<2x128xf32>
    %509 = arith.select %507, %504, %508 : vector<2x128xi1>, vector<2x128xf32>
    %cst_194 = arith.constant dense<0xFF800000> : vector<2xf32>
    %510 = vector.multi_reduction <maximumf>, %509, %cst_194 [1] : vector<2x128xf32> to vector<2xf32>
    %511 = vector.shape_cast %510 : vector<2xf32> to vector<2x1xf32>
    %512 = vector.broadcast %511 : vector<2x1xf32> to vector<2x128xf32>
    %513 = arith.subf %509, %512 : vector<2x128xf32>
    %514 = math.exp %513 : vector<2x128xf32>
    %cst_195 = arith.constant dense<0.000000e+00> : vector<2xf32>
    %515 = vector.multi_reduction <add>, %514, %cst_195 [1] : vector<2x128xf32> to vector<2xf32>
    %516 = vector.shape_cast %515 : vector<2xf32> to vector<2x1xf32>
    %517 = math.log %516 : vector<2x1xf32>
    %518 = vector.broadcast %511 : vector<2x1xf32> to vector<2x128xf32>
    %519 = arith.subf %509, %518 : vector<2x128xf32>
    %520 = vector.broadcast %517 : vector<2x1xf32> to vector<2x128xf32>
    %521 = arith.subf %519, %520 : vector<2x128xf32>
    %c0_196 = arith.constant 0 : index
    %c0_197 = arith.constant 0 : index
    %522 = vector.load %arg10[%c0_196, %c0_197] : memref<2x128xf32, #tpu.memory_space<vmem>>, vector<2x128xf32>
    tpu.vector_store %arg10[%c0_196, %c0_197], %521 {strides = array<i32>} : memref<2x128xf32, #tpu.memory_space<vmem>>, vector<2x128xf32>,
    return
  }
  func.func @transform_0(%arg0: i32) -> (i32, i32, i32) {
    %c0_i32 = arith.constant 0 : i32
    %c0_i32_0 = arith.constant 0 : i32
    %c0_i32_1 = arith.constant 0 : i32
    %c0_i32_2 = arith.constant 0 : i32
    return %c0_i32, %c0_i32_0, %c0_i32_1 : i32, i32, i32
  }
  func.func @transform_1(%arg0: i32) -> (i32, i32) {
    %c0_i32 = arith.constant 0 : i32
    %c0_i32_0 = arith.constant 0 : i32
    %c0_i32_1 = arith.constant 0 : i32
    return %c0_i32, %c0_i32_0 : i32, i32
  }
  func.func @transform_2(%arg0: i32) -> (i32, i32) {
    %c0_i32 = arith.constant 0 : i32
    %c0_i32_0 = arith.constant 0 : i32
    %c0_i32_1 = arith.constant 0 : i32
    return %c0_i32, %c0_i32_0 : i32, i32
  }
  func.func @transform_3(%arg0: i32) -> (i32, i32, i32) {
    %c0_i32 = arith.constant 0 : i32
    %c0_i32_0 = arith.constant 0 : i32
    %c0_i32_1 = arith.constant 0 : i32
    %c0_i32_2 = arith.constant 0 : i32
    return %c0_i32, %c0_i32_0, %c0_i32_1 : i32, i32, i32
  }
  func.func @transform_4(%arg0: i32) -> (i32, i32) {
    %c0_i32 = arith.constant 0 : i32
    %c0_i32_0 = arith.constant 0 : i32
    %c0_i32_1 = arith.constant 0 : i32
    return %c0_i32, %c0_i32_0 : i32, i32
  }
  func.func @transform_5(%arg0: i32) -> (i32, i32, i32) {
    %c0_i32 = arith.constant 0 : i32
    %c0_i32_0 = arith.constant 0 : i32
    %c0_i32_1 = arith.constant 0 : i32
    %c0_i32_2 = arith.constant 0 : i32
    return %c0_i32, %c0_i32_0, %c0_i32_1 : i32, i32, i32
  }
  func.func @transform_6(%arg0: i32) -> (i32, i32) {
    %c0_i32 = arith.constant 0 : i32
    %c0_i32_0 = arith.constant 0 : i32
    %c0_i32_1 = arith.constant 0 : i32
    return %c0_i32, %c0_i32_0 : i32, i32
  }
  func.func @transform_7(%arg0: i32) -> (i32, i32) {
    %c0_i32 = arith.constant 0 : i32
    %c0_i32_0 = arith.constant 0 : i32
    %c0_i32_1 = arith.constant 0 : i32
    return %c0_i32, %c0_i32_0 : i32, i32
  }
  func.func @transform_8(%arg0: i32) -> (i32, i32) {
    %c0_i32 = arith.constant 0 : i32
    %c0_i32_0 = arith.constant 0 : i32
    %c0_i32_1 = arith.constant 0 : i32
    return %c0_i32, %c0_i32_0 : i32, i32
  }
  func.func @transform_9(%arg0: i32) -> (i32, i32) {
    %c0_i32 = arith.constant 0 : i32
    %c0_i32_0 = arith.constant 0 : i32
    %c0_i32_1 = arith.constant 0 : i32
    return %c0_i32, %c0_i32_0 : i32, i32
  }
}

</mosaic_0001>

<llo_original>
// kernel: net_forward.1
$region0: #{net_forward.1}
  #allocation0 [shape = 'u32[]', space=smem, size = 0x4, offset = 0x4, fixed_abs, tag = 'smem constant byte address 0x4 - core index']
  #allocation1 [shape = 'u32[144,128]{1,0:T(1,128)}', space=vmem, size = 0x12000, scoped, tag = 'internal scratch']
  %s0 = inlined_call_operand.vmem [shape: bf16[4,512,32], index: 0, kind: input, shape index: {}]
  %s1 = inlined_call_operand.vmem [shape: bf16[32,128], index: 1, kind: input, shape index: {}]
  %s2 = inlined_call_operand.vmem [shape: f32[1,128], index: 2, kind: input, shape index: {}]
  %s3 = inlined_call_operand.vmem [shape: bf16[25,128,128], index: 3, kind: input, shape index: {}]
  %s4 = inlined_call_operand.vmem [shape: f32[1,128], index: 4, kind: input, shape index: {}]
  %s5 = inlined_call_operand.vmem [shape: bf16[16,128,128], index: 5, kind: input, shape index: {}]
  %s6 = inlined_call_operand.vmem [shape: f32[1,128], index: 6, kind: input, shape index: {}]
  %s7 = inlined_call_operand.vmem [shape: bf16[128,128], index: 7, kind: input, shape index: {}]
  %s8 = inlined_call_operand.vmem [shape: f32[1,128], index: 8, kind: input, shape index: {}]
  %s9 = inlined_call_operand.hbm [shape: f32[2,128], index: 9, kind: output, shape index: {}]
  %s10 = sld [smem:[#allocation0]]
  $region46: #{net_forward.1} parent=0
    _
  %s12 = ssub.s32 1, %s10
  %s13 = scalar_select 0, %s12, %s10
  $region1: #{net_forward.1} parent=0
    #allocation2 [shape = 'u8[1024]{0}', space=vmem, size = 0x400, scoped, tag = 'output window, operand 0, single buffered']
    #allocation3 [shape = 's32[1]{0}', space=sflag, size = 0x4, scoped, tag = 'scoped memory for net_forward.1']
    %14 = vsyncpa [#allocation3], 0
    // Predicated region
    $region2: #{net_forward.1} parent=1 // pred_check
      _
    $region3: #{net_forward.1} parent=1 // pred_check_branch
      %16 = sbr.rel (0) target = $region5
    $region4: #{net_forward.1} parent=1 // pred_region
      _
    $region5: #{net_forward.1} parent=1 // pred_fallthru
      _
    // Predicated region
    $region6: #{net_forward.1} parent=1 // pred_check
      _
    $region7: #{net_forward.1} parent=1 // pred_check_branch
      %18 = sbr.rel (0) target = $region9
    $region8: #{net_forward.1} parent=1 // pred_region
      _
    $region9: #{net_forward.1} parent=1 // pred_fallthru
      _
    // Predicated region
    $region10: #{net_forward.1} parent=1 // pred_check
      _
    $region11: #{net_forward.1} parent=1 // pred_check_branch
      %20 = sbr.rel (0) target = $region13
    $region12: #{net_forward.1} parent=1 // pred_region
      _
    $region13: #{net_forward.1} parent=1 // pred_fallthru
      _
    // Predicated region
    $region14: #{net_forward.1} parent=1 // pred_check
      _
    $region15: #{net_forward.1} parent=1 // pred_check_branch
      %22 = sbr.rel (0) target = $region17
    $region16: #{net_forward.1} parent=1 // pred_region
      _
    $region17: #{net_forward.1} parent=1 // pred_fallthru
      _
    // Predicated region
    $region18: #{net_forward.1} parent=1 // pred_check
      _
    $region19: #{net_forward.1} parent=1 // pred_check_branch
      %24 = sbr.rel (0) target = $region21
    $region20: #{net_forward.1} parent=1 // pred_region
      _
    $region21: #{net_forward.1} parent=1 // pred_fallthru
      _
    // Predicated region
    $region22: #{net_forward.1} parent=1 // pred_check
      _
    $region23: #{net_forward.1} parent=1 // pred_check_branch
      %26 = sbr.rel (0) target = $region25
    $region24: #{net_forward.1} parent=1 // pred_region
      _
    $region25: #{net_forward.1} parent=1 // pred_fallthru
      _
    // Predicated region
    $region26: #{net_forward.1} parent=1 // pred_check
      _
    $region27: #{net_forward.1} parent=1 // pred_check_branch
      %28 = sbr.rel (0) target = $region29
    $region28: #{net_forward.1} parent=1 // pred_region
      _
    $region29: #{net_forward.1} parent=1 // pred_fallthru
      _
    // Predicated region
    $region30: #{net_forward.1} parent=1 // pred_check
      _
    $region31: #{net_forward.1} parent=1 // pred_check_branch
      %30 = sbr.rel (0) target = $region33
    $region32: #{net_forward.1} parent=1 // pred_region
      _
    $region33: #{net_forward.1} parent=1 // pred_fallthru
      _
    // Predicated region
    $region34: #{net_forward.1} parent=1 // pred_check
      _
    $region35: #{net_forward.1} parent=1 // pred_check_branch
      %32 = sbr.rel (0) target = $region37
    $region36: #{net_forward.1} parent=1 // pred_region
      _
    $region37: #{net_forward.1} parent=1 // pred_fallthru
      _
    %v34 = vld [vmem:[%s0] sm:$0xf]
    %v35 = vld [vmem:[%s0 + $0x4] sm:$0xf]
    %v36 = vld [vmem:[%s0 + $0x8] sm:$0xf]
    %v37 = vld [vmem:[%s0 + $0xc] sm:$0xf]
    %v38 = vld [vmem:[%s0 + $0x10] sm:$0xf]
    %v39 = vld [vmem:[%s0 + $0x14] sm:$0xf]
    %v40 = vld [vmem:[%s0 + $0x18] sm:$0xf]
    %v41 = vld [vmem:[%s0 + $0x1c] sm:$0xf]
    %v42 = vld [vmem:[%s0 + $0x20] sm:$0xf]
    %v43 = vld [vmem:[%s0 + $0x24] sm:$0xf]
    %v44 = vld [vmem:[%s0 + $0x28] sm:$0xf]
    %v45 = vld [vmem:[%s0 + $0x2c] sm:$0xf]
    %v46 = vld [vmem:[%s0 + $0x30] sm:$0xf]
    %v47 = vld [vmem:[%s0 + $0x34] sm:$0xf]
    %v48 = vld [vmem:[%s0 + $0x38] sm:$0xf]
    %v49 = vld [vmem:[%s0 + $0x3c] sm:$0xf]
    %v50 = vld [vmem:[%s0 + $0x40] sm:$0xf]
    %v51 = vld [vmem:[%s0 + $0x44] sm:$0xf]
    %v52 = vld [vmem:[%s0 + $0x48] sm:$0xf]
    %v53 = vld [vmem:[%s0 + $0x4c] sm:$0xf]
    %v54 = vld [vmem:[%s0 + $0x50] sm:$0xf]
    %v55 = vld [vmem:[%s0 + $0x54] sm:$0xf]
    %v56 = vld [vmem:[%s0 + $0x58] sm:$0xf]
    %v57 = vld [vmem:[%s0 + $0x5c] sm:$0xf]
    %v58 = vld [vmem:[%s0 + $0x60] sm:$0xf]
    %v59 = vld [vmem:[%s0 + $0x64] sm:$0xf]
    %v60 = vld [vmem:[%s0 + $0x68] sm:$0xf]
    %v61 = vld [vmem:[%s0 + $0x6c] sm:$0xf]
    %v62 = vld [vmem:[%s0 + $0x70] sm:$0xf]
    %v63 = vld [vmem:[%s0 + $0x74] sm:$0xf]
    %v64 = vld [vmem:[%s0 + $0x78] sm:$0xf]
    %v65 = vld [vmem:[%s0 + $0x7c] sm:$0xf]
    %v66 = vld [vmem:[%s0 + $0x80] sm:$0xf]
    %v67 = vld [vmem:[%s0 + $0x84] sm:$0xf]
    %v68 = vld [vmem:[%s0 + $0x88] sm:$0xf]
    %v69 = vld [vmem:[%s0 + $0x8c] sm:$0xf]
    %v70 = vld [vmem:[%s0 + $0x90] sm:$0xf]
    %v71 = vld [vmem:[%s0 + $0x94] sm:$0xf]
    %v72 = vld [vmem:[%s0 + $0x98] sm:$0xf]
    %v73 = vld [vmem:[%s0 + $0x9c] sm:$0xf]
    %v74 = vld [vmem:[%s0 + $0xa0] sm:$0xf]
    %v75 = vld [vmem:[%s0 + $0xa4] sm:$0xf]
    %v76 = vld [vmem:[%s0 + $0xa8] sm:$0xf]
    %v77 = vld [vmem:[%s0 + $0xac] sm:$0xf]
    %v78 = vld [vmem:[%s0 + $0xb0] sm:$0xf]
    %v79 = vld [vmem:[%s0 + $0xb4] sm:$0xf]
    %v80 = vld [vmem:[%s0 + $0xb8] sm:$0xf]
    %v81 = vld [vmem:[%s0 + $0xbc] sm:$0xf]
    %v82 = vld [vmem:[%s0 + $0xc0] sm:$0xf]
    %v83 = vld [vmem:[%s0 + $0xc4] sm:$0xf]
    %v84 = vld [vmem:[%s0 + $0xc8] sm:$0xf]
    %v85 = vld [vmem:[%s0 + $0xcc] sm:$0xf]
    %v86 = vld [vmem:[%s0 + $0xd0] sm:$0xf]
    %v87 = vld [vmem:[%s0 + $0xd4] sm:$0xf]
    %v88 = vld [vmem:[%s0 + $0xd8] sm:$0xf]
    %v89 = vld [vmem:[%s0 + $0xdc] sm:$0xf]
    %v90 = vld [vmem:[%s0 + $0xe0] sm:$0xf]
    %v91 = vld [vmem:[%s0 + $0xe4] sm:$0xf]
    %v92 = vld [vmem:[%s0 + $0xe8] sm:$0xf]
    %v93 = vld [vmem:[%s0 + $0xec] sm:$0xf]
    %v94 = vld [vmem:[%s0 + $0xf0] sm:$0xf]
    %v95 = vld [vmem:[%s0 + $0xf4] sm:$0xf]
    %v96 = vld [vmem:[%s0 + $0xf8] sm:$0xf]
    %v97 = vld [vmem:[%s0 + $0xfc] sm:$0xf]
    %v98 = vld [vmem:[%s1] sm:$0xf]
    %v99 = vld [vmem:[%s1 + $0x4] sm:$0xf]
    %v100 = vld [vmem:[%s1 + $0x8] sm:$0xf]
    %v101 = vld [vmem:[%s1 + $0xc] sm:$0xf]
    %v166 = vunpack.c.l.b16 %v34
    %v167 = vunpack.c.l.b16 %v35
    %v168 = vunpack.c.l.b16 %v36
    %v169 = vunpack.c.l.b16 %v37
    %v170 = vunpack.c.l.b16 %v38
    %v171 = vunpack.c.l.b16 %v39
    %v172 = vunpack.c.l.b16 %v40
    %v173 = vunpack.c.l.b16 %v41
    %v174 = vunpack.c.l.b16 %v42
    %v175 = vunpack.c.l.b16 %v43
    %v176 = vunpack.c.l.b16 %v44
    %v177 = vunpack.c.l.b16 %v45
    %v178 = vunpack.c.l.b16 %v46
    %v179 = vunpack.c.l.b16 %v47
    %v180 = vunpack.c.l.b16 %v48
    %v181 = vunpack.c.l.b16 %v49
    %v182 = vunpack.c.l.b16 %v50
    %v183 = vunpack.c.l.b16 %v51
    %v184 = vunpack.c.l.b16 %v52
    %v185 = vunpack.c.l.b16 %v53
    %v186 = vunpack.c.l.b16 %v54
    %v187 = vunpack.c.l.b16 %v55
    %v188 = vunpack.c.l.b16 %v56
    %v189 = vunpack.c.l.b16 %v57
    %v190 = vunpack.c.l.b16 %v58
    %v191 = vunpack.c.l.b16 %v59
    %v192 = vunpack.c.l.b16 %v60
    %v193 = vunpack.c.l.b16 %v61
    %v194 = vunpack.c.l.b16 %v62
    %v195 = vunpack.c.l.b16 %v63
    %v196 = vunpack.c.l.b16 %v64
    %v197 = vunpack.c.l.b16 %v65
    %v198 = vunpack.c.l.b16 %v66
    %v199 = vunpack.c.l.b16 %v67
    %v200 = vunpack.c.l.b16 %v68
    %v201 = vunpack.c.l.b16 %v69
    %v202 = vunpack.c.l.b16 %v70
    %v203 = vunpack.c.l.b16 %v71
    %v204 = vunpack.c.l.b16 %v72
    %v205 = vunpack.c.l.b16 %v73
    %v206 = vunpack.c.l.b16 %v74
    %v207 = vunpack.c.l.b16 %v75
    %v208 = vunpack.c.l.b16 %v76
    %v209 = vunpack.c.l.b16 %v77
    %v210 = vunpack.c.l.b16 %v78
    %v211 = vunpack.c.l.b16 %v79
    %v212 = vunpack.c.l.b16 %v80
    %v213 = vunpack.c.l.b16 %v81
    %v214 = vunpack.c.l.b16 %v82
    %v215 = vunpack.c.l.b16 %v83
    %v216 = vunpack.c.l.b16 %v84
    %v217 = vunpack.c.l.b16 %v85
    %v218 = vunpack.c.l.b16 %v86
    %v219 = vunpack.c.l.b16 %v87
    %v220 = vunpack.c.l.b16 %v88
    %v221 = vunpack.c.l.b16 %v89
    %v222 = vunpack.c.l.b16 %v90
    %v223 = vunpack.c.l.b16 %v91
    %v224 = vunpack.c.l.b16 %v92
    %v225 = vunpack.c.l.b16 %v93
    %v226 = vunpack.c.l.b16 %v94
    %v227 = vunpack.c.l.b16 %v95
    %v228 = vunpack.c.l.b16 %v96
    %v229 = vunpack.c.l.b16 %v97
    %v230 = vpack.c.b16 %v167, %v166
    %v231 = vpack.c.b16 %v169, %v168
    %v232 = vpack.c.b16 %v171, %v170
    %v233 = vpack.c.b16 %v173, %v172
    %v234 = vpack.c.b16 %v175, %v174
    %v235 = vpack.c.b16 %v177, %v176
    %v236 = vpack.c.b16 %v179, %v178
    %v237 = vpack.c.b16 %v181, %v180
    %v238 = vpack.c.b16 %v183, %v182
    %v239 = vpack.c.b16 %v185, %v184
    %v240 = vpack.c.b16 %v187, %v186
    %v241 = vpack.c.b16 %v189, %v188
    %v242 = vpack.c.b16 %v191, %v190
    %v243 = vpack.c.b16 %v193, %v192
    %v244 = vpack.c.b16 %v195, %v194
    %v245 = vpack.c.b16 %v197, %v196
    %v246 = vpack.c.b16 %v199, %v198
    %v247 = vpack.c.b16 %v201, %v200
    %v248 = vpack.c.b16 %v203, %v202
    %v249 = vpack.c.b16 %v205, %v204
    %v250 = vpack.c.b16 %v207, %v206
    %v251 = vpack.c.b16 %v209, %v208
    %v252 = vpack.c.b16 %v211, %v210
    %v253 = vpack.c.b16 %v213, %v212
    %v254 = vpack.c.b16 %v215, %v214
    %v255 = vpack.c.b16 %v217, %v216
    %v256 = vpack.c.b16 %v219, %v218
    %v257 = vpack.c.b16 %v221, %v220
    %v258 = vpack.c.b16 %v223, %v222
    %v259 = vpack.c.b16 %v225, %v224
    %v260 = vpack.c.b16 %v227, %v226
    %v261 = vpack.c.b16 %v229, %v228
    %v266 = vunpack.c.l.b16 %v98
    %v267 = vunpack.c.l.b16 %v99
    %v268 = vunpack.c.l.b16 %v100
    %v269 = vunpack.c.l.b16 %v101
    %v270 = vpack.c.b16 %v267, %v266
    %v271 = vpack.c.b16 %v269, %v268
    %vm274 = vcmask 261120
    %v276 = vsel %vm274, %v230, 0
    %v279 = vsel %vm274, %v231, 0
    %v282 = vsel %vm274, %v232, 0
    %v285 = vsel %vm274, %v233, 0
    %v288 = vsel %vm274, %v234, 0
    %v291 = vsel %vm274, %v235, 0
    %v294 = vsel %vm274, %v236, 0
    %v297 = vsel %vm274, %v237, 0
    %v300 = vsel %vm274, %v238, 0
    %v303 = vsel %vm274, %v239, 0
    %v306 = vsel %vm274, %v240, 0
    %v309 = vsel %vm274, %v241, 0
    %v312 = vsel %vm274, %v242, 0
    %v315 = vsel %vm274, %v243, 0
    %v318 = vsel %vm274, %v244, 0
    %v321 = vsel %vm274, %v245, 0
    %v324 = vsel %vm274, %v246, 0
    %v327 = vsel %vm274, %v247, 0
    %v330 = vsel %vm274, %v248, 0
    %v333 = vsel %vm274, %v249, 0
    %v336 = vsel %vm274, %v250, 0
    %v339 = vsel %vm274, %v251, 0
    %v342 = vsel %vm274, %v252, 0
    %v345 = vsel %vm274, %v253, 0
    %v348 = vsel %vm274, %v254, 0
    %v351 = vsel %vm274, %v255, 0
    %v354 = vsel %vm274, %v256, 0
    %v357 = vsel %vm274, %v257, 0
    %v360 = vsel %vm274, %v258, 0
    %v363 = vsel %vm274, %v259, 0
    %v366 = vsel %vm274, %v260, 0
    %v369 = vsel %vm274, %v261, 0
    %371 = vmatprep.subr.bf16.mxu0 0
    %372 = vmatpush1.bf16.msra.mxu0 %v270
    %373 = vmatprep.subr.bf16.mxu0 0
    %374 = vmatpush1.bf16.msra.mxu0 %v271
    %375 = vmatprep.subr.bf16.mxu0 0
    %376 = vmatpush1.bf16.msra.mxu0 0
    %377 = vmatprep.subr.bf16.mxu0 0
    %378 = vmatpush1.bf16.msra.mxu0 0
    %379 = vmatprep.subr.bf16.mxu0 0
    %380 = vmatpush1.bf16.msra.mxu0 0
    %381 = vmatprep.subr.bf16.mxu0 0
    %382 = vmatpush1.bf16.msra.mxu0 0
    %383 = vmatprep.subr.bf16.mxu0 0
    %384 = vmatpush1.bf16.msra.mxu0 0
    %385 = vmatprep.subr.bf16.mxu0 0
    %386 = vmatpush1.bf16.msra.mxu0 0
    %387 = vmatprep.subr.bf16.mxu0 0
    %388 = vmatpush1.bf16.msra.mxu0 0
    %389 = vmatprep.subr.bf16.mxu0 0
    %390 = vmatpush1.bf16.msra.mxu0 0
    %391 = vmatprep.subr.bf16.mxu0 0
    %392 = vmatpush1.bf16.msra.mxu0 0
    %393 = vmatprep.subr.bf16.mxu0 0
    %394 = vmatpush1.bf16.msra.mxu0 0
    %395 = vmatprep.subr.bf16.mxu0 0
    %396 = vmatpush1.bf16.msra.mxu0 0
    %397 = vmatprep.subr.bf16.mxu0 0
    %398 = vmatpush1.bf16.msra.mxu0 0
    %399 = vmatprep.subr.bf16.mxu0 0
    %400 = vmatpush1.bf16.msra.mxu0 0
    %401 = vmatprep.subr.bf16.mxu0 0
    %402 = vmatpush1.bf16.msra.mxu0 0
    %403 = vmatprep.mubr.bf16.mxu0 0
    %404 = vmatmul.mubr.bf16.gmra.mrb[0].mxu0 %v276
    %v405 = vpop.f32.mrb[0].mxu0
    %v406 = vadd.f32 0.0, %v405
    %v407 = vpop.f32.mrb[0].mxu0
    %v408 = vpop.f32.mrb[0].mxu0
    %v409 = vadd.f32 0.0, %v408
    %v410 = vpop.f32.mrb[0].mxu0
    %411 = vmatprep.mubr.bf16.mxu0 0
    %412 = vmatmul.mubr.bf16.gmra.mrb[0].mxu0 %v279
    %v413 = vpop.f32.mrb[0].mxu0
    %v414 = vadd.f32 0.0, %v413
    %v415 = vpop.f32.mrb[0].mxu0
    %v416 = vpop.f32.mrb[0].mxu0
    %v417 = vadd.f32 0.0, %v416
    %v418 = vpop.f32.mrb[0].mxu0
    %419 = vmatprep.mubr.bf16.mxu0 0
    %420 = vmatmul.mubr.bf16.gmra.mrb[0].mxu0 %v282
    %v421 = vpop.f32.mrb[0].mxu0
    %v422 = vadd.f32 0.0, %v421
    %v423 = vpop.f32.mrb[0].mxu0
    %v424 = vpop.f32.mrb[0].mxu0
    %v425 = vadd.f32 0.0, %v424
    %v426 = vpop.f32.mrb[0].mxu0
    %427 = vmatprep.mubr.bf16.mxu0 0
    %428 = vmatmul.mubr.bf16.gmra.mrb[0].mxu0 %v285
    %v429 = vpop.f32.mrb[0].mxu0
    %v430 = vadd.f32 0.0, %v429
    %v431 = vpop.f32.mrb[0].mxu0
    %v432 = vpop.f32.mrb[0].mxu0
    %v433 = vadd.f32 0.0, %v432
    %v434 = vpop.f32.mrb[0].mxu0
    %435 = vmatprep.mubr.bf16.mxu0 0
    %436 = vmatmul.mubr.bf16.gmra.mrb[0].mxu0 %v288
    %v437 = vpop.f32.mrb[0].mxu0
    %v438 = vadd.f32 0.0, %v437
    %v439 = vpop.f32.mrb[0].mxu0
    %v440 = vpop.f32.mrb[0].mxu0
    %v441 = vadd.f32 0.0, %v440
    %v442 = vpop.f32.mrb[0].mxu0
    %443 = vmatprep.mubr.bf16.mxu0 0
    %444 = vmatmul.mubr.bf16.gmra.mrb[0].mxu0 %v291
    %v445 = vpop.f32.mrb[0].mxu0
    %v446 = vadd.f32 0.0, %v445
    %v447 = vpop.f32.mrb[0].mxu0
    %v448 = vpop.f32.mrb[0].mxu0
    %v449 = vadd.f32 0.0, %v448
    %v450 = vpop.f32.mrb[0].mxu0
    %451 = vmatprep.mubr.bf16.mxu0 0
    %452 = vmatmul.mubr.bf16.gmra.mrb[0].mxu0 %v294
    %v453 = vpop.f32.mrb[0].mxu0
    %v454 = vadd.f32 0.0, %v453
    %v455 = vpop.f32.mrb[0].mxu0
    %v456 = vpop.f32.mrb[0].mxu0
    %v457 = vadd.f32 0.0, %v456
    %v458 = vpop.f32.mrb[0].mxu0
    %459 = vmatprep.mubr.bf16.mxu0 0
    %460 = vmatmul.mubr.bf16.gmra.mrb[0].mxu0 %v297
    %v461 = vpop.f32.mrb[0].mxu0
    %v462 = vadd.f32 0.0, %v461
    %v463 = vpop.f32.mrb[0].mxu0
    %v464 = vpop.f32.mrb[0].mxu0
    %v465 = vadd.f32 0.0, %v464
    %v466 = vpop.f32.mrb[0].mxu0
    %467 = vmatprep.mubr.bf16.mxu0 0
    %468 = vmatmul.mubr.bf16.gmra.mrb[0].mxu0 %v300
    %v469 = vpop.f32.mrb[0].mxu0
    %v470 = vadd.f32 0.0, %v469
    %v471 = vpop.f32.mrb[0].mxu0
    %v472 = vpop.f32.mrb[0].mxu0
    %v473 = vadd.f32 0.0, %v472
    %v474 = vpop.f32.mrb[0].mxu0
    %475 = vmatprep.mubr.bf16.mxu0 0
    %476 = vmatmul.mubr.bf16.gmra.mrb[0].mxu0 %v303
    %v477 = vpop.f32.mrb[0].mxu0
    %v478 = vadd.f32 0.0, %v477
    %v479 = vpop.f32.mrb[0].mxu0
    %v480 = vpop.f32.mrb[0].mxu0
    %v481 = vadd.f32 0.0, %v480
    %v482 = vpop.f32.mrb[0].mxu0
    %483 = vmatprep.mubr.bf16.mxu0 0
    %484 = vmatmul.mubr.bf16.gmra.mrb[0].mxu0 %v306
    %v485 = vpop.f32.mrb[0].mxu0
    %v486 = vadd.f32 0.0, %v485
    %v487 = vpop.f32.mrb[0].mxu0
    %v488 = vpop.f32.mrb[0].mxu0
    %v489 = vadd.f32 0.0, %v488
    %v490 = vpop.f32.mrb[0].mxu0
    %491 = vmatprep.mubr.bf16.mxu0 0
    %492 = vmatmul.mubr.bf16.gmra.mrb[0].mxu0 %v309
    %v493 = vpop.f32.mrb[0].mxu0
    %v494 = vadd.f32 0.0, %v493
    %v495 = vpop.f32.mrb[0].mxu0
    %v496 = vpop.f32.mrb[0].mxu0
    %v497 = vadd.f32 0.0, %v496
    %v498 = vpop.f32.mrb[0].mxu0
    %499 = vmatprep.mubr.bf16.mxu0 0
    %500 = vmatmul.mubr.bf16.gmra.mrb[0].mxu0 %v312
    %v501 = vpop.f32.mrb[0].mxu0
    %v502 = vpop.f32.mrb[0].mxu0
    %v503 = vpop.f32.mrb[0].mxu0
    %v504 = vpop.f32.mrb[0].mxu0
    %505 = vmatprep.mubr.bf16.mxu0 0
    %506 = vmatmul.mubr.bf16.gmra.mrb[0].mxu0 %v315
    %v507 = vpop.f32.mrb[0].mxu0
    %v508 = vpop.f32.mrb[0].mxu0
    %v509 = vpop.f32.mrb[0].mxu0
    %v510 = vpop.f32.mrb[0].mxu0
    %511 = vmatprep.mubr.bf16.mxu0 0
    %512 = vmatmul.mubr.bf16.gmra.mrb[0].mxu0 %v318
    %v513 = vpop.f32.mrb[0].mxu0
    %v514 = vpop.f32.mrb[0].mxu0
    %v515 = vpop.f32.mrb[0].mxu0
    %v516 = vpop.f32.mrb[0].mxu0
    %517 = vmatprep.mubr.bf16.mxu0 0
    %518 = vmatmul.mubr.bf16.gmra.mrb[0].mxu0 %v321
    %v519 = vpop.f32.mrb[0].mxu0
    %v520 = vpop.f32.mrb[0].mxu0
    %v521 = vpop.f32.mrb[0].mxu0
    %v522 = vpop.f32.mrb[0].mxu0
    %523 = vmatprep.mubr.bf16.mxu0 0
    %524 = vmatmul.mubr.bf16.gmra.mrb[0].mxu0 %v324
    %v525 = vpop.f32.mrb[0].mxu0
    %v526 = vadd.f32 0.0, %v525
    %v527 = vpop.f32.mrb[0].mxu0
    %v528 = vpop.f32.mrb[0].mxu0
    %v529 = vadd.f32 0.0, %v528
    %v530 = vpop.f32.mrb[0].mxu0
    %531 = vmatprep.mubr.bf16.mxu0 0
    %532 = vmatmul.mubr.bf16.gmra.mrb[0].mxu0 %v327
    %v533 = vpop.f32.mrb[0].mxu0
    %v534 = vadd.f32 0.0, %v533
    %v535 = vpop.f32.mrb[0].mxu0
    %v536 = vpop.f32.mrb[0].mxu0
    %v537 = vadd.f32 0.0, %v536
    %v538 = vpop.f32.mrb[0].mxu0
    %539 = vmatprep.mubr.bf16.mxu0 0
    %540 = vmatmul.mubr.bf16.gmra.mrb[0].mxu0 %v330
    %v541 = vpop.f32.mrb[0].mxu0
    %v542 = vadd.f32 0.0, %v541
    %v543 = vpop.f32.mrb[0].mxu0
    %v544 = vpop.f32.mrb[0].mxu0
    %v545 = vadd.f32 0.0, %v544
    %v546 = vpop.f32.mrb[0].mxu0
    %547 = vmatprep.mubr.bf16.mxu0 0
    %548 = vmatmul.mubr.bf16.gmra.mrb[0].mxu0 %v333
    %v549 = vpop.f32.mrb[0].mxu0
    %v550 = vadd.f32 0.0, %v549
    %v551 = vpop.f32.mrb[0].mxu0
    %v552 = vpop.f32.mrb[0].mxu0
    %v553 = vadd.f32 0.0, %v552
    %v554 = vpop.f32.mrb[0].mxu0
    %555 = vmatprep.mubr.bf16.mxu0 0
    %556 = vmatmul.mubr.bf16.gmra.mrb[0].mxu0 %v336
    %v557 = vpop.f32.mrb[0].mxu0
    %v558 = vadd.f32 0.0, %v557
    %v559 = vpop.f32.mrb[0].mxu0
    %v560 = vpop.f32.mrb[0].mxu0
    %v561 = vadd.f32 0.0, %v560
    %v562 = vpop.f32.mrb[0].mxu0
    %563 = vmatprep.mubr.bf16.mxu0 0
    %564 = vmatmul.mubr.bf16.gmra.mrb[0].mxu0 %v339
    %v565 = vpop.f32.mrb[0].mxu0
    %v566 = vadd.f32 0.0, %v565
    %v567 = vpop.f32.mrb[0].mxu0
    %v568 = vpop.f32.mrb[0].mxu0
    %v569 = vadd.f32 0.0, %v568
    %v570 = vpop.f32.mrb[0].mxu0
    %571 = vmatprep.mubr.bf16.mxu0 0
    %572 = vmatmul.mubr.bf16.gmra.mrb[0].mxu0 %v342
    %v573 = vpop.f32.mrb[0].mxu0
    %v574 = vadd.f32 0.0, %v573
    %v575 = vpop.f32.mrb[0].mxu0
    %v576 = vpop.f32.mrb[0].mxu0
    %v577 = vadd.f32 0.0, %v576
    %v578 = vpop.f32.mrb[0].mxu0
    %579 = vmatprep.mubr.bf16.mxu0 0
    %580 = vmatmul.mubr.bf16.gmra.mrb[0].mxu0 %v345
    %v581 = vpop.f32.mrb[0].mxu0
    %v582 = vadd.f32 0.0, %v581
    %v583 = vpop.f32.mrb[0].mxu0
    %v584 = vpop.f32.mrb[0].mxu0
    %v585 = vadd.f32 0.0, %v584
    %v586 = vpop.f32.mrb[0].mxu0
    %587 = vmatprep.mubr.bf16.mxu0 0
    %588 = vmatmul.mubr.bf16.gmra.mrb[0].mxu0 %v348
    %v589 = vpop.f32.mrb[0].mxu0
    %v590 = vadd.f32 0.0, %v589
    %v591 = vpop.f32.mrb[0].mxu0
    %v592 = vpop.f32.mrb[0].mxu0
    %v593 = vadd.f32 0.0, %v592
    %v594 = vpop.f32.mrb[0].mxu0
    %595 = vmatprep.mubr.bf16.mxu0 0
    %596 = vmatmul.mubr.bf16.gmra.mrb[0].mxu0 %v351
    %v597 = vpop.f32.mrb[0].mxu0
    %v598 = vadd.f32 0.0, %v597
    %v599 = vpop.f32.mrb[0].mxu0
    %v600 = vpop.f32.mrb[0].mxu0
    %v601 = vadd.f32 0.0, %v600
    %v602 = vpop.f32.mrb[0].mxu0
    %603 = vmatprep.mubr.bf16.mxu0 0
    %604 = vmatmul.mubr.bf16.gmra.mrb[0].mxu0 %v354
    %v605 = vpop.f32.mrb[0].mxu0
    %v606 = vadd.f32 0.0, %v605
    %v607 = vpop.f32.mrb[0].mxu0
    %v608 = vpop.f32.mrb[0].mxu0
    %v609 = vadd.f32 0.0, %v608
    %v610 = vpop.f32.mrb[0].mxu0
    %611 = vmatprep.mubr.bf16.mxu0 0
    %612 = vmatmul.mubr.bf16.gmra.mrb[0].mxu0 %v357
    %v613 = vpop.f32.mrb[0].mxu0
    %v614 = vadd.f32 0.0, %v613
    %v615 = vpop.f32.mrb[0].mxu0
    %v616 = vpop.f32.mrb[0].mxu0
    %v617 = vadd.f32 0.0, %v616
    %v618 = vpop.f32.mrb[0].mxu0
    %619 = vmatprep.mubr.bf16.mxu0 0
    %620 = vmatmul.mubr.bf16.gmra.mrb[0].mxu0 %v360
    %v621 = vpop.f32.mrb[0].mxu0
    %v622 = vpop.f32.mrb[0].mxu0
    %v623 = vpop.f32.mrb[0].mxu0
    %v624 = vpop.f32.mrb[0].mxu0
    %625 = vmatprep.mubr.bf16.mxu0 0
    %626 = vmatmul.mubr.bf16.gmra.mrb[0].mxu0 %v363
    %v627 = vpop.f32.mrb[0].mxu0
    %v628 = vpop.f32.mrb[0].mxu0
    %v629 = vpop.f32.mrb[0].mxu0
    %v630 = vpop.f32.mrb[0].mxu0
    %631 = vmatprep.mubr.bf16.mxu0 0
    %632 = vmatmul.mubr.bf16.gmra.mrb[0].mxu0 %v366
    %v633 = vpop.f32.mrb[0].mxu0
    %v634 = vpop.f32.mrb[0].mxu0
    %v635 = vpop.f32.mrb[0].mxu0
    %v636 = vpop.f32.mrb[0].mxu0
    %637 = vmatprep.mubr.bf16.mxu0 0
    %638 = vmatmul.mubr.bf16.gmra.mrb[0].mxu0 %v369
    %v639 = vpop.f32.mrb[0].mxu0
    %v640 = vpop.f32.mrb[0].mxu0
    %v641 = vpop.f32.mrb[0].mxu0
    %v642 = vpop.f32.mrb[0].mxu0
    %643 = vdwg.mxu0
    %s644 = scalar_lea.vmem %s0, 256
    %v645 = vld [vmem:[%s644] sm:$0xf]
    %v646 = vld [vmem:[%s644 + $0x4] sm:$0xf]
    %v647 = vld [vmem:[%s644 + $0x8] sm:$0xf]
    %v648 = vld [vmem:[%s644 + $0xc] sm:$0xf]
    %v649 = vld [vmem:[%s644 + $0x10] sm:$0xf]
    %v650 = vld [vmem:[%s644 + $0x14] sm:$0xf]
    %v651 = vld [vmem:[%s644 + $0x18] sm:$0xf]
    %v652 = vld [vmem:[%s644 + $0x1c] sm:$0xf]
    %v653 = vld [vmem:[%s644 + $0x20] sm:$0xf]
    %v654 = vld [vmem:[%s644 + $0x24] sm:$0xf]
    %v655 = vld [vmem:[%s644 + $0x28] sm:$0xf]
    %v656 = vld [vmem:[%s644 + $0x2c] sm:$0xf]
    %v657 = vld [vmem:[%s644 + $0x30] sm:$0xf]
    %v658 = vld [vmem:[%s644 + $0x34] sm:$0xf]
    %v659 = vld [vmem:[%s644 + $0x38] sm:$0xf]
    %v660 = vld [vmem:[%s644 + $0x3c] sm:$0xf]
    %v661 = vld [vmem:[%s644 + $0x40] sm:$0xf]
    %v662 = vld [vmem:[%s644 + $0x44] sm:$0xf]
    %v663 = vld [vmem:[%s644 + $0x48] sm:$0xf]
    %v664 = vld [vmem:[%s644 + $0x4c] sm:$0xf]
    %v665 = vld [vmem:[%s644 + $0x50] sm:$0xf]
    %v666 = vld [vmem:[%s644 + $0x54] sm:$0xf]
    %v667 = vld [vmem:[%s644 + $0x58] sm:$0xf]
    %v668 = vld [vmem:[%s644 + $0x5c] sm:$0xf]
    %v669 = vld [vmem:[%s644 + $0x60] sm:$0xf]
    %v670 = vld [vmem:[%s644 + $0x64] sm:$0xf]
    %v671 = vld [vmem:[%s644 + $0x68] sm:$0xf]
    %v672 = vld [vmem:[%s644 + $0x6c] sm:$0xf]
    %v673 = vld [vmem:[%s644 + $0x70] sm:$0xf]
    %v674 = vld [vmem:[%s644 + $0x74] sm:$0xf]
    %v675 = vld [vmem:[%s644 + $0x78] sm:$0xf]
    %v676 = vld [vmem:[%s644 + $0x7c] sm:$0xf]
    %v677 = vld [vmem:[%s644 + $0x80] sm:$0xf]
    %v678 = vld [vmem:[%s644 + $0x84] sm:$0xf]
    %v679 = vld [vmem:[%s644 + $0x88] sm:$0xf]
    %v680 = vld [vmem:[%s644 + $0x8c] sm:$0xf]
    %v681 = vld [vmem:[%s644 + $0x90] sm:$0xf]
    %v682 = vld [vmem:[%s644 + $0x94] sm:$0xf]
    %v683 = vld [vmem:[%s644 + $0x98] sm:$0xf]
    %v684 = vld [vmem:[%s644 + $0x9c] sm:$0xf]
    %v685 = vld [vmem:[%s644 + $0xa0] sm:$0xf]
    %v686 = vld [vmem:[%s644 + $0xa4] sm:$0xf]
    %v687 = vld [vmem:[%s644 + $0xa8] sm:$0xf]
    %v688 = vld [vmem:[%s644 + $0xac] sm:$0xf]
    %v689 = vld [vmem:[%s644 + $0xb0] sm:$0xf]
    %v690 = vld [vmem:[%s644 + $0xb4] sm:$0xf]
    %v691 = vld [vmem:[%s644 + $0xb8] sm:$0xf]
    %v692 = vld [vmem:[%s644 + $0xbc] sm:$0xf]
    %v693 = vld [vmem:[%s644 + $0xc0] sm:$0xf]
    %v694 = vld [vmem:[%s644 + $0xc4] sm:$0xf]
    %v695 = vld [vmem:[%s644 + $0xc8] sm:$0xf]
    %v696 = vld [vmem:[%s644 + $0xcc] sm:$0xf]
    %v697 = vld [vmem:[%s644 + $0xd0] sm:$0xf]
    %v698 = vld [vmem:[%s644 + $0xd4] sm:$0xf]
    %v699 = vld [vmem:[%s644 + $0xd8] sm:$0xf]
    %v700 = vld [vmem:[%s644 + $0xdc] sm:$0xf]
    %v701 = vld [vmem:[%s644 + $0xe0] sm:$0xf]
    %v702 = vld [vmem:[%s644 + $0xe4] sm:$0xf]
    %v703 = vld [vmem:[%s644 + $0xe8] sm:$0xf]
    %v704 = vld [vmem:[%s644 + $0xec] sm:$0xf]
    %v705 = vld [vmem:[%s644 + $0xf0] sm:$0xf]
    %v706 = vld [vmem:[%s644 + $0xf4] sm:$0xf]
    %v707 = vld [vmem:[%s644 + $0xf8] sm:$0xf]
    %v708 = vld [vmem:[%s644 + $0xfc] sm:$0xf]
    %v773 = vunpack.c.l.b16 %v645
    %v774 = vunpack.c.l.b16 %v646
    %v775 = vunpack.c.l.b16 %v647
    %v776 = vunpack.c.l.b16 %v648
    %v777 = vunpack.c.l.b16 %v649
    %v778 = vunpack.c.l.b16 %v650
    %v779 = vunpack.c.l.b16 %v651
    %v780 = vunpack.c.l.b16 %v652
    %v781 = vunpack.c.l.b16 %v653
    %v782 = vunpack.c.l.b16 %v654
    %v783 = vunpack.c.l.b16 %v655
    %v784 = vunpack.c.l.b16 %v656
    %v785 = vunpack.c.l.b16 %v657
    %v786 = vunpack.c.l.b16 %v658
    %v787 = vunpack.c.l.b16 %v659
    %v788 = vunpack.c.l.b16 %v660
    %v789 = vunpack.c.l.b16 %v661
    %v790 = vunpack.c.l.b16 %v662
    %v791 = vunpack.c.l.b16 %v663
    %v792 = vunpack.c.l.b16 %v664
    %v793 = vunpack.c.l.b16 %v665
    %v794 = vunpack.c.l.b16 %v666
    %v795 = vunpack.c.l.b16 %v667
    %v796 = vunpack.c.l.b16 %v668
    %v797 = vunpack.c.l.b16 %v669
    %v798 = vunpack.c.l.b16 %v670
    %v799 = vunpack.c.l.b16 %v671
    %v800 = vunpack.c.l.b16 %v672
    %v801 = vunpack.c.l.b16 %v673
    %v802 = vunpack.c.l.b16 %v674
    %v803 = vunpack.c.l.b16 %v675
    %v804 = vunpack.c.l.b16 %v676
    %v805 = vunpack.c.l.b16 %v677
    %v806 = vunpack.c.l.b16 %v678
    %v807 = vunpack.c.l.b16 %v679
    %v808 = vunpack.c.l.b16 %v680
    %v809 = vunpack.c.l.b16 %v681
    %v810 = vunpack.c.l.b16 %v682
    %v811 = vunpack.c.l.b16 %v683
    %v812 = vunpack.c.l.b16 %v684
    %v813 = vunpack.c.l.b16 %v685
    %v814 = vunpack.c.l.b16 %v686
    %v815 = vunpack.c.l.b16 %v687
    %v816 = vunpack.c.l.b16 %v688
    %v817 = vunpack.c.l.b16 %v689
    %v818 = vunpack.c.l.b16 %v690
    %v819 = vunpack.c.l.b16 %v691
    %v820 = vunpack.c.l.b16 %v692
    %v821 = vunpack.c.l.b16 %v693
    %v822 = vunpack.c.l.b16 %v694
    %v823 = vunpack.c.l.b16 %v695
    %v824 = vunpack.c.l.b16 %v696
    %v825 = vunpack.c.l.b16 %v697
    %v826 = vunpack.c.l.b16 %v698
    %v827 = vunpack.c.l.b16 %v699
    %v828 = vunpack.c.l.b16 %v700
    %v829 = vunpack.c.l.b16 %v701
    %v830 = vunpack.c.l.b16 %v702
    %v831 = vunpack.c.l.b16 %v703
    %v832 = vunpack.c.l.b16 %v704
    %v833 = vunpack.c.l.b16 %v705
    %v834 = vunpack.c.l.b16 %v706
    %v835 = vunpack.c.l.b16 %v707
    %v836 = vunpack.c.l.b16 %v708
    %v837 = vpack.c.b16 %v774, %v773
    %v838 = vpack.c.b16 %v776, %v775
    %v839 = vpack.c.b16 %v778, %v777
    %v840 = vpack.c.b16 %v780, %v779
    %v841 = vpack.c.b16 %v782, %v781
    %v842 = vpack.c.b16 %v784, %v783
    %v843 = vpack.c.b16 %v786, %v785
    %v844 = vpack.c.b16 %v788, %v787
    %v845 = vpack.c.b16 %v790, %v789
    %v846 = vpack.c.b16 %v792, %v791
    %v847 = vpack.c.b16 %v794, %v793
    %v848 = vpack.c.b16 %v796, %v795
    %v849 = vpack.c.b16 %v798, %v797
    %v850 = vpack.c.b16 %v800, %v799
    %v851 = vpack.c.b16 %v802, %v801
    %v852 = vpack.c.b16 %v804, %v803
    %v853 = vpack.c.b16 %v806, %v805
    %v854 = vpack.c.b16 %v808, %v807
    %v855 = vpack.c.b16 %v810, %v809
    %v856 = vpack.c.b16 %v812, %v811
    %v857 = vpack.c.b16 %v814, %v813
    %v858 = vpack.c.b16 %v816, %v815
    %v859 = vpack.c.b16 %v818, %v817
    %v860 = vpack.c.b16 %v820, %v819
    %v861 = vpack.c.b16 %v822, %v821
    %v862 = vpack.c.b16 %v824, %v823
    %v863 = vpack.c.b16 %v826, %v825
    %v864 = vpack.c.b16 %v828, %v827
    %v865 = vpack.c.b16 %v830, %v829
    %v866 = vpack.c.b16 %v832, %v831
    %v867 = vpack.c.b16 %v834, %v833
    %v868 = vpack.c.b16 %v836, %v835
    %v870 = vsel %vm274, %v837, 0
    %v873 = vsel %vm274, %v838, 0
    %v876 = vsel %vm274, %v839, 0
    %v879 = vsel %vm274, %v840, 0
    %v882 = vsel %vm274, %v841, 0
    %v885 = vsel %vm274, %v842, 0
    %v888 = vsel %vm274, %v843, 0
    %v891 = vsel %vm274, %v844, 0
    %v894 = vsel %vm274, %v845, 0
    %v897 = vsel %vm274, %v846, 0
    %v900 = vsel %vm274, %v847, 0
    %v903 = vsel %vm274, %v848, 0
    %v906 = vsel %vm274, %v849, 0
    %v909 = vsel %vm274, %v850, 0
    %v912 = vsel %vm274, %v851, 0
    %v915 = vsel %vm274, %v852, 0
    %v918 = vsel %vm274, %v853, 0
    %v921 = vsel %vm274, %v854, 0
    %v924 = vsel %vm274, %v855, 0
    %v927 = vsel %vm274, %v856, 0
    %v930 = vsel %vm274, %v857, 0
    %v933 = vsel %vm274, %v858, 0
    %v936 = vsel %vm274, %v859, 0
    %v939 = vsel %vm274, %v860, 0
    %v942 = vsel %vm274, %v861, 0
    %v945 = vsel %vm274, %v862, 0
    %v948 = vsel %vm274, %v863, 0
    %v951 = vsel %vm274, %v864, 0
    %v954 = vsel %vm274, %v865, 0
    %v957 = vsel %vm274, %v866, 0
    %v960 = vsel %vm274, %v867, 0
    %v963 = vsel %vm274, %v868, 0
    %965 = vmatprep.subr.bf16.mxu0 0
    %966 = vmatpush1.bf16.msra.mxu0 %v270
    %967 = vmatprep.subr.bf16.mxu0 0
    %968 = vmatpush1.bf16.msra.mxu0 %v271
    %969 = vmatprep.subr.bf16.mxu0 0
    %970 = vmatpush1.bf16.msra.mxu0 0
    %971 = vmatprep.subr.bf16.mxu0 0
    %972 = vmatpush1.bf16.msra.mxu0 0
    %973 = vmatprep.subr.bf16.mxu0 0
    %974 = vmatpush1.bf16.msra.mxu0 0
    %975 = vmatprep.subr.bf16.mxu0 0
    %976 = vmatpush1.bf16.msra.mxu0 0
    %977 = vmatprep.subr.bf16.mxu0 0
    %978 = vmatpush1.bf16.msra.mxu0 0
    %979 = vmatprep.subr.bf16.mxu0 0
    %980 = vmatpush1.bf16.msra.mxu0 0
    %981 = vmatprep.subr.bf16.mxu0 0
    %982 = vmatpush1.bf16.msra.mxu0 0
    %983 = vmatprep.subr.bf16.mxu0 0
    %984 = vmatpush1.bf16.msra.mxu0 0
    %985 = vmatprep.subr.bf16.mxu0 0
    %986 = vmatpush1.bf16.msra.mxu0 0
    %987 = vmatprep.subr.bf16.mxu0 0
    %988 = vmatpush1.bf16.msra.mxu0 0
    %989 = vmatprep.subr.bf16.mxu0 0
    %990 = vmatpush1.bf16.msra.mxu0 0
    %991 = vmatprep.subr.bf16.mxu0 0
    %992 = vmatpush1.bf16.msra.mxu0 0
    %993 = vmatprep.subr.bf16.mxu0 0
    %994 = vmatpush1.bf16.msra.mxu0 0
    %995 = vmatprep.subr.bf16.mxu0 0
    %996 = vmatpush1.bf16.msra.mxu0 0
    %997 = vmatprep.mubr.bf16.mxu0 0
    %998 = vmatmul.mubr.bf16.gmra.mrb[0].mxu0 %v870
    %v999 = vpop.f32.mrb[0].mxu0
    %v1000 = vadd.f32 0.0, %v999
    %v1001 = vpop.f32.mrb[0].mxu0
    %v1002 = vpop.f32.mrb[0].mxu0
    %v1003 = vadd.f32 0.0, %v1002
    %v1004 = vpop.f32.mrb[0].mxu0
    %1005 = vmatprep.mubr.bf16.mxu0 0
    %1006 = vmatmul.mubr.bf16.gmra.mrb[0].mxu0 %v873
    %v1007 = vpop.f32.mrb[0].mxu0
    %v1008 = vadd.f32 0.0, %v1007
    %v1009 = vpop.f32.mrb[0].mxu0
    %v1010 = vpop.f32.mrb[0].mxu0
    %v1011 = vadd.f32 0.0, %v1010
    %v1012 = vpop.f32.mrb[0].mxu0
    %1013 = vmatprep.mubr.bf16.mxu0 0
    %1014 = vmatmul.mubr.bf16.gmra.mrb[0].mxu0 %v876
    %v1015 = vpop.f32.mrb[0].mxu0
    %v1016 = vadd.f32 0.0, %v1015
    %v1017 = vpop.f32.mrb[0].mxu0
    %v1018 = vpop.f32.mrb[0].mxu0
    %v1019 = vadd.f32 0.0, %v1018
    %v1020 = vpop.f32.mrb[0].mxu0
    %1021 = vmatprep.mubr.bf16.mxu0 0
    %1022 = vmatmul.mubr.bf16.gmra.mrb[0].mxu0 %v879
    %v1023 = vpop.f32.mrb[0].mxu0
    %v1024 = vadd.f32 0.0, %v1023
    %v1025 = vpop.f32.mrb[0].mxu0
    %v1026 = vpop.f32.mrb[0].mxu0
    %v1027 = vadd.f32 0.0, %v1026
    %v1028 = vpop.f32.mrb[0].mxu0
    %1029 = vmatprep.mubr.bf16.mxu0 0
    %1030 = vmatmul.mubr.bf16.gmra.mrb[0].mxu0 %v882
    %v1031 = vpop.f32.mrb[0].mxu0
    %v1032 = vadd.f32 0.0, %v1031
    %v1033 = vpop.f32.mrb[0].mxu0
    %v1034 = vpop.f32.mrb[0].mxu0
    %v1035 = vadd.f32 0.0, %v1034
    %v1036 = vpop.f32.mrb[0].mxu0
    %1037 = vmatprep.mubr.bf16.mxu0 0
    %1038 = vmatmul.mubr.bf16.gmra.mrb[0].mxu0 %v885
    %v1039 = vpop.f32.mrb[0].mxu0
    %v1040 = vadd.f32 0.0, %v1039
    %v1041 = vpop.f32.mrb[0].mxu0
    %v1042 = vpop.f32.mrb[0].mxu0
    %v1043 = vadd.f32 0.0, %v1042
    %v1044 = vpop.f32.mrb[0].mxu0
    %1045 = vmatprep.mubr.bf16.mxu0 0
    %1046 = vmatmul.mubr.bf16.gmra.mrb[0].mxu0 %v888
    %v1047 = vpop.f32.mrb[0].mxu0
    %v1048 = vadd.f32 0.0, %v1047
    %v1049 = vpop.f32.mrb[0].mxu0
    %v1050 = vpop.f32.mrb[0].mxu0
    %v1051 = vadd.f32 0.0, %v1050
    %v1052 = vpop.f32.mrb[0].mxu0
    %1053 = vmatprep.mubr.bf16.mxu0 0
    %1054 = vmatmul.mubr.bf16.gmra.mrb[0].mxu0 %v891
    %v1055 = vpop.f32.mrb[0].mxu0
    %v1056 = vadd.f32 0.0, %v1055
    %v1057 = vpop.f32.mrb[0].mxu0
    %v1058 = vpop.f32.mrb[0].mxu0
    %v1059 = vadd.f32 0.0, %v1058
    %v1060 = vpop.f32.mrb[0].mxu0
    %1061 = vmatprep.mubr.bf16.mxu0 0
    %1062 = vmatmul.mubr.bf16.gmra.mrb[0].mxu0 %v894
    %v1063 = vpop.f32.mrb[0].mxu0
    %v1064 = vadd.f32 0.0, %v1063
    %v1065 = vpop.f32.mrb[0].mxu0
    %v1066 = vpop.f32.mrb[0].mxu0
    %v1067 = vadd.f32 0.0, %v1066
    %v1068 = vpop.f32.mrb[0].mxu0
    %1069 = vmatprep.mubr.bf16.mxu0 0
    %1070 = vmatmul.mubr.bf16.gmra.mrb[0].mxu0 %v897
    %v1071 = vpop.f32.mrb[0].mxu0
    %v1072 = vadd.f32 0.0, %v1071
    %v1073 = vpop.f32.mrb[0].mxu0
    %v1074 = vpop.f32.mrb[0].mxu0
    %v1075 = vadd.f32 0.0, %v1074
    %v1076 = vpop.f32.mrb[0].mxu0
    %1077 = vmatprep.mubr.bf16.mxu0 0
    %1078 = vmatmul.mubr.bf16.gmra.mrb[0].mxu0 %v900
    %v1079 = vpop.f32.mrb[0].mxu0
    %v1080 = vadd.f32 0.0, %v1079
    %v1081 = vpop.f32.mrb[0].mxu0
    %v1082 = vpop.f32.mrb[0].mxu0
    %v1083 = vadd.f32 0.0, %v1082
    %v1084 = vpop.f32.mrb[0].mxu0
    %1085 = vmatprep.mubr.bf16.mxu0 0
    %1086 = vmatmul.mubr.bf16.gmra.mrb[0].mxu0 %v903
    %v1087 = vpop.f32.mrb[0].mxu0
    %v1088 = vadd.f32 0.0, %v1087
    %v1089 = vpop.f32.mrb[0].mxu0
    %v1090 = vpop.f32.mrb[0].mxu0
    %v1091 = vadd.f32 0.0, %v1090
    %v1092 = vpop.f32.mrb[0].mxu0
    %1093 = vmatprep.mubr.bf16.mxu0 0
    %1094 = vmatmul.mubr.bf16.gmra.mrb[0].mxu0 %v906
    %v1095 = vpop.f32.mrb[0].mxu0
    %v1096 = vpop.f32.mrb[0].mxu0
    %v1097 = vpop.f32.mrb[0].mxu0
    %v1098 = vpop.f32.mrb[0].mxu0
    %1099 = vmatprep.mubr.bf16.mxu0 0
    %1100 = vmatmul.mubr.bf16.gmra.mrb[0].mxu0 %v909
    %v1101 = vpop.f32.mrb[0].mxu0
    %v1102 = vpop.f32.mrb[0].mxu0
    %v1103 = vpop.f32.mrb[0].mxu0
    %v1104 = vpop.f32.mrb[0].mxu0
    %1105 = vmatprep.mubr.bf16.mxu0 0
    %1106 = vmatmul.mubr.bf16.gmra.mrb[0].mxu0 %v912
    %v1107 = vpop.f32.mrb[0].mxu0
    %v1108 = vpop.f32.mrb[0].mxu0
    %v1109 = vpop.f32.mrb[0].mxu0
    %v1110 = vpop.f32.mrb[0].mxu0
    %1111 = vmatprep.mubr.bf16.mxu0 0
    %1112 = vmatmul.mubr.bf16.gmra.mrb[0].mxu0 %v915
    %v1113 = vpop.f32.mrb[0].mxu0
    %v1114 = vpop.f32.mrb[0].mxu0
    %v1115 = vpop.f32.mrb[0].mxu0
    %v1116 = vpop.f32.mrb[0].mxu0
    %1117 = vmatprep.mubr.bf16.mxu0 0
    %1118 = vmatmul.mubr.bf16.gmra.mrb[0].mxu0 %v918
    %v1119 = vpop.f32.mrb[0].mxu0
    %v1120 = vadd.f32 0.0, %v1119
    %v1121 = vpop.f32.mrb[0].mxu0
    %v1122 = vpop.f32.mrb[0].mxu0
    %v1123 = vadd.f32 0.0, %v1122
    %v1124 = vpop.f32.mrb[0].mxu0
    %1125 = vmatprep.mubr.bf16.mxu0 0
    %1126 = vmatmul.mubr.bf16.gmra.mrb[0].mxu0 %v921
    %v1127 = vpop.f32.mrb[0].mxu0
    %v1128 = vadd.f32 0.0, %v1127
    %v1129 = vpop.f32.mrb[0].mxu0
    %v1130 = vpop.f32.mrb[0].mxu0
    %v1131 = vadd.f32 0.0, %v1130
    %v1132 = vpop.f32.mrb[0].mxu0
    %1133 = vmatprep.mubr.bf16.mxu0 0
    %1134 = vmatmul.mubr.bf16.gmra.mrb[0].mxu0 %v924
    %v1135 = vpop.f32.mrb[0].mxu0
    %v1136 = vadd.f32 0.0, %v1135
    %v1137 = vpop.f32.mrb[0].mxu0
    %v1138 = vpop.f32.mrb[0].mxu0
    %v1139 = vadd.f32 0.0, %v1138
    %v1140 = vpop.f32.mrb[0].mxu0
    %1141 = vmatprep.mubr.bf16.mxu0 0
    %1142 = vmatmul.mubr.bf16.gmra.mrb[0].mxu0 %v927
    %v1143 = vpop.f32.mrb[0].mxu0
    %v1144 = vadd.f32 0.0, %v1143
    %v1145 = vpop.f32.mrb[0].mxu0
    %v1146 = vpop.f32.mrb[0].mxu0
    %v1147 = vadd.f32 0.0, %v1146
    %v1148 = vpop.f32.mrb[0].mxu0
    %1149 = vmatprep.mubr.bf16.mxu0 0
    %1150 = vmatmul.mubr.bf16.gmra.mrb[0].mxu0 %v930
    %v1151 = vpop.f32.mrb[0].mxu0
    %v1152 = vadd.f32 0.0, %v1151
    %v1153 = vpop.f32.mrb[0].mxu0
    %v1154 = vpop.f32.mrb[0].mxu0
    %v1155 = vadd.f32 0.0, %v1154
    %v1156 = vpop.f32.mrb[0].mxu0
    %1157 = vmatprep.mubr.bf16.mxu0 0
    %1158 = vmatmul.mubr.bf16.gmra.mrb[0].mxu0 %v933
    %v1159 = vpop.f32.mrb[0].mxu0
    %v1160 = vadd.f32 0.0, %v1159
    %v1161 = vpop.f32.mrb[0].mxu0
    %v1162 = vpop.f32.mrb[0].mxu0
    %v1163 = vadd.f32 0.0, %v1162
    %v1164 = vpop.f32.mrb[0].mxu0
    %1165 = vmatprep.mubr.bf16.mxu0 0
    %1166 = vmatmul.mubr.bf16.gmra.mrb[0].mxu0 %v936
    %v1167 = vpop.f32.mrb[0].mxu0
    %v1168 = vadd.f32 0.0, %v1167
    %v1169 = vpop.f32.mrb[0].mxu0
    %v1170 = vpop.f32.mrb[0].mxu0
    %v1171 = vadd.f32 0.0, %v1170
    %v1172 = vpop.f32.mrb[0].mxu0
    %1173 = vmatprep.mubr.bf16.mxu0 0
    %1174 = vmatmul.mubr.bf16.gmra.mrb[0].mxu0 %v939
    %v1175 = vpop.f32.mrb[0].mxu0
    %v1176 = vadd.f32 0.0, %v1175
    %v1177 = vpop.f32.mrb[0].mxu0
    %v1178 = vpop.f32.mrb[0].mxu0
    %v1179 = vadd.f32 0.0, %v1178
    %v1180 = vpop.f32.mrb[0].mxu0
    %1181 = vmatprep.mubr.bf16.mxu0 0
    %1182 = vmatmul.mubr.bf16.gmra.mrb[0].mxu0 %v942
    %v1183 = vpop.f32.mrb[0].mxu0
    %v1184 = vadd.f32 0.0, %v1183
    %v1185 = vpop.f32.mrb[0].mxu0
    %v1186 = vpop.f32.mrb[0].mxu0
    %v1187 = vadd.f32 0.0, %v1186
    %v1188 = vpop.f32.mrb[0].mxu0
    %1189 = vmatprep.mubr.bf16.mxu0 0
    %1190 = vmatmul.mubr.bf16.gmra.mrb[0].mxu0 %v945
    %v1191 = vpop.f32.mrb[0].mxu0
    %v1192 = vadd.f32 0.0, %v1191
    %v1193 = vpop.f32.mrb[0].mxu0
    %v1194 = vpop.f32.mrb[0].mxu0
    %v1195 = vadd.f32 0.0, %v1194
    %v1196 = vpop.f32.mrb[0].mxu0
    %1197 = vmatprep.mubr.bf16.mxu0 0
    %1198 = vmatmul.mubr.bf16.gmra.mrb[0].mxu0 %v948
    %v1199 = vpop.f32.mrb[0].mxu0
    %v1200 = vadd.f32 0.0, %v1199
    %v1201 = vpop.f32.mrb[0].mxu0
    %v1202 = vpop.f32.mrb[0].mxu0
    %v1203 = vadd.f32 0.0, %v1202
    %v1204 = vpop.f32.mrb[0].mxu0
    %1205 = vmatprep.mubr.bf16.mxu0 0
    %1206 = vmatmul.mubr.bf16.gmra.mrb[0].mxu0 %v951
    %v1207 = vpop.f32.mrb[0].mxu0
    %v1208 = vadd.f32 0.0, %v1207
    %v1209 = vpop.f32.mrb[0].mxu0
    %v1210 = vpop.f32.mrb[0].mxu0
    %v1211 = vadd.f32 0.0, %v1210
    %v1212 = vpop.f32.mrb[0].mxu0
    %1213 = vmatprep.mubr.bf16.mxu0 0
    %1214 = vmatmul.mubr.bf16.gmra.mrb[0].mxu0 %v954
    %v1215 = vpop.f32.mrb[0].mxu0
    %v1216 = vpop.f32.mrb[0].mxu0
    %v1217 = vpop.f32.mrb[0].mxu0
    %v1218 = vpop.f32.mrb[0].mxu0
    %1219 = vmatprep.mubr.bf16.mxu0 0
    %1220 = vmatmul.mubr.bf16.gmra.mrb[0].mxu0 %v957
    %v1221 = vpop.f32.mrb[0].mxu0
    %v1222 = vpop.f32.mrb[0].mxu0
    %v1223 = vpop.f32.mrb[0].mxu0
    %v1224 = vpop.f32.mrb[0].mxu0
    %1225 = vmatprep.mubr.bf16.mxu0 0
    %1226 = vmatmul.mubr.bf16.gmra.mrb[0].mxu0 %v960
    %v1227 = vpop.f32.mrb[0].mxu0
    %v1228 = vpop.f32.mrb[0].mxu0
    %v1229 = vpop.f32.mrb[0].mxu0
    %v1230 = vpop.f32.mrb[0].mxu0
    %1231 = vmatprep.mubr.bf16.mxu0 0
    %1232 = vmatmul.mubr.bf16.gmra.mrb[0].mxu0 %v963
    %v1233 = vpop.f32.mrb[0].mxu0
    %v1234 = vpop.f32.mrb[0].mxu0
    %v1235 = vpop.f32.mrb[0].mxu0
    %v1236 = vpop.f32.mrb[0].mxu0
    %1237 = vdwg.mxu0
    %v1238 = vmax.f32 %v406, %v1000
    %v1239 = vmax.f32 %v409, %v1003
    %v1240 = vmax.f32 %v414, %v1008
    %v1241 = vmax.f32 %v417, %v1011
    %v1242 = vmax.f32 %v422, %v1016
    %v1243 = vmax.f32 %v425, %v1019
    %v1244 = vmax.f32 %v430, %v1024
    %v1245 = vmax.f32 %v433, %v1027
    %v1246 = vmax.f32 %v438, %v1032
    %v1247 = vmax.f32 %v441, %v1035
    %v1248 = vmax.f32 %v446, %v1040
    %v1249 = vmax.f32 %v449, %v1043
    %v1250 = vmax.f32 %v454, %v1048
    %v1251 = vmax.f32 %v457, %v1051
    %v1252 = vmax.f32 %v462, %v1056
    %v1253 = vmax.f32 %v465, %v1059
    %v1254 = vmax.f32 %v470, %v1064
    %v1255 = vmax.f32 %v473, %v1067
    %v1256 = vmax.f32 %v478, %v1072
    %v1257 = vmax.f32 %v481, %v1075
    %v1258 = vmax.f32 %v486, %v1080
    %v1259 = vmax.f32 %v489, %v1083
    %v1260 = vmax.f32 %v494, %v1088
    %v1261 = vmax.f32 %v497, %v1091
    %v1262 = vmax.f32 %v526, %v1120
    %v1263 = vmax.f32 %v529, %v1123
    %v1264 = vmax.f32 %v534, %v1128
    %v1265 = vmax.f32 %v537, %v1131
    %v1266 = vmax.f32 %v542, %v1136
    %v1267 = vmax.f32 %v545, %v1139
    %v1268 = vmax.f32 %v550, %v1144
    %v1269 = vmax.f32 %v553, %v1147
    %v1270 = vmax.f32 %v558, %v1152
    %v1271 = vmax.f32 %v561, %v1155
    %v1272 = vmax.f32 %v566, %v1160
    %v1273 = vmax.f32 %v569, %v1163
    %v1274 = vmax.f32 %v574, %v1168
    %v1275 = vmax.f32 %v577, %v1171
    %v1276 = vmax.f32 %v582, %v1176
    %v1277 = vmax.f32 %v585, %v1179
    %v1278 = vmax.f32 %v590, %v1184
    %v1279 = vmax.f32 %v593, %v1187
    %v1280 = vmax.f32 %v598, %v1192
    %v1281 = vmax.f32 %v601, %v1195
    %v1282 = vmax.f32 %v606, %v1200
    %v1283 = vmax.f32 %v609, %v1203
    %v1284 = vmax.f32 %v614, %v1208
    %v1285 = vmax.f32 %v617, %v1211
    %s1286 = scalar_lea.vmem %s0, 512
    %v1287 = vld [vmem:[%s1286] sm:$0xf]
    %v1288 = vld [vmem:[%s1286 + $0x4] sm:$0xf]
    %v1289 = vld [vmem:[%s1286 + $0x8] sm:$0xf]
    %v1290 = vld [vmem:[%s1286 + $0xc] sm:$0xf]
    %v1291 = vld [vmem:[%s1286 + $0x10] sm:$0xf]
    %v1292 = vld [vmem:[%s1286 + $0x14] sm:$0xf]
    %v1293 = vld [vmem:[%s1286 + $0x18] sm:$0xf]
    %v1294 = vld [vmem:[%s1286 + $0x1c] sm:$0xf]
    %v1295 = vld [vmem:[%s1286 + $0x20] sm:$0xf]
    %v1296 = vld [vmem:[%s1286 + $0x24] sm:$0xf]
    %v1297 = vld [vmem:[%s1286 + $0x28] sm:$0xf]
    %v1298 = vld [vmem:[%s1286 + $0x2c] sm:$0xf]
    %v1299 = vld [vmem:[%s1286 + $0x30] sm:$0xf]
    %v1300 = vld [vmem:[%s1286 + $0x34] sm:$0xf]
    %v1301 = vld [vmem:[%s1286 + $0x38] sm:$0xf]
    %v1302 = vld [vmem:[%s1286 + $0x3c] sm:$0xf]
    %v1303 = vld [vmem:[%s1286 + $0x40] sm:$0xf]
    %v1304 = vld [vmem:[%s1286 + $0x44] sm:$0xf]
    %v1305 = vld [vmem:[%s1286 + $0x48] sm:$0xf]
    %v1306 = vld [vmem:[%s1286 + $0x4c] sm:$0xf]
    %v1307 = vld [vmem:[%s1286 + $0x50] sm:$0xf]
    %v1308 = vld [vmem:[%s1286 + $0x54] sm:$0xf]
    %v1309 = vld [vmem:[%s1286 + $0x58] sm:$0xf]
    %v1310 = vld [vmem:[%s1286 + $0x5c] sm:$0xf]
    %v1311 = vld [vmem:[%s1286 + $0x60] sm:$0xf]
    %v1312 = vld [vmem:[%s1286 + $0x64] sm:$0xf]
    %v1313 = vld [vmem:[%s1286 + $0x68] sm:$0xf]
    %v1314 = vld [vmem:[%s1286 + $0x6c] sm:$0xf]
    %v1315 = vld [vmem:[%s1286 + $0x70] sm:$0xf]
    %v1316 = vld [vmem:[%s1286 + $0x74] sm:$0xf]
    %v1317 = vld [vmem:[%s1286 + $0x78] sm:$0xf]
    %v1318 = vld [vmem:[%s1286 + $0x7c] sm:$0xf]
    %v1319 = vld [vmem:[%s1286 + $0x80] sm:$0xf]
    %v1320 = vld [vmem:[%s1286 + $0x84] sm:$0xf]
    %v1321 = vld [vmem:[%s1286 + $0x88] sm:$0xf]
    %v1322 = vld [vmem:[%s1286 + $0x8c] sm:$0xf]
    %v1323 = vld [vmem:[%s1286 + $0x90] sm:$0xf]
    %v1324 = vld [vmem:[%s1286 + $0x94] sm:$0xf]
    %v1325 = vld [vmem:[%s1286 + $0x98] sm:$0xf]
    %v1326 = vld [vmem:[%s1286 + $0x9c] sm:$0xf]
    %v1327 = vld [vmem:[%s1286 + $0xa0] sm:$0xf]
    %v1328 = vld [vmem:[%s1286 + $0xa4] sm:$0xf]
    %v1329 = vld [vmem:[%s1286 + $0xa8] sm:$0xf]
    %v1330 = vld [vmem:[%s1286 + $0xac] sm:$0xf]
    %v1331 = vld [vmem:[%s1286 + $0xb0] sm:$0xf]
    %v1332 = vld [vmem:[%s1286 + $0xb4] sm:$0xf]
    %v1333 = vld [vmem:[%s1286 + $0xb8] sm:$0xf]
    %v1334 = vld [vmem:[%s1286 + $0xbc] sm:$0xf]
    %v1335 = vld [vmem:[%s1286 + $0xc0] sm:$0xf]
    %v1336 = vld [vmem:[%s1286 + $0xc4] sm:$0xf]
    %v1337 = vld [vmem:[%s1286 + $0xc8] sm:$0xf]
    %v1338 = vld [vmem:[%s1286 + $0xcc] sm:$0xf]
    %v1339 = vld [vmem:[%s1286 + $0xd0] sm:$0xf]
    %v1340 = vld [vmem:[%s1286 + $0xd4] sm:$0xf]
    %v1341 = vld [vmem:[%s1286 + $0xd8] sm:$0xf]
    %v1342 = vld [vmem:[%s1286 + $0xdc] sm:$0xf]
    %v1343 = vld [vmem:[%s1286 + $0xe0] sm:$0xf]
    %v1344 = vld [vmem:[%s1286 + $0xe4] sm:$0xf]
    %v1345 = vld [vmem:[%s1286 + $0xe8] sm:$0xf]
    %v1346 = vld [vmem:[%s1286 + $0xec] sm:$0xf]
    %v1347 = vld [vmem:[%s1286 + $0xf0] sm:$0xf]
    %v1348 = vld [vmem:[%s1286 + $0xf4] sm:$0xf]
    %v1349 = vld [vmem:[%s1286 + $0xf8] sm:$0xf]
    %v1350 = vld [vmem:[%s1286 + $0xfc] sm:$0xf]
    %v1415 = vunpack.c.l.b16 %v1287
    %v1416 = vunpack.c.l.b16 %v1288
    %v1417 = vunpack.c.l.b16 %v1289
    %v1418 = vunpack.c.l.b16 %v1290
    %v1419 = vunpack.c.l.b16 %v1291
    %v1420 = vunpack.c.l.b16 %v1292
    %v1421 = vunpack.c.l.b16 %v1293
    %v1422 = vunpack.c.l.b16 %v1294
    %v1423 = vunpack.c.l.b16 %v1295
    %v1424 = vunpack.c.l.b16 %v1296
    %v1425 = vunpack.c.l.b16 %v1297
    %v1426 = vunpack.c.l.b16 %v1298
    %v1427 = vunpack.c.l.b16 %v1299
    %v1428 = vunpack.c.l.b16 %v1300
    %v1429 = vunpack.c.l.b16 %v1301
    %v1430 = vunpack.c.l.b16 %v1302
    %v1431 = vunpack.c.l.b16 %v1303
    %v1432 = vunpack.c.l.b16 %v1304
    %v1433 = vunpack.c.l.b16 %v1305
    %v1434 = vunpack.c.l.b16 %v1306
    %v1435 = vunpack.c.l.b16 %v1307
    %v1436 = vunpack.c.l.b16 %v1308
    %v1437 = vunpack.c.l.b16 %v1309
    %v1438 = vunpack.c.l.b16 %v1310
    %v1439 = vunpack.c.l.b16 %v1311
    %v1440 = vunpack.c.l.b16 %v1312
    %v1441 = vunpack.c.l.b16 %v1313
    %v1442 = vunpack.c.l.b16 %v1314
    %v1443 = vunpack.c.l.b16 %v1315
    %v1444 = vunpack.c.l.b16 %v1316
    %v1445 = vunpack.c.l.b16 %v1317
    %v1446 = vunpack.c.l.b16 %v1318
    %v1447 = vunpack.c.l.b16 %v1319
    %v1448 = vunpack.c.l.b16 %v1320
    %v1449 = vunpack.c.l.b16 %v1321
    %v1450 = vunpack.c.l.b16 %v1322
    %v1451 = vunpack.c.l.b16 %v1323
    %v1452 = vunpack.c.l.b16 %v1324
    %v1453 = vunpack.c.l.b16 %v1325
    %v1454 = vunpack.c.l.b16 %v1326
    %v1455 = vunpack.c.l.b16 %v1327
    %v1456 = vunpack.c.l.b16 %v1328
    %v1457 = vunpack.c.l.b16 %v1329
    %v1458 = vunpack.c.l.b16 %v1330
    %v1459 = vunpack.c.l.b16 %v1331
    %v1460 = vunpack.c.l.b16 %v1332
    %v1461 = vunpack.c.l.b16 %v1333
    %v1462 = vunpack.c.l.b16 %v1334
    %v1463 = vunpack.c.l.b16 %v1335
    %v1464 = vunpack.c.l.b16 %v1336
    %v1465 = vunpack.c.l.b16 %v1337
    %v1466 = vunpack.c.l.b16 %v1338
    %v1467 = vunpack.c.l.b16 %v1339
    %v1468 = vunpack.c.l.b16 %v1340
    %v1469 = vunpack.c.l.b16 %v1341
    %v1470 = vunpack.c.l.b16 %v1342
    %v1471 = vunpack.c.l.b16 %v1343
    %v1472 = vunpack.c.l.b16 %v1344
    %v1473 = vunpack.c.l.b16 %v1345
    %v1474 = vunpack.c.l.b16 %v1346
    %v1475 = vunpack.c.l.b16 %v1347
    %v1476 = vunpack.c.l.b16 %v1348
    %v1477 = vunpack.c.l.b16 %v1349
    %v1478 = vunpack.c.l.b16 %v1350
    %v1479 = vpack.c.b16 %v1416, %v1415
    %v1480 = vpack.c.b16 %v1418, %v1417
    %v1481 = vpack.c.b16 %v1420, %v1419
    %v1482 = vpack.c.b16 %v1422, %v1421
    %v1483 = vpack.c.b16 %v1424, %v1423
    %v1484 = vpack.c.b16 %v1426, %v1425
    %v1485 = vpack.c.b16 %v1428, %v1427
    %v1486 = vpack.c.b16 %v1430, %v1429
    %v1487 = vpack.c.b16 %v1432, %v1431
    %v1488 = vpack.c.b16 %v1434, %v1433
    %v1489 = vpack.c.b16 %v1436, %v1435
    %v1490 = vpack.c.b16 %v1438, %v1437
    %v1491 = vpack.c.b16 %v1440, %v1439
    %v1492 = vpack.c.b16 %v1442, %v1441
    %v1493 = vpack.c.b16 %v1444, %v1443
    %v1494 = vpack.c.b16 %v1446, %v1445
    %v1495 = vpack.c.b16 %v1448, %v1447
    %v1496 = vpack.c.b16 %v1450, %v1449
    %v1497 = vpack.c.b16 %v1452, %v1451
    %v1498 = vpack.c.b16 %v1454, %v1453
    %v1499 = vpack.c.b16 %v1456, %v1455
    %v1500 = vpack.c.b16 %v1458, %v1457
    %v1501 = vpack.c.b16 %v1460, %v1459
    %v1502 = vpack.c.b16 %v1462, %v1461
    %v1503 = vpack.c.b16 %v1464, %v1463
    %v1504 = vpack.c.b16 %v1466, %v1465
    %v1505 = vpack.c.b16 %v1468, %v1467
    %v1506 = vpack.c.b16 %v1470, %v1469
    %v1507 = vpack.c.b16 %v1472, %v1471
    %v1508 = vpack.c.b16 %v1474, %v1473
    %v1509 = vpack.c.b16 %v1476, %v1475
    %v1510 = vpack.c.b16 %v1478, %v1477
    %v1512 = vsel %vm274, %v1479, 0
    %v1515 = vsel %vm274, %v1480, 0
    %v1518 = vsel %vm274, %v1481, 0
    %v1521 = vsel %vm274, %v1482, 0
    %v1524 = vsel %vm274, %v1483, 0
    %v1527 = vsel %vm274, %v1484, 0
    %v1530 = vsel %vm274, %v1485, 0
    %v1533 = vsel %vm274, %v1486, 0
    %v1536 = vsel %vm274, %v1487, 0
    %v1539 = vsel %vm274, %v1488, 0
    %v1542 = vsel %vm274, %v1489, 0
    %v1545 = vsel %vm274, %v1490, 0
    %v1548 = vsel %vm274, %v1491, 0
    %v1551 = vsel %vm274, %v1492, 0
    %v1554 = vsel %vm274, %v1493, 0
    %v1557 = vsel %vm274, %v1494, 0
    %v1560 = vsel %vm274, %v1495, 0
    %v1563 = vsel %vm274, %v1496, 0
    %v1566 = vsel %vm274, %v1497, 0
    %v1569 = vsel %vm274, %v1498, 0
    %v1572 = vsel %vm274, %v1499, 0
    %v1575 = vsel %vm274, %v1500, 0
    %v1578 = vsel %vm274, %v1501, 0
    %v1581 = vsel %vm274, %v1502, 0
    %v1584 = vsel %vm274, %v1503, 0
    %v1587 = vsel %vm274, %v1504, 0
    %v1590 = vsel %vm274, %v1505, 0
    %v1593 = vsel %vm274, %v1506, 0
    %v1596 = vsel %vm274, %v1507, 0
    %v1599 = vsel %vm274, %v1508, 0
    %v1602 = vsel %vm274, %v1509, 0
    %v1605 = vsel %vm274, %v1510, 0
    %1607 = vmatprep.subr.bf16.mxu0 0
    %1608 = vmatpush1.bf16.msra.mxu0 %v270
    %1609 = vmatprep.subr.bf16.mxu0 0
    %1610 = vmatpush1.bf16.msra.mxu0 %v271
    %1611 = vmatprep.subr.bf16.mxu0 0
    %1612 = vmatpush1.bf16.msra.mxu0 0
    %1613 = vmatprep.subr.bf16.mxu0 0
    %1614 = vmatpush1.bf16.msra.mxu0 0
    %1615 = vmatprep.subr.bf16.mxu0 0
    %1616 = vmatpush1.bf16.msra.mxu0 0
    %1617 = vmatprep.subr.bf16.mxu0 0
    %1618 = vmatpush1.bf16.msra.mxu0 0
    %1619 = vmatprep.subr.bf16.mxu0 0
    %1620 = vmatpush1.bf16.msra.mxu0 0
    %1621 = vmatprep.subr.bf16.mxu0 0
    %1622 = vmatpush1.bf16.msra.mxu0 0
    %1623 = vmatprep.subr.bf16.mxu0 0
    %1624 = vmatpush1.bf16.msra.mxu0 0
    %1625 = vmatprep.subr.bf16.mxu0 0
    %1626 = vmatpush1.bf16.msra.mxu0 0
    %1627 = vmatprep.subr.bf16.mxu0 0
    %1628 = vmatpush1.bf16.msra.mxu0 0
    %1629 = vmatprep.subr.bf16.mxu0 0
    %1630 = vmatpush1.bf16.msra.mxu0 0
    %1631 = vmatprep.subr.bf16.mxu0 0
    %1632 = vmatpush1.bf16.msra.mxu0 0
    %1633 = vmatprep.subr.bf16.mxu0 0
    %1634 = vmatpush1.bf16.msra.mxu0 0
    %1635 = vmatprep.subr.bf16.mxu0 0
    %1636 = vmatpush1.bf16.msra.mxu0 0
    %1637 = vmatprep.subr.bf16.mxu0 0
    %1638 = vmatpush1.bf16.msra.mxu0 0
    %1639 = vmatprep.mubr.bf16.mxu0 0
    %1640 = vmatmul.mubr.bf16.gmra.mrb[0].mxu0 %v1512
    %v1641 = vpop.f32.mrb[0].mxu0
    %v1642 = vadd.f32 0.0, %v1641
    %v1643 = vpop.f32.mrb[0].mxu0
    %v1644 = vpop.f32.mrb[0].mxu0
    %v1645 = vadd.f32 0.0, %v1644
    %v1646 = vpop.f32.mrb[0].mxu0
    %1647 = vmatprep.mubr.bf16.mxu0 0
    %1648 = vmatmul.mubr.bf16.gmra.mrb[0].mxu0 %v1515
    %v1649 = vpop.f32.mrb[0].mxu0
    %v1650 = vadd.f32 0.0, %v1649
    %v1651 = vpop.f32.mrb[0].mxu0
    %v1652 = vpop.f32.mrb[0].mxu0
    %v1653 = vadd.f32 0.0, %v1652
    %v1654 = vpop.f32.mrb[0].mxu0
    %1655 = vmatprep.mubr.bf16.mxu0 0
    %1656 = vmatmul.mubr.bf16.gmra.mrb[0].mxu0 %v1518
    %v1657 = vpop.f32.mrb[0].mxu0
    %v1658 = vadd.f32 0.0, %v1657
    %v1659 = vpop.f32.mrb[0].mxu0
    %v1660 = vpop.f32.mrb[0].mxu0
    %v1661 = vadd.f32 0.0, %v1660
    %v1662 = vpop.f32.mrb[0].mxu0
    %1663 = vmatprep.mubr.bf16.mxu0 0
    %1664 = vmatmul.mubr.bf16.gmra.mrb[0].mxu0 %v1521
    %v1665 = vpop.f32.mrb[0].mxu0
    %v1666 = vadd.f32 0.0, %v1665
    %v1667 = vpop.f32.mrb[0].mxu0
    %v1668 = vpop.f32.mrb[0].mxu0
    %v1669 = vadd.f32 0.0, %v1668
    %v1670 = vpop.f32.mrb[0].mxu0
    %1671 = vmatprep.mubr.bf16.mxu0 0
    %1672 = vmatmul.mubr.bf16.gmra.mrb[0].mxu0 %v1524
    %v1673 = vpop.f32.mrb[0].mxu0
    %v1674 = vadd.f32 0.0, %v1673
    %v1675 = vpop.f32.mrb[0].mxu0
    %v1676 = vpop.f32.mrb[0].mxu0
    %v1677 = vadd.f32 0.0, %v1676
    %v1678 = vpop.f32.mrb[0].mxu0
    %1679 = vmatprep.mubr.bf16.mxu0 0
    %1680 = vmatmul.mubr.bf16.gmra.mrb[0].mxu0 %v1527
    %v1681 = vpop.f32.mrb[0].mxu0
    %v1682 = vadd.f32 0.0, %v1681
    %v1683 = vpop.f32.mrb[0].mxu0
    %v1684 = vpop.f32.mrb[0].mxu0
    %v1685 = vadd.f32 0.0, %v1684
    %v1686 = vpop.f32.mrb[0].mxu0
    %1687 = vmatprep.mubr.bf16.mxu0 0
    %1688 = vmatmul.mubr.bf16.gmra.mrb[0].mxu0 %v1530
    %v1689 = vpop.f32.mrb[0].mxu0
    %v1690 = vadd.f32 0.0, %v1689
    %v1691 = vpop.f32.mrb[0].mxu0
    %v1692 = vpop.f32.mrb[0].mxu0
    %v1693 = vadd.f32 0.0, %v1692
    %v1694 = vpop.f32.mrb[0].mxu0
    %1695 = vmatprep.mubr.bf16.mxu0 0
    %1696 = vmatmul.mubr.bf16.gmra.mrb[0].mxu0 %v1533
    %v1697 = vpop.f32.mrb[0].mxu0
    %v1698 = vadd.f32 0.0, %v1697
    %v1699 = vpop.f32.mrb[0].mxu0
    %v1700 = vpop.f32.mrb[0].mxu0
    %v1701 = vadd.f32 0.0, %v1700
    %v1702 = vpop.f32.mrb[0].mxu0
    %1703 = vmatprep.mubr.bf16.mxu0 0
    %1704 = vmatmul.mubr.bf16.gmra.mrb[0].mxu0 %v1536
    %v1705 = vpop.f32.mrb[0].mxu0
    %v1706 = vadd.f32 0.0, %v1705
    %v1707 = vpop.f32.mrb[0].mxu0
    %v1708 = vpop.f32.mrb[0].mxu0
    %v1709 = vadd.f32 0.0, %v1708
    %v1710 = vpop.f32.mrb[0].mxu0
    %1711 = vmatprep.mubr.bf16.mxu0 0
    %1712 = vmatmul.mubr.bf16.gmra.mrb[0].mxu0 %v1539
    %v1713 = vpop.f32.mrb[0].mxu0
    %v1714 = vadd.f32 0.0, %v1713
    %v1715 = vpop.f32.mrb[0].mxu0
    %v1716 = vpop.f32.mrb[0].mxu0
    %v1717 = vadd.f32 0.0, %v1716
    %v1718 = vpop.f32.mrb[0].mxu0
    %1719 = vmatprep.mubr.bf16.mxu0 0
    %1720 = vmatmul.mubr.bf16.gmra.mrb[0].mxu0 %v1542
    %v1721 = vpop.f32.mrb[0].mxu0
    %v1722 = vadd.f32 0.0, %v1721
    %v1723 = vpop.f32.mrb[0].mxu0
    %v1724 = vpop.f32.mrb[0].mxu0
    %v1725 = vadd.f32 0.0, %v1724
    %v1726 = vpop.f32.mrb[0].mxu0
    %1727 = vmatprep.mubr.bf16.mxu0 0
    %1728 = vmatmul.mubr.bf16.gmra.mrb[0].mxu0 %v1545
    %v1729 = vpop.f32.mrb[0].mxu0
    %v1730 = vadd.f32 0.0, %v1729
    %v1731 = vpop.f32.mrb[0].mxu0
    %v1732 = vpop.f32.mrb[0].mxu0
    %v1733 = vadd.f32 0.0, %v1732
    %v1734 = vpop.f32.mrb[0].mxu0
    %1735 = vmatprep.mubr.bf16.mxu0 0
    %1736 = vmatmul.mubr.bf16.gmra.mrb[0].mxu0 %v1548
    %v1737 = vpop.f32.mrb[0].mxu0
    %v1738 = vpop.f32.mrb[0].mxu0
    %v1739 = vpop.f32.mrb[0].mxu0
    %v1740 = vpop.f32.mrb[0].mxu0
    %1741 = vmatprep.mubr.bf16.mxu0 0
    %1742 = vmatmul.mubr.bf16.gmra.mrb[0].mxu0 %v1551
    %v1743 = vpop.f32.mrb[0].mxu0
    %v1744 = vpop.f32.mrb[0].mxu0
    %v1745 = vpop.f32.mrb[0].mxu0
    %v1746 = vpop.f32.mrb[0].mxu0
    %1747 = vmatprep.mubr.bf16.mxu0 0
    %1748 = vmatmul.mubr.bf16.gmra.mrb[0].mxu0 %v1554
    %v1749 = vpop.f32.mrb[0].mxu0
    %v1750 = vpop.f32.mrb[0].mxu0
    %v1751 = vpop.f32.mrb[0].mxu0
    %v1752 = vpop.f32.mrb[0].mxu0
    %1753 = vmatprep.mubr.bf16.mxu0 0
    %1754 = vmatmul.mubr.bf16.gmra.mrb[0].mxu0 %v1557
    %v1755 = vpop.f32.mrb[0].mxu0
    %v1756 = vpop.f32.mrb[0].mxu0
    %v1757 = vpop.f32.mrb[0].mxu0
    %v1758 = vpop.f32.mrb[0].mxu0
    %1759 = vmatprep.mubr.bf16.mxu0 0
    %1760 = vmatmul.mubr.bf16.gmra.mrb[0].mxu0 %v1560
    %v1761 = vpop.f32.mrb[0].mxu0
    %v1762 = vadd.f32 0.0, %v1761
    %v1763 = vpop.f32.mrb[0].mxu0
    %v1764 = vpop.f32.mrb[0].mxu0
    %v1765 = vadd.f32 0.0, %v1764
    %v1766 = vpop.f32.mrb[0].mxu0
    %1767 = vmatprep.mubr.bf16.mxu0 0
    %1768 = vmatmul.mubr.bf16.gmra.mrb[0].mxu0 %v1563
    %v1769 = vpop.f32.mrb[0].mxu0
    %v1770 = vadd.f32 0.0, %v1769
    %v1771 = vpop.f32.mrb[0].mxu0
    %v1772 = vpop.f32.mrb[0].mxu0
    %v1773 = vadd.f32 0.0, %v1772
    %v1774 = vpop.f32.mrb[0].mxu0
    %1775 = vmatprep.mubr.bf16.mxu0 0
    %1776 = vmatmul.mubr.bf16.gmra.mrb[0].mxu0 %v1566
    %v1777 = vpop.f32.mrb[0].mxu0
    %v1778 = vadd.f32 0.0, %v1777
    %v1779 = vpop.f32.mrb[0].mxu0
    %v1780 = vpop.f32.mrb[0].mxu0
    %v1781 = vadd.f32 0.0, %v1780
    %v1782 = vpop.f32.mrb[0].mxu0
    %1783 = vmatprep.mubr.bf16.mxu0 0
    %1784 = vmatmul.mubr.bf16.gmra.mrb[0].mxu0 %v1569
    %v1785 = vpop.f32.mrb[0].mxu0
    %v1786 = vadd.f32 0.0, %v1785
    %v1787 = vpop.f32.mrb[0].mxu0
    %v1788 = vpop.f32.mrb[0].mxu0
    %v1789 = vadd.f32 0.0, %v1788
    %v1790 = vpop.f32.mrb[0].mxu0
    %1791 = vmatprep.mubr.bf16.mxu0 0
    %1792 = vmatmul.mubr.bf16.gmra.mrb[0].mxu0 %v1572
    %v1793 = vpop.f32.mrb[0].mxu0
    %v1794 = vadd.f32 0.0, %v1793
    %v1795 = vpop.f32.mrb[0].mxu0
    %v1796 = vpop.f32.mrb[0].mxu0
    %v1797 = vadd.f32 0.0, %v1796
    %v1798 = vpop.f32.mrb[0].mxu0
    %1799 = vmatprep.mubr.bf16.mxu0 0
    %1800 = vmatmul.mubr.bf16.gmra.mrb[0].mxu0 %v1575
    %v1801 = vpop.f32.mrb[0].mxu0
    %v1802 = vadd.f32 0.0, %v1801
    %v1803 = vpop.f32.mrb[0].mxu0
    %v1804 = vpop.f32.mrb[0].mxu0
    %v1805 = vadd.f32 0.0, %v1804
    %v1806 = vpop.f32.mrb[0].mxu0
    %1807 = vmatprep.mubr.bf16.mxu0 0
    %1808 = vmatmul.mubr.bf16.gmra.mrb[0].mxu0 %v1578
    %v1809 = vpop.f32.mrb[0].mxu0
    %v1810 = vadd.f32 0.0, %v1809
    %v1811 = vpop.f32.mrb[0].mxu0
    %v1812 = vpop.f32.mrb[0].mxu0
    %v1813 = vadd.f32 0.0, %v1812
    %v1814 = vpop.f32.mrb[0].mxu0
    %1815 = vmatprep.mubr.bf16.mxu0 0
    %1816 = vmatmul.mubr.bf16.gmra.mrb[0].mxu0 %v1581
    %v1817 = vpop.f32.mrb[0].mxu0
    %v1818 = vadd.f32 0.0, %v1817
    %v1819 = vpop.f32.mrb[0].mxu0
    %v1820 = vpop.f32.mrb[0].mxu0
    %v1821 = vadd.f32 0.0, %v1820
    %v1822 = vpop.f32.mrb[0].mxu0
    %1823 = vmatprep.mubr.bf16.mxu0 0
    %1824 = vmatmul.mubr.bf16.gmra.mrb[0].mxu0 %v1584
    %v1825 = vpop.f32.mrb[0].mxu0
    %v1826 = vadd.f32 0.0, %v1825
    %v1827 = vpop.f32.mrb[0].mxu0
    %v1828 = vpop.f32.mrb[0].mxu0
    %v1829 = vadd.f32 0.0, %v1828
    %v1830 = vpop.f32.mrb[0].mxu0
    %1831 = vmatprep.mubr.bf16.mxu0 0
    %1832 = vmatmul.mubr.bf16.gmra.mrb[0].mxu0 %v1587
    %v1833 = vpop.f32.mrb[0].mxu0
    %v1834 = vadd.f32 0.0, %v1833
    %v1835 = vpop.f32.mrb[0].mxu0
    %v1836 = vpop.f32.mrb[0].mxu0
    %v1837 = vadd.f32 0.0, %v1836
    %v1838 = vpop.f32.mrb[0].mxu0
    %1839 = vmatprep.mubr.bf16.mxu0 0
    %1840 = vmatmul.mubr.bf16.gmra.mrb[0].mxu0 %v1590
    %v1841 = vpop.f32.mrb[0].mxu0
    %v1842 = vadd.f32 0.0, %v1841
    %v1843 = vpop.f32.mrb[0].mxu0
    %v1844 = vpop.f32.mrb[0].mxu0
    %v1845 = vadd.f32 0.0, %v1844
    %v1846 = vpop.f32.mrb[0].mxu0
    %1847 = vmatprep.mubr.bf16.mxu0 0
    %1848 = vmatmul.mubr.bf16.gmra.mrb[0].mxu0 %v1593
    %v1849 = vpop.f32.mrb[0].mxu0
    %v1850 = vadd.f32 0.0, %v1849
    %v1851 = vpop.f32.mrb[0].mxu0
    %v1852 = vpop.f32.mrb[0].mxu0
    %v1853 = vadd.f32 0.0, %v1852
    %v1854 = vpop.f32.mrb[0].mxu0
    %1855 = vmatprep.mubr.bf16.mxu0 0
    %1856 = vmatmul.mubr.bf16.gmra.mrb[0].mxu0 %v1596
    %v1857 = vpop.f32.mrb[0].mxu0
    %v1858 = vpop.f32.mrb[0].mxu0
    %v1859 = vpop.f32.mrb[0].mxu0
    %v1860 = vpop.f32.mrb[0].mxu0
    %1861 = vmatprep.mubr.bf16.mxu0 0
    %1862 = vmatmul.mubr.bf16.gmra.mrb[0].mxu0 %v1599
    %v1863 = vpop.f32.mrb[0].mxu0
    %v1864 = vpop.f32.mrb[0].mxu0
    %v1865 = vpop.f32.mrb[0].mxu0
    %v1866 = vpop.f32.mrb[0].mxu0
    %1867 = vmatprep.mubr.bf16.mxu0 0
    %1868 = vmatmul.mubr.bf16.gmra.mrb[0].mxu0 %v1602
    %v1869 = vpop.f32.mrb[0].mxu0
    %v1870 = vpop.f32.mrb[0].mxu0
    %v1871 = vpop.f32.mrb[0].mxu0
    %v1872 = vpop.f32.mrb[0].mxu0
    %1873 = vmatprep.mubr.bf16.mxu0 0
    %1874 = vmatmul.mubr.bf16.gmra.mrb[0].mxu0 %v1605
    %v1875 = vpop.f32.mrb[0].mxu0
    %v1876 = vpop.f32.mrb[0].mxu0
    %v1877 = vpop.f32.mrb[0].mxu0
    %v1878 = vpop.f32.mrb[0].mxu0
    %1879 = vdwg.mxu0
    %v1880 = vmax.f32 %v1238, %v1642
    %v1881 = vmax.f32 %v1239, %v1645
    %v1882 = vmax.f32 %v1240, %v1650
    %v1883 = vmax.f32 %v1241, %v1653
    %v1884 = vmax.f32 %v1242, %v1658
    %v1885 = vmax.f32 %v1243, %v1661
    %v1886 = vmax.f32 %v1244, %v1666
    %v1887 = vmax.f32 %v1245, %v1669
    %v1888 = vmax.f32 %v1246, %v1674
    %v1889 = vmax.f32 %v1247, %v1677
    %v1890 = vmax.f32 %v1248, %v1682
    %v1891 = vmax.f32 %v1249, %v1685
    %v1892 = vmax.f32 %v1250, %v1690
    %v1893 = vmax.f32 %v1251, %v1693
    %v1894 = vmax.f32 %v1252, %v1698
    %v1895 = vmax.f32 %v1253, %v1701
    %v1896 = vmax.f32 %v1254, %v1706
    %v1897 = vmax.f32 %v1255, %v1709
    %v1898 = vmax.f32 %v1256, %v1714
    %v1899 = vmax.f32 %v1257, %v1717
    %v1900 = vmax.f32 %v1258, %v1722
    %v1901 = vmax.f32 %v1259, %v1725
    %v1902 = vmax.f32 %v1260, %v1730
    %v1903 = vmax.f32 %v1261, %v1733
    %v1904 = vmax.f32 %v1262, %v1762
    %v1905 = vmax.f32 %v1263, %v1765
    %v1906 = vmax.f32 %v1264, %v1770
    %v1907 = vmax.f32 %v1265, %v1773
    %v1908 = vmax.f32 %v1266, %v1778
    %v1909 = vmax.f32 %v1267, %v1781
    %v1910 = vmax.f32 %v1268, %v1786
    %v1911 = vmax.f32 %v1269, %v1789
    %v1912 = vmax.f32 %v1270, %v1794
    %v1913 = vmax.f32 %v1271, %v1797
    %v1914 = vmax.f32 %v1272, %v1802
    %v1915 = vmax.f32 %v1273, %v1805
    %v1916 = vmax.f32 %v1274, %v1810
    %v1917 = vmax.f32 %v1275, %v1813
    %v1918 = vmax.f32 %v1276, %v1818
    %v1919 = vmax.f32 %v1277, %v1821
    %v1920 = vmax.f32 %v1278, %v1826
    %v1921 = vmax.f32 %v1279, %v1829
    %v1922 = vmax.f32 %v1280, %v1834
    %v1923 = vmax.f32 %v1281, %v1837
    %v1924 = vmax.f32 %v1282, %v1842
    %v1925 = vmax.f32 %v1283, %v1845
    %v1926 = vmax.f32 %v1284, %v1850
    %v1927 = vmax.f32 %v1285, %v1853
    %s1928 = scalar_lea.vmem %s0, 768
    %v1929 = vld [vmem:[%s1928] sm:$0xf]
    %v1930 = vld [vmem:[%s1928 + $0x4] sm:$0xf]
    %v1931 = vld [vmem:[%s1928 + $0x8] sm:$0xf]
    %v1932 = vld [vmem:[%s1928 + $0xc] sm:$0xf]
    %v1933 = vld [vmem:[%s1928 + $0x10] sm:$0xf]
    %v1934 = vld [vmem:[%s1928 + $0x14] sm:$0xf]
    %v1935 = vld [vmem:[%s1928 + $0x18] sm:$0xf]
    %v1936 = vld [vmem:[%s1928 + $0x1c] sm:$0xf]
    %v1937 = vld [vmem:[%s1928 + $0x20] sm:$0xf]
    %v1938 = vld [vmem:[%s1928 + $0x24] sm:$0xf]
    %v1939 = vld [vmem:[%s1928 + $0x28] sm:$0xf]
    %v1940 = vld [vmem:[%s1928 + $0x2c] sm:$0xf]
    %v1941 = vld [vmem:[%s1928 + $0x30] sm:$0xf]
    %v1942 = vld [vmem:[%s1928 + $0x34] sm:$0xf]
    %v1943 = vld [vmem:[%s1928 + $0x38] sm:$0xf]
    %v1944 = vld [vmem:[%s1928 + $0x3c] sm:$0xf]
    %v1945 = vld [vmem:[%s1928 + $0x40] sm:$0xf]
    %v1946 = vld [vmem:[%s1928 + $0x44] sm:$0xf]
    %v1947 = vld [vmem:[%s1928 + $0x48] sm:$0xf]
    %v1948 = vld [vmem:[%s1928 + $0x4c] sm:$0xf]
    %v1949 = vld [vmem:[%s1928 + $0x50] sm:$0xf]
    %v1950 = vld [vmem:[%s1928 + $0x54] sm:$0xf]
    %v1951 = vld [vmem:[%s1928 + $0x58] sm:$0xf]
    %v1952 = vld [vmem:[%s1928 + $0x5c] sm:$0xf]
    %v1953 = vld [vmem:[%s1928 + $0x60] sm:$0xf]
    %v1954 = vld [vmem:[%s1928 + $0x64] sm:$0xf]
    %v1955 = vld [vmem:[%s1928 + $0x68] sm:$0xf]
    %v1956 = vld [vmem:[%s1928 + $0x6c] sm:$0xf]
    %v1957 = vld [vmem:[%s1928 + $0x70] sm:$0xf]
    %v1958 = vld [vmem:[%s1928 + $0x74] sm:$0xf]
    %v1959 = vld [vmem:[%s1928 + $0x78] sm:$0xf]
    %v1960 = vld [vmem:[%s1928 + $0x7c] sm:$0xf]
    %v1961 = vld [vmem:[%s1928 + $0x80] sm:$0xf]
    %v1962 = vld [vmem:[%s1928 + $0x84] sm:$0xf]
    %v1963 = vld [vmem:[%s1928 + $0x88] sm:$0xf]
    %v1964 = vld [vmem:[%s1928 + $0x8c] sm:$0xf]
    %v1965 = vld [vmem:[%s1928 + $0x90] sm:$0xf]
    %v1966 = vld [vmem:[%s1928 + $0x94] sm:$0xf]
    %v1967 = vld [vmem:[%s1928 + $0x98] sm:$0xf]
    %v1968 = vld [vmem:[%s1928 + $0x9c] sm:$0xf]
    %v1969 = vld [vmem:[%s1928 + $0xa0] sm:$0xf]
    %v1970 = vld [vmem:[%s1928 + $0xa4] sm:$0xf]
    %v1971 = vld [vmem:[%s1928 + $0xa8] sm:$0xf]
    %v1972 = vld [vmem:[%s1928 + $0xac] sm:$0xf]
    %v1973 = vld [vmem:[%s1928 + $0xb0] sm:$0xf]
    %v1974 = vld [vmem:[%s1928 + $0xb4] sm:$0xf]
    %v1975 = vld [vmem:[%s1928 + $0xb8] sm:$0xf]
    %v1976 = vld [vmem:[%s1928 + $0xbc] sm:$0xf]
    %v1977 = vld [vmem:[%s1928 + $0xc0] sm:$0xf]
    %v1978 = vld [vmem:[%s1928 + $0xc4] sm:$0xf]
    %v1979 = vld [vmem:[%s1928 + $0xc8] sm:$0xf]
    %v1980 = vld [vmem:[%s1928 + $0xcc] sm:$0xf]
    %v1981 = vld [vmem:[%s1928 + $0xd0] sm:$0xf]
    %v1982 = vld [vmem:[%s1928 + $0xd4] sm:$0xf]
    %v1983 = vld [vmem:[%s1928 + $0xd8] sm:$0xf]
    %v1984 = vld [vmem:[%s1928 + $0xdc] sm:$0xf]
    %v1985 = vld [vmem:[%s1928 + $0xe0] sm:$0xf]
    %v1986 = vld [vmem:[%s1928 + $0xe4] sm:$0xf]
    %v1987 = vld [vmem:[%s1928 + $0xe8] sm:$0xf]
    %v1988 = vld [vmem:[%s1928 + $0xec] sm:$0xf]
    %v1989 = vld [vmem:[%s1928 + $0xf0] sm:$0xf]
    %v1990 = vld [vmem:[%s1928 + $0xf4] sm:$0xf]
    %v1991 = vld [vmem:[%s1928 + $0xf8] sm:$0xf]
    %v1992 = vld [vmem:[%s1928 + $0xfc] sm:$0xf]
    %v2057 = vunpack.c.l.b16 %v1929
    %v2058 = vunpack.c.l.b16 %v1930
    %v2059 = vunpack.c.l.b16 %v1931
    %v2060 = vunpack.c.l.b16 %v1932
    %v2061 = vunpack.c.l.b16 %v1933
    %v2062 = vunpack.c.l.b16 %v1934
    %v2063 = vunpack.c.l.b16 %v1935
    %v2064 = vunpack.c.l.b16 %v1936
    %v2065 = vunpack.c.l.b16 %v1937
    %v2066 = vunpack.c.l.b16 %v1938
    %v2067 = vunpack.c.l.b16 %v1939
    %v2068 = vunpack.c.l.b16 %v1940
    %v2069 = vunpack.c.l.b16 %v1941
    %v2070 = vunpack.c.l.b16 %v1942
    %v2071 = vunpack.c.l.b16 %v1943
    %v2072 = vunpack.c.l.b16 %v1944
    %v2073 = vunpack.c.l.b16 %v1945
    %v2074 = vunpack.c.l.b16 %v1946
    %v2075 = vunpack.c.l.b16 %v1947
    %v2076 = vunpack.c.l.b16 %v1948
    %v2077 = vunpack.c.l.b16 %v1949
    %v2078 = vunpack.c.l.b16 %v1950
    %v2079 = vunpack.c.l.b16 %v1951
    %v2080 = vunpack.c.l.b16 %v1952
    %v2081 = vunpack.c.l.b16 %v1953
    %v2082 = vunpack.c.l.b16 %v1954
    %v2083 = vunpack.c.l.b16 %v1955
    %v2084 = vunpack.c.l.b16 %v1956
    %v2085 = vunpack.c.l.b16 %v1957
    %v2086 = vunpack.c.l.b16 %v1958
    %v2087 = vunpack.c.l.b16 %v1959
    %v2088 = vunpack.c.l.b16 %v1960
    %v2089 = vunpack.c.l.b16 %v1961
    %v2090 = vunpack.c.l.b16 %v1962
    %v2091 = vunpack.c.l.b16 %v1963
    %v2092 = vunpack.c.l.b16 %v1964
    %v2093 = vunpack.c.l.b16 %v1965
    %v2094 = vunpack.c.l.b16 %v1966
    %v2095 = vunpack.c.l.b16 %v1967
    %v2096 = vunpack.c.l.b16 %v1968
    %v2097 = vunpack.c.l.b16 %v1969
    %v2098 = vunpack.c.l.b16 %v1970
    %v2099 = vunpack.c.l.b16 %v1971
    %v2100 = vunpack.c.l.b16 %v1972
    %v2101 = vunpack.c.l.b16 %v1973
    %v2102 = vunpack.c.l.b16 %v1974
    %v2103 = vunpack.c.l.b16 %v1975
    %v2104 = vunpack.c.l.b16 %v1976
    %v2105 = vunpack.c.l.b16 %v1977
    %v2106 = vunpack.c.l.b16 %v1978
    %v2107 = vunpack.c.l.b16 %v1979
    %v2108 = vunpack.c.l.b16 %v1980
    %v2109 = vunpack.c.l.b16 %v1981
    %v2110 = vunpack.c.l.b16 %v1982
    %v2111 = vunpack.c.l.b16 %v1983
    %v2112 = vunpack.c.l.b16 %v1984
    %v2113 = vunpack.c.l.b16 %v1985
    %v2114 = vunpack.c.l.b16 %v1986
    %v2115 = vunpack.c.l.b16 %v1987
    %v2116 = vunpack.c.l.b16 %v1988
    %v2117 = vunpack.c.l.b16 %v1989
    %v2118 = vunpack.c.l.b16 %v1990
    %v2119 = vunpack.c.l.b16 %v1991
    %v2120 = vunpack.c.l.b16 %v1992
    %v2121 = vpack.c.b16 %v2058, %v2057
    %v2122 = vpack.c.b16 %v2060, %v2059
    %v2123 = vpack.c.b16 %v2062, %v2061
    %v2124 = vpack.c.b16 %v2064, %v2063
    %v2125 = vpack.c.b16 %v2066, %v2065
    %v2126 = vpack.c.b16 %v2068, %v2067
    %v2127 = vpack.c.b16 %v2070, %v2069
    %v2128 = vpack.c.b16 %v2072, %v2071
    %v2129 = vpack.c.b16 %v2074, %v2073
    %v2130 = vpack.c.b16 %v2076, %v2075
    %v2131 = vpack.c.b16 %v2078, %v2077
    %v2132 = vpack.c.b16 %v2080, %v2079
    %v2133 = vpack.c.b16 %v2082, %v2081
    %v2134 = vpack.c.b16 %v2084, %v2083
    %v2135 = vpack.c.b16 %v2086, %v2085
    %v2136 = vpack.c.b16 %v2088, %v2087
    %v2137 = vpack.c.b16 %v2090, %v2089
    %v2138 = vpack.c.b16 %v2092, %v2091
    %v2139 = vpack.c.b16 %v2094, %v2093
    %v2140 = vpack.c.b16 %v2096, %v2095
    %v2141 = vpack.c.b16 %v2098, %v2097
    %v2142 = vpack.c.b16 %v2100, %v2099
    %v2143 = vpack.c.b16 %v2102, %v2101
    %v2144 = vpack.c.b16 %v2104, %v2103
    %v2145 = vpack.c.b16 %v2106, %v2105
    %v2146 = vpack.c.b16 %v2108, %v2107
    %v2147 = vpack.c.b16 %v2110, %v2109
    %v2148 = vpack.c.b16 %v2112, %v2111
    %v2149 = vpack.c.b16 %v2114, %v2113
    %v2150 = vpack.c.b16 %v2116, %v2115
    %v2151 = vpack.c.b16 %v2118, %v2117
    %v2152 = vpack.c.b16 %v2120, %v2119
    %v2154 = vsel %vm274, %v2121, 0
    %v2157 = vsel %vm274, %v2122, 0
    %v2160 = vsel %vm274, %v2123, 0
    %v2163 = vsel %vm274, %v2124, 0
    %v2166 = vsel %vm274, %v2125, 0
    %v2169 = vsel %vm274, %v2126, 0
    %v2172 = vsel %vm274, %v2127, 0
    %v2175 = vsel %vm274, %v2128, 0
    %v2178 = vsel %vm274, %v2129, 0
    %v2181 = vsel %vm274, %v2130, 0
    %v2184 = vsel %vm274, %v2131, 0
    %v2187 = vsel %vm274, %v2132, 0
    %v2190 = vsel %vm274, %v2133, 0
    %v2193 = vsel %vm274, %v2134, 0
    %v2196 = vsel %vm274, %v2135, 0
    %v2199 = vsel %vm274, %v2136, 0
    %v2202 = vsel %vm274, %v2137, 0
    %v2205 = vsel %vm274, %v2138, 0
    %v2208 = vsel %vm274, %v2139, 0
    %v2211 = vsel %vm274, %v2140, 0
    %v2214 = vsel %vm274, %v2141, 0
    %v2217 = vsel %vm274, %v2142, 0
    %v2220 = vsel %vm274, %v2143, 0
    %v2223 = vsel %vm274, %v2144, 0
    %v2226 = vsel %vm274, %v2145, 0
    %v2229 = vsel %vm274, %v2146, 0
    %v2232 = vsel %vm274, %v2147, 0
    %v2235 = vsel %vm274, %v2148, 0
    %v2238 = vsel %vm274, %v2149, 0
    %v2241 = vsel %vm274, %v2150, 0
    %v2244 = vsel %vm274, %v2151, 0
    %v2247 = vsel %vm274, %v2152, 0
    %2249 = vmatprep.subr.bf16.mxu0 0
    %2250 = vmatpush1.bf16.msra.mxu0 %v270
    %2251 = vmatprep.subr.bf16.mxu0 0
    %2252 = vmatpush1.bf16.msra.mxu0 %v271
    %2253 = vmatprep.subr.bf16.mxu0 0
    %2254 = vmatpush1.bf16.msra.mxu0 0
    %2255 = vmatprep.subr.bf16.mxu0 0
    %2256 = vmatpush1.bf16.msra.mxu0 0
    %2257 = vmatprep.subr.bf16.mxu0 0
    %2258 = vmatpush1.bf16.msra.mxu0 0
    %2259 = vmatprep.subr.bf16.mxu0 0
    %2260 = vmatpush1.bf16.msra.mxu0 0
    %2261 = vmatprep.subr.bf16.mxu0 0
    %2262 = vmatpush1.bf16.msra.mxu0 0
    %2263 = vmatprep.subr.bf16.mxu0 0
    %2264 = vmatpush1.bf16.msra.mxu0 0
    %2265 = vmatprep.subr.bf16.mxu0 0
    %2266 = vmatpush1.bf16.msra.mxu0 0
    %2267 = vmatprep.subr.bf16.mxu0 0
    %2268 = vmatpush1.bf16.msra.mxu0 0
    %2269 = vmatprep.subr.bf16.mxu0 0
    %2270 = vmatpush1.bf16.msra.mxu0 0
    %2271 = vmatprep.subr.bf16.mxu0 0
    %2272 = vmatpush1.bf16.msra.mxu0 0
    %2273 = vmatprep.subr.bf16.mxu0 0
    %2274 = vmatpush1.bf16.msra.mxu0 0
    %2275 = vmatprep.subr.bf16.mxu0 0
    %2276 = vmatpush1.bf16.msra.mxu0 0
    %2277 = vmatprep.subr.bf16.mxu0 0
    %2278 = vmatpush1.bf16.msra.mxu0 0
    %2279 = vmatprep.subr.bf16.mxu0 0
    %2280 = vmatpush1.bf16.msra.mxu0 0
    %2281 = vmatprep.mubr.bf16.mxu0 0
    %2282 = vmatmul.mubr.bf16.gmra.mrb[0].mxu0 %v2154
    %v2283 = vpop.f32.mrb[0].mxu0
    %v2284 = vadd.f32 0.0, %v2283
    %v2285 = vpop.f32.mrb[0].mxu0
    %v2286 = vpop.f32.mrb[0].mxu0
    %v2287 = vadd.f32 0.0, %v2286
    %v2288 = vpop.f32.mrb[0].mxu0
    %2289 = vmatprep.mubr.bf16.mxu0 0
    %2290 = vmatmul.mubr.bf16.gmra.mrb[0].mxu0 %v2157
    %v2291 = vpop.f32.mrb[0].mxu0
    %v2292 = vadd.f32 0.0, %v2291
    %v2293 = vpop.f32.mrb[0].mxu0
    %v2294 = vpop.f32.mrb[0].mxu0
    %v2295 = vadd.f32 0.0, %v2294
    %v2296 = vpop.f32.mrb[0].mxu0
    %2297 = vmatprep.mubr.bf16.mxu0 0
    %2298 = vmatmul.mubr.bf16.gmra.mrb[0].mxu0 %v2160
    %v2299 = vpop.f32.mrb[0].mxu0
    %v2300 = vadd.f32 0.0, %v2299
    %v2301 = vpop.f32.mrb[0].mxu0
    %v2302 = vpop.f32.mrb[0].mxu0
    %v2303 = vadd.f32 0.0, %v2302
    %v2304 = vpop.f32.mrb[0].mxu0
    %2305 = vmatprep.mubr.bf16.mxu0 0
    %2306 = vmatmul.mubr.bf16.gmra.mrb[0].mxu0 %v2163
    %v2307 = vpop.f32.mrb[0].mxu0
    %v2308 = vadd.f32 0.0, %v2307
    %v2309 = vpop.f32.mrb[0].mxu0
    %v2310 = vpop.f32.mrb[0].mxu0
    %v2311 = vadd.f32 0.0, %v2310
    %v2312 = vpop.f32.mrb[0].mxu0
    %2313 = vmatprep.mubr.bf16.mxu0 0
    %2314 = vmatmul.mubr.bf16.gmra.mrb[0].mxu0 %v2166
    %v2315 = vpop.f32.mrb[0].mxu0
    %v2316 = vadd.f32 0.0, %v2315
    %v2317 = vpop.f32.mrb[0].mxu0
    %v2318 = vpop.f32.mrb[0].mxu0
    %v2319 = vadd.f32 0.0, %v2318
    %v2320 = vpop.f32.mrb[0].mxu0
    %2321 = vmatprep.mubr.bf16.mxu0 0
    %2322 = vmatmul.mubr.bf16.gmra.mrb[0].mxu0 %v2169
    %v2323 = vpop.f32.mrb[0].mxu0
    %v2324 = vadd.f32 0.0, %v2323
    %v2325 = vpop.f32.mrb[0].mxu0
    %v2326 = vpop.f32.mrb[0].mxu0
    %v2327 = vadd.f32 0.0, %v2326
    %v2328 = vpop.f32.mrb[0].mxu0
    %2329 = vmatprep.mubr.bf16.mxu0 0
    %2330 = vmatmul.mubr.bf16.gmra.mrb[0].mxu0 %v2172
    %v2331 = vpop.f32.mrb[0].mxu0
    %v2332 = vadd.f32 0.0, %v2331
    %v2333 = vpop.f32.mrb[0].mxu0
    %v2334 = vpop.f32.mrb[0].mxu0
    %v2335 = vadd.f32 0.0, %v2334
    %v2336 = vpop.f32.mrb[0].mxu0
    %2337 = vmatprep.mubr.bf16.mxu0 0
    %2338 = vmatmul.mubr.bf16.gmra.mrb[0].mxu0 %v2175
    %v2339 = vpop.f32.mrb[0].mxu0
    %v2340 = vadd.f32 0.0, %v2339
    %v2341 = vpop.f32.mrb[0].mxu0
    %v2342 = vpop.f32.mrb[0].mxu0
    %v2343 = vadd.f32 0.0, %v2342
    %v2344 = vpop.f32.mrb[0].mxu0
    %2345 = vmatprep.mubr.bf16.mxu0 0
    %2346 = vmatmul.mubr.bf16.gmra.mrb[0].mxu0 %v2178
    %v2347 = vpop.f32.mrb[0].mxu0
    %v2348 = vadd.f32 0.0, %v2347
    %v2349 = vpop.f32.mrb[0].mxu0
    %v2350 = vpop.f32.mrb[0].mxu0
    %v2351 = vadd.f32 0.0, %v2350
    %v2352 = vpop.f32.mrb[0].mxu0
    %2353 = vmatprep.mubr.bf16.mxu0 0
    %2354 = vmatmul.mubr.bf16.gmra.mrb[0].mxu0 %v2181
    %v2355 = vpop.f32.mrb[0].mxu0
    %v2356 = vadd.f32 0.0, %v2355
    %v2357 = vpop.f32.mrb[0].mxu0
    %v2358 = vpop.f32.mrb[0].mxu0
    %v2359 = vadd.f32 0.0, %v2358
    %v2360 = vpop.f32.mrb[0].mxu0
    %2361 = vmatprep.mubr.bf16.mxu0 0
    %2362 = vmatmul.mubr.bf16.gmra.mrb[0].mxu0 %v2184
    %v2363 = vpop.f32.mrb[0].mxu0
    %v2364 = vadd.f32 0.0, %v2363
    %v2365 = vpop.f32.mrb[0].mxu0
    %v2366 = vpop.f32.mrb[0].mxu0
    %v2367 = vadd.f32 0.0, %v2366
    %v2368 = vpop.f32.mrb[0].mxu0
    %2369 = vmatprep.mubr.bf16.mxu0 0
    %2370 = vmatmul.mubr.bf16.gmra.mrb[0].mxu0 %v2187
    %v2371 = vpop.f32.mrb[0].mxu0
    %v2372 = vadd.f32 0.0, %v2371
    %v2373 = vpop.f32.mrb[0].mxu0
    %v2374 = vpop.f32.mrb[0].mxu0
    %v2375 = vadd.f32 0.0, %v2374
    %v2376 = vpop.f32.mrb[0].mxu0
    %2377 = vmatprep.mubr.bf16.mxu0 0
    %2378 = vmatmul.mubr.bf16.gmra.mrb[0].mxu0 %v2190
    %v2379 = vpop.f32.mrb[0].mxu0
    %v2380 = vpop.f32.mrb[0].mxu0
    %v2381 = vpop.f32.mrb[0].mxu0
    %v2382 = vpop.f32.mrb[0].mxu0
    %2383 = vmatprep.mubr.bf16.mxu0 0
    %2384 = vmatmul.mubr.bf16.gmra.mrb[0].mxu0 %v2193
    %v2385 = vpop.f32.mrb[0].mxu0
    %v2386 = vpop.f32.mrb[0].mxu0
    %v2387 = vpop.f32.mrb[0].mxu0
    %v2388 = vpop.f32.mrb[0].mxu0
    %2389 = vmatprep.mubr.bf16.mxu0 0
    %2390 = vmatmul.mubr.bf16.gmra.mrb[0].mxu0 %v2196
    %v2391 = vpop.f32.mrb[0].mxu0
    %v2392 = vpop.f32.mrb[0].mxu0
    %v2393 = vpop.f32.mrb[0].mxu0
    %v2394 = vpop.f32.mrb[0].mxu0
    %2395 = vmatprep.mubr.bf16.mxu0 0
    %2396 = vmatmul.mubr.bf16.gmra.mrb[0].mxu0 %v2199
    %v2397 = vpop.f32.mrb[0].mxu0
    %v2398 = vpop.f32.mrb[0].mxu0
    %v2399 = vpop.f32.mrb[0].mxu0
    %v2400 = vpop.f32.mrb[0].mxu0
    %2401 = vmatprep.mubr.bf16.mxu0 0
    %2402 = vmatmul.mubr.bf16.gmra.mrb[0].mxu0 %v2202
    %v2403 = vpop.f32.mrb[0].mxu0
    %v2404 = vadd.f32 0.0, %v2403
    %v2405 = vpop.f32.mrb[0].mxu0
    %v2406 = vpop.f32.mrb[0].mxu0
    %v2407 = vadd.f32 0.0, %v2406
    %v2408 = vpop.f32.mrb[0].mxu0
    %2409 = vmatprep.mubr.bf16.mxu0 0
    %2410 = vmatmul.mubr.bf16.gmra.mrb[0].mxu0 %v2205
    %v2411 = vpop.f32.mrb[0].mxu0
    %v2412 = vadd.f32 0.0, %v2411
    %v2413 = vpop.f32.mrb[0].mxu0
    %v2414 = vpop.f32.mrb[0].mxu0
    %v2415 = vadd.f32 0.0, %v2414
    %v2416 = vpop.f32.mrb[0].mxu0
    %2417 = vmatprep.mubr.bf16.mxu0 0
    %2418 = vmatmul.mubr.bf16.gmra.mrb[0].mxu0 %v2208
    %v2419 = vpop.f32.mrb[0].mxu0
    %v2420 = vadd.f32 0.0, %v2419
    %v2421 = vpop.f32.mrb[0].mxu0
    %v2422 = vpop.f32.mrb[0].mxu0
    %v2423 = vadd.f32 0.0, %v2422
    %v2424 = vpop.f32.mrb[0].mxu0
    %2425 = vmatprep.mubr.bf16.mxu0 0
    %2426 = vmatmul.mubr.bf16.gmra.mrb[0].mxu0 %v2211
    %v2427 = vpop.f32.mrb[0].mxu0
    %v2428 = vadd.f32 0.0, %v2427
    %v2429 = vpop.f32.mrb[0].mxu0
    %v2430 = vpop.f32.mrb[0].mxu0
    %v2431 = vadd.f32 0.0, %v2430
    %v2432 = vpop.f32.mrb[0].mxu0
    %2433 = vmatprep.mubr.bf16.mxu0 0
    %2434 = vmatmul.mubr.bf16.gmra.mrb[0].mxu0 %v2214
    %v2435 = vpop.f32.mrb[0].mxu0
    %v2436 = vadd.f32 0.0, %v2435
    %v2437 = vpop.f32.mrb[0].mxu0
    %v2438 = vpop.f32.mrb[0].mxu0
    %v2439 = vadd.f32 0.0, %v2438
    %v2440 = vpop.f32.mrb[0].mxu0
    %2441 = vmatprep.mubr.bf16.mxu0 0
    %2442 = vmatmul.mubr.bf16.gmra.mrb[0].mxu0 %v2217
    %v2443 = vpop.f32.mrb[0].mxu0
    %v2444 = vadd.f32 0.0, %v2443
    %v2445 = vpop.f32.mrb[0].mxu0
    %v2446 = vpop.f32.mrb[0].mxu0
    %v2447 = vadd.f32 0.0, %v2446
    %v2448 = vpop.f32.mrb[0].mxu0
    %2449 = vmatprep.mubr.bf16.mxu0 0
    %2450 = vmatmul.mubr.bf16.gmra.mrb[0].mxu0 %v2220
    %v2451 = vpop.f32.mrb[0].mxu0
    %v2452 = vadd.f32 0.0, %v2451
    %v2453 = vpop.f32.mrb[0].mxu0
    %v2454 = vpop.f32.mrb[0].mxu0
    %v2455 = vadd.f32 0.0, %v2454
    %v2456 = vpop.f32.mrb[0].mxu0
    %2457 = vmatprep.mubr.bf16.mxu0 0
    %2458 = vmatmul.mubr.bf16.gmra.mrb[0].mxu0 %v2223
    %v2459 = vpop.f32.mrb[0].mxu0
    %v2460 = vadd.f32 0.0, %v2459
    %v2461 = vpop.f32.mrb[0].mxu0
    %v2462 = vpop.f32.mrb[0].mxu0
    %v2463 = vadd.f32 0.0, %v2462
    %v2464 = vpop.f32.mrb[0].mxu0
    %2465 = vmatprep.mubr.bf16.mxu0 0
    %2466 = vmatmul.mubr.bf16.gmra.mrb[0].mxu0 %v2226
    %v2467 = vpop.f32.mrb[0].mxu0
    %v2468 = vadd.f32 0.0, %v2467
    %v2469 = vpop.f32.mrb[0].mxu0
    %v2470 = vpop.f32.mrb[0].mxu0
    %v2471 = vadd.f32 0.0, %v2470
    %v2472 = vpop.f32.mrb[0].mxu0
    %2473 = vmatprep.mubr.bf16.mxu0 0
    %2474 = vmatmul.mubr.bf16.gmra.mrb[0].mxu0 %v2229
    %v2475 = vpop.f32.mrb[0].mxu0
    %v2476 = vadd.f32 0.0, %v2475
    %v2477 = vpop.f32.mrb[0].mxu0
    %v2478 = vpop.f32.mrb[0].mxu0
    %v2479 = vadd.f32 0.0, %v2478
    %v2480 = vpop.f32.mrb[0].mxu0
    %2481 = vmatprep.mubr.bf16.mxu0 0
    %2482 = vmatmul.mubr.bf16.gmra.mrb[0].mxu0 %v2232
    %v2483 = vpop.f32.mrb[0].mxu0
    %v2484 = vadd.f32 0.0, %v2483
    %v2485 = vpop.f32.mrb[0].mxu0
    %v2486 = vpop.f32.mrb[0].mxu0
    %v2487 = vadd.f32 0.0, %v2486
    %v2488 = vpop.f32.mrb[0].mxu0
    %2489 = vmatprep.mubr.bf16.mxu0 0
    %2490 = vmatmul.mubr.bf16.gmra.mrb[0].mxu0 %v2235
    %v2491 = vpop.f32.mrb[0].mxu0
    %v2492 = vadd.f32 0.0, %v2491
    %v2493 = vpop.f32.mrb[0].mxu0
    %v2494 = vpop.f32.mrb[0].mxu0
    %v2495 = vadd.f32 0.0, %v2494
    %v2496 = vpop.f32.mrb[0].mxu0
    %2497 = vmatprep.mubr.bf16.mxu0 0
    %2498 = vmatmul.mubr.bf16.gmra.mrb[0].mxu0 %v2238
    %v2499 = vpop.f32.mrb[0].mxu0
    %v2500 = vpop.f32.mrb[0].mxu0
    %v2501 = vpop.f32.mrb[0].mxu0
    %v2502 = vpop.f32.mrb[0].mxu0
    %2503 = vmatprep.mubr.bf16.mxu0 0
    %2504 = vmatmul.mubr.bf16.gmra.mrb[0].mxu0 %v2241
    %v2505 = vpop.f32.mrb[0].mxu0
    %v2506 = vpop.f32.mrb[0].mxu0
    %v2507 = vpop.f32.mrb[0].mxu0
    %v2508 = vpop.f32.mrb[0].mxu0
    %2509 = vmatprep.mubr.bf16.mxu0 0
    %2510 = vmatmul.mubr.bf16.gmra.mrb[0].mxu0 %v2244
    %v2511 = vpop.f32.mrb[0].mxu0
    %v2512 = vpop.f32.mrb[0].mxu0
    %v2513 = vpop.f32.mrb[0].mxu0
    %v2514 = vpop.f32.mrb[0].mxu0
    %2515 = vmatprep.mubr.bf16.mxu0 0
    %2516 = vmatmul.mubr.bf16.gmra.mrb[0].mxu0 %v2247
    %v2517 = vpop.f32.mrb[0].mxu0
    %v2518 = vpop.f32.mrb[0].mxu0
    %v2519 = vpop.f32.mrb[0].mxu0
    %v2520 = vpop.f32.mrb[0].mxu0
    %2521 = vdwg.mxu0
    %v2522 = vmax.f32 %v1880, %v2284
    %v2523 = vmax.f32 %v1881, %v2287
    %v2524 = vmax.f32 %v1882, %v2292
    %v2525 = vmax.f32 %v1883, %v2295
    %v2526 = vmax.f32 %v1884, %v2300
    %v2527 = vmax.f32 %v1885, %v2303
    %v2528 = vmax.f32 %v1886, %v2308
    %v2529 = vmax.f32 %v1887, %v2311
    %v2530 = vmax.f32 %v1888, %v2316
    %v2531 = vmax.f32 %v1889, %v2319
    %v2532 = vmax.f32 %v1890, %v2324
    %v2533 = vmax.f32 %v1891, %v2327
    %v2534 = vmax.f32 %v1892, %v2332
    %v2535 = vmax.f32 %v1893, %v2335
    %v2536 = vmax.f32 %v1894, %v2340
    %v2537 = vmax.f32 %v1895, %v2343
    %v2538 = vmax.f32 %v1896, %v2348
    %v2539 = vmax.f32 %v1897, %v2351
    %v2540 = vmax.f32 %v1898, %v2356
    %v2541 = vmax.f32 %v1899, %v2359
    %v2542 = vmax.f32 %v1900, %v2364
    %v2543 = vmax.f32 %v1901, %v2367
    %v2544 = vmax.f32 %v1902, %v2372
    %v2545 = vmax.f32 %v1903, %v2375
    %v2546 = vmax.f32 %v1904, %v2404
    %v2547 = vmax.f32 %v1905, %v2407
    %v2548 = vmax.f32 %v1906, %v2412
    %v2549 = vmax.f32 %v1907, %v2415
    %v2550 = vmax.f32 %v1908, %v2420
    %v2551 = vmax.f32 %v1909, %v2423
    %v2552 = vmax.f32 %v1910, %v2428
    %v2553 = vmax.f32 %v1911, %v2431
    %v2554 = vmax.f32 %v1912, %v2436
    %v2555 = vmax.f32 %v1913, %v2439
    %v2556 = vmax.f32 %v1914, %v2444
    %v2557 = vmax.f32 %v1915, %v2447
    %v2558 = vmax.f32 %v1916, %v2452
    %v2559 = vmax.f32 %v1917, %v2455
    %v2560 = vmax.f32 %v1918, %v2460
    %v2561 = vmax.f32 %v1919, %v2463
    %v2562 = vmax.f32 %v1920, %v2468
    %v2563 = vmax.f32 %v1921, %v2471
    %v2564 = vmax.f32 %v1922, %v2476
    %v2565 = vmax.f32 %v1923, %v2479
    %v2566 = vmax.f32 %v1924, %v2484
    %v2567 = vmax.f32 %v1925, %v2487
    %v2568 = vmax.f32 %v1926, %v2492
    %v2569 = vmax.f32 %v1927, %v2495
    %v2570 = vld [vmem:[%s2] sm:$0x1]
    %v2572 = vlaneseq
    %v2573 = vshrl.u32 %v2572, 7
    %v2574 = vsub.s32 0, %v2573
    %v2575 = vrot.slane %v2570, %v2574
    %v2577 = vadd.f32 %v2522, %v2575
    %v2578 = vadd.f32 %v2523, %v2575
    %v2579 = vadd.f32 %v2524, %v2575
    %v2580 = vadd.f32 %v2525, %v2575
    %v2581 = vadd.f32 %v2526, %v2575
    %v2582 = vadd.f32 %v2527, %v2575
    %v2583 = vadd.f32 %v2528, %v2575
    %v2584 = vadd.f32 %v2529, %v2575
    %v2585 = vadd.f32 %v2530, %v2575
    %v2586 = vadd.f32 %v2531, %v2575
    %v2587 = vadd.f32 %v2532, %v2575
    %v2588 = vadd.f32 %v2533, %v2575
    %v2589 = vadd.f32 %v2534, %v2575
    %v2590 = vadd.f32 %v2535, %v2575
    %v2591 = vadd.f32 %v2536, %v2575
    %v2592 = vadd.f32 %v2537, %v2575
    %v2593 = vadd.f32 %v2538, %v2575
    %v2594 = vadd.f32 %v2539, %v2575
    %v2595 = vadd.f32 %v2540, %v2575
    %v2596 = vadd.f32 %v2541, %v2575
    %v2597 = vadd.f32 %v2542, %v2575
    %v2598 = vadd.f32 %v2543, %v2575
    %v2599 = vadd.f32 %v2544, %v2575
    %v2600 = vadd.f32 %v2545, %v2575
    %v2601 = vadd.f32 %v2546, %v2575
    %v2602 = vadd.f32 %v2547, %v2575
    %v2603 = vadd.f32 %v2548, %v2575
    %v2604 = vadd.f32 %v2549, %v2575
    %v2605 = vadd.f32 %v2550, %v2575
    %v2606 = vadd.f32 %v2551, %v2575
    %v2607 = vadd.f32 %v2552, %v2575
    %v2608 = vadd.f32 %v2553, %v2575
    %v2609 = vadd.f32 %v2554, %v2575
    %v2610 = vadd.f32 %v2555, %v2575
    %v2611 = vadd.f32 %v2556, %v2575
    %v2612 = vadd.f32 %v2557, %v2575
    %v2613 = vadd.f32 %v2558, %v2575
    %v2614 = vadd.f32 %v2559, %v2575
    %v2615 = vadd.f32 %v2560, %v2575
    %v2616 = vadd.f32 %v2561, %v2575
    %v2617 = vadd.f32 %v2562, %v2575
    %v2618 = vadd.f32 %v2563, %v2575
    %v2619 = vadd.f32 %v2564, %v2575
    %v2620 = vadd.f32 %v2565, %v2575
    %v2621 = vadd.f32 %v2566, %v2575
    %v2622 = vadd.f32 %v2567, %v2575
    %v2623 = vadd.f32 %v2568, %v2575
    %v2624 = vadd.f32 %v2569, %v2575
    %v2625 = vmax.f32 %v2577, 0.0
    %v2626 = vmax.f32 %v2578, 0.0
    %v2627 = vmax.f32 %v2579, 0.0
    %v2628 = vmax.f32 %v2580, 0.0
    %v2629 = vmax.f32 %v2581, 0.0
    %v2630 = vmax.f32 %v2582, 0.0
    %v2631 = vmax.f32 %v2583, 0.0
    %v2632 = vmax.f32 %v2584, 0.0
    %v2633 = vmax.f32 %v2585, 0.0
    %v2634 = vmax.f32 %v2586, 0.0
    %v2635 = vmax.f32 %v2587, 0.0
    %v2636 = vmax.f32 %v2588, 0.0
    %v2637 = vmax.f32 %v2589, 0.0
    %v2638 = vmax.f32 %v2590, 0.0
    %v2639 = vmax.f32 %v2591, 0.0
    %v2640 = vmax.f32 %v2592, 0.0
    %v2641 = vmax.f32 %v2593, 0.0
    %v2642 = vmax.f32 %v2594, 0.0
    %v2643 = vmax.f32 %v2595, 0.0
    %v2644 = vmax.f32 %v2596, 0.0
    %v2645 = vmax.f32 %v2597, 0.0
    %v2646 = vmax.f32 %v2598, 0.0
    %v2647 = vmax.f32 %v2599, 0.0
    %v2648 = vmax.f32 %v2600, 0.0
    %v2649 = vmax.f32 %v2601, 0.0
    %v2650 = vmax.f32 %v2602, 0.0
    %v2651 = vmax.f32 %v2603, 0.0
    %v2652 = vmax.f32 %v2604, 0.0
    %v2653 = vmax.f32 %v2605, 0.0
    %v2654 = vmax.f32 %v2606, 0.0
    %v2655 = vmax.f32 %v2607, 0.0
    %v2656 = vmax.f32 %v2608, 0.0
    %v2657 = vmax.f32 %v2609, 0.0
    %v2658 = vmax.f32 %v2610, 0.0
    %v2659 = vmax.f32 %v2611, 0.0
    %v2660 = vmax.f32 %v2612, 0.0
    %v2661 = vmax.f32 %v2613, 0.0
    %v2662 = vmax.f32 %v2614, 0.0
    %v2663 = vmax.f32 %v2615, 0.0
    %v2664 = vmax.f32 %v2616, 0.0
    %v2665 = vmax.f32 %v2617, 0.0
    %v2666 = vmax.f32 %v2618, 0.0
    %v2667 = vmax.f32 %v2619, 0.0
    %v2668 = vmax.f32 %v2620, 0.0
    %v2669 = vmax.f32 %v2621, 0.0
    %v2670 = vmax.f32 %v2622, 0.0
    %v2671 = vmax.f32 %v2623, 0.0
    %v2672 = vmax.f32 %v2624, 0.0
    %v2673 = vld [vmem:[%s4] sm:$0x1]
    %v2675 = vlaneseq
    %v2676 = vshrl.u32 %v2675, 7
    %v2677 = vsub.s32 0, %v2676
    %v2678 = vrot.slane %v2673, %v2677
    %v2680 = vadd.f32 %v2678, 0.0
    %v2681 = vpack.c.bf16 %v2627, %v2625
    %v2682 = vpack.c.bf16 %v2631, %v2629
    %v2683 = vpack.c.bf16 %v2635, %v2633
    %v2684 = vpack.c.bf16 %v2639, %v2637
    %v2685 = vpack.c.bf16 %v2651, %v2649
    %v2686 = vpack.c.bf16 %v2655, %v2653
    %v2687 = vpack.c.bf16 %v2659, %v2657
    %v2688 = vpack.c.bf16 %v2663, %v2661
    %v2689 = vld [vmem:[%s3] sm:$0xf]
    %v2690 = vld [vmem:[%s3 + $0x4] sm:$0xf]
    %v2691 = vld [vmem:[%s3 + $0x8] sm:$0xf]
    %v2692 = vld [vmem:[%s3 + $0xc] sm:$0xf]
    %v2693 = vld [vmem:[%s3 + $0x10] sm:$0xf]
    %v2694 = vld [vmem:[%s3 + $0x14] sm:$0xf]
    %v2695 = vld [vmem:[%s3 + $0x18] sm:$0xf]
    %v2696 = vld [vmem:[%s3 + $0x1c] sm:$0xf]
    %v2697 = vld [vmem:[%s3 + $0x20] sm:$0xf]
    %v2698 = vld [vmem:[%s3 + $0x24] sm:$0xf]
    %v2699 = vld [vmem:[%s3 + $0x28] sm:$0xf]
    %v2700 = vld [vmem:[%s3 + $0x2c] sm:$0xf]
    %v2701 = vld [vmem:[%s3 + $0x30] sm:$0xf]
    %v2702 = vld [vmem:[%s3 + $0x34] sm:$0xf]
    %v2703 = vld [vmem:[%s3 + $0x38] sm:$0xf]
    %v2704 = vld [vmem:[%s3 + $0x3c] sm:$0xf]
    %v2721 = vunpack.c.l.b16 %v2689
    %v2722 = vunpack.c.l.b16 %v2690
    %v2723 = vunpack.c.l.b16 %v2691
    %v2724 = vunpack.c.l.b16 %v2692
    %v2725 = vunpack.c.l.b16 %v2693
    %v2726 = vunpack.c.l.b16 %v2694
    %v2727 = vunpack.c.l.b16 %v2695
    %v2728 = vunpack.c.l.b16 %v2696
    %v2729 = vunpack.c.l.b16 %v2697
    %v2730 = vunpack.c.l.b16 %v2698
    %v2731 = vunpack.c.l.b16 %v2699
    %v2732 = vunpack.c.l.b16 %v2700
    %v2733 = vunpack.c.l.b16 %v2701
    %v2734 = vunpack.c.l.b16 %v2702
    %v2735 = vunpack.c.l.b16 %v2703
    %v2736 = vunpack.c.l.b16 %v2704
    %v2737 = vpack.c.b16 %v2722, %v2721
    %v2738 = vpack.c.b16 %v2724, %v2723
    %v2739 = vpack.c.b16 %v2726, %v2725
    %v2740 = vpack.c.b16 %v2728, %v2727
    %v2741 = vpack.c.b16 %v2730, %v2729
    %v2742 = vpack.c.b16 %v2732, %v2731
    %v2743 = vpack.c.b16 %v2734, %v2733
    %v2744 = vpack.c.b16 %v2736, %v2735
    %2753 = vmatprep.subr.bf16.mxu0 0
    %2754 = vmatpush1.bf16.msra.mxu0 %v2737
    %2755 = vmatprep.subr.bf16.mxu0 0
    %2756 = vmatpush1.bf16.msra.mxu0 %v2738
    %2757 = vmatprep.subr.bf16.mxu0 0
    %2758 = vmatpush1.bf16.msra.mxu0 %v2739
    %2759 = vmatprep.subr.bf16.mxu0 0
    %2760 = vmatpush1.bf16.msra.mxu0 %v2740
    %2761 = vmatprep.subr.bf16.mxu0 0
    %2762 = vmatpush1.bf16.msra.mxu0 %v2741
    %2763 = vmatprep.subr.bf16.mxu0 0
    %2764 = vmatpush1.bf16.msra.mxu0 %v2742
    %2765 = vmatprep.subr.bf16.mxu0 0
    %2766 = vmatpush1.bf16.msra.mxu0 %v2743
    %2767 = vmatprep.subr.bf16.mxu0 0
    %2768 = vmatpush1.bf16.msra.mxu0 %v2744
    %2769 = vmatprep.subr.bf16.mxu0 0
    %2770 = vmatpush1.bf16.msra.mxu0 0
    %2771 = vmatprep.subr.bf16.mxu0 0
    %2772 = vmatpush1.bf16.msra.mxu0 0
    %2773 = vmatprep.subr.bf16.mxu0 0
    %2774 = vmatpush1.bf16.msra.mxu0 0
    %2775 = vmatprep.subr.bf16.mxu0 0
    %2776 = vmatpush1.bf16.msra.mxu0 0
    %2777 = vmatprep.subr.bf16.mxu0 0
    %2778 = vmatpush1.bf16.msra.mxu0 0
    %2779 = vmatprep.subr.bf16.mxu0 0
    %2780 = vmatpush1.bf16.msra.mxu0 0
    %2781 = vmatprep.subr.bf16.mxu0 0
    %2782 = vmatpush1.bf16.msra.mxu0 0
    %2783 = vmatprep.subr.bf16.mxu0 0
    %2784 = vmatpush1.bf16.msra.mxu0 0
    %2785 = vmatprep.mubr.bf16.mxu0 0
    %2786 = vmatmul.mubr.bf16.gmra.mrb[0].mxu0 %v2681
    %v2787 = vpop.f32.mrb[0].mxu0
    %v2788 = vadd.f32 0.0, %v2787
    %v2789 = vpop.f32.mrb[0].mxu0
    %v2790 = vpop.f32.mrb[0].mxu0
    %v2791 = vadd.f32 0.0, %v2790
    %v2792 = vpop.f32.mrb[0].mxu0
    %2793 = vmatprep.mubr.bf16.mxu0 0
    %2794 = vmatmul.mubr.bf16.gmra.mrb[0].mxu0 %v2682
    %v2795 = vpop.f32.mrb[0].mxu0
    %v2796 = vadd.f32 0.0, %v2795
    %v2797 = vpop.f32.mrb[0].mxu0
    %v2798 = vpop.f32.mrb[0].mxu0
    %v2799 = vadd.f32 0.0, %v2798
    %v2800 = vpop.f32.mrb[0].mxu0
    %2801 = vmatprep.mubr.bf16.mxu0 0
    %2802 = vmatmul.mubr.bf16.gmra.mrb[0].mxu0 %v2683
    %v2803 = vpop.f32.mrb[0].mxu0
    %v2804 = vadd.f32 0.0, %v2803
    %v2805 = vpop.f32.mrb[0].mxu0
    %v2806 = vpop.f32.mrb[0].mxu0
    %v2807 = vadd.f32 0.0, %v2806
    %v2808 = vpop.f32.mrb[0].mxu0
    %2809 = vmatprep.mubr.bf16.mxu0 0
    %2810 = vmatmul.mubr.bf16.gmra.mrb[0].mxu0 %v2684
    %v2811 = vpop.f32.mrb[0].mxu0
    %v2812 = vadd.f32 0.0, %v2811
    %v2813 = vpop.f32.mrb[0].mxu0
    %v2814 = vpop.f32.mrb[0].mxu0
    %v2815 = vadd.f32 0.0, %v2814
    %v2816 = vpop.f32.mrb[0].mxu0
    %2817 = vmatprep.mubr.bf16.mxu0 0
    %2818 = vmatmul.mubr.bf16.gmra.mrb[0].mxu0 %v2685
    %v2819 = vpop.f32.mrb[0].mxu0
    %v2820 = vadd.f32 0.0, %v2819
    %v2821 = vpop.f32.mrb[0].mxu0
    %v2822 = vpop.f32.mrb[0].mxu0
    %v2823 = vadd.f32 0.0, %v2822
    %v2824 = vpop.f32.mrb[0].mxu0
    %2825 = vmatprep.mubr.bf16.mxu0 0
    %2826 = vmatmul.mubr.bf16.gmra.mrb[0].mxu0 %v2686
    %v2827 = vpop.f32.mrb[0].mxu0
    %v2828 = vadd.f32 0.0, %v2827
    %v2829 = vpop.f32.mrb[0].mxu0
    %v2830 = vpop.f32.mrb[0].mxu0
    %v2831 = vadd.f32 0.0, %v2830
    %v2832 = vpop.f32.mrb[0].mxu0
    %2833 = vmatprep.mubr.bf16.mxu0 0
    %2834 = vmatmul.mubr.bf16.gmra.mrb[0].mxu0 %v2687
    %v2835 = vpop.f32.mrb[0].mxu0
    %v2836 = vadd.f32 0.0, %v2835
    %v2837 = vpop.f32.mrb[0].mxu0
    %v2838 = vpop.f32.mrb[0].mxu0
    %v2839 = vadd.f32 0.0, %v2838
    %v2840 = vpop.f32.mrb[0].mxu0
    %2841 = vmatprep.mubr.bf16.mxu0 0
    %2842 = vmatmul.mubr.bf16.gmra.mrb[0].mxu0 %v2688
    %v2843 = vpop.f32.mrb[0].mxu0
    %v2844 = vadd.f32 0.0, %v2843
    %v2845 = vpop.f32.mrb[0].mxu0
    %v2846 = vpop.f32.mrb[0].mxu0
    %v2847 = vadd.f32 0.0, %v2846
    %v2848 = vpop.f32.mrb[0].mxu0
    %2849 = vdwg.mxu0
    %v2850 = vadd.f32 %v2680, %v2788
    %v2851 = vadd.f32 %v2680, %v2791
    %v2852 = vadd.f32 %v2680, %v2796
    %v2853 = vadd.f32 %v2680, %v2799
    %v2854 = vadd.f32 %v2680, %v2804
    %v2855 = vadd.f32 %v2680, %v2807
    %v2856 = vadd.f32 %v2680, %v2812
    %v2857 = vadd.f32 %v2680, %v2815
    %v2858 = vadd.f32 %v2680, %v2820
    %v2859 = vadd.f32 %v2680, %v2823
    %v2860 = vadd.f32 %v2680, %v2828
    %v2861 = vadd.f32 %v2680, %v2831
    %v2862 = vadd.f32 %v2680, %v2836
    %v2863 = vadd.f32 %v2680, %v2839
    %v2864 = vadd.f32 %v2680, %v2844
    %v2865 = vadd.f32 %v2680, %v2847
    %vm2898 = vcmask 1046528
    %v2899 = vrot.slane %v2625, 1
    %v2900 = vrot.slane %v2626, 1
    %v2901 = vsel %vm2898, %v2899, %v2900
    %v2902 = vrot.slane %v2627, 1
    %v2903 = vrot.slane %v2628, 1
    %v2904 = vsel %vm2898, %v2902, %v2903
    %v2905 = vrot.slane %v2629, 1
    %v2906 = vrot.slane %v2630, 1
    %v2907 = vsel %vm2898, %v2905, %v2906
    %v2908 = vrot.slane %v2631, 1
    %v2909 = vrot.slane %v2632, 1
    %v2910 = vsel %vm2898, %v2908, %v2909
    %v2911 = vrot.slane %v2633, 1
    %v2912 = vrot.slane %v2634, 1
    %v2913 = vsel %vm2898, %v2911, %v2912
    %v2914 = vrot.slane %v2635, 1
    %v2915 = vrot.slane %v2636, 1
    %v2916 = vsel %vm2898, %v2914, %v2915
    %v2917 = vrot.slane %v2637, 1
    %v2918 = vrot.slane %v2638, 1
    %v2919 = vsel %vm2898, %v2917, %v2918
    %v2920 = vrot.slane %v2639, 1
    %v2921 = vrot.slane %v2640, 1
    %v2922 = vsel %vm2898, %v2920, %v2921
    %v2923 = vrot.slane %v2649, 1
    %v2924 = vrot.slane %v2650, 1
    %v2925 = vsel %vm2898, %v2923, %v2924
    %v2926 = vrot.slane %v2651, 1
    %v2927 = vrot.slane %v2652, 1
    %v2928 = vsel %vm2898, %v2926, %v2927
    %v2929 = vrot.slane %v2653, 1
    %v2930 = vrot.slane %v2654, 1
    %v2931 = vsel %vm2898, %v2929, %v2930
    %v2932 = vrot.slane %v2655, 1
    %v2933 = vrot.slane %v2656, 1
    %v2934 = vsel %vm2898, %v2932, %v2933
    %v2935 = vrot.slane %v2657, 1
    %v2936 = vrot.slane %v2658, 1
    %v2937 = vsel %vm2898, %v2935, %v2936
    %v2938 = vrot.slane %v2659, 1
    %v2939 = vrot.slane %v2660, 1
    %v2940 = vsel %vm2898, %v2938, %v2939
    %v2941 = vrot.slane %v2661, 1
    %v2942 = vrot.slane %v2662, 1
    %v2943 = vsel %vm2898, %v2941, %v2942
    %v2944 = vrot.slane %v2663, 1
    %v2945 = vrot.slane %v2664, 1
    %v2946 = vsel %vm2898, %v2944, %v2945
    %v2963 = vpack.c.bf16 %v2904, %v2901
    %v2964 = vpack.c.bf16 %v2910, %v2907
    %v2965 = vpack.c.bf16 %v2916, %v2913
    %v2966 = vpack.c.bf16 %v2922, %v2919
    %v2967 = vpack.c.bf16 %v2928, %v2925
    %v2968 = vpack.c.bf16 %v2934, %v2931
    %v2969 = vpack.c.bf16 %v2940, %v2937
    %v2970 = vpack.c.bf16 %v2946, %v2943
    %s2971 = scalar_lea.vmem %s3, 64
    %v2972 = vld [vmem:[%s2971] sm:$0xf]
    %v2973 = vld [vmem:[%s2971 + $0x4] sm:$0xf]
    %v2974 = vld [vmem:[%s2971 + $0x8] sm:$0xf]
    %v2975 = vld [vmem:[%s2971 + $0xc] sm:$0xf]
    %v2976 = vld [vmem:[%s2971 + $0x10] sm:$0xf]
    %v2977 = vld [vmem:[%s2971 + $0x14] sm:$0xf]
    %v2978 = vld [vmem:[%s2971 + $0x18] sm:$0xf]
    %v2979 = vld [vmem:[%s2971 + $0x1c] sm:$0xf]
    %v2980 = vld [vmem:[%s2971 + $0x20] sm:$0xf]
    %v2981 = vld [vmem:[%s2971 + $0x24] sm:$0xf]
    %v2982 = vld [vmem:[%s2971 + $0x28] sm:$0xf]
    %v2983 = vld [vmem:[%s2971 + $0x2c] sm:$0xf]
    %v2984 = vld [vmem:[%s2971 + $0x30] sm:$0xf]
    %v2985 = vld [vmem:[%s2971 + $0x34] sm:$0xf]
    %v2986 = vld [vmem:[%s2971 + $0x38] sm:$0xf]
    %v2987 = vld [vmem:[%s2971 + $0x3c] sm:$0xf]
    %v3004 = vunpack.c.l.b16 %v2972
    %v3005 = vunpack.c.l.b16 %v2973
    %v3006 = vunpack.c.l.b16 %v2974
    %v3007 = vunpack.c.l.b16 %v2975
    %v3008 = vunpack.c.l.b16 %v2976
    %v3009 = vunpack.c.l.b16 %v2977
    %v3010 = vunpack.c.l.b16 %v2978
    %v3011 = vunpack.c.l.b16 %v2979
    %v3012 = vunpack.c.l.b16 %v2980
    %v3013 = vunpack.c.l.b16 %v2981
    %v3014 = vunpack.c.l.b16 %v2982
    %v3015 = vunpack.c.l.b16 %v2983
    %v3016 = vunpack.c.l.b16 %v2984
    %v3017 = vunpack.c.l.b16 %v2985
    %v3018 = vunpack.c.l.b16 %v2986
    %v3019 = vunpack.c.l.b16 %v2987
    %v3020 = vpack.c.b16 %v3005, %v3004
    %v3021 = vpack.c.b16 %v3007, %v3006
    %v3022 = vpack.c.b16 %v3009, %v3008
    %v3023 = vpack.c.b16 %v3011, %v3010
    %v3024 = vpack.c.b16 %v3013, %v3012
    %v3025 = vpack.c.b16 %v3015, %v3014
    %v3026 = vpack.c.b16 %v3017, %v3016
    %v3027 = vpack.c.b16 %v3019, %v3018
    %3036 = vmatprep.subr.bf16.mxu0 0
    %3037 = vmatpush1.bf16.msra.mxu0 %v3020
    %3038 = vmatprep.subr.bf16.mxu0 0
    %3039 = vmatpush1.bf16.msra.mxu0 %v3021
    %3040 = vmatprep.subr.bf16.mxu0 0
    %3041 = vmatpush1.bf16.msra.mxu0 %v3022
    %3042 = vmatprep.subr.bf16.mxu0 0
    %3043 = vmatpush1.bf16.msra.mxu0 %v3023
    %3044 = vmatprep.subr.bf16.mxu0 0
    %3045 = vmatpush1.bf16.msra.mxu0 %v3024
    %3046 = vmatprep.subr.bf16.mxu0 0
    %3047 = vmatpush1.bf16.msra.mxu0 %v3025
    %3048 = vmatprep.subr.bf16.mxu0 0
    %3049 = vmatpush1.bf16.msra.mxu0 %v3026
    %3050 = vmatprep.subr.bf16.mxu0 0
    %3051 = vmatpush1.bf16.msra.mxu0 %v3027
    %3052 = vmatprep.subr.bf16.mxu0 0
    %3053 = vmatpush1.bf16.msra.mxu0 0
    %3054 = vmatprep.subr.bf16.mxu0 0
    %3055 = vmatpush1.bf16.msra.mxu0 0
    %3056 = vmatprep.subr.bf16.mxu0 0
    %3057 = vmatpush1.bf16.msra.mxu0 0
    %3058 = vmatprep.subr.bf16.mxu0 0
    %3059 = vmatpush1.bf16.msra.mxu0 0
    %3060 = vmatprep.subr.bf16.mxu0 0
    %3061 = vmatpush1.bf16.msra.mxu0 0
    %3062 = vmatprep.subr.bf16.mxu0 0
    %3063 = vmatpush1.bf16.msra.mxu0 0
    %3064 = vmatprep.subr.bf16.mxu0 0
    %3065 = vmatpush1.bf16.msra.mxu0 0
    %3066 = vmatprep.subr.bf16.mxu0 0
    %3067 = vmatpush1.bf16.msra.mxu0 0
    %3068 = vmatprep.mubr.bf16.mxu0 0
    %3069 = vmatmul.mubr.bf16.gmra.mrb[0].mxu0 %v2963
    %v3070 = vpop.f32.mrb[0].mxu0
    %v3071 = vadd.f32 0.0, %v3070
    %v3072 = vpop.f32.mrb[0].mxu0
    %v3073 = vpop.f32.mrb[0].mxu0
    %v3074 = vadd.f32 0.0, %v3073
    %v3075 = vpop.f32.mrb[0].mxu0
    %3076 = vmatprep.mubr.bf16.mxu0 0
    %3077 = vmatmul.mubr.bf16.gmra.mrb[0].mxu0 %v2964
    %v3078 = vpop.f32.mrb[0].mxu0
    %v3079 = vadd.f32 0.0, %v3078
    %v3080 = vpop.f32.mrb[0].mxu0
    %v3081 = vpop.f32.mrb[0].mxu0
    %v3082 = vadd.f32 0.0, %v3081
    %v3083 = vpop.f32.mrb[0].mxu0
    %3084 = vmatprep.mubr.bf16.mxu0 0
    %3085 = vmatmul.mubr.bf16.gmra.mrb[0].mxu0 %v2965
    %v3086 = vpop.f32.mrb[0].mxu0
    %v3087 = vadd.f32 0.0, %v3086
    %v3088 = vpop.f32.mrb[0].mxu0
    %v3089 = vpop.f32.mrb[0].mxu0
    %v3090 = vadd.f32 0.0, %v3089
    %v3091 = vpop.f32.mrb[0].mxu0
    %3092 = vmatprep.mubr.bf16.mxu0 0
    %3093 = vmatmul.mubr.bf16.gmra.mrb[0].mxu0 %v2966
    %v3094 = vpop.f32.mrb[0].mxu0
    %v3095 = vadd.f32 0.0, %v3094
    %v3096 = vpop.f32.mrb[0].mxu0
    %v3097 = vpop.f32.mrb[0].mxu0
    %v3098 = vadd.f32 0.0, %v3097
    %v3099 = vpop.f32.mrb[0].mxu0
    %3100 = vmatprep.mubr.bf16.mxu0 0
    %3101 = vmatmul.mubr.bf16.gmra.mrb[0].mxu0 %v2967
    %v3102 = vpop.f32.mrb[0].mxu0
    %v3103 = vadd.f32 0.0, %v3102
    %v3104 = vpop.f32.mrb[0].mxu0
    %v3105 = vpop.f32.mrb[0].mxu0
    %v3106 = vadd.f32 0.0, %v3105
    %v3107 = vpop.f32.mrb[0].mxu0
    %3108 = vmatprep.mubr.bf16.mxu0 0
    %3109 = vmatmul.mubr.bf16.gmra.mrb[0].mxu0 %v2968
    %v3110 = vpop.f32.mrb[0].mxu0
    %v3111 = vadd.f32 0.0, %v3110
    %v3112 = vpop.f32.mrb[0].mxu0
    %v3113 = vpop.f32.mrb[0].mxu0
    %v3114 = vadd.f32 0.0, %v3113
    %v3115 = vpop.f32.mrb[0].mxu0
    %3116 = vmatprep.mubr.bf16.mxu0 0
    %3117 = vmatmul.mubr.bf16.gmra.mrb[0].mxu0 %v2969
    %v3118 = vpop.f32.mrb[0].mxu0
    %v3119 = vadd.f32 0.0, %v3118
    %v3120 = vpop.f32.mrb[0].mxu0
    %v3121 = vpop.f32.mrb[0].mxu0
    %v3122 = vadd.f32 0.0, %v3121
    %v3123 = vpop.f32.mrb[0].mxu0
    %3124 = vmatprep.mubr.bf16.mxu0 0
    %3125 = vmatmul.mubr.bf16.gmra.mrb[0].mxu0 %v2970
    %v3126 = vpop.f32.mrb[0].mxu0
    %v3127 = vadd.f32 0.0, %v3126
    %v3128 = vpop.f32.mrb[0].mxu0
    %v3129 = vpop.f32.mrb[0].mxu0
    %v3130 = vadd.f32 0.0, %v3129
    %v3131 = vpop.f32.mrb[0].mxu0
    %3132 = vdwg.mxu0
    %v3133 = vadd.f32 %v2850, %v3071
    %v3134 = vadd.f32 %v2851, %v3074
    %v3135 = vadd.f32 %v2852, %v3079
    %v3136 = vadd.f32 %v2853, %v3082
    %v3137 = vadd.f32 %v2854, %v3087
    %v3138 = vadd.f32 %v2855, %v3090
    %v3139 = vadd.f32 %v2856, %v3095
    %v3140 = vadd.f32 %v2857, %v3098
    %v3141 = vadd.f32 %v2858, %v3103
    %v3142 = vadd.f32 %v2859, %v3106
    %v3143 = vadd.f32 %v2860, %v3111
    %v3144 = vadd.f32 %v2861, %v3114
    %v3145 = vadd.f32 %v2862, %v3119
    %v3146 = vadd.f32 %v2863, %v3122
    %v3147 = vadd.f32 %v2864, %v3127
    %v3148 = vadd.f32 %v2865, %v3130
    %vm3149 = vcmask 1045504
    %v3150 = vrot.slane %v2625, 2
    %v3151 = vrot.slane %v2626, 2
    %v3152 = vsel %vm3149, %v3150, %v3151
    %v3153 = vrot.slane %v2627, 2
    %v3154 = vrot.slane %v2628, 2
    %v3155 = vsel %vm3149, %v3153, %v3154
    %v3156 = vrot.slane %v2629, 2
    %v3157 = vrot.slane %v2630, 2
    %v3158 = vsel %vm3149, %v3156, %v3157
    %v3159 = vrot.slane %v2631, 2
    %v3160 = vrot.slane %v2632, 2
    %v3161 = vsel %vm3149, %v3159, %v3160
    %v3162 = vrot.slane %v2633, 2
    %v3163 = vrot.slane %v2634, 2
    %v3164 = vsel %vm3149, %v3162, %v3163
    %v3165 = vrot.slane %v2635, 2
    %v3166 = vrot.slane %v2636, 2
    %v3167 = vsel %vm3149, %v3165, %v3166
    %v3168 = vrot.slane %v2637, 2
    %v3169 = vrot.slane %v2638, 2
    %v3170 = vsel %vm3149, %v3168, %v3169
    %v3171 = vrot.slane %v2639, 2
    %v3172 = vrot.slane %v2640, 2
    %v3173 = vsel %vm3149, %v3171, %v3172
    %v3174 = vrot.slane %v2649, 2
    %v3175 = vrot.slane %v2650, 2
    %v3176 = vsel %vm3149, %v3174, %v3175
    %v3177 = vrot.slane %v2651, 2
    %v3178 = vrot.slane %v2652, 2
    %v3179 = vsel %vm3149, %v3177, %v3178
    %v3180 = vrot.slane %v2653, 2
    %v3181 = vrot.slane %v2654, 2
    %v3182 = vsel %vm3149, %v3180, %v3181
    %v3183 = vrot.slane %v2655, 2
    %v3184 = vrot.slane %v2656, 2
    %v3185 = vsel %vm3149, %v3183, %v3184
    %v3186 = vrot.slane %v2657, 2
    %v3187 = vrot.slane %v2658, 2
    %v3188 = vsel %vm3149, %v3186, %v3187
    %v3189 = vrot.slane %v2659, 2
    %v3190 = vrot.slane %v2660, 2
    %v3191 = vsel %vm3149, %v3189, %v3190
    %v3192 = vrot.slane %v2661, 2
    %v3193 = vrot.slane %v2662, 2
    %v3194 = vsel %vm3149, %v3192, %v3193
    %v3195 = vrot.slane %v2663, 2
    %v3196 = vrot.slane %v2664, 2
    %v3197 = vsel %vm3149, %v3195, %v3196
    %v3214 = vpack.c.bf16 %v3155, %v3152
    %v3215 = vpack.c.bf16 %v3161, %v3158
    %v3216 = vpack.c.bf16 %v3167, %v3164
    %v3217 = vpack.c.bf16 %v3173, %v3170
    %v3218 = vpack.c.bf16 %v3179, %v3176
    %v3219 = vpack.c.bf16 %v3185, %v3182
    %v3220 = vpack.c.bf16 %v3191, %v3188
    %v3221 = vpack.c.bf16 %v3197, %v3194
    %s3222 = scalar_lea.vmem %s3, 128
    %v3223 = vld [vmem:[%s3222] sm:$0xf]
    %v3224 = vld [vmem:[%s3222 + $0x4] sm:$0xf]
    %v3225 = vld [vmem:[%s3222 + $0x8] sm:$0xf]
    %v3226 = vld [vmem:[%s3222 + $0xc] sm:$0xf]
    %v3227 = vld [vmem:[%s3222 + $0x10] sm:$0xf]
    %v3228 = vld [vmem:[%s3222 + $0x14] sm:$0xf]
    %v3229 = vld [vmem:[%s3222 + $0x18] sm:$0xf]
    %v3230 = vld [vmem:[%s3222 + $0x1c] sm:$0xf]
    %v3231 = vld [vmem:[%s3222 + $0x20] sm:$0xf]
    %v3232 = vld [vmem:[%s3222 + $0x24] sm:$0xf]
    %v3233 = vld [vmem:[%s3222 + $0x28] sm:$0xf]
    %v3234 = vld [vmem:[%s3222 + $0x2c] sm:$0xf]
    %v3235 = vld [vmem:[%s3222 + $0x30] sm:$0xf]
    %v3236 = vld [vmem:[%s3222 + $0x34] sm:$0xf]
    %v3237 = vld [vmem:[%s3222 + $0x38] sm:$0xf]
    %v3238 = vld [vmem:[%s3222 + $0x3c] sm:$0xf]
    %v3255 = vunpack.c.l.b16 %v3223
    %v3256 = vunpack.c.l.b16 %v3224
    %v3257 = vunpack.c.l.b16 %v3225
    %v3258 = vunpack.c.l.b16 %v3226
    %v3259 = vunpack.c.l.b16 %v3227
    %v3260 = vunpack.c.l.b16 %v3228
    %v3261 = vunpack.c.l.b16 %v3229
    %v3262 = vunpack.c.l.b16 %v3230
    %v3263 = vunpack.c.l.b16 %v3231
    %v3264 = vunpack.c.l.b16 %v3232
    %v3265 = vunpack.c.l.b16 %v3233
    %v3266 = vunpack.c.l.b16 %v3234
    %v3267 = vunpack.c.l.b16 %v3235
    %v3268 = vunpack.c.l.b16 %v3236
    %v3269 = vunpack.c.l.b16 %v3237
    %v3270 = vunpack.c.l.b16 %v3238
    %v3271 = vpack.c.b16 %v3256, %v3255
    %v3272 = vpack.c.b16 %v3258, %v3257
    %v3273 = vpack.c.b16 %v3260, %v3259
    %v3274 = vpack.c.b16 %v3262, %v3261
    %v3275 = vpack.c.b16 %v3264, %v3263
    %v3276 = vpack.c.b16 %v3266, %v3265
    %v3277 = vpack.c.b16 %v3268, %v3267
    %v3278 = vpack.c.b16 %v3270, %v3269
    %3287 = vmatprep.subr.bf16.mxu0 0
    %3288 = vmatpush1.bf16.msra.mxu0 %v3271
    %3289 = vmatprep.subr.bf16.mxu0 0
    %3290 = vmatpush1.bf16.msra.mxu0 %v3272
    %3291 = vmatprep.subr.bf16.mxu0 0
    %3292 = vmatpush1.bf16.msra.mxu0 %v3273
    %3293 = vmatprep.subr.bf16.mxu0 0
    %3294 = vmatpush1.bf16.msra.mxu0 %v3274
    %3295 = vmatprep.subr.bf16.mxu0 0
    %3296 = vmatpush1.bf16.msra.mxu0 %v3275
    %3297 = vmatprep.subr.bf16.mxu0 0
    %3298 = vmatpush1.bf16.msra.mxu0 %v3276
    %3299 = vmatprep.subr.bf16.mxu0 0
    %3300 = vmatpush1.bf16.msra.mxu0 %v3277
    %3301 = vmatprep.subr.bf16.mxu0 0
    %3302 = vmatpush1.bf16.msra.mxu0 %v3278
    %3303 = vmatprep.subr.bf16.mxu0 0
    %3304 = vmatpush1.bf16.msra.mxu0 0
    %3305 = vmatprep.subr.bf16.mxu0 0
    %3306 = vmatpush1.bf16.msra.mxu0 0
    %3307 = vmatprep.subr.bf16.mxu0 0
    %3308 = vmatpush1.bf16.msra.mxu0 0
    %3309 = vmatprep.subr.bf16.mxu0 0
    %3310 = vmatpush1.bf16.msra.mxu0 0
    %3311 = vmatprep.subr.bf16.mxu0 0
    %3312 = vmatpush1.bf16.msra.mxu0 0
    %3313 = vmatprep.subr.bf16.mxu0 0
    %3314 = vmatpush1.bf16.msra.mxu0 0
    %3315 = vmatprep.subr.bf16.mxu0 0
    %3316 = vmatpush1.bf16.msra.mxu0 0
    %3317 = vmatprep.subr.bf16.mxu0 0
    %3318 = vmatpush1.bf16.msra.mxu0 0
    %3319 = vmatprep.mubr.bf16.mxu0 0
    %3320 = vmatmul.mubr.bf16.gmra.mrb[0].mxu0 %v3214
    %v3321 = vpop.f32.mrb[0].mxu0
    %v3322 = vadd.f32 0.0, %v3321
    %v3323 = vpop.f32.mrb[0].mxu0
    %v3324 = vpop.f32.mrb[0].mxu0
    %v3325 = vadd.f32 0.0, %v3324
    %v3326 = vpop.f32.mrb[0].mxu0
    %3327 = vmatprep.mubr.bf16.mxu0 0
    %3328 = vmatmul.mubr.bf16.gmra.mrb[0].mxu0 %v3215
    %v3329 = vpop.f32.mrb[0].mxu0
    %v3330 = vadd.f32 0.0, %v3329
    %v3331 = vpop.f32.mrb[0].mxu0
    %v3332 = vpop.f32.mrb[0].mxu0
    %v3333 = vadd.f32 0.0, %v3332
    %v3334 = vpop.f32.mrb[0].mxu0
    %3335 = vmatprep.mubr.bf16.mxu0 0
    %3336 = vmatmul.mubr.bf16.gmra.mrb[0].mxu0 %v3216
    %v3337 = vpop.f32.mrb[0].mxu0
    %v3338 = vadd.f32 0.0, %v3337
    %v3339 = vpop.f32.mrb[0].mxu0
    %v3340 = vpop.f32.mrb[0].mxu0
    %v3341 = vadd.f32 0.0, %v3340
    %v3342 = vpop.f32.mrb[0].mxu0
    %3343 = vmatprep.mubr.bf16.mxu0 0
    %3344 = vmatmul.mubr.bf16.gmra.mrb[0].mxu0 %v3217
    %v3345 = vpop.f32.mrb[0].mxu0
    %v3346 = vadd.f32 0.0, %v3345
    %v3347 = vpop.f32.mrb[0].mxu0
    %v3348 = vpop.f32.mrb[0].mxu0
    %v3349 = vadd.f32 0.0, %v3348
    %v3350 = vpop.f32.mrb[0].mxu0
    %3351 = vmatprep.mubr.bf16.mxu0 0
    %3352 = vmatmul.mubr.bf16.gmra.mrb[0].mxu0 %v3218
    %v3353 = vpop.f32.mrb[0].mxu0
    %v3354 = vadd.f32 0.0, %v3353
    %v3355 = vpop.f32.mrb[0].mxu0
    %v3356 = vpop.f32.mrb[0].mxu0
    %v3357 = vadd.f32 0.0, %v3356
    %v3358 = vpop.f32.mrb[0].mxu0
    %3359 = vmatprep.mubr.bf16.mxu0 0
    %3360 = vmatmul.mubr.bf16.gmra.mrb[0].mxu0 %v3219
    %v3361 = vpop.f32.mrb[0].mxu0
    %v3362 = vadd.f32 0.0, %v3361
    %v3363 = vpop.f32.mrb[0].mxu0
    %v3364 = vpop.f32.mrb[0].mxu0
    %v3365 = vadd.f32 0.0, %v3364
    %v3366 = vpop.f32.mrb[0].mxu0
    %3367 = vmatprep.mubr.bf16.mxu0 0
    %3368 = vmatmul.mubr.bf16.gmra.mrb[0].mxu0 %v3220
    %v3369 = vpop.f32.mrb[0].mxu0
    %v3370 = vadd.f32 0.0, %v3369
    %v3371 = vpop.f32.mrb[0].mxu0
    %v3372 = vpop.f32.mrb[0].mxu0
    %v3373 = vadd.f32 0.0, %v3372
    %v3374 = vpop.f32.mrb[0].mxu0
    %3375 = vmatprep.mubr.bf16.mxu0 0
    %3376 = vmatmul.mubr.bf16.gmra.mrb[0].mxu0 %v3221
    %v3377 = vpop.f32.mrb[0].mxu0
    %v3378 = vadd.f32 0.0, %v3377
    %v3379 = vpop.f32.mrb[0].mxu0
    %v3380 = vpop.f32.mrb[0].mxu0
    %v3381 = vadd.f32 0.0, %v3380
    %v3382 = vpop.f32.mrb[0].mxu0
    %3383 = vdwg.mxu0
    %v3384 = vadd.f32 %v3133, %v3322
    %v3385 = vadd.f32 %v3134, %v3325
    %v3386 = vadd.f32 %v3135, %v3330
    %v3387 = vadd.f32 %v3136, %v3333
    %v3388 = vadd.f32 %v3137, %v3338
    %v3389 = vadd.f32 %v3138, %v3341
    %v3390 = vadd.f32 %v3139, %v3346
    %v3391 = vadd.f32 %v3140, %v3349
    %v3392 = vadd.f32 %v3141, %v3354
    %v3393 = vadd.f32 %v3142, %v3357
    %v3394 = vadd.f32 %v3143, %v3362
    %v3395 = vadd.f32 %v3144, %v3365
    %v3396 = vadd.f32 %v3145, %v3370
    %v3397 = vadd.f32 %v3146, %v3373
    %v3398 = vadd.f32 %v3147, %v3378
    %v3399 = vadd.f32 %v3148, %v3381
    %vm3400 = vcmask 1044480
    %v3401 = vrot.slane %v2625, 3
    %v3402 = vrot.slane %v2626, 3
    %v3403 = vsel %vm3400, %v3401, %v3402
    %v3404 = vrot.slane %v2627, 3
    %v3405 = vrot.slane %v2628, 3
    %v3406 = vsel %vm3400, %v3404, %v3405
    %v3407 = vrot.slane %v2629, 3
    %v3408 = vrot.slane %v2630, 3
    %v3409 = vsel %vm3400, %v3407, %v3408
    %v3410 = vrot.slane %v2631, 3
    %v3411 = vrot.slane %v2632, 3
    %v3412 = vsel %vm3400, %v3410, %v3411
    %v3413 = vrot.slane %v2633, 3
    %v3414 = vrot.slane %v2634, 3
    %v3415 = vsel %vm3400, %v3413, %v3414
    %v3416 = vrot.slane %v2635, 3
    %v3417 = vrot.slane %v2636, 3
    %v3418 = vsel %vm3400, %v3416, %v3417
    %v3419 = vrot.slane %v2637, 3
    %v3420 = vrot.slane %v2638, 3
    %v3421 = vsel %vm3400, %v3419, %v3420
    %v3422 = vrot.slane %v2639, 3
    %v3423 = vrot.slane %v2640, 3
    %v3424 = vsel %vm3400, %v3422, %v3423
    %v3425 = vrot.slane %v2649, 3
    %v3426 = vrot.slane %v2650, 3
    %v3427 = vsel %vm3400, %v3425, %v3426
    %v3428 = vrot.slane %v2651, 3
    %v3429 = vrot.slane %v2652, 3
    %v3430 = vsel %vm3400, %v3428, %v3429
    %v3431 = vrot.slane %v2653, 3
    %v3432 = vrot.slane %v2654, 3
    %v3433 = vsel %vm3400, %v3431, %v3432
    %v3434 = vrot.slane %v2655, 3
    %v3435 = vrot.slane %v2656, 3
    %v3436 = vsel %vm3400, %v3434, %v3435
    %v3437 = vrot.slane %v2657, 3
    %v3438 = vrot.slane %v2658, 3
    %v3439 = vsel %vm3400, %v3437, %v3438
    %v3440 = vrot.slane %v2659, 3
    %v3441 = vrot.slane %v2660, 3
    %v3442 = vsel %vm3400, %v3440, %v3441
    %v3443 = vrot.slane %v2661, 3
    %v3444 = vrot.slane %v2662, 3
    %v3445 = vsel %vm3400, %v3443, %v3444
    %v3446 = vrot.slane %v2663, 3
    %v3447 = vrot.slane %v2664, 3
    %v3448 = vsel %vm3400, %v3446, %v3447
    %v3465 = vpack.c.bf16 %v3406, %v3403
    %v3466 = vpack.c.bf16 %v3412, %v3409
    %v3467 = vpack.c.bf16 %v3418, %v3415
    %v3468 = vpack.c.bf16 %v3424, %v3421
    %v3469 = vpack.c.bf16 %v3430, %v3427
    %v3470 = vpack.c.bf16 %v3436, %v3433
    %v3471 = vpack.c.bf16 %v3442, %v3439
    %v3472 = vpack.c.bf16 %v3448, %v3445
    %s3473 = scalar_lea.vmem %s3, 192
    %v3474 = vld [vmem:[%s3473] sm:$0xf]
    %v3475 = vld [vmem:[%s3473 + $0x4] sm:$0xf]
    %v3476 = vld [vmem:[%s3473 + $0x8] sm:$0xf]
    %v3477 = vld [vmem:[%s3473 + $0xc] sm:$0xf]
    %v3478 = vld [vmem:[%s3473 + $0x10] sm:$0xf]
    %v3479 = vld [vmem:[%s3473 + $0x14] sm:$0xf]
    %v3480 = vld [vmem:[%s3473 + $0x18] sm:$0xf]
    %v3481 = vld [vmem:[%s3473 + $0x1c] sm:$0xf]
    %v3482 = vld [vmem:[%s3473 + $0x20] sm:$0xf]
    %v3483 = vld [vmem:[%s3473 + $0x24] sm:$0xf]
    %v3484 = vld [vmem:[%s3473 + $0x28] sm:$0xf]
    %v3485 = vld [vmem:[%s3473 + $0x2c] sm:$0xf]
    %v3486 = vld [vmem:[%s3473 + $0x30] sm:$0xf]
    %v3487 = vld [vmem:[%s3473 + $0x34] sm:$0xf]
    %v3488 = vld [vmem:[%s3473 + $0x38] sm:$0xf]
    %v3489 = vld [vmem:[%s3473 + $0x3c] sm:$0xf]
    %v3506 = vunpack.c.l.b16 %v3474
    %v3507 = vunpack.c.l.b16 %v3475
    %v3508 = vunpack.c.l.b16 %v3476
    %v3509 = vunpack.c.l.b16 %v3477
    %v3510 = vunpack.c.l.b16 %v3478
    %v3511 = vunpack.c.l.b16 %v3479
    %v3512 = vunpack.c.l.b16 %v3480
    %v3513 = vunpack.c.l.b16 %v3481
    %v3514 = vunpack.c.l.b16 %v3482
    %v3515 = vunpack.c.l.b16 %v3483
    %v3516 = vunpack.c.l.b16 %v3484
    %v3517 = vunpack.c.l.b16 %v3485
    %v3518 = vunpack.c.l.b16 %v3486
    %v3519 = vunpack.c.l.b16 %v3487
    %v3520 = vunpack.c.l.b16 %v3488
    %v3521 = vunpack.c.l.b16 %v3489
    %v3522 = vpack.c.b16 %v3507, %v3506
    %v3523 = vpack.c.b16 %v3509, %v3508
    %v3524 = vpack.c.b16 %v3511, %v3510
    %v3525 = vpack.c.b16 %v3513, %v3512
    %v3526 = vpack.c.b16 %v3515, %v3514
    %v3527 = vpack.c.b16 %v3517, %v3516
    %v3528 = vpack.c.b16 %v3519, %v3518
    %v3529 = vpack.c.b16 %v3521, %v3520
    %3538 = vmatprep.subr.bf16.mxu0 0
    %3539 = vmatpush1.bf16.msra.mxu0 %v3522
    %3540 = vmatprep.subr.bf16.mxu0 0
    %3541 = vmatpush1.bf16.msra.mxu0 %v3523
    %3542 = vmatprep.subr.bf16.mxu0 0
    %3543 = vmatpush1.bf16.msra.mxu0 %v3524
    %3544 = vmatprep.subr.bf16.mxu0 0
    %3545 = vmatpush1.bf16.msra.mxu0 %v3525
    %3546 = vmatprep.subr.bf16.mxu0 0
    %3547 = vmatpush1.bf16.msra.mxu0 %v3526
    %3548 = vmatprep.subr.bf16.mxu0 0
    %3549 = vmatpush1.bf16.msra.mxu0 %v3527
    %3550 = vmatprep.subr.bf16.mxu0 0
    %3551 = vmatpush1.bf16.msra.mxu0 %v3528
    %3552 = vmatprep.subr.bf16.mxu0 0
    %3553 = vmatpush1.bf16.msra.mxu0 %v3529
    %3554 = vmatprep.subr.bf16.mxu0 0
    %3555 = vmatpush1.bf16.msra.mxu0 0
    %3556 = vmatprep.subr.bf16.mxu0 0
    %3557 = vmatpush1.bf16.msra.mxu0 0
    %3558 = vmatprep.subr.bf16.mxu0 0
    %3559 = vmatpush1.bf16.msra.mxu0 0
    %3560 = vmatprep.subr.bf16.mxu0 0
    %3561 = vmatpush1.bf16.msra.mxu0 0
    %3562 = vmatprep.subr.bf16.mxu0 0
    %3563 = vmatpush1.bf16.msra.mxu0 0
    %3564 = vmatprep.subr.bf16.mxu0 0
    %3565 = vmatpush1.bf16.msra.mxu0 0
    %3566 = vmatprep.subr.bf16.mxu0 0
    %3567 = vmatpush1.bf16.msra.mxu0 0
    %3568 = vmatprep.subr.bf16.mxu0 0
    %3569 = vmatpush1.bf16.msra.mxu0 0
    %3570 = vmatprep.mubr.bf16.mxu0 0
    %3571 = vmatmul.mubr.bf16.gmra.mrb[0].mxu0 %v3465
    %v3572 = vpop.f32.mrb[0].mxu0
    %v3573 = vadd.f32 0.0, %v3572
    %v3574 = vpop.f32.mrb[0].mxu0
    %v3575 = vpop.f32.mrb[0].mxu0
    %v3576 = vadd.f32 0.0, %v3575
    %v3577 = vpop.f32.mrb[0].mxu0
    %3578 = vmatprep.mubr.bf16.mxu0 0
    %3579 = vmatmul.mubr.bf16.gmra.mrb[0].mxu0 %v3466
    %v3580 = vpop.f32.mrb[0].mxu0
    %v3581 = vadd.f32 0.0, %v3580
    %v3582 = vpop.f32.mrb[0].mxu0
    %v3583 = vpop.f32.mrb[0].mxu0
    %v3584 = vadd.f32 0.0, %v3583
    %v3585 = vpop.f32.mrb[0].mxu0
    %3586 = vmatprep.mubr.bf16.mxu0 0
    %3587 = vmatmul.mubr.bf16.gmra.mrb[0].mxu0 %v3467
    %v3588 = vpop.f32.mrb[0].mxu0
    %v3589 = vadd.f32 0.0, %v3588
    %v3590 = vpop.f32.mrb[0].mxu0
    %v3591 = vpop.f32.mrb[0].mxu0
    %v3592 = vadd.f32 0.0, %v3591
    %v3593 = vpop.f32.mrb[0].mxu0
    %3594 = vmatprep.mubr.bf16.mxu0 0
    %3595 = vmatmul.mubr.bf16.gmra.mrb[0].mxu0 %v3468
    %v3596 = vpop.f32.mrb[0].mxu0
    %v3597 = vadd.f32 0.0, %v3596
    %v3598 = vpop.f32.mrb[0].mxu0
    %v3599 = vpop.f32.mrb[0].mxu0
    %v3600 = vadd.f32 0.0, %v3599
    %v3601 = vpop.f32.mrb[0].mxu0
    %3602 = vmatprep.mubr.bf16.mxu0 0
    %3603 = vmatmul.mubr.bf16.gmra.mrb[0].mxu0 %v3469
    %v3604 = vpop.f32.mrb[0].mxu0
    %v3605 = vadd.f32 0.0, %v3604
    %v3606 = vpop.f32.mrb[0].mxu0
    %v3607 = vpop.f32.mrb[0].mxu0
    %v3608 = vadd.f32 0.0, %v3607
    %v3609 = vpop.f32.mrb[0].mxu0
    %3610 = vmatprep.mubr.bf16.mxu0 0
    %3611 = vmatmul.mubr.bf16.gmra.mrb[0].mxu0 %v3470
    %v3612 = vpop.f32.mrb[0].mxu0
    %v3613 = vadd.f32 0.0, %v3612
    %v3614 = vpop.f32.mrb[0].mxu0
    %v3615 = vpop.f32.mrb[0].mxu0
    %v3616 = vadd.f32 0.0, %v3615
    %v3617 = vpop.f32.mrb[0].mxu0
    %3618 = vmatprep.mubr.bf16.mxu0 0
    %3619 = vmatmul.mubr.bf16.gmra.mrb[0].mxu0 %v3471
    %v3620 = vpop.f32.mrb[0].mxu0
    %v3621 = vadd.f32 0.0, %v3620
    %v3622 = vpop.f32.mrb[0].mxu0
    %v3623 = vpop.f32.mrb[0].mxu0
    %v3624 = vadd.f32 0.0, %v3623
    %v3625 = vpop.f32.mrb[0].mxu0
    %3626 = vmatprep.mubr.bf16.mxu0 0
    %3627 = vmatmul.mubr.bf16.gmra.mrb[0].mxu0 %v3472
    %v3628 = vpop.f32.mrb[0].mxu0
    %v3629 = vadd.f32 0.0, %v3628
    %v3630 = vpop.f32.mrb[0].mxu0
    %v3631 = vpop.f32.mrb[0].mxu0
    %v3632 = vadd.f32 0.0, %v3631
    %v3633 = vpop.f32.mrb[0].mxu0
    %3634 = vdwg.mxu0
    %v3635 = vadd.f32 %v3384, %v3573
    %v3636 = vadd.f32 %v3385, %v3576
    %v3637 = vadd.f32 %v3386, %v3581
    %v3638 = vadd.f32 %v3387, %v3584
    %v3639 = vadd.f32 %v3388, %v3589
    %v3640 = vadd.f32 %v3389, %v3592
    %v3641 = vadd.f32 %v3390, %v3597
    %v3642 = vadd.f32 %v3391, %v3600
    %v3643 = vadd.f32 %v3392, %v3605
    %v3644 = vadd.f32 %v3393, %v3608
    %v3645 = vadd.f32 %v3394, %v3613
    %v3646 = vadd.f32 %v3395, %v3616
    %v3647 = vadd.f32 %v3396, %v3621
    %v3648 = vadd.f32 %v3397, %v3624
    %v3649 = vadd.f32 %v3398, %v3629
    %v3650 = vadd.f32 %v3399, %v3632
    %vm3651 = vcmask 1043456
    %v3652 = vrot.slane %v2625, 4
    %v3653 = vrot.slane %v2626, 4
    %v3654 = vsel %vm3651, %v3652, %v3653
    %v3655 = vrot.slane %v2627, 4
    %v3656 = vrot.slane %v2628, 4
    %v3657 = vsel %vm3651, %v3655, %v3656
    %v3658 = vrot.slane %v2629, 4
    %v3659 = vrot.slane %v2630, 4
    %v3660 = vsel %vm3651, %v3658, %v3659
    %v3661 = vrot.slane %v2631, 4
    %v3662 = vrot.slane %v2632, 4
    %v3663 = vsel %vm3651, %v3661, %v3662
    %v3664 = vrot.slane %v2633, 4
    %v3665 = vrot.slane %v2634, 4
    %v3666 = vsel %vm3651, %v3664, %v3665
    %v3667 = vrot.slane %v2635, 4
    %v3668 = vrot.slane %v2636, 4
    %v3669 = vsel %vm3651, %v3667, %v3668
    %v3670 = vrot.slane %v2637, 4
    %v3671 = vrot.slane %v2638, 4
    %v3672 = vsel %vm3651, %v3670, %v3671
    %v3673 = vrot.slane %v2639, 4
    %v3674 = vrot.slane %v2640, 4
    %v3675 = vsel %vm3651, %v3673, %v3674
    %v3676 = vrot.slane %v2649, 4
    %v3677 = vrot.slane %v2650, 4
    %v3678 = vsel %vm3651, %v3676, %v3677
    %v3679 = vrot.slane %v2651, 4
    %v3680 = vrot.slane %v2652, 4
    %v3681 = vsel %vm3651, %v3679, %v3680
    %v3682 = vrot.slane %v2653, 4
    %v3683 = vrot.slane %v2654, 4
    %v3684 = vsel %vm3651, %v3682, %v3683
    %v3685 = vrot.slane %v2655, 4
    %v3686 = vrot.slane %v2656, 4
    %v3687 = vsel %vm3651, %v3685, %v3686
    %v3688 = vrot.slane %v2657, 4
    %v3689 = vrot.slane %v2658, 4
    %v3690 = vsel %vm3651, %v3688, %v3689
    %v3691 = vrot.slane %v2659, 4
    %v3692 = vrot.slane %v2660, 4
    %v3693 = vsel %vm3651, %v3691, %v3692
    %v3694 = vrot.slane %v2661, 4
    %v3695 = vrot.slane %v2662, 4
    %v3696 = vsel %vm3651, %v3694, %v3695
    %v3697 = vrot.slane %v2663, 4
    %v3698 = vrot.slane %v2664, 4
    %v3699 = vsel %vm3651, %v3697, %v3698
    %v3716 = vpack.c.bf16 %v3657, %v3654
    %v3717 = vpack.c.bf16 %v3663, %v3660
    %v3718 = vpack.c.bf16 %v3669, %v3666
    %v3719 = vpack.c.bf16 %v3675, %v3672
    %v3720 = vpack.c.bf16 %v3681, %v3678
    %v3721 = vpack.c.bf16 %v3687, %v3684
    %v3722 = vpack.c.bf16 %v3693, %v3690
    %v3723 = vpack.c.bf16 %v3699, %v3696
    %s3724 = scalar_lea.vmem %s3, 256
    %v3725 = vld [vmem:[%s3724] sm:$0xf]
    %v3726 = vld [vmem:[%s3724 + $0x4] sm:$0xf]
    %v3727 = vld [vmem:[%s3724 + $0x8] sm:$0xf]
    %v3728 = vld [vmem:[%s3724 + $0xc] sm:$0xf]
    %v3729 = vld [vmem:[%s3724 + $0x10] sm:$0xf]
    %v3730 = vld [vmem:[%s3724 + $0x14] sm:$0xf]
    %v3731 = vld [vmem:[%s3724 + $0x18] sm:$0xf]
    %v3732 = vld [vmem:[%s3724 + $0x1c] sm:$0xf]
    %v3733 = vld [vmem:[%s3724 + $0x20] sm:$0xf]
    %v3734 = vld [vmem:[%s3724 + $0x24] sm:$0xf]
    %v3735 = vld [vmem:[%s3724 + $0x28] sm:$0xf]
    %v3736 = vld [vmem:[%s3724 + $0x2c] sm:$0xf]
    %v3737 = vld [vmem:[%s3724 + $0x30] sm:$0xf]
    %v3738 = vld [vmem:[%s3724 + $0x34] sm:$0xf]
    %v3739 = vld [vmem:[%s3724 + $0x38] sm:$0xf]
    %v3740 = vld [vmem:[%s3724 + $0x3c] sm:$0xf]
    %v3757 = vunpack.c.l.b16 %v3725
    %v3758 = vunpack.c.l.b16 %v3726
    %v3759 = vunpack.c.l.b16 %v3727
    %v3760 = vunpack.c.l.b16 %v3728
    %v3761 = vunpack.c.l.b16 %v3729
    %v3762 = vunpack.c.l.b16 %v3730
    %v3763 = vunpack.c.l.b16 %v3731
    %v3764 = vunpack.c.l.b16 %v3732
    %v3765 = vunpack.c.l.b16 %v3733
    %v3766 = vunpack.c.l.b16 %v3734
    %v3767 = vunpack.c.l.b16 %v3735
    %v3768 = vunpack.c.l.b16 %v3736
    %v3769 = vunpack.c.l.b16 %v3737
    %v3770 = vunpack.c.l.b16 %v3738
    %v3771 = vunpack.c.l.b16 %v3739
    %v3772 = vunpack.c.l.b16 %v3740
    %v3773 = vpack.c.b16 %v3758, %v3757
    %v3774 = vpack.c.b16 %v3760, %v3759
    %v3775 = vpack.c.b16 %v3762, %v3761
    %v3776 = vpack.c.b16 %v3764, %v3763
    %v3777 = vpack.c.b16 %v3766, %v3765
    %v3778 = vpack.c.b16 %v3768, %v3767
    %v3779 = vpack.c.b16 %v3770, %v3769
    %v3780 = vpack.c.b16 %v3772, %v3771
    %3789 = vmatprep.subr.bf16.mxu0 0
    %3790 = vmatpush1.bf16.msra.mxu0 %v3773
    %3791 = vmatprep.subr.bf16.mxu0 0
    %3792 = vmatpush1.bf16.msra.mxu0 %v3774
    %3793 = vmatprep.subr.bf16.mxu0 0
    %3794 = vmatpush1.bf16.msra.mxu0 %v3775
    %3795 = vmatprep.subr.bf16.mxu0 0
    %3796 = vmatpush1.bf16.msra.mxu0 %v3776
    %3797 = vmatprep.subr.bf16.mxu0 0
    %3798 = vmatpush1.bf16.msra.mxu0 %v3777
    %3799 = vmatprep.subr.bf16.mxu0 0
    %3800 = vmatpush1.bf16.msra.mxu0 %v3778
    %3801 = vmatprep.subr.bf16.mxu0 0
    %3802 = vmatpush1.bf16.msra.mxu0 %v3779
    %3803 = vmatprep.subr.bf16.mxu0 0
    %3804 = vmatpush1.bf16.msra.mxu0 %v3780
    %3805 = vmatprep.subr.bf16.mxu0 0
    %3806 = vmatpush1.bf16.msra.mxu0 0
    %3807 = vmatprep.subr.bf16.mxu0 0
    %3808 = vmatpush1.bf16.msra.mxu0 0
    %3809 = vmatprep.subr.bf16.mxu0 0
    %3810 = vmatpush1.bf16.msra.mxu0 0
    %3811 = vmatprep.subr.bf16.mxu0 0
    %3812 = vmatpush1.bf16.msra.mxu0 0
    %3813 = vmatprep.subr.bf16.mxu0 0
    %3814 = vmatpush1.bf16.msra.mxu0 0
    %3815 = vmatprep.subr.bf16.mxu0 0
    %3816 = vmatpush1.bf16.msra.mxu0 0
    %3817 = vmatprep.subr.bf16.mxu0 0
    %3818 = vmatpush1.bf16.msra.mxu0 0
    %3819 = vmatprep.subr.bf16.mxu0 0
    %3820 = vmatpush1.bf16.msra.mxu0 0
    %3821 = vmatprep.mubr.bf16.mxu0 0
    %3822 = vmatmul.mubr.bf16.gmra.mrb[0].mxu0 %v3716
    %v3823 = vpop.f32.mrb[0].mxu0
    %v3824 = vadd.f32 0.0, %v3823
    %v3825 = vpop.f32.mrb[0].mxu0
    %v3826 = vpop.f32.mrb[0].mxu0
    %v3827 = vadd.f32 0.0, %v3826
    %v3828 = vpop.f32.mrb[0].mxu0
    %3829 = vmatprep.mubr.bf16.mxu0 0
    %3830 = vmatmul.mubr.bf16.gmra.mrb[0].mxu0 %v3717
    %v3831 = vpop.f32.mrb[0].mxu0
    %v3832 = vadd.f32 0.0, %v3831
    %v3833 = vpop.f32.mrb[0].mxu0
    %v3834 = vpop.f32.mrb[0].mxu0
    %v3835 = vadd.f32 0.0, %v3834
    %v3836 = vpop.f32.mrb[0].mxu0
    %3837 = vmatprep.mubr.bf16.mxu0 0
    %3838 = vmatmul.mubr.bf16.gmra.mrb[0].mxu0 %v3718
    %v3839 = vpop.f32.mrb[0].mxu0
    %v3840 = vadd.f32 0.0, %v3839
    %v3841 = vpop.f32.mrb[0].mxu0
    %v3842 = vpop.f32.mrb[0].mxu0
    %v3843 = vadd.f32 0.0, %v3842
    %v3844 = vpop.f32.mrb[0].mxu0
    %3845 = vmatprep.mubr.bf16.mxu0 0
    %3846 = vmatmul.mubr.bf16.gmra.mrb[0].mxu0 %v3719
    %v3847 = vpop.f32.mrb[0].mxu0
    %v3848 = vadd.f32 0.0, %v3847
    %v3849 = vpop.f32.mrb[0].mxu0
    %v3850 = vpop.f32.mrb[0].mxu0
    %v3851 = vadd.f32 0.0, %v3850
    %v3852 = vpop.f32.mrb[0].mxu0
    %3853 = vmatprep.mubr.bf16.mxu0 0
    %3854 = vmatmul.mubr.bf16.gmra.mrb[0].mxu0 %v3720
    %v3855 = vpop.f32.mrb[0].mxu0
    %v3856 = vadd.f32 0.0, %v3855
    %v3857 = vpop.f32.mrb[0].mxu0
    %v3858 = vpop.f32.mrb[0].mxu0
    %v3859 = vadd.f32 0.0, %v3858
    %v3860 = vpop.f32.mrb[0].mxu0
    %3861 = vmatprep.mubr.bf16.mxu0 0
    %3862 = vmatmul.mubr.bf16.gmra.mrb[0].mxu0 %v3721
    %v3863 = vpop.f32.mrb[0].mxu0
    %v3864 = vadd.f32 0.0, %v3863
    %v3865 = vpop.f32.mrb[0].mxu0
    %v3866 = vpop.f32.mrb[0].mxu0
    %v3867 = vadd.f32 0.0, %v3866
    %v3868 = vpop.f32.mrb[0].mxu0
    %3869 = vmatprep.mubr.bf16.mxu0 0
    %3870 = vmatmul.mubr.bf16.gmra.mrb[0].mxu0 %v3722
    %v3871 = vpop.f32.mrb[0].mxu0
    %v3872 = vadd.f32 0.0, %v3871
    %v3873 = vpop.f32.mrb[0].mxu0
    %v3874 = vpop.f32.mrb[0].mxu0
    %v3875 = vadd.f32 0.0, %v3874
    %v3876 = vpop.f32.mrb[0].mxu0
    %3877 = vmatprep.mubr.bf16.mxu0 0
    %3878 = vmatmul.mubr.bf16.gmra.mrb[0].mxu0 %v3723
    %v3879 = vpop.f32.mrb[0].mxu0
    %v3880 = vadd.f32 0.0, %v3879
    %v3881 = vpop.f32.mrb[0].mxu0
    %v3882 = vpop.f32.mrb[0].mxu0
    %v3883 = vadd.f32 0.0, %v3882
    %v3884 = vpop.f32.mrb[0].mxu0
    %3885 = vdwg.mxu0
    %v3886 = vadd.f32 %v3635, %v3824
    %v3887 = vadd.f32 %v3636, %v3827
    %v3888 = vadd.f32 %v3637, %v3832
    %v3889 = vadd.f32 %v3638, %v3835
    %v3890 = vadd.f32 %v3639, %v3840
    %v3891 = vadd.f32 %v3640, %v3843
    %v3892 = vadd.f32 %v3641, %v3848
    %v3893 = vadd.f32 %v3642, %v3851
    %v3894 = vadd.f32 %v3643, %v3856
    %v3895 = vadd.f32 %v3644, %v3859
    %v3896 = vadd.f32 %v3645, %v3864
    %v3897 = vadd.f32 %v3646, %v3867
    %v3898 = vadd.f32 %v3647, %v3872
    %v3899 = vadd.f32 %v3648, %v3875
    %v3900 = vadd.f32 %v3649, %v3880
    %v3901 = vadd.f32 %v3650, %v3883
    %v3902 = vpack.c.bf16 %v2629, %v2627
    %v3903 = vpack.c.bf16 %v2633, %v2631
    %v3904 = vpack.c.bf16 %v2637, %v2635
    %v3905 = vpack.c.bf16 %v2641, %v2639
    %v3906 = vpack.c.bf16 %v2653, %v2651
    %v3907 = vpack.c.bf16 %v2657, %v2655
    %v3908 = vpack.c.bf16 %v2661, %v2659
    %v3909 = vpack.c.bf16 %v2665, %v2663
    %s3910 = scalar_lea.vmem %s3, 320
    %v3911 = vld [vmem:[%s3910] sm:$0xf]
    %v3912 = vld [vmem:[%s3910 + $0x4] sm:$0xf]
    %v3913 = vld [vmem:[%s3910 + $0x8] sm:$0xf]
    %v3914 = vld [vmem:[%s3910 + $0xc] sm:$0xf]
    %v3915 = vld [vmem:[%s3910 + $0x10] sm:$0xf]
    %v3916 = vld [vmem:[%s3910 + $0x14] sm:$0xf]
    %v3917 = vld [vmem:[%s3910 + $0x18] sm:$0xf]
    %v3918 = vld [vmem:[%s3910 + $0x1c] sm:$0xf]
    %v3919 = vld [vmem:[%s3910 + $0x20] sm:$0xf]
    %v3920 = vld [vmem:[%s3910 + $0x24] sm:$0xf]
    %v3921 = vld [vmem:[%s3910 + $0x28] sm:$0xf]
    %v3922 = vld [vmem:[%s3910 + $0x2c] sm:$0xf]
    %v3923 = vld [vmem:[%s3910 + $0x30] sm:$0xf]
    %v3924 = vld [vmem:[%s3910 + $0x34] sm:$0xf]
    %v3925 = vld [vmem:[%s3910 + $0x38] sm:$0xf]
    %v3926 = vld [vmem:[%s3910 + $0x3c] sm:$0xf]
    %v3943 = vunpack.c.l.b16 %v3911
    %v3944 = vunpack.c.l.b16 %v3912
    %v3945 = vunpack.c.l.b16 %v3913
    %v3946 = vunpack.c.l.b16 %v3914
    %v3947 = vunpack.c.l.b16 %v3915
    %v3948 = vunpack.c.l.b16 %v3916
    %v3949 = vunpack.c.l.b16 %v3917
    %v3950 = vunpack.c.l.b16 %v3918
    %v3951 = vunpack.c.l.b16 %v3919
    %v3952 = vunpack.c.l.b16 %v3920
    %v3953 = vunpack.c.l.b16 %v3921
    %v3954 = vunpack.c.l.b16 %v3922
    %v3955 = vunpack.c.l.b16 %v3923
    %v3956 = vunpack.c.l.b16 %v3924
    %v3957 = vunpack.c.l.b16 %v3925
    %v3958 = vunpack.c.l.b16 %v3926
    %v3959 = vpack.c.b16 %v3944, %v3943
    %v3960 = vpack.c.b16 %v3946, %v3945
    %v3961 = vpack.c.b16 %v3948, %v3947
    %v3962 = vpack.c.b16 %v3950, %v3949
    %v3963 = vpack.c.b16 %v3952, %v3951
    %v3964 = vpack.c.b16 %v3954, %v3953
    %v3965 = vpack.c.b16 %v3956, %v3955
    %v3966 = vpack.c.b16 %v3958, %v3957
    %3975 = vmatprep.subr.bf16.mxu0 0
    %3976 = vmatpush1.bf16.msra.mxu0 %v3959
    %3977 = vmatprep.subr.bf16.mxu0 0
    %3978 = vmatpush1.bf16.msra.mxu0 %v3960
    %3979 = vmatprep.subr.bf16.mxu0 0
    %3980 = vmatpush1.bf16.msra.mxu0 %v3961
    %3981 = vmatprep.subr.bf16.mxu0 0
    %3982 = vmatpush1.bf16.msra.mxu0 %v3962
    %3983 = vmatprep.subr.bf16.mxu0 0
    %3984 = vmatpush1.bf16.msra.mxu0 %v3963
    %3985 = vmatprep.subr.bf16.mxu0 0
    %3986 = vmatpush1.bf16.msra.mxu0 %v3964
    %3987 = vmatprep.subr.bf16.mxu0 0
    %3988 = vmatpush1.bf16.msra.mxu0 %v3965
    %3989 = vmatprep.subr.bf16.mxu0 0
    %3990 = vmatpush1.bf16.msra.mxu0 %v3966
    %3991 = vmatprep.subr.bf16.mxu0 0
    %3992 = vmatpush1.bf16.msra.mxu0 0
    %3993 = vmatprep.subr.bf16.mxu0 0
    %3994 = vmatpush1.bf16.msra.mxu0 0
    %3995 = vmatprep.subr.bf16.mxu0 0
    %3996 = vmatpush1.bf16.msra.mxu0 0
    %3997 = vmatprep.subr.bf16.mxu0 0
    %3998 = vmatpush1.bf16.msra.mxu0 0
    %3999 = vmatprep.subr.bf16.mxu0 0
    %4000 = vmatpush1.bf16.msra.mxu0 0
    %4001 = vmatprep.subr.bf16.mxu0 0
    %4002 = vmatpush1.bf16.msra.mxu0 0
    %4003 = vmatprep.subr.bf16.mxu0 0
    %4004 = vmatpush1.bf16.msra.mxu0 0
    %4005 = vmatprep.subr.bf16.mxu0 0
    %4006 = vmatpush1.bf16.msra.mxu0 0
    %4007 = vmatprep.mubr.bf16.mxu0 0
    %4008 = vmatmul.mubr.bf16.gmra.mrb[0].mxu0 %v3902
    %v4009 = vpop.f32.mrb[0].mxu0
    %v4010 = vadd.f32 0.0, %v4009
    %v4011 = vpop.f32.mrb[0].mxu0
    %v4012 = vpop.f32.mrb[0].mxu0
    %v4013 = vadd.f32 0.0, %v4012
    %v4014 = vpop.f32.mrb[0].mxu0
    %4015 = vmatprep.mubr.bf16.mxu0 0
    %4016 = vmatmul.mubr.bf16.gmra.mrb[0].mxu0 %v3903
    %v4017 = vpop.f32.mrb[0].mxu0
    %v4018 = vadd.f32 0.0, %v4017
    %v4019 = vpop.f32.mrb[0].mxu0
    %v4020 = vpop.f32.mrb[0].mxu0
    %v4021 = vadd.f32 0.0, %v4020
    %v4022 = vpop.f32.mrb[0].mxu0
    %4023 = vmatprep.mubr.bf16.mxu0 0
    %4024 = vmatmul.mubr.bf16.gmra.mrb[0].mxu0 %v3904
    %v4025 = vpop.f32.mrb[0].mxu0
    %v4026 = vadd.f32 0.0, %v4025
    %v4027 = vpop.f32.mrb[0].mxu0
    %v4028 = vpop.f32.mrb[0].mxu0
    %v4029 = vadd.f32 0.0, %v4028
    %v4030 = vpop.f32.mrb[0].mxu0
    %4031 = vmatprep.mubr.bf16.mxu0 0
    %4032 = vmatmul.mubr.bf16.gmra.mrb[0].mxu0 %v3905
    %v4033 = vpop.f32.mrb[0].mxu0
    %v4034 = vadd.f32 0.0, %v4033
    %v4035 = vpop.f32.mrb[0].mxu0
    %v4036 = vpop.f32.mrb[0].mxu0
    %v4037 = vadd.f32 0.0, %v4036
    %v4038 = vpop.f32.mrb[0].mxu0
    %4039 = vmatprep.mubr.bf16.mxu0 0
    %4040 = vmatmul.mubr.bf16.gmra.mrb[0].mxu0 %v3906
    %v4041 = vpop.f32.mrb[0].mxu0
    %v4042 = vadd.f32 0.0, %v4041
    %v4043 = vpop.f32.mrb[0].mxu0
    %v4044 = vpop.f32.mrb[0].mxu0
    %v4045 = vadd.f32 0.0, %v4044
    %v4046 = vpop.f32.mrb[0].mxu0
    %4047 = vmatprep.mubr.bf16.mxu0 0
    %4048 = vmatmul.mubr.bf16.gmra.mrb[0].mxu0 %v3907
    %v4049 = vpop.f32.mrb[0].mxu0
    %v4050 = vadd.f32 0.0, %v4049
    %v4051 = vpop.f32.mrb[0].mxu0
    %v4052 = vpop.f32.mrb[0].mxu0
    %v4053 = vadd.f32 0.0, %v4052
    %v4054 = vpop.f32.mrb[0].mxu0
    %4055 = vmatprep.mubr.bf16.mxu0 0
    %4056 = vmatmul.mubr.bf16.gmra.mrb[0].mxu0 %v3908
    %v4057 = vpop.f32.mrb[0].mxu0
    %v4058 = vadd.f32 0.0, %v4057
    %v4059 = vpop.f32.mrb[0].mxu0
    %v4060 = vpop.f32.mrb[0].mxu0
    %v4061 = vadd.f32 0.0, %v4060
    %v4062 = vpop.f32.mrb[0].mxu0
    %4063 = vmatprep.mubr.bf16.mxu0 0
    %4064 = vmatmul.mubr.bf16.gmra.mrb[0].mxu0 %v3909
    %v4065 = vpop.f32.mrb[0].mxu0
    %v4066 = vadd.f32 0.0, %v4065
    %v4067 = vpop.f32.mrb[0].mxu0
    %v4068 = vpop.f32.mrb[0].mxu0
    %v4069 = vadd.f32 0.0, %v4068
    %v4070 = vpop.f32.mrb[0].mxu0
    %4071 = vdwg.mxu0
    %v4072 = vadd.f32 %v3886, %v4010
    %v4073 = vadd.f32 %v3887, %v4013
    %v4074 = vadd.f32 %v3888, %v4018
    %v4075 = vadd.f32 %v3889, %v4021
    %v4076 = vadd.f32 %v3890, %v4026
    %v4077 = vadd.f32 %v3891, %v4029
    %v4078 = vadd.f32 %v3892, %v4034
    %v4079 = vadd.f32 %v3893, %v4037
    %v4080 = vadd.f32 %v3894, %v4042
    %v4081 = vadd.f32 %v3895, %v4045
    %v4082 = vadd.f32 %v3896, %v4050
    %v4083 = vadd.f32 %v3897, %v4053
    %v4084 = vadd.f32 %v3898, %v4058
    %v4085 = vadd.f32 %v3899, %v4061
    %v4086 = vadd.f32 %v3900, %v4066
    %v4087 = vadd.f32 %v3901, %v4069
    %v4092 = vrot.slane %v2641, 1
    %v4093 = vrot.slane %v2642, 1
    %v4094 = vsel %vm2898, %v4092, %v4093
    %v4095 = vrot.slane %v2665, 1
    %v4096 = vrot.slane %v2666, 1
    %v4097 = vsel %vm2898, %v4095, %v4096
    %v4100 = vpack.c.bf16 %v2907, %v2904
    %v4101 = vpack.c.bf16 %v2913, %v2910
    %v4102 = vpack.c.bf16 %v2919, %v2916
    %v4103 = vpack.c.bf16 %v4094, %v2922
    %v4104 = vpack.c.bf16 %v2931, %v2928
    %v4105 = vpack.c.bf16 %v2937, %v2934
    %v4106 = vpack.c.bf16 %v2943, %v2940
    %v4107 = vpack.c.bf16 %v4097, %v2946
    %s4108 = scalar_lea.vmem %s3, 384
    %v4109 = vld [vmem:[%s4108] sm:$0xf]
    %v4110 = vld [vmem:[%s4108 + $0x4] sm:$0xf]
    %v4111 = vld [vmem:[%s4108 + $0x8] sm:$0xf]
    %v4112 = vld [vmem:[%s4108 + $0xc] sm:$0xf]
    %v4113 = vld [vmem:[%s4108 + $0x10] sm:$0xf]
    %v4114 = vld [vmem:[%s4108 + $0x14] sm:$0xf]
    %v4115 = vld [vmem:[%s4108 + $0x18] sm:$0xf]
    %v4116 = vld [vmem:[%s4108 + $0x1c] sm:$0xf]
    %v4117 = vld [vmem:[%s4108 + $0x20] sm:$0xf]
    %v4118 = vld [vmem:[%s4108 + $0x24] sm:$0xf]
    %v4119 = vld [vmem:[%s4108 + $0x28] sm:$0xf]
    %v4120 = vld [vmem:[%s4108 + $0x2c] sm:$0xf]
    %v4121 = vld [vmem:[%s4108 + $0x30] sm:$0xf]
    %v4122 = vld [vmem:[%s4108 + $0x34] sm:$0xf]
    %v4123 = vld [vmem:[%s4108 + $0x38] sm:$0xf]
    %v4124 = vld [vmem:[%s4108 + $0x3c] sm:$0xf]
    %v4141 = vunpack.c.l.b16 %v4109
    %v4142 = vunpack.c.l.b16 %v4110
    %v4143 = vunpack.c.l.b16 %v4111
    %v4144 = vunpack.c.l.b16 %v4112
    %v4145 = vunpack.c.l.b16 %v4113
    %v4146 = vunpack.c.l.b16 %v4114
    %v4147 = vunpack.c.l.b16 %v4115
    %v4148 = vunpack.c.l.b16 %v4116
    %v4149 = vunpack.c.l.b16 %v4117
    %v4150 = vunpack.c.l.b16 %v4118
    %v4151 = vunpack.c.l.b16 %v4119
    %v4152 = vunpack.c.l.b16 %v4120
    %v4153 = vunpack.c.l.b16 %v4121
    %v4154 = vunpack.c.l.b16 %v4122
    %v4155 = vunpack.c.l.b16 %v4123
    %v4156 = vunpack.c.l.b16 %v4124
    %v4157 = vpack.c.b16 %v4142, %v4141
    %v4158 = vpack.c.b16 %v4144, %v4143
    %v4159 = vpack.c.b16 %v4146, %v4145
    %v4160 = vpack.c.b16 %v4148, %v4147
    %v4161 = vpack.c.b16 %v4150, %v4149
    %v4162 = vpack.c.b16 %v4152, %v4151
    %v4163 = vpack.c.b16 %v4154, %v4153
    %v4164 = vpack.c.b16 %v4156, %v4155
    %4173 = vmatprep.subr.bf16.mxu0 0
    %4174 = vmatpush1.bf16.msra.mxu0 %v4157
    %4175 = vmatprep.subr.bf16.mxu0 0
    %4176 = vmatpush1.bf16.msra.mxu0 %v4158
    %4177 = vmatprep.subr.bf16.mxu0 0
    %4178 = vmatpush1.bf16.msra.mxu0 %v4159
    %4179 = vmatprep.subr.bf16.mxu0 0
    %4180 = vmatpush1.bf16.msra.mxu0 %v4160
    %4181 = vmatprep.subr.bf16.mxu0 0
    %4182 = vmatpush1.bf16.msra.mxu0 %v4161
    %4183 = vmatprep.subr.bf16.mxu0 0
    %4184 = vmatpush1.bf16.msra.mxu0 %v4162
    %4185 = vmatprep.subr.bf16.mxu0 0
    %4186 = vmatpush1.bf16.msra.mxu0 %v4163
    %4187 = vmatprep.subr.bf16.mxu0 0
    %4188 = vmatpush1.bf16.msra.mxu0 %v4164
    %4189 = vmatprep.subr.bf16.mxu0 0
    %4190 = vmatpush1.bf16.msra.mxu0 0
    %4191 = vmatprep.subr.bf16.mxu0 0
    %4192 = vmatpush1.bf16.msra.mxu0 0
    %4193 = vmatprep.subr.bf16.mxu0 0
    %4194 = vmatpush1.bf16.msra.mxu0 0
    %4195 = vmatprep.subr.bf16.mxu0 0
    %4196 = vmatpush1.bf16.msra.mxu0 0
    %4197 = vmatprep.subr.bf16.mxu0 0
    %4198 = vmatpush1.bf16.msra.mxu0 0
    %4199 = vmatprep.subr.bf16.mxu0 0
    %4200 = vmatpush1.bf16.msra.mxu0 0
    %4201 = vmatprep.subr.bf16.mxu0 0
    %4202 = vmatpush1.bf16.msra.mxu0 0
    %4203 = vmatprep.subr.bf16.mxu0 0
    %4204 = vmatpush1.bf16.msra.mxu0 0
    %4205 = vmatprep.mubr.bf16.mxu0 0
    %4206 = vmatmul.mubr.bf16.gmra.mrb[0].mxu0 %v4100
    %v4207 = vpop.f32.mrb[0].mxu0
    %v4208 = vadd.f32 0.0, %v4207
    %v4209 = vpop.f32.mrb[0].mxu0
    %v4210 = vpop.f32.mrb[0].mxu0
    %v4211 = vadd.f32 0.0, %v4210
    %v4212 = vpop.f32.mrb[0].mxu0
    %4213 = vmatprep.mubr.bf16.mxu0 0
    %4214 = vmatmul.mubr.bf16.gmra.mrb[0].mxu0 %v4101
    %v4215 = vpop.f32.mrb[0].mxu0
    %v4216 = vadd.f32 0.0, %v4215
    %v4217 = vpop.f32.mrb[0].mxu0
    %v4218 = vpop.f32.mrb[0].mxu0
    %v4219 = vadd.f32 0.0, %v4218
    %v4220 = vpop.f32.mrb[0].mxu0
    %4221 = vmatprep.mubr.bf16.mxu0 0
    %4222 = vmatmul.mubr.bf16.gmra.mrb[0].mxu0 %v4102
    %v4223 = vpop.f32.mrb[0].mxu0
    %v4224 = vadd.f32 0.0, %v4223
    %v4225 = vpop.f32.mrb[0].mxu0
    %v4226 = vpop.f32.mrb[0].mxu0
    %v4227 = vadd.f32 0.0, %v4226
    %v4228 = vpop.f32.mrb[0].mxu0
    %4229 = vmatprep.mubr.bf16.mxu0 0
    %4230 = vmatmul.mubr.bf16.gmra.mrb[0].mxu0 %v4103
    %v4231 = vpop.f32.mrb[0].mxu0
    %v4232 = vadd.f32 0.0, %v4231
    %v4233 = vpop.f32.mrb[0].mxu0
    %v4234 = vpop.f32.mrb[0].mxu0
    %v4235 = vadd.f32 0.0, %v4234
    %v4236 = vpop.f32.mrb[0].mxu0
    %4237 = vmatprep.mubr.bf16.mxu0 0
    %4238 = vmatmul.mubr.bf16.gmra.mrb[0].mxu0 %v4104
    %v4239 = vpop.f32.mrb[0].mxu0
    %v4240 = vadd.f32 0.0, %v4239
    %v4241 = vpop.f32.mrb[0].mxu0
    %v4242 = vpop.f32.mrb[0].mxu0
    %v4243 = vadd.f32 0.0, %v4242
    %v4244 = vpop.f32.mrb[0].mxu0
    %4245 = vmatprep.mubr.bf16.mxu0 0
    %4246 = vmatmul.mubr.bf16.gmra.mrb[0].mxu0 %v4105
    %v4247 = vpop.f32.mrb[0].mxu0
    %v4248 = vadd.f32 0.0, %v4247
    %v4249 = vpop.f32.mrb[0].mxu0
    %v4250 = vpop.f32.mrb[0].mxu0
    %v4251 = vadd.f32 0.0, %v4250
    %v4252 = vpop.f32.mrb[0].mxu0
    %4253 = vmatprep.mubr.bf16.mxu0 0
    %4254 = vmatmul.mubr.bf16.gmra.mrb[0].mxu0 %v4106
    %v4255 = vpop.f32.mrb[0].mxu0
    %v4256 = vadd.f32 0.0, %v4255
    %v4257 = vpop.f32.mrb[0].mxu0
    %v4258 = vpop.f32.mrb[0].mxu0
    %v4259 = vadd.f32 0.0, %v4258
    %v4260 = vpop.f32.mrb[0].mxu0
    %4261 = vmatprep.mubr.bf16.mxu0 0
    %4262 = vmatmul.mubr.bf16.gmra.mrb[0].mxu0 %v4107
    %v4263 = vpop.f32.mrb[0].mxu0
    %v4264 = vadd.f32 0.0, %v4263
    %v4265 = vpop.f32.mrb[0].mxu0
    %v4266 = vpop.f32.mrb[0].mxu0
    %v4267 = vadd.f32 0.0, %v4266
    %v4268 = vpop.f32.mrb[0].mxu0
    %4269 = vdwg.mxu0
    %v4270 = vadd.f32 %v4072, %v4208
    %v4271 = vadd.f32 %v4073, %v4211
    %v4272 = vadd.f32 %v4074, %v4216
    %v4273 = vadd.f32 %v4075, %v4219
    %v4274 = vadd.f32 %v4076, %v4224
    %v4275 = vadd.f32 %v4077, %v4227
    %v4276 = vadd.f32 %v4078, %v4232
    %v4277 = vadd.f32 %v4079, %v4235
    %v4278 = vadd.f32 %v4080, %v4240
    %v4279 = vadd.f32 %v4081, %v4243
    %v4280 = vadd.f32 %v4082, %v4248
    %v4281 = vadd.f32 %v4083, %v4251
    %v4282 = vadd.f32 %v4084, %v4256
    %v4283 = vadd.f32 %v4085, %v4259
    %v4284 = vadd.f32 %v4086, %v4264
    %v4285 = vadd.f32 %v4087, %v4267
    %v4286 = vrot.slane %v2641, 2
    %v4287 = vrot.slane %v2642, 2
    %v4288 = vsel %vm3149, %v4286, %v4287
    %v4289 = vrot.slane %v2665, 2
    %v4290 = vrot.slane %v2666, 2
    %v4291 = vsel %vm3149, %v4289, %v4290
    %v4294 = vpack.c.bf16 %v3158, %v3155
    %v4295 = vpack.c.bf16 %v3164, %v3161
    %v4296 = vpack.c.bf16 %v3170, %v3167
    %v4297 = vpack.c.bf16 %v4288, %v3173
    %v4298 = vpack.c.bf16 %v3182, %v3179
    %v4299 = vpack.c.bf16 %v3188, %v3185
    %v4300 = vpack.c.bf16 %v3194, %v3191
    %v4301 = vpack.c.bf16 %v4291, %v3197
    %s4302 = scalar_lea.vmem %s3, 448
    %v4303 = vld [vmem:[%s4302] sm:$0xf]
    %v4304 = vld [vmem:[%s4302 + $0x4] sm:$0xf]
    %v4305 = vld [vmem:[%s4302 + $0x8] sm:$0xf]
    %v4306 = vld [vmem:[%s4302 + $0xc] sm:$0xf]
    %v4307 = vld [vmem:[%s4302 + $0x10] sm:$0xf]
    %v4308 = vld [vmem:[%s4302 + $0x14] sm:$0xf]
    %v4309 = vld [vmem:[%s4302 + $0x18] sm:$0xf]
    %v4310 = vld [vmem:[%s4302 + $0x1c] sm:$0xf]
    %v4311 = vld [vmem:[%s4302 + $0x20] sm:$0xf]
    %v4312 = vld [vmem:[%s4302 + $0x24] sm:$0xf]
    %v4313 = vld [vmem:[%s4302 + $0x28] sm:$0xf]
    %v4314 = vld [vmem:[%s4302 + $0x2c] sm:$0xf]
    %v4315 = vld [vmem:[%s4302 + $0x30] sm:$0xf]
    %v4316 = vld [vmem:[%s4302 + $0x34] sm:$0xf]
    %v4317 = vld [vmem:[%s4302 + $0x38] sm:$0xf]
    %v4318 = vld [vmem:[%s4302 + $0x3c] sm:$0xf]
    %v4335 = vunpack.c.l.b16 %v4303
    %v4336 = vunpack.c.l.b16 %v4304
    %v4337 = vunpack.c.l.b16 %v4305
    %v4338 = vunpack.c.l.b16 %v4306
    %v4339 = vunpack.c.l.b16 %v4307
    %v4340 = vunpack.c.l.b16 %v4308
    %v4341 = vunpack.c.l.b16 %v4309
    %v4342 = vunpack.c.l.b16 %v4310
    %v4343 = vunpack.c.l.b16 %v4311
    %v4344 = vunpack.c.l.b16 %v4312
    %v4345 = vunpack.c.l.b16 %v4313
    %v4346 = vunpack.c.l.b16 %v4314
    %v4347 = vunpack.c.l.b16 %v4315
    %v4348 = vunpack.c.l.b16 %v4316
    %v4349 = vunpack.c.l.b16 %v4317
    %v4350 = vunpack.c.l.b16 %v4318
    %v4351 = vpack.c.b16 %v4336, %v4335
    %v4352 = vpack.c.b16 %v4338, %v4337
    %v4353 = vpack.c.b16 %v4340, %v4339
    %v4354 = vpack.c.b16 %v4342, %v4341
    %v4355 = vpack.c.b16 %v4344, %v4343
    %v4356 = vpack.c.b16 %v4346, %v4345
    %v4357 = vpack.c.b16 %v4348, %v4347
    %v4358 = vpack.c.b16 %v4350, %v4349
    %4367 = vmatprep.subr.bf16.mxu0 0
    %4368 = vmatpush1.bf16.msra.mxu0 %v4351
    %4369 = vmatprep.subr.bf16.mxu0 0
    %4370 = vmatpush1.bf16.msra.mxu0 %v4352
    %4371 = vmatprep.subr.bf16.mxu0 0
    %4372 = vmatpush1.bf16.msra.mxu0 %v4353
    %4373 = vmatprep.subr.bf16.mxu0 0
    %4374 = vmatpush1.bf16.msra.mxu0 %v4354
    %4375 = vmatprep.subr.bf16.mxu0 0
    %4376 = vmatpush1.bf16.msra.mxu0 %v4355
    %4377 = vmatprep.subr.bf16.mxu0 0
    %4378 = vmatpush1.bf16.msra.mxu0 %v4356
    %4379 = vmatprep.subr.bf16.mxu0 0
    %4380 = vmatpush1.bf16.msra.mxu0 %v4357
    %4381 = vmatprep.subr.bf16.mxu0 0
    %4382 = vmatpush1.bf16.msra.mxu0 %v4358
    %4383 = vmatprep.subr.bf16.mxu0 0
    %4384 = vmatpush1.bf16.msra.mxu0 0
    %4385 = vmatprep.subr.bf16.mxu0 0
    %4386 = vmatpush1.bf16.msra.mxu0 0
    %4387 = vmatprep.subr.bf16.mxu0 0
    %4388 = vmatpush1.bf16.msra.mxu0 0
    %4389 = vmatprep.subr.bf16.mxu0 0
    %4390 = vmatpush1.bf16.msra.mxu0 0
    %4391 = vmatprep.subr.bf16.mxu0 0
    %4392 = vmatpush1.bf16.msra.mxu0 0
    %4393 = vmatprep.subr.bf16.mxu0 0
    %4394 = vmatpush1.bf16.msra.mxu0 0
    %4395 = vmatprep.subr.bf16.mxu0 0
    %4396 = vmatpush1.bf16.msra.mxu0 0
    %4397 = vmatprep.subr.bf16.mxu0 0
    %4398 = vmatpush1.bf16.msra.mxu0 0
    %4399 = vmatprep.mubr.bf16.mxu0 0
    %4400 = vmatmul.mubr.bf16.gmra.mrb[0].mxu0 %v4294
    %v4401 = vpop.f32.mrb[0].mxu0
    %v4402 = vadd.f32 0.0, %v4401
    %v4403 = vpop.f32.mrb[0].mxu0
    %v4404 = vpop.f32.mrb[0].mxu0
    %v4405 = vadd.f32 0.0, %v4404
    %v4406 = vpop.f32.mrb[0].mxu0
    %4407 = vmatprep.mubr.bf16.mxu0 0
    %4408 = vmatmul.mubr.bf16.gmra.mrb[0].mxu0 %v4295
    %v4409 = vpop.f32.mrb[0].mxu0
    %v4410 = vadd.f32 0.0, %v4409
    %v4411 = vpop.f32.mrb[0].mxu0
    %v4412 = vpop.f32.mrb[0].mxu0
    %v4413 = vadd.f32 0.0, %v4412
    %v4414 = vpop.f32.mrb[0].mxu0
    %4415 = vmatprep.mubr.bf16.mxu0 0
    %4416 = vmatmul.mubr.bf16.gmra.mrb[0].mxu0 %v4296
    %v4417 = vpop.f32.mrb[0].mxu0
    %v4418 = vadd.f32 0.0, %v4417
    %v4419 = vpop.f32.mrb[0].mxu0
    %v4420 = vpop.f32.mrb[0].mxu0
    %v4421 = vadd.f32 0.0, %v4420
    %v4422 = vpop.f32.mrb[0].mxu0
    %4423 = vmatprep.mubr.bf16.mxu0 0
    %4424 = vmatmul.mubr.bf16.gmra.mrb[0].mxu0 %v4297
    %v4425 = vpop.f32.mrb[0].mxu0
    %v4426 = vadd.f32 0.0, %v4425
    %v4427 = vpop.f32.mrb[0].mxu0
    %v4428 = vpop.f32.mrb[0].mxu0
    %v4429 = vadd.f32 0.0, %v4428
    %v4430 = vpop.f32.mrb[0].mxu0
    %4431 = vmatprep.mubr.bf16.mxu0 0
    %4432 = vmatmul.mubr.bf16.gmra.mrb[0].mxu0 %v4298
    %v4433 = vpop.f32.mrb[0].mxu0
    %v4434 = vadd.f32 0.0, %v4433
    %v4435 = vpop.f32.mrb[0].mxu0
    %v4436 = vpop.f32.mrb[0].mxu0
    %v4437 = vadd.f32 0.0, %v4436
    %v4438 = vpop.f32.mrb[0].mxu0
    %4439 = vmatprep.mubr.bf16.mxu0 0
    %4440 = vmatmul.mubr.bf16.gmra.mrb[0].mxu0 %v4299
    %v4441 = vpop.f32.mrb[0].mxu0
    %v4442 = vadd.f32 0.0, %v4441
    %v4443 = vpop.f32.mrb[0].mxu0
    %v4444 = vpop.f32.mrb[0].mxu0
    %v4445 = vadd.f32 0.0, %v4444
    %v4446 = vpop.f32.mrb[0].mxu0
    %4447 = vmatprep.mubr.bf16.mxu0 0
    %4448 = vmatmul.mubr.bf16.gmra.mrb[0].mxu0 %v4300
    %v4449 = vpop.f32.mrb[0].mxu0
    %v4450 = vadd.f32 0.0, %v4449
    %v4451 = vpop.f32.mrb[0].mxu0
    %v4452 = vpop.f32.mrb[0].mxu0
    %v4453 = vadd.f32 0.0, %v4452
    %v4454 = vpop.f32.mrb[0].mxu0
    %4455 = vmatprep.mubr.bf16.mxu0 0
    %4456 = vmatmul.mubr.bf16.gmra.mrb[0].mxu0 %v4301
    %v4457 = vpop.f32.mrb[0].mxu0
    %v4458 = vadd.f32 0.0, %v4457
    %v4459 = vpop.f32.mrb[0].mxu0
    %v4460 = vpop.f32.mrb[0].mxu0
    %v4461 = vadd.f32 0.0, %v4460
    %v4462 = vpop.f32.mrb[0].mxu0
    %4463 = vdwg.mxu0
    %v4464 = vadd.f32 %v4270, %v4402
    %v4465 = vadd.f32 %v4271, %v4405
    %v4466 = vadd.f32 %v4272, %v4410
    %v4467 = vadd.f32 %v4273, %v4413
    %v4468 = vadd.f32 %v4274, %v4418
    %v4469 = vadd.f32 %v4275, %v4421
    %v4470 = vadd.f32 %v4276, %v4426
    %v4471 = vadd.f32 %v4277, %v4429
    %v4472 = vadd.f32 %v4278, %v4434
    %v4473 = vadd.f32 %v4279, %v4437
    %v4474 = vadd.f32 %v4280, %v4442
    %v4475 = vadd.f32 %v4281, %v4445
    %v4476 = vadd.f32 %v4282, %v4450
    %v4477 = vadd.f32 %v4283, %v4453
    %v4478 = vadd.f32 %v4284, %v4458
    %v4479 = vadd.f32 %v4285, %v4461
    %v4480 = vrot.slane %v2641, 3
    %v4481 = vrot.slane %v2642, 3
    %v4482 = vsel %vm3400, %v4480, %v4481
    %v4483 = vrot.slane %v2665, 3
    %v4484 = vrot.slane %v2666, 3
    %v4485 = vsel %vm3400, %v4483, %v4484
    %v4488 = vpack.c.bf16 %v3409, %v3406
    %v4489 = vpack.c.bf16 %v3415, %v3412
    %v4490 = vpack.c.bf16 %v3421, %v3418
    %v4491 = vpack.c.bf16 %v4482, %v3424
    %v4492 = vpack.c.bf16 %v3433, %v3430
    %v4493 = vpack.c.bf16 %v3439, %v3436
    %v4494 = vpack.c.bf16 %v3445, %v3442
    %v4495 = vpack.c.bf16 %v4485, %v3448
    %s4496 = scalar_lea.vmem %s3, 512
    %v4497 = vld [vmem:[%s4496] sm:$0xf]
    %v4498 = vld [vmem:[%s4496 + $0x4] sm:$0xf]
    %v4499 = vld [vmem:[%s4496 + $0x8] sm:$0xf]
    %v4500 = vld [vmem:[%s4496 + $0xc] sm:$0xf]
    %v4501 = vld [vmem:[%s4496 + $0x10] sm:$0xf]
    %v4502 = vld [vmem:[%s4496 + $0x14] sm:$0xf]
    %v4503 = vld [vmem:[%s4496 + $0x18] sm:$0xf]
    %v4504 = vld [vmem:[%s4496 + $0x1c] sm:$0xf]
    %v4505 = vld [vmem:[%s4496 + $0x20] sm:$0xf]
    %v4506 = vld [vmem:[%s4496 + $0x24] sm:$0xf]
    %v4507 = vld [vmem:[%s4496 + $0x28] sm:$0xf]
    %v4508 = vld [vmem:[%s4496 + $0x2c] sm:$0xf]
    %v4509 = vld [vmem:[%s4496 + $0x30] sm:$0xf]
    %v4510 = vld [vmem:[%s4496 + $0x34] sm:$0xf]
    %v4511 = vld [vmem:[%s4496 + $0x38] sm:$0xf]
    %v4512 = vld [vmem:[%s4496 + $0x3c] sm:$0xf]
    %v4529 = vunpack.c.l.b16 %v4497
    %v4530 = vunpack.c.l.b16 %v4498
    %v4531 = vunpack.c.l.b16 %v4499
    %v4532 = vunpack.c.l.b16 %v4500
    %v4533 = vunpack.c.l.b16 %v4501
    %v4534 = vunpack.c.l.b16 %v4502
    %v4535 = vunpack.c.l.b16 %v4503
    %v4536 = vunpack.c.l.b16 %v4504
    %v4537 = vunpack.c.l.b16 %v4505
    %v4538 = vunpack.c.l.b16 %v4506
    %v4539 = vunpack.c.l.b16 %v4507
    %v4540 = vunpack.c.l.b16 %v4508
    %v4541 = vunpack.c.l.b16 %v4509
    %v4542 = vunpack.c.l.b16 %v4510
    %v4543 = vunpack.c.l.b16 %v4511
    %v4544 = vunpack.c.l.b16 %v4512
    %v4545 = vpack.c.b16 %v4530, %v4529
    %v4546 = vpack.c.b16 %v4532, %v4531
    %v4547 = vpack.c.b16 %v4534, %v4533
    %v4548 = vpack.c.b16 %v4536, %v4535
    %v4549 = vpack.c.b16 %v4538, %v4537
    %v4550 = vpack.c.b16 %v4540, %v4539
    %v4551 = vpack.c.b16 %v4542, %v4541
    %v4552 = vpack.c.b16 %v4544, %v4543
    %4561 = vmatprep.subr.bf16.mxu0 0
    %4562 = vmatpush1.bf16.msra.mxu0 %v4545
    %4563 = vmatprep.subr.bf16.mxu0 0
    %4564 = vmatpush1.bf16.msra.mxu0 %v4546
    %4565 = vmatprep.subr.bf16.mxu0 0
    %4566 = vmatpush1.bf16.msra.mxu0 %v4547
    %4567 = vmatprep.subr.bf16.mxu0 0
    %4568 = vmatpush1.bf16.msra.mxu0 %v4548
    %4569 = vmatprep.subr.bf16.mxu0 0
    %4570 = vmatpush1.bf16.msra.mxu0 %v4549
    %4571 = vmatprep.subr.bf16.mxu0 0
    %4572 = vmatpush1.bf16.msra.mxu0 %v4550
    %4573 = vmatprep.subr.bf16.mxu0 0
    %4574 = vmatpush1.bf16.msra.mxu0 %v4551
    %4575 = vmatprep.subr.bf16.mxu0 0
    %4576 = vmatpush1.bf16.msra.mxu0 %v4552
    %4577 = vmatprep.subr.bf16.mxu0 0
    %4578 = vmatpush1.bf16.msra.mxu0 0
    %4579 = vmatprep.subr.bf16.mxu0 0
    %4580 = vmatpush1.bf16.msra.mxu0 0
    %4581 = vmatprep.subr.bf16.mxu0 0
    %4582 = vmatpush1.bf16.msra.mxu0 0
    %4583 = vmatprep.subr.bf16.mxu0 0
    %4584 = vmatpush1.bf16.msra.mxu0 0
    %4585 = vmatprep.subr.bf16.mxu0 0
    %4586 = vmatpush1.bf16.msra.mxu0 0
    %4587 = vmatprep.subr.bf16.mxu0 0
    %4588 = vmatpush1.bf16.msra.mxu0 0
    %4589 = vmatprep.subr.bf16.mxu0 0
    %4590 = vmatpush1.bf16.msra.mxu0 0
    %4591 = vmatprep.subr.bf16.mxu0 0
    %4592 = vmatpush1.bf16.msra.mxu0 0
    %4593 = vmatprep.mubr.bf16.mxu0 0
    %4594 = vmatmul.mubr.bf16.gmra.mrb[0].mxu0 %v4488
    %v4595 = vpop.f32.mrb[0].mxu0
    %v4596 = vadd.f32 0.0, %v4595
    %v4597 = vpop.f32.mrb[0].mxu0
    %v4598 = vpop.f32.mrb[0].mxu0
    %v4599 = vadd.f32 0.0, %v4598
    %v4600 = vpop.f32.mrb[0].mxu0
    %4601 = vmatprep.mubr.bf16.mxu0 0
    %4602 = vmatmul.mubr.bf16.gmra.mrb[0].mxu0 %v4489
    %v4603 = vpop.f32.mrb[0].mxu0
    %v4604 = vadd.f32 0.0, %v4603
    %v4605 = vpop.f32.mrb[0].mxu0
    %v4606 = vpop.f32.mrb[0].mxu0
    %v4607 = vadd.f32 0.0, %v4606
    %v4608 = vpop.f32.mrb[0].mxu0
    %4609 = vmatprep.mubr.bf16.mxu0 0
    %4610 = vmatmul.mubr.bf16.gmra.mrb[0].mxu0 %v4490
    %v4611 = vpop.f32.mrb[0].mxu0
    %v4612 = vadd.f32 0.0, %v4611
    %v4613 = vpop.f32.mrb[0].mxu0
    %v4614 = vpop.f32.mrb[0].mxu0
    %v4615 = vadd.f32 0.0, %v4614
    %v4616 = vpop.f32.mrb[0].mxu0
    %4617 = vmatprep.mubr.bf16.mxu0 0
    %4618 = vmatmul.mubr.bf16.gmra.mrb[0].mxu0 %v4491
    %v4619 = vpop.f32.mrb[0].mxu0
    %v4620 = vadd.f32 0.0, %v4619
    %v4621 = vpop.f32.mrb[0].mxu0
    %v4622 = vpop.f32.mrb[0].mxu0
    %v4623 = vadd.f32 0.0, %v4622
    %v4624 = vpop.f32.mrb[0].mxu0
    %4625 = vmatprep.mubr.bf16.mxu0 0
    %4626 = vmatmul.mubr.bf16.gmra.mrb[0].mxu0 %v4492
    %v4627 = vpop.f32.mrb[0].mxu0
    %v4628 = vadd.f32 0.0, %v4627
    %v4629 = vpop.f32.mrb[0].mxu0
    %v4630 = vpop.f32.mrb[0].mxu0
    %v4631 = vadd.f32 0.0, %v4630
    %v4632 = vpop.f32.mrb[0].mxu0
    %4633 = vmatprep.mubr.bf16.mxu0 0
    %4634 = vmatmul.mubr.bf16.gmra.mrb[0].mxu0 %v4493
    %v4635 = vpop.f32.mrb[0].mxu0
    %v4636 = vadd.f32 0.0, %v4635
    %v4637 = vpop.f32.mrb[0].mxu0
    %v4638 = vpop.f32.mrb[0].mxu0
    %v4639 = vadd.f32 0.0, %v4638
    %v4640 = vpop.f32.mrb[0].mxu0
    %4641 = vmatprep.mubr.bf16.mxu0 0
    %4642 = vmatmul.mubr.bf16.gmra.mrb[0].mxu0 %v4494
    %v4643 = vpop.f32.mrb[0].mxu0
    %v4644 = vadd.f32 0.0, %v4643
    %v4645 = vpop.f32.mrb[0].mxu0
    %v4646 = vpop.f32.mrb[0].mxu0
    %v4647 = vadd.f32 0.0, %v4646
    %v4648 = vpop.f32.mrb[0].mxu0
    %4649 = vmatprep.mubr.bf16.mxu0 0
    %4650 = vmatmul.mubr.bf16.gmra.mrb[0].mxu0 %v4495
    %v4651 = vpop.f32.mrb[0].mxu0
    %v4652 = vadd.f32 0.0, %v4651
    %v4653 = vpop.f32.mrb[0].mxu0
    %v4654 = vpop.f32.mrb[0].mxu0
    %v4655 = vadd.f32 0.0, %v4654
    %v4656 = vpop.f32.mrb[0].mxu0
    %4657 = vdwg.mxu0
    %v4658 = vadd.f32 %v4464, %v4596
    %v4659 = vadd.f32 %v4465, %v4599
    %v4660 = vadd.f32 %v4466, %v4604
    %v4661 = vadd.f32 %v4467, %v4607
    %v4662 = vadd.f32 %v4468, %v4612
    %v4663 = vadd.f32 %v4469, %v4615
    %v4664 = vadd.f32 %v4470, %v4620
    %v4665 = vadd.f32 %v4471, %v4623
    %v4666 = vadd.f32 %v4472, %v4628
    %v4667 = vadd.f32 %v4473, %v4631
    %v4668 = vadd.f32 %v4474, %v4636
    %v4669 = vadd.f32 %v4475, %v4639
    %v4670 = vadd.f32 %v4476, %v4644
    %v4671 = vadd.f32 %v4477, %v4647
    %v4672 = vadd.f32 %v4478, %v4652
    %v4673 = vadd.f32 %v4479, %v4655
    %v4674 = vrot.slane %v2641, 4
    %v4675 = vrot.slane %v2642, 4
    %v4676 = vsel %vm3651, %v4674, %v4675
    %v4677 = vrot.slane %v2665, 4
    %v4678 = vrot.slane %v2666, 4
    %v4679 = vsel %vm3651, %v4677, %v4678
    %v4682 = vpack.c.bf16 %v3660, %v3657
    %v4683 = vpack.c.bf16 %v3666, %v3663
    %v4684 = vpack.c.bf16 %v3672, %v3669
    %v4685 = vpack.c.bf16 %v4676, %v3675
    %v4686 = vpack.c.bf16 %v3684, %v3681
    %v4687 = vpack.c.bf16 %v3690, %v3687
    %v4688 = vpack.c.bf16 %v3696, %v3693
    %v4689 = vpack.c.bf16 %v4679, %v3699
    %s4690 = scalar_lea.vmem %s3, 576
    %v4691 = vld [vmem:[%s4690] sm:$0xf]
    %v4692 = vld [vmem:[%s4690 + $0x4] sm:$0xf]
    %v4693 = vld [vmem:[%s4690 + $0x8] sm:$0xf]
    %v4694 = vld [vmem:[%s4690 + $0xc] sm:$0xf]
    %v4695 = vld [vmem:[%s4690 + $0x10] sm:$0xf]
    %v4696 = vld [vmem:[%s4690 + $0x14] sm:$0xf]
    %v4697 = vld [vmem:[%s4690 + $0x18] sm:$0xf]
    %v4698 = vld [vmem:[%s4690 + $0x1c] sm:$0xf]
    %v4699 = vld [vmem:[%s4690 + $0x20] sm:$0xf]
    %v4700 = vld [vmem:[%s4690 + $0x24] sm:$0xf]
    %v4701 = vld [vmem:[%s4690 + $0x28] sm:$0xf]
    %v4702 = vld [vmem:[%s4690 + $0x2c] sm:$0xf]
    %v4703 = vld [vmem:[%s4690 + $0x30] sm:$0xf]
    %v4704 = vld [vmem:[%s4690 + $0x34] sm:$0xf]
    %v4705 = vld [vmem:[%s4690 + $0x38] sm:$0xf]
    %v4706 = vld [vmem:[%s4690 + $0x3c] sm:$0xf]
    %v4723 = vunpack.c.l.b16 %v4691
    %v4724 = vunpack.c.l.b16 %v4692
    %v4725 = vunpack.c.l.b16 %v4693
    %v4726 = vunpack.c.l.b16 %v4694
    %v4727 = vunpack.c.l.b16 %v4695
    %v4728 = vunpack.c.l.b16 %v4696
    %v4729 = vunpack.c.l.b16 %v4697
    %v4730 = vunpack.c.l.b16 %v4698
    %v4731 = vunpack.c.l.b16 %v4699
    %v4732 = vunpack.c.l.b16 %v4700
    %v4733 = vunpack.c.l.b16 %v4701
    %v4734 = vunpack.c.l.b16 %v4702
    %v4735 = vunpack.c.l.b16 %v4703
    %v4736 = vunpack.c.l.b16 %v4704
    %v4737 = vunpack.c.l.b16 %v4705
    %v4738 = vunpack.c.l.b16 %v4706
    %v4739 = vpack.c.b16 %v4724, %v4723
    %v4740 = vpack.c.b16 %v4726, %v4725
    %v4741 = vpack.c.b16 %v4728, %v4727
    %v4742 = vpack.c.b16 %v4730, %v4729
    %v4743 = vpack.c.b16 %v4732, %v4731
    %v4744 = vpack.c.b16 %v4734, %v4733
    %v4745 = vpack.c.b16 %v4736, %v4735
    %v4746 = vpack.c.b16 %v4738, %v4737
    %4755 = vmatprep.subr.bf16.mxu0 0
    %4756 = vmatpush1.bf16.msra.mxu0 %v4739
    %4757 = vmatprep.subr.bf16.mxu0 0
    %4758 = vmatpush1.bf16.msra.mxu0 %v4740
    %4759 = vmatprep.subr.bf16.mxu0 0
    %4760 = vmatpush1.bf16.msra.mxu0 %v4741
    %4761 = vmatprep.subr.bf16.mxu0 0
    %4762 = vmatpush1.bf16.msra.mxu0 %v4742
    %4763 = vmatprep.subr.bf16.mxu0 0
    %4764 = vmatpush1.bf16.msra.mxu0 %v4743
    %4765 = vmatprep.subr.bf16.mxu0 0
    %4766 = vmatpush1.bf16.msra.mxu0 %v4744
    %4767 = vmatprep.subr.bf16.mxu0 0
    %4768 = vmatpush1.bf16.msra.mxu0 %v4745
    %4769 = vmatprep.subr.bf16.mxu0 0
    %4770 = vmatpush1.bf16.msra.mxu0 %v4746
    %4771 = vmatprep.subr.bf16.mxu0 0
    %4772 = vmatpush1.bf16.msra.mxu0 0
    %4773 = vmatprep.subr.bf16.mxu0 0
    %4774 = vmatpush1.bf16.msra.mxu0 0
    %4775 = vmatprep.subr.bf16.mxu0 0
    %4776 = vmatpush1.bf16.msra.mxu0 0
    %4777 = vmatprep.subr.bf16.mxu0 0
    %4778 = vmatpush1.bf16.msra.mxu0 0
    %4779 = vmatprep.subr.bf16.mxu0 0
    %4780 = vmatpush1.bf16.msra.mxu0 0
    %4781 = vmatprep.subr.bf16.mxu0 0
    %4782 = vmatpush1.bf16.msra.mxu0 0
    %4783 = vmatprep.subr.bf16.mxu0 0
    %4784 = vmatpush1.bf16.msra.mxu0 0
    %4785 = vmatprep.subr.bf16.mxu0 0
    %4786 = vmatpush1.bf16.msra.mxu0 0
    %4787 = vmatprep.mubr.bf16.mxu0 0
    %4788 = vmatmul.mubr.bf16.gmra.mrb[0].mxu0 %v4682
    %v4789 = vpop.f32.mrb[0].mxu0
    %v4790 = vadd.f32 0.0, %v4789
    %v4791 = vpop.f32.mrb[0].mxu0
    %v4792 = vpop.f32.mrb[0].mxu0
    %v4793 = vadd.f32 0.0, %v4792
    %v4794 = vpop.f32.mrb[0].mxu0
    %4795 = vmatprep.mubr.bf16.mxu0 0
    %4796 = vmatmul.mubr.bf16.gmra.mrb[0].mxu0 %v4683
    %v4797 = vpop.f32.mrb[0].mxu0
    %v4798 = vadd.f32 0.0, %v4797
    %v4799 = vpop.f32.mrb[0].mxu0
    %v4800 = vpop.f32.mrb[0].mxu0
    %v4801 = vadd.f32 0.0, %v4800
    %v4802 = vpop.f32.mrb[0].mxu0
    %4803 = vmatprep.mubr.bf16.mxu0 0
    %4804 = vmatmul.mubr.bf16.gmra.mrb[0].mxu0 %v4684
    %v4805 = vpop.f32.mrb[0].mxu0
    %v4806 = vadd.f32 0.0, %v4805
    %v4807 = vpop.f32.mrb[0].mxu0
    %v4808 = vpop.f32.mrb[0].mxu0
    %v4809 = vadd.f32 0.0, %v4808
    %v4810 = vpop.f32.mrb[0].mxu0
    %4811 = vmatprep.mubr.bf16.mxu0 0
    %4812 = vmatmul.mubr.bf16.gmra.mrb[0].mxu0 %v4685
    %v4813 = vpop.f32.mrb[0].mxu0
    %v4814 = vadd.f32 0.0, %v4813
    %v4815 = vpop.f32.mrb[0].mxu0
    %v4816 = vpop.f32.mrb[0].mxu0
    %v4817 = vadd.f32 0.0, %v4816
    %v4818 = vpop.f32.mrb[0].mxu0
    %4819 = vmatprep.mubr.bf16.mxu0 0
    %4820 = vmatmul.mubr.bf16.gmra.mrb[0].mxu0 %v4686
    %v4821 = vpop.f32.mrb[0].mxu0
    %v4822 = vadd.f32 0.0, %v4821
    %v4823 = vpop.f32.mrb[0].mxu0
    %v4824 = vpop.f32.mrb[0].mxu0
    %v4825 = vadd.f32 0.0, %v4824
    %v4826 = vpop.f32.mrb[0].mxu0
    %4827 = vmatprep.mubr.bf16.mxu0 0
    %4828 = vmatmul.mubr.bf16.gmra.mrb[0].mxu0 %v4687
    %v4829 = vpop.f32.mrb[0].mxu0
    %v4830 = vadd.f32 0.0, %v4829
    %v4831 = vpop.f32.mrb[0].mxu0
    %v4832 = vpop.f32.mrb[0].mxu0
    %v4833 = vadd.f32 0.0, %v4832
    %v4834 = vpop.f32.mrb[0].mxu0
    %4835 = vmatprep.mubr.bf16.mxu0 0
    %4836 = vmatmul.mubr.bf16.gmra.mrb[0].mxu0 %v4688
    %v4837 = vpop.f32.mrb[0].mxu0
    %v4838 = vadd.f32 0.0, %v4837
    %v4839 = vpop.f32.mrb[0].mxu0
    %v4840 = vpop.f32.mrb[0].mxu0
    %v4841 = vadd.f32 0.0, %v4840
    %v4842 = vpop.f32.mrb[0].mxu0
    %4843 = vmatprep.mubr.bf16.mxu0 0
    %4844 = vmatmul.mubr.bf16.gmra.mrb[0].mxu0 %v4689
    %v4845 = vpop.f32.mrb[0].mxu0
    %v4846 = vadd.f32 0.0, %v4845
    %v4847 = vpop.f32.mrb[0].mxu0
    %v4848 = vpop.f32.mrb[0].mxu0
    %v4849 = vadd.f32 0.0, %v4848
    %v4850 = vpop.f32.mrb[0].mxu0
    %4851 = vdwg.mxu0
    %v4852 = vadd.f32 %v4658, %v4790
    %v4853 = vadd.f32 %v4659, %v4793
    %v4854 = vadd.f32 %v4660, %v4798
    %v4855 = vadd.f32 %v4661, %v4801
    %v4856 = vadd.f32 %v4662, %v4806
    %v4857 = vadd.f32 %v4663, %v4809
    %v4858 = vadd.f32 %v4664, %v4814
    %v4859 = vadd.f32 %v4665, %v4817
    %v4860 = vadd.f32 %v4666, %v4822
    %v4861 = vadd.f32 %v4667, %v4825
    %v4862 = vadd.f32 %v4668, %v4830
    %v4863 = vadd.f32 %v4669, %v4833
    %v4864 = vadd.f32 %v4670, %v4838
    %v4865 = vadd.f32 %v4671, %v4841
    %v4866 = vadd.f32 %v4672, %v4846
    %v4867 = vadd.f32 %v4673, %v4849
    %v4868 = vpack.c.bf16 %v2643, %v2641
    %v4869 = vpack.c.bf16 %v2667, %v2665
    %s4870 = scalar_lea.vmem %s3, 640
    %v4871 = vld [vmem:[%s4870] sm:$0xf]
    %v4872 = vld [vmem:[%s4870 + $0x4] sm:$0xf]
    %v4873 = vld [vmem:[%s4870 + $0x8] sm:$0xf]
    %v4874 = vld [vmem:[%s4870 + $0xc] sm:$0xf]
    %v4875 = vld [vmem:[%s4870 + $0x10] sm:$0xf]
    %v4876 = vld [vmem:[%s4870 + $0x14] sm:$0xf]
    %v4877 = vld [vmem:[%s4870 + $0x18] sm:$0xf]
    %v4878 = vld [vmem:[%s4870 + $0x1c] sm:$0xf]
    %v4879 = vld [vmem:[%s4870 + $0x20] sm:$0xf]
    %v4880 = vld [vmem:[%s4870 + $0x24] sm:$0xf]
    %v4881 = vld [vmem:[%s4870 + $0x28] sm:$0xf]
    %v4882 = vld [vmem:[%s4870 + $0x2c] sm:$0xf]
    %v4883 = vld [vmem:[%s4870 + $0x30] sm:$0xf]
    %v4884 = vld [vmem:[%s4870 + $0x34] sm:$0xf]
    %v4885 = vld [vmem:[%s4870 + $0x38] sm:$0xf]
    %v4886 = vld [vmem:[%s4870 + $0x3c] sm:$0xf]
    %v4903 = vunpack.c.l.b16 %v4871
    %v4904 = vunpack.c.l.b16 %v4872
    %v4905 = vunpack.c.l.b16 %v4873
    %v4906 = vunpack.c.l.b16 %v4874
    %v4907 = vunpack.c.l.b16 %v4875
    %v4908 = vunpack.c.l.b16 %v4876
    %v4909 = vunpack.c.l.b16 %v4877
    %v4910 = vunpack.c.l.b16 %v4878
    %v4911 = vunpack.c.l.b16 %v4879
    %v4912 = vunpack.c.l.b16 %v4880
    %v4913 = vunpack.c.l.b16 %v4881
    %v4914 = vunpack.c.l.b16 %v4882
    %v4915 = vunpack.c.l.b16 %v4883
    %v4916 = vunpack.c.l.b16 %v4884
    %v4917 = vunpack.c.l.b16 %v4885
    %v4918 = vunpack.c.l.b16 %v4886
    %v4919 = vpack.c.b16 %v4904, %v4903
    %v4920 = vpack.c.b16 %v4906, %v4905
    %v4921 = vpack.c.b16 %v4908, %v4907
    %v4922 = vpack.c.b16 %v4910, %v4909
    %v4923 = vpack.c.b16 %v4912, %v4911
    %v4924 = vpack.c.b16 %v4914, %v4913
    %v4925 = vpack.c.b16 %v4916, %v4915
    %v4926 = vpack.c.b16 %v4918, %v4917
    %4935 = vmatprep.subr.bf16.mxu0 0
    %4936 = vmatpush1.bf16.msra.mxu0 %v4919
    %4937 = vmatprep.subr.bf16.mxu0 0
    %4938 = vmatpush1.bf16.msra.mxu0 %v4920
    %4939 = vmatprep.subr.bf16.mxu0 0
    %4940 = vmatpush1.bf16.msra.mxu0 %v4921
    %4941 = vmatprep.subr.bf16.mxu0 0
    %4942 = vmatpush1.bf16.msra.mxu0 %v4922
    %4943 = vmatprep.subr.bf16.mxu0 0
    %4944 = vmatpush1.bf16.msra.mxu0 %v4923
    %4945 = vmatprep.subr.bf16.mxu0 0
    %4946 = vmatpush1.bf16.msra.mxu0 %v4924
    %4947 = vmatprep.subr.bf16.mxu0 0
    %4948 = vmatpush1.bf16.msra.mxu0 %v4925
    %4949 = vmatprep.subr.bf16.mxu0 0
    %4950 = vmatpush1.bf16.msra.mxu0 %v4926
    %4951 = vmatprep.subr.bf16.mxu0 0
    %4952 = vmatpush1.bf16.msra.mxu0 0
    %4953 = vmatprep.subr.bf16.mxu0 0
    %4954 = vmatpush1.bf16.msra.mxu0 0
    %4955 = vmatprep.subr.bf16.mxu0 0
    %4956 = vmatpush1.bf16.msra.mxu0 0
    %4957 = vmatprep.subr.bf16.mxu0 0
    %4958 = vmatpush1.bf16.msra.mxu0 0
    %4959 = vmatprep.subr.bf16.mxu0 0
    %4960 = vmatpush1.bf16.msra.mxu0 0
    %4961 = vmatprep.subr.bf16.mxu0 0
    %4962 = vmatpush1.bf16.msra.mxu0 0
    %4963 = vmatprep.subr.bf16.mxu0 0
    %4964 = vmatpush1.bf16.msra.mxu0 0
    %4965 = vmatprep.subr.bf16.mxu0 0
    %4966 = vmatpush1.bf16.msra.mxu0 0
    %4967 = vmatprep.mubr.bf16.mxu0 0
    %4968 = vmatmul.mubr.bf16.gmra.mrb[0].mxu0 %v2682
    %v4969 = vpop.f32.mrb[0].mxu0
    %v4970 = vadd.f32 0.0, %v4969
    %v4971 = vpop.f32.mrb[0].mxu0
    %v4972 = vpop.f32.mrb[0].mxu0
    %v4973 = vadd.f32 0.0, %v4972
    %v4974 = vpop.f32.mrb[0].mxu0
    %4975 = vmatprep.mubr.bf16.mxu0 0
    %4976 = vmatmul.mubr.bf16.gmra.mrb[0].mxu0 %v2683
    %v4977 = vpop.f32.mrb[0].mxu0
    %v4978 = vadd.f32 0.0, %v4977
    %v4979 = vpop.f32.mrb[0].mxu0
    %v4980 = vpop.f32.mrb[0].mxu0
    %v4981 = vadd.f32 0.0, %v4980
    %v4982 = vpop.f32.mrb[0].mxu0
    %4983 = vmatprep.mubr.bf16.mxu0 0
    %4984 = vmatmul.mubr.bf16.gmra.mrb[0].mxu0 %v2684
    %v4985 = vpop.f32.mrb[0].mxu0
    %v4986 = vadd.f32 0.0, %v4985
    %v4987 = vpop.f32.mrb[0].mxu0
    %v4988 = vpop.f32.mrb[0].mxu0
    %v4989 = vadd.f32 0.0, %v4988
    %v4990 = vpop.f32.mrb[0].mxu0
    %4991 = vmatprep.mubr.bf16.mxu0 0
    %4992 = vmatmul.mubr.bf16.gmra.mrb[0].mxu0 %v4868
    %v4993 = vpop.f32.mrb[0].mxu0
    %v4994 = vadd.f32 0.0, %v4993
    %v4995 = vpop.f32.mrb[0].mxu0
    %v4996 = vpop.f32.mrb[0].mxu0
    %v4997 = vadd.f32 0.0, %v4996
    %v4998 = vpop.f32.mrb[0].mxu0
    %4999 = vmatprep.mubr.bf16.mxu0 0
    %5000 = vmatmul.mubr.bf16.gmra.mrb[0].mxu0 %v2686
    %v5001 = vpop.f32.mrb[0].mxu0
    %v5002 = vadd.f32 0.0, %v5001
    %v5003 = vpop.f32.mrb[0].mxu0
    %v5004 = vpop.f32.mrb[0].mxu0
    %v5005 = vadd.f32 0.0, %v5004
    %v5006 = vpop.f32.mrb[0].mxu0
    %5007 = vmatprep.mubr.bf16.mxu0 0
    %5008 = vmatmul.mubr.bf16.gmra.mrb[0].mxu0 %v2687
    %v5009 = vpop.f32.mrb[0].mxu0
    %v5010 = vadd.f32 0.0, %v5009
    %v5011 = vpop.f32.mrb[0].mxu0
    %v5012 = vpop.f32.mrb[0].mxu0
    %v5013 = vadd.f32 0.0, %v5012
    %v5014 = vpop.f32.mrb[0].mxu0
    %5015 = vmatprep.mubr.bf16.mxu0 0
    %5016 = vmatmul.mubr.bf16.gmra.mrb[0].mxu0 %v2688
    %v5017 = vpop.f32.mrb[0].mxu0
    %v5018 = vadd.f32 0.0, %v5017
    %v5019 = vpop.f32.mrb[0].mxu0
    %v5020 = vpop.f32.mrb[0].mxu0
    %v5021 = vadd.f32 0.0, %v5020
    %v5022 = vpop.f32.mrb[0].mxu0
    %5023 = vmatprep.mubr.bf16.mxu0 0
    %5024 = vmatmul.mubr.bf16.gmra.mrb[0].mxu0 %v4869
    %v5025 = vpop.f32.mrb[0].mxu0
    %v5026 = vadd.f32 0.0, %v5025
    %v5027 = vpop.f32.mrb[0].mxu0
    %v5028 = vpop.f32.mrb[0].mxu0
    %v5029 = vadd.f32 0.0, %v5028
    %v5030 = vpop.f32.mrb[0].mxu0
    %5031 = vdwg.mxu0
    %v5032 = vadd.f32 %v4852, %v4970
    %v5033 = vadd.f32 %v4853, %v4973
    %v5034 = vadd.f32 %v4854, %v4978
    %v5035 = vadd.f32 %v4855, %v4981
    %v5036 = vadd.f32 %v4856, %v4986
    %v5037 = vadd.f32 %v4857, %v4989
    %v5038 = vadd.f32 %v4858, %v4994
    %v5039 = vadd.f32 %v4859, %v4997
    %v5040 = vadd.f32 %v4860, %v5002
    %v5041 = vadd.f32 %v4861, %v5005
    %v5042 = vadd.f32 %v4862, %v5010
    %v5043 = vadd.f32 %v4863, %v5013
    %v5044 = vadd.f32 %v4864, %v5018
    %v5045 = vadd.f32 %v4865, %v5021
    %v5046 = vadd.f32 %v4866, %v5026
    %v5047 = vadd.f32 %v4867, %v5029
    %v5052 = vrot.slane %v2643, 1
    %v5053 = vrot.slane %v2644, 1
    %v5054 = vsel %vm2898, %v5052, %v5053
    %v5055 = vrot.slane %v2667, 1
    %v5056 = vrot.slane %v2668, 1
    %v5057 = vsel %vm2898, %v5055, %v5056
    %v5060 = vpack.c.bf16 %v5054, %v4094
    %v5061 = vpack.c.bf16 %v5057, %v4097
    %s5062 = scalar_lea.vmem %s3, 704
    %v5063 = vld [vmem:[%s5062] sm:$0xf]
    %v5064 = vld [vmem:[%s5062 + $0x4] sm:$0xf]
    %v5065 = vld [vmem:[%s5062 + $0x8] sm:$0xf]
    %v5066 = vld [vmem:[%s5062 + $0xc] sm:$0xf]
    %v5067 = vld [vmem:[%s5062 + $0x10] sm:$0xf]
    %v5068 = vld [vmem:[%s5062 + $0x14] sm:$0xf]
    %v5069 = vld [vmem:[%s5062 + $0x18] sm:$0xf]
    %v5070 = vld [vmem:[%s5062 + $0x1c] sm:$0xf]
    %v5071 = vld [vmem:[%s5062 + $0x20] sm:$0xf]
    %v5072 = vld [vmem:[%s5062 + $0x24] sm:$0xf]
    %v5073 = vld [vmem:[%s5062 + $0x28] sm:$0xf]
    %v5074 = vld [vmem:[%s5062 + $0x2c] sm:$0xf]
    %v5075 = vld [vmem:[%s5062 + $0x30] sm:$0xf]
    %v5076 = vld [vmem:[%s5062 + $0x34] sm:$0xf]
    %v5077 = vld [vmem:[%s5062 + $0x38] sm:$0xf]
    %v5078 = vld [vmem:[%s5062 + $0x3c] sm:$0xf]
    %v5095 = vunpack.c.l.b16 %v5063
    %v5096 = vunpack.c.l.b16 %v5064
    %v5097 = vunpack.c.l.b16 %v5065
    %v5098 = vunpack.c.l.b16 %v5066
    %v5099 = vunpack.c.l.b16 %v5067
    %v5100 = vunpack.c.l.b16 %v5068
    %v5101 = vunpack.c.l.b16 %v5069
    %v5102 = vunpack.c.l.b16 %v5070
    %v5103 = vunpack.c.l.b16 %v5071
    %v5104 = vunpack.c.l.b16 %v5072
    %v5105 = vunpack.c.l.b16 %v5073
    %v5106 = vunpack.c.l.b16 %v5074
    %v5107 = vunpack.c.l.b16 %v5075
    %v5108 = vunpack.c.l.b16 %v5076
    %v5109 = vunpack.c.l.b16 %v5077
    %v5110 = vunpack.c.l.b16 %v5078
    %v5111 = vpack.c.b16 %v5096, %v5095
    %v5112 = vpack.c.b16 %v5098, %v5097
    %v5113 = vpack.c.b16 %v5100, %v5099
    %v5114 = vpack.c.b16 %v5102, %v5101
    %v5115 = vpack.c.b16 %v5104, %v5103
    %v5116 = vpack.c.b16 %v5106, %v5105
    %v5117 = vpack.c.b16 %v5108, %v5107
    %v5118 = vpack.c.b16 %v5110, %v5109
    %5127 = vmatprep.subr.bf16.mxu0 0
    %5128 = vmatpush1.bf16.msra.mxu0 %v5111
    %5129 = vmatprep.subr.bf16.mxu0 0
    %5130 = vmatpush1.bf16.msra.mxu0 %v5112
    %5131 = vmatprep.subr.bf16.mxu0 0
    %5132 = vmatpush1.bf16.msra.mxu0 %v5113
    %5133 = vmatprep.subr.bf16.mxu0 0
    %5134 = vmatpush1.bf16.msra.mxu0 %v5114
    %5135 = vmatprep.subr.bf16.mxu0 0
    %5136 = vmatpush1.bf16.msra.mxu0 %v5115
    %5137 = vmatprep.subr.bf16.mxu0 0
    %5138 = vmatpush1.bf16.msra.mxu0 %v5116
    %5139 = vmatprep.subr.bf16.mxu0 0
    %5140 = vmatpush1.bf16.msra.mxu0 %v5117
    %5141 = vmatprep.subr.bf16.mxu0 0
    %5142 = vmatpush1.bf16.msra.mxu0 %v5118
    %5143 = vmatprep.subr.bf16.mxu0 0
    %5144 = vmatpush1.bf16.msra.mxu0 0
    %5145 = vmatprep.subr.bf16.mxu0 0
    %5146 = vmatpush1.bf16.msra.mxu0 0
    %5147 = vmatprep.subr.bf16.mxu0 0
    %5148 = vmatpush1.bf16.msra.mxu0 0
    %5149 = vmatprep.subr.bf16.mxu0 0
    %5150 = vmatpush1.bf16.msra.mxu0 0
    %5151 = vmatprep.subr.bf16.mxu0 0
    %5152 = vmatpush1.bf16.msra.mxu0 0
    %5153 = vmatprep.subr.bf16.mxu0 0
    %5154 = vmatpush1.bf16.msra.mxu0 0
    %5155 = vmatprep.subr.bf16.mxu0 0
    %5156 = vmatpush1.bf16.msra.mxu0 0
    %5157 = vmatprep.subr.bf16.mxu0 0
    %5158 = vmatpush1.bf16.msra.mxu0 0
    %5159 = vmatprep.mubr.bf16.mxu0 0
    %5160 = vmatmul.mubr.bf16.gmra.mrb[0].mxu0 %v2964
    %v5161 = vpop.f32.mrb[0].mxu0
    %v5162 = vadd.f32 0.0, %v5161
    %v5163 = vpop.f32.mrb[0].mxu0
    %v5164 = vpop.f32.mrb[0].mxu0
    %v5165 = vadd.f32 0.0, %v5164
    %v5166 = vpop.f32.mrb[0].mxu0
    %5167 = vmatprep.mubr.bf16.mxu0 0
    %5168 = vmatmul.mubr.bf16.gmra.mrb[0].mxu0 %v2965
    %v5169 = vpop.f32.mrb[0].mxu0
    %v5170 = vadd.f32 0.0, %v5169
    %v5171 = vpop.f32.mrb[0].mxu0
    %v5172 = vpop.f32.mrb[0].mxu0
    %v5173 = vadd.f32 0.0, %v5172
    %v5174 = vpop.f32.mrb[0].mxu0
    %5175 = vmatprep.mubr.bf16.mxu0 0
    %5176 = vmatmul.mubr.bf16.gmra.mrb[0].mxu0 %v2966
    %v5177 = vpop.f32.mrb[0].mxu0
    %v5178 = vadd.f32 0.0, %v5177
    %v5179 = vpop.f32.mrb[0].mxu0
    %v5180 = vpop.f32.mrb[0].mxu0
    %v5181 = vadd.f32 0.0, %v5180
    %v5182 = vpop.f32.mrb[0].mxu0
    %5183 = vmatprep.mubr.bf16.mxu0 0
    %5184 = vmatmul.mubr.bf16.gmra.mrb[0].mxu0 %v5060
    %v5185 = vpop.f32.mrb[0].mxu0
    %v5186 = vadd.f32 0.0, %v5185
    %v5187 = vpop.f32.mrb[0].mxu0
    %v5188 = vpop.f32.mrb[0].mxu0
    %v5189 = vadd.f32 0.0, %v5188
    %v5190 = vpop.f32.mrb[0].mxu0
    %5191 = vmatprep.mubr.bf16.mxu0 0
    %5192 = vmatmul.mubr.bf16.gmra.mrb[0].mxu0 %v2968
    %v5193 = vpop.f32.mrb[0].mxu0
    %v5194 = vadd.f32 0.0, %v5193
    %v5195 = vpop.f32.mrb[0].mxu0
    %v5196 = vpop.f32.mrb[0].mxu0
    %v5197 = vadd.f32 0.0, %v5196
    %v5198 = vpop.f32.mrb[0].mxu0
    %5199 = vmatprep.mubr.bf16.mxu0 0
    %5200 = vmatmul.mubr.bf16.gmra.mrb[0].mxu0 %v2969
    %v5201 = vpop.f32.mrb[0].mxu0
    %v5202 = vadd.f32 0.0, %v5201
    %v5203 = vpop.f32.mrb[0].mxu0
    %v5204 = vpop.f32.mrb[0].mxu0
    %v5205 = vadd.f32 0.0, %v5204
    %v5206 = vpop.f32.mrb[0].mxu0
    %5207 = vmatprep.mubr.bf16.mxu0 0
    %5208 = vmatmul.mubr.bf16.gmra.mrb[0].mxu0 %v2970
    %v5209 = vpop.f32.mrb[0].mxu0
    %v5210 = vadd.f32 0.0, %v5209
    %v5211 = vpop.f32.mrb[0].mxu0
    %v5212 = vpop.f32.mrb[0].mxu0
    %v5213 = vadd.f32 0.0, %v5212
    %v5214 = vpop.f32.mrb[0].mxu0
    %5215 = vmatprep.mubr.bf16.mxu0 0
    %5216 = vmatmul.mubr.bf16.gmra.mrb[0].mxu0 %v5061
    %v5217 = vpop.f32.mrb[0].mxu0
    %v5218 = vadd.f32 0.0, %v5217
    %v5219 = vpop.f32.mrb[0].mxu0
    %v5220 = vpop.f32.mrb[0].mxu0
    %v5221 = vadd.f32 0.0, %v5220
    %v5222 = vpop.f32.mrb[0].mxu0
    %5223 = vdwg.mxu0
    %v5224 = vadd.f32 %v5032, %v5162
    %v5225 = vadd.f32 %v5033, %v5165
    %v5226 = vadd.f32 %v5034, %v5170
    %v5227 = vadd.f32 %v5035, %v5173
    %v5228 = vadd.f32 %v5036, %v5178
    %v5229 = vadd.f32 %v5037, %v5181
    %v5230 = vadd.f32 %v5038, %v5186
    %v5231 = vadd.f32 %v5039, %v5189
    %v5232 = vadd.f32 %v5040, %v5194
    %v5233 = vadd.f32 %v5041, %v5197
    %v5234 = vadd.f32 %v5042, %v5202
    %v5235 = vadd.f32 %v5043, %v5205
    %v5236 = vadd.f32 %v5044, %v5210
    %v5237 = vadd.f32 %v5045, %v5213
    %v5238 = vadd.f32 %v5046, %v5218
    %v5239 = vadd.f32 %v5047, %v5221
    %v5240 = vrot.slane %v2643, 2
    %v5241 = vrot.slane %v2644, 2
    %v5242 = vsel %vm3149, %v5240, %v5241
    %v5243 = vrot.slane %v2667, 2
    %v5244 = vrot.slane %v2668, 2
    %v5245 = vsel %vm3149, %v5243, %v5244
    %v5248 = vpack.c.bf16 %v5242, %v4288
    %v5249 = vpack.c.bf16 %v5245, %v4291
    %s5250 = scalar_lea.vmem %s3, 768
    %v5251 = vld [vmem:[%s5250] sm:$0xf]
    %v5252 = vld [vmem:[%s5250 + $0x4] sm:$0xf]
    %v5253 = vld [vmem:[%s5250 + $0x8] sm:$0xf]
    %v5254 = vld [vmem:[%s5250 + $0xc] sm:$0xf]
    %v5255 = vld [vmem:[%s5250 + $0x10] sm:$0xf]
    %v5256 = vld [vmem:[%s5250 + $0x14] sm:$0xf]
    %v5257 = vld [vmem:[%s5250 + $0x18] sm:$0xf]
    %v5258 = vld [vmem:[%s5250 + $0x1c] sm:$0xf]
    %v5259 = vld [vmem:[%s5250 + $0x20] sm:$0xf]
    %v5260 = vld [vmem:[%s5250 + $0x24] sm:$0xf]
    %v5261 = vld [vmem:[%s5250 + $0x28] sm:$0xf]
    %v5262 = vld [vmem:[%s5250 + $0x2c] sm:$0xf]
    %v5263 = vld [vmem:[%s5250 + $0x30] sm:$0xf]
    %v5264 = vld [vmem:[%s5250 + $0x34] sm:$0xf]
    %v5265 = vld [vmem:[%s5250 + $0x38] sm:$0xf]
    %v5266 = vld [vmem:[%s5250 + $0x3c] sm:$0xf]
    %v5283 = vunpack.c.l.b16 %v5251
    %v5284 = vunpack.c.l.b16 %v5252
    %v5285 = vunpack.c.l.b16 %v5253
    %v5286 = vunpack.c.l.b16 %v5254
    %v5287 = vunpack.c.l.b16 %v5255
    %v5288 = vunpack.c.l.b16 %v5256
    %v5289 = vunpack.c.l.b16 %v5257
    %v5290 = vunpack.c.l.b16 %v5258
    %v5291 = vunpack.c.l.b16 %v5259
    %v5292 = vunpack.c.l.b16 %v5260
    %v5293 = vunpack.c.l.b16 %v5261
    %v5294 = vunpack.c.l.b16 %v5262
    %v5295 = vunpack.c.l.b16 %v5263
    %v5296 = vunpack.c.l.b16 %v5264
    %v5297 = vunpack.c.l.b16 %v5265
    %v5298 = vunpack.c.l.b16 %v5266
    %v5299 = vpack.c.b16 %v5284, %v5283
    %v5300 = vpack.c.b16 %v5286, %v5285
    %v5301 = vpack.c.b16 %v5288, %v5287
    %v5302 = vpack.c.b16 %v5290, %v5289
    %v5303 = vpack.c.b16 %v5292, %v5291
    %v5304 = vpack.c.b16 %v5294, %v5293
    %v5305 = vpack.c.b16 %v5296, %v5295
    %v5306 = vpack.c.b16 %v5298, %v5297
    %5315 = vmatprep.subr.bf16.mxu0 0
    %5316 = vmatpush1.bf16.msra.mxu0 %v5299
    %5317 = vmatprep.subr.bf16.mxu0 0
    %5318 = vmatpush1.bf16.msra.mxu0 %v5300
    %5319 = vmatprep.subr.bf16.mxu0 0
    %5320 = vmatpush1.bf16.msra.mxu0 %v5301
    %5321 = vmatprep.subr.bf16.mxu0 0
    %5322 = vmatpush1.bf16.msra.mxu0 %v5302
    %5323 = vmatprep.subr.bf16.mxu0 0
    %5324 = vmatpush1.bf16.msra.mxu0 %v5303
    %5325 = vmatprep.subr.bf16.mxu0 0
    %5326 = vmatpush1.bf16.msra.mxu0 %v5304
    %5327 = vmatprep.subr.bf16.mxu0 0
    %5328 = vmatpush1.bf16.msra.mxu0 %v5305
    %5329 = vmatprep.subr.bf16.mxu0 0
    %5330 = vmatpush1.bf16.msra.mxu0 %v5306
    %5331 = vmatprep.subr.bf16.mxu0 0
    %5332 = vmatpush1.bf16.msra.mxu0 0
    %5333 = vmatprep.subr.bf16.mxu0 0
    %5334 = vmatpush1.bf16.msra.mxu0 0
    %5335 = vmatprep.subr.bf16.mxu0 0
    %5336 = vmatpush1.bf16.msra.mxu0 0
    %5337 = vmatprep.subr.bf16.mxu0 0
    %5338 = vmatpush1.bf16.msra.mxu0 0
    %5339 = vmatprep.subr.bf16.mxu0 0
    %5340 = vmatpush1.bf16.msra.mxu0 0
    %5341 = vmatprep.subr.bf16.mxu0 0
    %5342 = vmatpush1.bf16.msra.mxu0 0
    %5343 = vmatprep.subr.bf16.mxu0 0
    %5344 = vmatpush1.bf16.msra.mxu0 0
    %5345 = vmatprep.subr.bf16.mxu0 0
    %5346 = vmatpush1.bf16.msra.mxu0 0
    %5347 = vmatprep.mubr.bf16.mxu0 0
    %5348 = vmatmul.mubr.bf16.gmra.mrb[0].mxu0 %v3215
    %v5349 = vpop.f32.mrb[0].mxu0
    %v5350 = vadd.f32 0.0, %v5349
    %v5351 = vpop.f32.mrb[0].mxu0
    %v5352 = vpop.f32.mrb[0].mxu0
    %v5353 = vadd.f32 0.0, %v5352
    %v5354 = vpop.f32.mrb[0].mxu0
    %5355 = vmatprep.mubr.bf16.mxu0 0
    %5356 = vmatmul.mubr.bf16.gmra.mrb[0].mxu0 %v3216
    %v5357 = vpop.f32.mrb[0].mxu0
    %v5358 = vadd.f32 0.0, %v5357
    %v5359 = vpop.f32.mrb[0].mxu0
    %v5360 = vpop.f32.mrb[0].mxu0
    %v5361 = vadd.f32 0.0, %v5360
    %v5362 = vpop.f32.mrb[0].mxu0
    %5363 = vmatprep.mubr.bf16.mxu0 0
    %5364 = vmatmul.mubr.bf16.gmra.mrb[0].mxu0 %v3217
    %v5365 = vpop.f32.mrb[0].mxu0
    %v5366 = vadd.f32 0.0, %v5365
    %v5367 = vpop.f32.mrb[0].mxu0
    %v5368 = vpop.f32.mrb[0].mxu0
    %v5369 = vadd.f32 0.0, %v5368
    %v5370 = vpop.f32.mrb[0].mxu0
    %5371 = vmatprep.mubr.bf16.mxu0 0
    %5372 = vmatmul.mubr.bf16.gmra.mrb[0].mxu0 %v5248
    %v5373 = vpop.f32.mrb[0].mxu0
    %v5374 = vadd.f32 0.0, %v5373
    %v5375 = vpop.f32.mrb[0].mxu0
    %v5376 = vpop.f32.mrb[0].mxu0
    %v5377 = vadd.f32 0.0, %v5376
    %v5378 = vpop.f32.mrb[0].mxu0
    %5379 = vmatprep.mubr.bf16.mxu0 0
    %5380 = vmatmul.mubr.bf16.gmra.mrb[0].mxu0 %v3219
    %v5381 = vpop.f32.mrb[0].mxu0
    %v5382 = vadd.f32 0.0, %v5381
    %v5383 = vpop.f32.mrb[0].mxu0
    %v5384 = vpop.f32.mrb[0].mxu0
    %v5385 = vadd.f32 0.0, %v5384
    %v5386 = vpop.f32.mrb[0].mxu0
    %5387 = vmatprep.mubr.bf16.mxu0 0
    %5388 = vmatmul.mubr.bf16.gmra.mrb[0].mxu0 %v3220
    %v5389 = vpop.f32.mrb[0].mxu0
    %v5390 = vadd.f32 0.0, %v5389
    %v5391 = vpop.f32.mrb[0].mxu0
    %v5392 = vpop.f32.mrb[0].mxu0
    %v5393 = vadd.f32 0.0, %v5392
    %v5394 = vpop.f32.mrb[0].mxu0
    %5395 = vmatprep.mubr.bf16.mxu0 0
    %5396 = vmatmul.mubr.bf16.gmra.mrb[0].mxu0 %v3221
    %v5397 = vpop.f32.mrb[0].mxu0
    %v5398 = vadd.f32 0.0, %v5397
    %v5399 = vpop.f32.mrb[0].mxu0
    %v5400 = vpop.f32.mrb[0].mxu0
    %v5401 = vadd.f32 0.0, %v5400
    %v5402 = vpop.f32.mrb[0].mxu0
    %5403 = vmatprep.mubr.bf16.mxu0 0
    %5404 = vmatmul.mubr.bf16.gmra.mrb[0].mxu0 %v5249
    %v5405 = vpop.f32.mrb[0].mxu0
    %v5406 = vadd.f32 0.0, %v5405
    %v5407 = vpop.f32.mrb[0].mxu0
    %v5408 = vpop.f32.mrb[0].mxu0
    %v5409 = vadd.f32 0.0, %v5408
    %v5410 = vpop.f32.mrb[0].mxu0
    %5411 = vdwg.mxu0
    %v5412 = vadd.f32 %v5224, %v5350
    %v5413 = vadd.f32 %v5225, %v5353
    %v5414 = vadd.f32 %v5226, %v5358
    %v5415 = vadd.f32 %v5227, %v5361
    %v5416 = vadd.f32 %v5228, %v5366
    %v5417 = vadd.f32 %v5229, %v5369
    %v5418 = vadd.f32 %v5230, %v5374
    %v5419 = vadd.f32 %v5231, %v5377
    %v5420 = vadd.f32 %v5232, %v5382
    %v5421 = vadd.f32 %v5233, %v5385
    %v5422 = vadd.f32 %v5234, %v5390
    %v5423 = vadd.f32 %v5235, %v5393
    %v5424 = vadd.f32 %v5236, %v5398
    %v5425 = vadd.f32 %v5237, %v5401
    %v5426 = vadd.f32 %v5238, %v5406
    %v5427 = vadd.f32 %v5239, %v5409
    %v5428 = vrot.slane %v2643, 3
    %v5429 = vrot.slane %v2644, 3
    %v5430 = vsel %vm3400, %v5428, %v5429
    %v5431 = vrot.slane %v2667, 3
    %v5432 = vrot.slane %v2668, 3
    %v5433 = vsel %vm3400, %v5431, %v5432
    %v5436 = vpack.c.bf16 %v5430, %v4482
    %v5437 = vpack.c.bf16 %v5433, %v4485
    %s5438 = scalar_lea.vmem %s3, 832
    %v5439 = vld [vmem:[%s5438] sm:$0xf]
    %v5440 = vld [vmem:[%s5438 + $0x4] sm:$0xf]
    %v5441 = vld [vmem:[%s5438 + $0x8] sm:$0xf]
    %v5442 = vld [vmem:[%s5438 + $0xc] sm:$0xf]
    %v5443 = vld [vmem:[%s5438 + $0x10] sm:$0xf]
    %v5444 = vld [vmem:[%s5438 + $0x14] sm:$0xf]
    %v5445 = vld [vmem:[%s5438 + $0x18] sm:$0xf]
    %v5446 = vld [vmem:[%s5438 + $0x1c] sm:$0xf]
    %v5447 = vld [vmem:[%s5438 + $0x20] sm:$0xf]
    %v5448 = vld [vmem:[%s5438 + $0x24] sm:$0xf]
    %v5449 = vld [vmem:[%s5438 + $0x28] sm:$0xf]
    %v5450 = vld [vmem:[%s5438 + $0x2c] sm:$0xf]
    %v5451 = vld [vmem:[%s5438 + $0x30] sm:$0xf]
    %v5452 = vld [vmem:[%s5438 + $0x34] sm:$0xf]
    %v5453 = vld [vmem:[%s5438 + $0x38] sm:$0xf]
    %v5454 = vld [vmem:[%s5438 + $0x3c] sm:$0xf]
    %v5471 = vunpack.c.l.b16 %v5439
    %v5472 = vunpack.c.l.b16 %v5440
    %v5473 = vunpack.c.l.b16 %v5441
    %v5474 = vunpack.c.l.b16 %v5442
    %v5475 = vunpack.c.l.b16 %v5443
    %v5476 = vunpack.c.l.b16 %v5444
    %v5477 = vunpack.c.l.b16 %v5445
    %v5478 = vunpack.c.l.b16 %v5446
    %v5479 = vunpack.c.l.b16 %v5447
    %v5480 = vunpack.c.l.b16 %v5448
    %v5481 = vunpack.c.l.b16 %v5449
    %v5482 = vunpack.c.l.b16 %v5450
    %v5483 = vunpack.c.l.b16 %v5451
    %v5484 = vunpack.c.l.b16 %v5452
    %v5485 = vunpack.c.l.b16 %v5453
    %v5486 = vunpack.c.l.b16 %v5454
    %v5487 = vpack.c.b16 %v5472, %v5471
    %v5488 = vpack.c.b16 %v5474, %v5473
    %v5489 = vpack.c.b16 %v5476, %v5475
    %v5490 = vpack.c.b16 %v5478, %v5477
    %v5491 = vpack.c.b16 %v5480, %v5479
    %v5492 = vpack.c.b16 %v5482, %v5481
    %v5493 = vpack.c.b16 %v5484, %v5483
    %v5494 = vpack.c.b16 %v5486, %v5485
    %5503 = vmatprep.subr.bf16.mxu0 0
    %5504 = vmatpush1.bf16.msra.mxu0 %v5487
    %5505 = vmatprep.subr.bf16.mxu0 0
    %5506 = vmatpush1.bf16.msra.mxu0 %v5488
    %5507 = vmatprep.subr.bf16.mxu0 0
    %5508 = vmatpush1.bf16.msra.mxu0 %v5489
    %5509 = vmatprep.subr.bf16.mxu0 0
    %5510 = vmatpush1.bf16.msra.mxu0 %v5490
    %5511 = vmatprep.subr.bf16.mxu0 0
    %5512 = vmatpush1.bf16.msra.mxu0 %v5491
    %5513 = vmatprep.subr.bf16.mxu0 0
    %5514 = vmatpush1.bf16.msra.mxu0 %v5492
    %5515 = vmatprep.subr.bf16.mxu0 0
    %5516 = vmatpush1.bf16.msra.mxu0 %v5493
    %5517 = vmatprep.subr.bf16.mxu0 0
    %5518 = vmatpush1.bf16.msra.mxu0 %v5494
    %5519 = vmatprep.subr.bf16.mxu0 0
    %5520 = vmatpush1.bf16.msra.mxu0 0
    %5521 = vmatprep.subr.bf16.mxu0 0
    %5522 = vmatpush1.bf16.msra.mxu0 0
    %5523 = vmatprep.subr.bf16.mxu0 0
    %5524 = vmatpush1.bf16.msra.mxu0 0
    %5525 = vmatprep.subr.bf16.mxu0 0
    %5526 = vmatpush1.bf16.msra.mxu0 0
    %5527 = vmatprep.subr.bf16.mxu0 0
    %5528 = vmatpush1.bf16.msra.mxu0 0
    %5529 = vmatprep.subr.bf16.mxu0 0
    %5530 = vmatpush1.bf16.msra.mxu0 0
    %5531 = vmatprep.subr.bf16.mxu0 0
    %5532 = vmatpush1.bf16.msra.mxu0 0
    %5533 = vmatprep.subr.bf16.mxu0 0
    %5534 = vmatpush1.bf16.msra.mxu0 0
    %5535 = vmatprep.mubr.bf16.mxu0 0
    %5536 = vmatmul.mubr.bf16.gmra.mrb[0].mxu0 %v3466
    %v5537 = vpop.f32.mrb[0].mxu0
    %v5538 = vadd.f32 0.0, %v5537
    %v5539 = vpop.f32.mrb[0].mxu0
    %v5540 = vpop.f32.mrb[0].mxu0
    %v5541 = vadd.f32 0.0, %v5540
    %v5542 = vpop.f32.mrb[0].mxu0
    %5543 = vmatprep.mubr.bf16.mxu0 0
    %5544 = vmatmul.mubr.bf16.gmra.mrb[0].mxu0 %v3467
    %v5545 = vpop.f32.mrb[0].mxu0
    %v5546 = vadd.f32 0.0, %v5545
    %v5547 = vpop.f32.mrb[0].mxu0
    %v5548 = vpop.f32.mrb[0].mxu0
    %v5549 = vadd.f32 0.0, %v5548
    %v5550 = vpop.f32.mrb[0].mxu0
    %5551 = vmatprep.mubr.bf16.mxu0 0
    %5552 = vmatmul.mubr.bf16.gmra.mrb[0].mxu0 %v3468
    %v5553 = vpop.f32.mrb[0].mxu0
    %v5554 = vadd.f32 0.0, %v5553
    %v5555 = vpop.f32.mrb[0].mxu0
    %v5556 = vpop.f32.mrb[0].mxu0
    %v5557 = vadd.f32 0.0, %v5556
    %v5558 = vpop.f32.mrb[0].mxu0
    %5559 = vmatprep.mubr.bf16.mxu0 0
    %5560 = vmatmul.mubr.bf16.gmra.mrb[0].mxu0 %v5436
    %v5561 = vpop.f32.mrb[0].mxu0
    %v5562 = vadd.f32 0.0, %v5561
    %v5563 = vpop.f32.mrb[0].mxu0
    %v5564 = vpop.f32.mrb[0].mxu0
    %v5565 = vadd.f32 0.0, %v5564
    %v5566 = vpop.f32.mrb[0].mxu0
    %5567 = vmatprep.mubr.bf16.mxu0 0
    %5568 = vmatmul.mubr.bf16.gmra.mrb[0].mxu0 %v3470
    %v5569 = vpop.f32.mrb[0].mxu0
    %v5570 = vadd.f32 0.0, %v5569
    %v5571 = vpop.f32.mrb[0].mxu0
    %v5572 = vpop.f32.mrb[0].mxu0
    %v5573 = vadd.f32 0.0, %v5572
    %v5574 = vpop.f32.mrb[0].mxu0
    %5575 = vmatprep.mubr.bf16.mxu0 0
    %5576 = vmatmul.mubr.bf16.gmra.mrb[0].mxu0 %v3471
    %v5577 = vpop.f32.mrb[0].mxu0
    %v5578 = vadd.f32 0.0, %v5577
    %v5579 = vpop.f32.mrb[0].mxu0
    %v5580 = vpop.f32.mrb[0].mxu0
    %v5581 = vadd.f32 0.0, %v5580
    %v5582 = vpop.f32.mrb[0].mxu0
    %5583 = vmatprep.mubr.bf16.mxu0 0
    %5584 = vmatmul.mubr.bf16.gmra.mrb[0].mxu0 %v3472
    %v5585 = vpop.f32.mrb[0].mxu0
    %v5586 = vadd.f32 0.0, %v5585
    %v5587 = vpop.f32.mrb[0].mxu0
    %v5588 = vpop.f32.mrb[0].mxu0
    %v5589 = vadd.f32 0.0, %v5588
    %v5590 = vpop.f32.mrb[0].mxu0
    %5591 = vmatprep.mubr.bf16.mxu0 0
    %5592 = vmatmul.mubr.bf16.gmra.mrb[0].mxu0 %v5437
    %v5593 = vpop.f32.mrb[0].mxu0
    %v5594 = vadd.f32 0.0, %v5593
    %v5595 = vpop.f32.mrb[0].mxu0
    %v5596 = vpop.f32.mrb[0].mxu0
    %v5597 = vadd.f32 0.0, %v5596
    %v5598 = vpop.f32.mrb[0].mxu0
    %5599 = vdwg.mxu0
    %v5600 = vadd.f32 %v5412, %v5538
    %v5601 = vadd.f32 %v5413, %v5541
    %v5602 = vadd.f32 %v5414, %v5546
    %v5603 = vadd.f32 %v5415, %v5549
    %v5604 = vadd.f32 %v5416, %v5554
    %v5605 = vadd.f32 %v5417, %v5557
    %v5606 = vadd.f32 %v5418, %v5562
    %v5607 = vadd.f32 %v5419, %v5565
    %v5608 = vadd.f32 %v5420, %v5570
    %v5609 = vadd.f32 %v5421, %v5573
    %v5610 = vadd.f32 %v5422, %v5578
    %v5611 = vadd.f32 %v5423, %v5581
    %v5612 = vadd.f32 %v5424, %v5586
    %v5613 = vadd.f32 %v5425, %v5589
    %v5614 = vadd.f32 %v5426, %v5594
    %v5615 = vadd.f32 %v5427, %v5597
    %v5616 = vrot.slane %v2643, 4
    %v5617 = vrot.slane %v2644, 4
    %v5618 = vsel %vm3651, %v5616, %v5617
    %v5619 = vrot.slane %v2667, 4
    %v5620 = vrot.slane %v2668, 4
    %v5621 = vsel %vm3651, %v5619, %v5620
    %v5624 = vpack.c.bf16 %v5618, %v4676
    %v5625 = vpack.c.bf16 %v5621, %v4679
    %s5626 = scalar_lea.vmem %s3, 896
    %v5627 = vld [vmem:[%s5626] sm:$0xf]
    %v5628 = vld [vmem:[%s5626 + $0x4] sm:$0xf]
    %v5629 = vld [vmem:[%s5626 + $0x8] sm:$0xf]
    %v5630 = vld [vmem:[%s5626 + $0xc] sm:$0xf]
    %v5631 = vld [vmem:[%s5626 + $0x10] sm:$0xf]
    %v5632 = vld [vmem:[%s5626 + $0x14] sm:$0xf]
    %v5633 = vld [vmem:[%s5626 + $0x18] sm:$0xf]
    %v5634 = vld [vmem:[%s5626 + $0x1c] sm:$0xf]
    %v5635 = vld [vmem:[%s5626 + $0x20] sm:$0xf]
    %v5636 = vld [vmem:[%s5626 + $0x24] sm:$0xf]
    %v5637 = vld [vmem:[%s5626 + $0x28] sm:$0xf]
    %v5638 = vld [vmem:[%s5626 + $0x2c] sm:$0xf]
    %v5639 = vld [vmem:[%s5626 + $0x30] sm:$0xf]
    %v5640 = vld [vmem:[%s5626 + $0x34] sm:$0xf]
    %v5641 = vld [vmem:[%s5626 + $0x38] sm:$0xf]
    %v5642 = vld [vmem:[%s5626 + $0x3c] sm:$0xf]
    %v5659 = vunpack.c.l.b16 %v5627
    %v5660 = vunpack.c.l.b16 %v5628
    %v5661 = vunpack.c.l.b16 %v5629
    %v5662 = vunpack.c.l.b16 %v5630
    %v5663 = vunpack.c.l.b16 %v5631
    %v5664 = vunpack.c.l.b16 %v5632
    %v5665 = vunpack.c.l.b16 %v5633
    %v5666 = vunpack.c.l.b16 %v5634
    %v5667 = vunpack.c.l.b16 %v5635
    %v5668 = vunpack.c.l.b16 %v5636
    %v5669 = vunpack.c.l.b16 %v5637
    %v5670 = vunpack.c.l.b16 %v5638
    %v5671 = vunpack.c.l.b16 %v5639
    %v5672 = vunpack.c.l.b16 %v5640
    %v5673 = vunpack.c.l.b16 %v5641
    %v5674 = vunpack.c.l.b16 %v5642
    %v5675 = vpack.c.b16 %v5660, %v5659
    %v5676 = vpack.c.b16 %v5662, %v5661
    %v5677 = vpack.c.b16 %v5664, %v5663
    %v5678 = vpack.c.b16 %v5666, %v5665
    %v5679 = vpack.c.b16 %v5668, %v5667
    %v5680 = vpack.c.b16 %v5670, %v5669
    %v5681 = vpack.c.b16 %v5672, %v5671
    %v5682 = vpack.c.b16 %v5674, %v5673
    %5691 = vmatprep.subr.bf16.mxu0 0
    %5692 = vmatpush1.bf16.msra.mxu0 %v5675
    %5693 = vmatprep.subr.bf16.mxu0 0
    %5694 = vmatpush1.bf16.msra.mxu0 %v5676
    %5695 = vmatprep.subr.bf16.mxu0 0
    %5696 = vmatpush1.bf16.msra.mxu0 %v5677
    %5697 = vmatprep.subr.bf16.mxu0 0
    %5698 = vmatpush1.bf16.msra.mxu0 %v5678
    %5699 = vmatprep.subr.bf16.mxu0 0
    %5700 = vmatpush1.bf16.msra.mxu0 %v5679
    %5701 = vmatprep.subr.bf16.mxu0 0
    %5702 = vmatpush1.bf16.msra.mxu0 %v5680
    %5703 = vmatprep.subr.bf16.mxu0 0
    %5704 = vmatpush1.bf16.msra.mxu0 %v5681
    %5705 = vmatprep.subr.bf16.mxu0 0
    %5706 = vmatpush1.bf16.msra.mxu0 %v5682
    %5707 = vmatprep.subr.bf16.mxu0 0
    %5708 = vmatpush1.bf16.msra.mxu0 0
    %5709 = vmatprep.subr.bf16.mxu0 0
    %5710 = vmatpush1.bf16.msra.mxu0 0
    %5711 = vmatprep.subr.bf16.mxu0 0
    %5712 = vmatpush1.bf16.msra.mxu0 0
    %5713 = vmatprep.subr.bf16.mxu0 0
    %5714 = vmatpush1.bf16.msra.mxu0 0
    %5715 = vmatprep.subr.bf16.mxu0 0
    %5716 = vmatpush1.bf16.msra.mxu0 0
    %5717 = vmatprep.subr.bf16.mxu0 0
    %5718 = vmatpush1.bf16.msra.mxu0 0
    %5719 = vmatprep.subr.bf16.mxu0 0
    %5720 = vmatpush1.bf16.msra.mxu0 0
    %5721 = vmatprep.subr.bf16.mxu0 0
    %5722 = vmatpush1.bf16.msra.mxu0 0
    %5723 = vmatprep.mubr.bf16.mxu0 0
    %5724 = vmatmul.mubr.bf16.gmra.mrb[0].mxu0 %v3717
    %v5725 = vpop.f32.mrb[0].mxu0
    %v5726 = vadd.f32 0.0, %v5725
    %v5727 = vpop.f32.mrb[0].mxu0
    %v5728 = vpop.f32.mrb[0].mxu0
    %v5729 = vadd.f32 0.0, %v5728
    %v5730 = vpop.f32.mrb[0].mxu0
    %5731 = vmatprep.mubr.bf16.mxu0 0
    %5732 = vmatmul.mubr.bf16.gmra.mrb[0].mxu0 %v3718
    %v5733 = vpop.f32.mrb[0].mxu0
    %v5734 = vadd.f32 0.0, %v5733
    %v5735 = vpop.f32.mrb[0].mxu0
    %v5736 = vpop.f32.mrb[0].mxu0
    %v5737 = vadd.f32 0.0, %v5736
    %v5738 = vpop.f32.mrb[0].mxu0
    %5739 = vmatprep.mubr.bf16.mxu0 0
    %5740 = vmatmul.mubr.bf16.gmra.mrb[0].mxu0 %v3719
    %v5741 = vpop.f32.mrb[0].mxu0
    %v5742 = vadd.f32 0.0, %v5741
    %v5743 = vpop.f32.mrb[0].mxu0
    %v5744 = vpop.f32.mrb[0].mxu0
    %v5745 = vadd.f32 0.0, %v5744
    %v5746 = vpop.f32.mrb[0].mxu0
    %5747 = vmatprep.mubr.bf16.mxu0 0
    %5748 = vmatmul.mubr.bf16.gmra.mrb[0].mxu0 %v5624
    %v5749 = vpop.f32.mrb[0].mxu0
    %v5750 = vadd.f32 0.0, %v5749
    %v5751 = vpop.f32.mrb[0].mxu0
    %v5752 = vpop.f32.mrb[0].mxu0
    %v5753 = vadd.f32 0.0, %v5752
    %v5754 = vpop.f32.mrb[0].mxu0
    %5755 = vmatprep.mubr.bf16.mxu0 0
    %5756 = vmatmul.mubr.bf16.gmra.mrb[0].mxu0 %v3721
    %v5757 = vpop.f32.mrb[0].mxu0
    %v5758 = vadd.f32 0.0, %v5757
    %v5759 = vpop.f32.mrb[0].mxu0
    %v5760 = vpop.f32.mrb[0].mxu0
    %v5761 = vadd.f32 0.0, %v5760
    %v5762 = vpop.f32.mrb[0].mxu0
    %5763 = vmatprep.mubr.bf16.mxu0 0
    %5764 = vmatmul.mubr.bf16.gmra.mrb[0].mxu0 %v3722
    %v5765 = vpop.f32.mrb[0].mxu0
    %v5766 = vadd.f32 0.0, %v5765
    %v5767 = vpop.f32.mrb[0].mxu0
    %v5768 = vpop.f32.mrb[0].mxu0
    %v5769 = vadd.f32 0.0, %v5768
    %v5770 = vpop.f32.mrb[0].mxu0
    %5771 = vmatprep.mubr.bf16.mxu0 0
    %5772 = vmatmul.mubr.bf16.gmra.mrb[0].mxu0 %v3723
    %v5773 = vpop.f32.mrb[0].mxu0
    %v5774 = vadd.f32 0.0, %v5773
    %v5775 = vpop.f32.mrb[0].mxu0
    %v5776 = vpop.f32.mrb[0].mxu0
    %v5777 = vadd.f32 0.0, %v5776
    %v5778 = vpop.f32.mrb[0].mxu0
    %5779 = vmatprep.mubr.bf16.mxu0 0
    %5780 = vmatmul.mubr.bf16.gmra.mrb[0].mxu0 %v5625
    %v5781 = vpop.f32.mrb[0].mxu0
    %v5782 = vadd.f32 0.0, %v5781
    %v5783 = vpop.f32.mrb[0].mxu0
    %v5784 = vpop.f32.mrb[0].mxu0
    %v5785 = vadd.f32 0.0, %v5784
    %v5786 = vpop.f32.mrb[0].mxu0
    %5787 = vdwg.mxu0
    %v5788 = vadd.f32 %v5600, %v5726
    %v5789 = vadd.f32 %v5601, %v5729
    %v5790 = vadd.f32 %v5602, %v5734
    %v5791 = vadd.f32 %v5603, %v5737
    %v5792 = vadd.f32 %v5604, %v5742
    %v5793 = vadd.f32 %v5605, %v5745
    %v5794 = vadd.f32 %v5606, %v5750
    %v5795 = vadd.f32 %v5607, %v5753
    %v5796 = vadd.f32 %v5608, %v5758
    %v5797 = vadd.f32 %v5609, %v5761
    %v5798 = vadd.f32 %v5610, %v5766
    %v5799 = vadd.f32 %v5611, %v5769
    %v5800 = vadd.f32 %v5612, %v5774
    %v5801 = vadd.f32 %v5613, %v5777
    %v5802 = vadd.f32 %v5614, %v5782
    %v5803 = vadd.f32 %v5615, %v5785
    %v5804 = vpack.c.bf16 %v2645, %v2643
    %v5805 = vpack.c.bf16 %v2669, %v2667
    %s5806 = scalar_lea.vmem %s3, 960
    %v5807 = vld [vmem:[%s5806] sm:$0xf]
    %v5808 = vld [vmem:[%s5806 + $0x4] sm:$0xf]
    %v5809 = vld [vmem:[%s5806 + $0x8] sm:$0xf]
    %v5810 = vld [vmem:[%s5806 + $0xc] sm:$0xf]
    %v5811 = vld [vmem:[%s5806 + $0x10] sm:$0xf]
    %v5812 = vld [vmem:[%s5806 + $0x14] sm:$0xf]
    %v5813 = vld [vmem:[%s5806 + $0x18] sm:$0xf]
    %v5814 = vld [vmem:[%s5806 + $0x1c] sm:$0xf]
    %v5815 = vld [vmem:[%s5806 + $0x20] sm:$0xf]
    %v5816 = vld [vmem:[%s5806 + $0x24] sm:$0xf]
    %v5817 = vld [vmem:[%s5806 + $0x28] sm:$0xf]
    %v5818 = vld [vmem:[%s5806 + $0x2c] sm:$0xf]
    %v5819 = vld [vmem:[%s5806 + $0x30] sm:$0xf]
    %v5820 = vld [vmem:[%s5806 + $0x34] sm:$0xf]
    %v5821 = vld [vmem:[%s5806 + $0x38] sm:$0xf]
    %v5822 = vld [vmem:[%s5806 + $0x3c] sm:$0xf]
    %v5839 = vunpack.c.l.b16 %v5807
    %v5840 = vunpack.c.l.b16 %v5808
    %v5841 = vunpack.c.l.b16 %v5809
    %v5842 = vunpack.c.l.b16 %v5810
    %v5843 = vunpack.c.l.b16 %v5811
    %v5844 = vunpack.c.l.b16 %v5812
    %v5845 = vunpack.c.l.b16 %v5813
    %v5846 = vunpack.c.l.b16 %v5814
    %v5847 = vunpack.c.l.b16 %v5815
    %v5848 = vunpack.c.l.b16 %v5816
    %v5849 = vunpack.c.l.b16 %v5817
    %v5850 = vunpack.c.l.b16 %v5818
    %v5851 = vunpack.c.l.b16 %v5819
    %v5852 = vunpack.c.l.b16 %v5820
    %v5853 = vunpack.c.l.b16 %v5821
    %v5854 = vunpack.c.l.b16 %v5822
    %v5855 = vpack.c.b16 %v5840, %v5839
    %v5856 = vpack.c.b16 %v5842, %v5841
    %v5857 = vpack.c.b16 %v5844, %v5843
    %v5858 = vpack.c.b16 %v5846, %v5845
    %v5859 = vpack.c.b16 %v5848, %v5847
    %v5860 = vpack.c.b16 %v5850, %v5849
    %v5861 = vpack.c.b16 %v5852, %v5851
    %v5862 = vpack.c.b16 %v5854, %v5853
    %5871 = vmatprep.subr.bf16.mxu0 0
    %5872 = vmatpush1.bf16.msra.mxu0 %v5855
    %5873 = vmatprep.subr.bf16.mxu0 0
    %5874 = vmatpush1.bf16.msra.mxu0 %v5856
    %5875 = vmatprep.subr.bf16.mxu0 0
    %5876 = vmatpush1.bf16.msra.mxu0 %v5857
    %5877 = vmatprep.subr.bf16.mxu0 0
    %5878 = vmatpush1.bf16.msra.mxu0 %v5858
    %5879 = vmatprep.subr.bf16.mxu0 0
    %5880 = vmatpush1.bf16.msra.mxu0 %v5859
    %5881 = vmatprep.subr.bf16.mxu0 0
    %5882 = vmatpush1.bf16.msra.mxu0 %v5860
    %5883 = vmatprep.subr.bf16.mxu0 0
    %5884 = vmatpush1.bf16.msra.mxu0 %v5861
    %5885 = vmatprep.subr.bf16.mxu0 0
    %5886 = vmatpush1.bf16.msra.mxu0 %v5862
    %5887 = vmatprep.subr.bf16.mxu0 0
    %5888 = vmatpush1.bf16.msra.mxu0 0
    %5889 = vmatprep.subr.bf16.mxu0 0
    %5890 = vmatpush1.bf16.msra.mxu0 0
    %5891 = vmatprep.subr.bf16.mxu0 0
    %5892 = vmatpush1.bf16.msra.mxu0 0
    %5893 = vmatprep.subr.bf16.mxu0 0
    %5894 = vmatpush1.bf16.msra.mxu0 0
    %5895 = vmatprep.subr.bf16.mxu0 0
    %5896 = vmatpush1.bf16.msra.mxu0 0
    %5897 = vmatprep.subr.bf16.mxu0 0
    %5898 = vmatpush1.bf16.msra.mxu0 0
    %5899 = vmatprep.subr.bf16.mxu0 0
    %5900 = vmatpush1.bf16.msra.mxu0 0
    %5901 = vmatprep.subr.bf16.mxu0 0
    %5902 = vmatpush1.bf16.msra.mxu0 0
    %5903 = vmatprep.mubr.bf16.mxu0 0
    %5904 = vmatmul.mubr.bf16.gmra.mrb[0].mxu0 %v3903
    %v5905 = vpop.f32.mrb[0].mxu0
    %v5906 = vadd.f32 0.0, %v5905
    %v5907 = vpop.f32.mrb[0].mxu0
    %v5908 = vpop.f32.mrb[0].mxu0
    %v5909 = vadd.f32 0.0, %v5908
    %v5910 = vpop.f32.mrb[0].mxu0
    %5911 = vmatprep.mubr.bf16.mxu0 0
    %5912 = vmatmul.mubr.bf16.gmra.mrb[0].mxu0 %v3904
    %v5913 = vpop.f32.mrb[0].mxu0
    %v5914 = vadd.f32 0.0, %v5913
    %v5915 = vpop.f32.mrb[0].mxu0
    %v5916 = vpop.f32.mrb[0].mxu0
    %v5917 = vadd.f32 0.0, %v5916
    %v5918 = vpop.f32.mrb[0].mxu0
    %5919 = vmatprep.mubr.bf16.mxu0 0
    %5920 = vmatmul.mubr.bf16.gmra.mrb[0].mxu0 %v3905
    %v5921 = vpop.f32.mrb[0].mxu0
    %v5922 = vadd.f32 0.0, %v5921
    %v5923 = vpop.f32.mrb[0].mxu0
    %v5924 = vpop.f32.mrb[0].mxu0
    %v5925 = vadd.f32 0.0, %v5924
    %v5926 = vpop.f32.mrb[0].mxu0
    %5927 = vmatprep.mubr.bf16.mxu0 0
    %5928 = vmatmul.mubr.bf16.gmra.mrb[0].mxu0 %v5804
    %v5929 = vpop.f32.mrb[0].mxu0
    %v5930 = vadd.f32 0.0, %v5929
    %v5931 = vpop.f32.mrb[0].mxu0
    %v5932 = vpop.f32.mrb[0].mxu0
    %v5933 = vadd.f32 0.0, %v5932
    %v5934 = vpop.f32.mrb[0].mxu0
    %5935 = vmatprep.mubr.bf16.mxu0 0
    %5936 = vmatmul.mubr.bf16.gmra.mrb[0].mxu0 %v3907
    %v5937 = vpop.f32.mrb[0].mxu0
    %v5938 = vadd.f32 0.0, %v5937
    %v5939 = vpop.f32.mrb[0].mxu0
    %v5940 = vpop.f32.mrb[0].mxu0
    %v5941 = vadd.f32 0.0, %v5940
    %v5942 = vpop.f32.mrb[0].mxu0
    %5943 = vmatprep.mubr.bf16.mxu0 0
    %5944 = vmatmul.mubr.bf16.gmra.mrb[0].mxu0 %v3908
    %v5945 = vpop.f32.mrb[0].mxu0
    %v5946 = vadd.f32 0.0, %v5945
    %v5947 = vpop.f32.mrb[0].mxu0
    %v5948 = vpop.f32.mrb[0].mxu0
    %v5949 = vadd.f32 0.0, %v5948
    %v5950 = vpop.f32.mrb[0].mxu0
    %5951 = vmatprep.mubr.bf16.mxu0 0
    %5952 = vmatmul.mubr.bf16.gmra.mrb[0].mxu0 %v3909
    %v5953 = vpop.f32.mrb[0].mxu0
    %v5954 = vadd.f32 0.0, %v5953
    %v5955 = vpop.f32.mrb[0].mxu0
    %v5956 = vpop.f32.mrb[0].mxu0
    %v5957 = vadd.f32 0.0, %v5956
    %v5958 = vpop.f32.mrb[0].mxu0
    %5959 = vmatprep.mubr.bf16.mxu0 0
    %5960 = vmatmul.mubr.bf16.gmra.mrb[0].mxu0 %v5805
    %v5961 = vpop.f32.mrb[0].mxu0
    %v5962 = vadd.f32 0.0, %v5961
    %v5963 = vpop.f32.mrb[0].mxu0
    %v5964 = vpop.f32.mrb[0].mxu0
    %v5965 = vadd.f32 0.0, %v5964
    %v5966 = vpop.f32.mrb[0].mxu0
    %5967 = vdwg.mxu0
    %v5968 = vadd.f32 %v5788, %v5906
    %v5969 = vadd.f32 %v5789, %v5909
    %v5970 = vadd.f32 %v5790, %v5914
    %v5971 = vadd.f32 %v5791, %v5917
    %v5972 = vadd.f32 %v5792, %v5922
    %v5973 = vadd.f32 %v5793, %v5925
    %v5974 = vadd.f32 %v5794, %v5930
    %v5975 = vadd.f32 %v5795, %v5933
    %v5976 = vadd.f32 %v5796, %v5938
    %v5977 = vadd.f32 %v5797, %v5941
    %v5978 = vadd.f32 %v5798, %v5946
    %v5979 = vadd.f32 %v5799, %v5949
    %v5980 = vadd.f32 %v5800, %v5954
    %v5981 = vadd.f32 %v5801, %v5957
    %v5982 = vadd.f32 %v5802, %v5962
    %v5983 = vadd.f32 %v5803, %v5965
    %v5988 = vrot.slane %v2645, 1
    %v5989 = vrot.slane %v2646, 1
    %v5990 = vsel %vm2898, %v5988, %v5989
    %v5991 = vrot.slane %v2669, 1
    %v5992 = vrot.slane %v2670, 1
    %v5993 = vsel %vm2898, %v5991, %v5992
    %v5996 = vpack.c.bf16 %v5990, %v5054
    %v5997 = vpack.c.bf16 %v5993, %v5057
    %s5998 = scalar_lea.vmem %s3, 1024
    %v5999 = vld [vmem:[%s5998] sm:$0xf]
    %v6000 = vld [vmem:[%s5998 + $0x4] sm:$0xf]
    %v6001 = vld [vmem:[%s5998 + $0x8] sm:$0xf]
    %v6002 = vld [vmem:[%s5998 + $0xc] sm:$0xf]
    %v6003 = vld [vmem:[%s5998 + $0x10] sm:$0xf]
    %v6004 = vld [vmem:[%s5998 + $0x14] sm:$0xf]
    %v6005 = vld [vmem:[%s5998 + $0x18] sm:$0xf]
    %v6006 = vld [vmem:[%s5998 + $0x1c] sm:$0xf]
    %v6007 = vld [vmem:[%s5998 + $0x20] sm:$0xf]
    %v6008 = vld [vmem:[%s5998 + $0x24] sm:$0xf]
    %v6009 = vld [vmem:[%s5998 + $0x28] sm:$0xf]
    %v6010 = vld [vmem:[%s5998 + $0x2c] sm:$0xf]
    %v6011 = vld [vmem:[%s5998 + $0x30] sm:$0xf]
    %v6012 = vld [vmem:[%s5998 + $0x34] sm:$0xf]
    %v6013 = vld [vmem:[%s5998 + $0x38] sm:$0xf]
    %v6014 = vld [vmem:[%s5998 + $0x3c] sm:$0xf]
    %v6031 = vunpack.c.l.b16 %v5999
    %v6032 = vunpack.c.l.b16 %v6000
    %v6033 = vunpack.c.l.b16 %v6001
    %v6034 = vunpack.c.l.b16 %v6002
    %v6035 = vunpack.c.l.b16 %v6003
    %v6036 = vunpack.c.l.b16 %v6004
    %v6037 = vunpack.c.l.b16 %v6005
    %v6038 = vunpack.c.l.b16 %v6006
    %v6039 = vunpack.c.l.b16 %v6007
    %v6040 = vunpack.c.l.b16 %v6008
    %v6041 = vunpack.c.l.b16 %v6009
    %v6042 = vunpack.c.l.b16 %v6010
    %v6043 = vunpack.c.l.b16 %v6011
    %v6044 = vunpack.c.l.b16 %v6012
    %v6045 = vunpack.c.l.b16 %v6013
    %v6046 = vunpack.c.l.b16 %v6014
    %v6047 = vpack.c.b16 %v6032, %v6031
    %v6048 = vpack.c.b16 %v6034, %v6033
    %v6049 = vpack.c.b16 %v6036, %v6035
    %v6050 = vpack.c.b16 %v6038, %v6037
    %v6051 = vpack.c.b16 %v6040, %v6039
    %v6052 = vpack.c.b16 %v6042, %v6041
    %v6053 = vpack.c.b16 %v6044, %v6043
    %v6054 = vpack.c.b16 %v6046, %v6045
    %6063 = vmatprep.subr.bf16.mxu0 0
    %6064 = vmatpush1.bf16.msra.mxu0 %v6047
    %6065 = vmatprep.subr.bf16.mxu0 0
    %6066 = vmatpush1.bf16.msra.mxu0 %v6048
    %6067 = vmatprep.subr.bf16.mxu0 0
    %6068 = vmatpush1.bf16.msra.mxu0 %v6049
    %6069 = vmatprep.subr.bf16.mxu0 0
    %6070 = vmatpush1.bf16.msra.mxu0 %v6050
    %6071 = vmatprep.subr.bf16.mxu0 0
    %6072 = vmatpush1.bf16.msra.mxu0 %v6051
    %6073 = vmatprep.subr.bf16.mxu0 0
    %6074 = vmatpush1.bf16.msra.mxu0 %v6052
    %6075 = vmatprep.subr.bf16.mxu0 0
    %6076 = vmatpush1.bf16.msra.mxu0 %v6053
    %6077 = vmatprep.subr.bf16.mxu0 0
    %6078 = vmatpush1.bf16.msra.mxu0 %v6054
    %6079 = vmatprep.subr.bf16.mxu0 0
    %6080 = vmatpush1.bf16.msra.mxu0 0
    %6081 = vmatprep.subr.bf16.mxu0 0
    %6082 = vmatpush1.bf16.msra.mxu0 0
    %6083 = vmatprep.subr.bf16.mxu0 0
    %6084 = vmatpush1.bf16.msra.mxu0 0
    %6085 = vmatprep.subr.bf16.mxu0 0
    %6086 = vmatpush1.bf16.msra.mxu0 0
    %6087 = vmatprep.subr.bf16.mxu0 0
    %6088 = vmatpush1.bf16.msra.mxu0 0
    %6089 = vmatprep.subr.bf16.mxu0 0
    %6090 = vmatpush1.bf16.msra.mxu0 0
    %6091 = vmatprep.subr.bf16.mxu0 0
    %6092 = vmatpush1.bf16.msra.mxu0 0
    %6093 = vmatprep.subr.bf16.mxu0 0
    %6094 = vmatpush1.bf16.msra.mxu0 0
    %6095 = vmatprep.mubr.bf16.mxu0 0
    %6096 = vmatmul.mubr.bf16.gmra.mrb[0].mxu0 %v4101
    %v6097 = vpop.f32.mrb[0].mxu0
    %v6098 = vadd.f32 0.0, %v6097
    %v6099 = vpop.f32.mrb[0].mxu0
    %v6100 = vpop.f32.mrb[0].mxu0
    %v6101 = vadd.f32 0.0, %v6100
    %v6102 = vpop.f32.mrb[0].mxu0
    %6103 = vmatprep.mubr.bf16.mxu0 0
    %6104 = vmatmul.mubr.bf16.gmra.mrb[0].mxu0 %v4102
    %v6105 = vpop.f32.mrb[0].mxu0
    %v6106 = vadd.f32 0.0, %v6105
    %v6107 = vpop.f32.mrb[0].mxu0
    %v6108 = vpop.f32.mrb[0].mxu0
    %v6109 = vadd.f32 0.0, %v6108
    %v6110 = vpop.f32.mrb[0].mxu0
    %6111 = vmatprep.mubr.bf16.mxu0 0
    %6112 = vmatmul.mubr.bf16.gmra.mrb[0].mxu0 %v4103
    %v6113 = vpop.f32.mrb[0].mxu0
    %v6114 = vadd.f32 0.0, %v6113
    %v6115 = vpop.f32.mrb[0].mxu0
    %v6116 = vpop.f32.mrb[0].mxu0
    %v6117 = vadd.f32 0.0, %v6116
    %v6118 = vpop.f32.mrb[0].mxu0
    %6119 = vmatprep.mubr.bf16.mxu0 0
    %6120 = vmatmul.mubr.bf16.gmra.mrb[0].mxu0 %v5996
    %v6121 = vpop.f32.mrb[0].mxu0
    %v6122 = vadd.f32 0.0, %v6121
    %v6123 = vpop.f32.mrb[0].mxu0
    %v6124 = vpop.f32.mrb[0].mxu0
    %v6125 = vadd.f32 0.0, %v6124
    %v6126 = vpop.f32.mrb[0].mxu0
    %6127 = vmatprep.mubr.bf16.mxu0 0
    %6128 = vmatmul.mubr.bf16.gmra.mrb[0].mxu0 %v4105
    %v6129 = vpop.f32.mrb[0].mxu0
    %v6130 = vadd.f32 0.0, %v6129
    %v6131 = vpop.f32.mrb[0].mxu0
    %v6132 = vpop.f32.mrb[0].mxu0
    %v6133 = vadd.f32 0.0, %v6132
    %v6134 = vpop.f32.mrb[0].mxu0
    %6135 = vmatprep.mubr.bf16.mxu0 0
    %6136 = vmatmul.mubr.bf16.gmra.mrb[0].mxu0 %v4106
    %v6137 = vpop.f32.mrb[0].mxu0
    %v6138 = vadd.f32 0.0, %v6137
    %v6139 = vpop.f32.mrb[0].mxu0
    %v6140 = vpop.f32.mrb[0].mxu0
    %v6141 = vadd.f32 0.0, %v6140
    %v6142 = vpop.f32.mrb[0].mxu0
    %6143 = vmatprep.mubr.bf16.mxu0 0
    %6144 = vmatmul.mubr.bf16.gmra.mrb[0].mxu0 %v4107
    %v6145 = vpop.f32.mrb[0].mxu0
    %v6146 = vadd.f32 0.0, %v6145
    %v6147 = vpop.f32.mrb[0].mxu0
    %v6148 = vpop.f32.mrb[0].mxu0
    %v6149 = vadd.f32 0.0, %v6148
    %v6150 = vpop.f32.mrb[0].mxu0
    %6151 = vmatprep.mubr.bf16.mxu0 0
    %6152 = vmatmul.mubr.bf16.gmra.mrb[0].mxu0 %v5997
    %v6153 = vpop.f32.mrb[0].mxu0
    %v6154 = vadd.f32 0.0, %v6153
    %v6155 = vpop.f32.mrb[0].mxu0
    %v6156 = vpop.f32.mrb[0].mxu0
    %v6157 = vadd.f32 0.0, %v6156
    %v6158 = vpop.f32.mrb[0].mxu0
    %6159 = vdwg.mxu0
    %v6160 = vadd.f32 %v5968, %v6098
    %v6161 = vadd.f32 %v5969, %v6101
    %v6162 = vadd.f32 %v5970, %v6106
    %v6163 = vadd.f32 %v5971, %v6109
    %v6164 = vadd.f32 %v5972, %v6114
    %v6165 = vadd.f32 %v5973, %v6117
    %v6166 = vadd.f32 %v5974, %v6122
    %v6167 = vadd.f32 %v5975, %v6125
    %v6168 = vadd.f32 %v5976, %v6130
    %v6169 = vadd.f32 %v5977, %v6133
    %v6170 = vadd.f32 %v5978, %v6138
    %v6171 = vadd.f32 %v5979, %v6141
    %v6172 = vadd.f32 %v5980, %v6146
    %v6173 = vadd.f32 %v5981, %v6149
    %v6174 = vadd.f32 %v5982, %v6154
    %v6175 = vadd.f32 %v5983, %v6157
    %v6176 = vrot.slane %v2645, 2
    %v6177 = vrot.slane %v2646, 2
    %v6178 = vsel %vm3149, %v6176, %v6177
    %v6179 = vrot.slane %v2669, 2
    %v6180 = vrot.slane %v2670, 2
    %v6181 = vsel %vm3149, %v6179, %v6180
    %v6184 = vpack.c.bf16 %v6178, %v5242
    %v6185 = vpack.c.bf16 %v6181, %v5245
    %s6186 = scalar_lea.vmem %s3, 1088
    %v6187 = vld [vmem:[%s6186] sm:$0xf]
    %v6188 = vld [vmem:[%s6186 + $0x4] sm:$0xf]
    %v6189 = vld [vmem:[%s6186 + $0x8] sm:$0xf]
    %v6190 = vld [vmem:[%s6186 + $0xc] sm:$0xf]
    %v6191 = vld [vmem:[%s6186 + $0x10] sm:$0xf]
    %v6192 = vld [vmem:[%s6186 + $0x14] sm:$0xf]
    %v6193 = vld [vmem:[%s6186 + $0x18] sm:$0xf]
    %v6194 = vld [vmem:[%s6186 + $0x1c] sm:$0xf]
    %v6195 = vld [vmem:[%s6186 + $0x20] sm:$0xf]
    %v6196 = vld [vmem:[%s6186 + $0x24] sm:$0xf]
    %v6197 = vld [vmem:[%s6186 + $0x28] sm:$0xf]
    %v6198 = vld [vmem:[%s6186 + $0x2c] sm:$0xf]
    %v6199 = vld [vmem:[%s6186 + $0x30] sm:$0xf]
    %v6200 = vld [vmem:[%s6186 + $0x34] sm:$0xf]
    %v6201 = vld [vmem:[%s6186 + $0x38] sm:$0xf]
    %v6202 = vld [vmem:[%s6186 + $0x3c] sm:$0xf]
    %v6219 = vunpack.c.l.b16 %v6187
    %v6220 = vunpack.c.l.b16 %v6188
    %v6221 = vunpack.c.l.b16 %v6189
    %v6222 = vunpack.c.l.b16 %v6190
    %v6223 = vunpack.c.l.b16 %v6191
    %v6224 = vunpack.c.l.b16 %v6192
    %v6225 = vunpack.c.l.b16 %v6193
    %v6226 = vunpack.c.l.b16 %v6194
    %v6227 = vunpack.c.l.b16 %v6195
    %v6228 = vunpack.c.l.b16 %v6196
    %v6229 = vunpack.c.l.b16 %v6197
    %v6230 = vunpack.c.l.b16 %v6198
    %v6231 = vunpack.c.l.b16 %v6199
    %v6232 = vunpack.c.l.b16 %v6200
    %v6233 = vunpack.c.l.b16 %v6201
    %v6234 = vunpack.c.l.b16 %v6202
    %v6235 = vpack.c.b16 %v6220, %v6219
    %v6236 = vpack.c.b16 %v6222, %v6221
    %v6237 = vpack.c.b16 %v6224, %v6223
    %v6238 = vpack.c.b16 %v6226, %v6225
    %v6239 = vpack.c.b16 %v6228, %v6227
    %v6240 = vpack.c.b16 %v6230, %v6229
    %v6241 = vpack.c.b16 %v6232, %v6231
    %v6242 = vpack.c.b16 %v6234, %v6233
    %6251 = vmatprep.subr.bf16.mxu0 0
    %6252 = vmatpush1.bf16.msra.mxu0 %v6235
    %6253 = vmatprep.subr.bf16.mxu0 0
    %6254 = vmatpush1.bf16.msra.mxu0 %v6236
    %6255 = vmatprep.subr.bf16.mxu0 0
    %6256 = vmatpush1.bf16.msra.mxu0 %v6237
    %6257 = vmatprep.subr.bf16.mxu0 0
    %6258 = vmatpush1.bf16.msra.mxu0 %v6238
    %6259 = vmatprep.subr.bf16.mxu0 0
    %6260 = vmatpush1.bf16.msra.mxu0 %v6239
    %6261 = vmatprep.subr.bf16.mxu0 0
    %6262 = vmatpush1.bf16.msra.mxu0 %v6240
    %6263 = vmatprep.subr.bf16.mxu0 0
    %6264 = vmatpush1.bf16.msra.mxu0 %v6241
    %6265 = vmatprep.subr.bf16.mxu0 0
    %6266 = vmatpush1.bf16.msra.mxu0 %v6242
    %6267 = vmatprep.subr.bf16.mxu0 0
    %6268 = vmatpush1.bf16.msra.mxu0 0
    %6269 = vmatprep.subr.bf16.mxu0 0
    %6270 = vmatpush1.bf16.msra.mxu0 0
    %6271 = vmatprep.subr.bf16.mxu0 0
    %6272 = vmatpush1.bf16.msra.mxu0 0
    %6273 = vmatprep.subr.bf16.mxu0 0
    %6274 = vmatpush1.bf16.msra.mxu0 0
    %6275 = vmatprep.subr.bf16.mxu0 0
    %6276 = vmatpush1.bf16.msra.mxu0 0
    %6277 = vmatprep.subr.bf16.mxu0 0
    %6278 = vmatpush1.bf16.msra.mxu0 0
    %6279 = vmatprep.subr.bf16.mxu0 0
    %6280 = vmatpush1.bf16.msra.mxu0 0
    %6281 = vmatprep.subr.bf16.mxu0 0
    %6282 = vmatpush1.bf16.msra.mxu0 0
    %6283 = vmatprep.mubr.bf16.mxu0 0
    %6284 = vmatmul.mubr.bf16.gmra.mrb[0].mxu0 %v4295
    %v6285 = vpop.f32.mrb[0].mxu0
    %v6286 = vadd.f32 0.0, %v6285
    %v6287 = vpop.f32.mrb[0].mxu0
    %v6288 = vpop.f32.mrb[0].mxu0
    %v6289 = vadd.f32 0.0, %v6288
    %v6290 = vpop.f32.mrb[0].mxu0
    %6291 = vmatprep.mubr.bf16.mxu0 0
    %6292 = vmatmul.mubr.bf16.gmra.mrb[0].mxu0 %v4296
    %v6293 = vpop.f32.mrb[0].mxu0
    %v6294 = vadd.f32 0.0, %v6293
    %v6295 = vpop.f32.mrb[0].mxu0
    %v6296 = vpop.f32.mrb[0].mxu0
    %v6297 = vadd.f32 0.0, %v6296
    %v6298 = vpop.f32.mrb[0].mxu0
    %6299 = vmatprep.mubr.bf16.mxu0 0
    %6300 = vmatmul.mubr.bf16.gmra.mrb[0].mxu0 %v4297
    %v6301 = vpop.f32.mrb[0].mxu0
    %v6302 = vadd.f32 0.0, %v6301
    %v6303 = vpop.f32.mrb[0].mxu0
    %v6304 = vpop.f32.mrb[0].mxu0
    %v6305 = vadd.f32 0.0, %v6304
    %v6306 = vpop.f32.mrb[0].mxu0
    %6307 = vmatprep.mubr.bf16.mxu0 0
    %6308 = vmatmul.mubr.bf16.gmra.mrb[0].mxu0 %v6184
    %v6309 = vpop.f32.mrb[0].mxu0
    %v6310 = vadd.f32 0.0, %v6309
    %v6311 = vpop.f32.mrb[0].mxu0
    %v6312 = vpop.f32.mrb[0].mxu0
    %v6313 = vadd.f32 0.0, %v6312
    %v6314 = vpop.f32.mrb[0].mxu0
    %6315 = vmatprep.mubr.bf16.mxu0 0
    %6316 = vmatmul.mubr.bf16.gmra.mrb[0].mxu0 %v4299
    %v6317 = vpop.f32.mrb[0].mxu0
    %v6318 = vadd.f32 0.0, %v6317
    %v6319 = vpop.f32.mrb[0].mxu0
    %v6320 = vpop.f32.mrb[0].mxu0
    %v6321 = vadd.f32 0.0, %v6320
    %v6322 = vpop.f32.mrb[0].mxu0
    %6323 = vmatprep.mubr.bf16.mxu0 0
    %6324 = vmatmul.mubr.bf16.gmra.mrb[0].mxu0 %v4300
    %v6325 = vpop.f32.mrb[0].mxu0
    %v6326 = vadd.f32 0.0, %v6325
    %v6327 = vpop.f32.mrb[0].mxu0
    %v6328 = vpop.f32.mrb[0].mxu0
    %v6329 = vadd.f32 0.0, %v6328
    %v6330 = vpop.f32.mrb[0].mxu0
    %6331 = vmatprep.mubr.bf16.mxu0 0
    %6332 = vmatmul.mubr.bf16.gmra.mrb[0].mxu0 %v4301
    %v6333 = vpop.f32.mrb[0].mxu0
    %v6334 = vadd.f32 0.0, %v6333
    %v6335 = vpop.f32.mrb[0].mxu0
    %v6336 = vpop.f32.mrb[0].mxu0
    %v6337 = vadd.f32 0.0, %v6336
    %v6338 = vpop.f32.mrb[0].mxu0
    %6339 = vmatprep.mubr.bf16.mxu0 0
    %6340 = vmatmul.mubr.bf16.gmra.mrb[0].mxu0 %v6185
    %v6341 = vpop.f32.mrb[0].mxu0
    %v6342 = vadd.f32 0.0, %v6341
    %v6343 = vpop.f32.mrb[0].mxu0
    %v6344 = vpop.f32.mrb[0].mxu0
    %v6345 = vadd.f32 0.0, %v6344
    %v6346 = vpop.f32.mrb[0].mxu0
    %6347 = vdwg.mxu0
    %v6348 = vadd.f32 %v6160, %v6286
    %v6349 = vadd.f32 %v6161, %v6289
    %v6350 = vadd.f32 %v6162, %v6294
    %v6351 = vadd.f32 %v6163, %v6297
    %v6352 = vadd.f32 %v6164, %v6302
    %v6353 = vadd.f32 %v6165, %v6305
    %v6354 = vadd.f32 %v6166, %v6310
    %v6355 = vadd.f32 %v6167, %v6313
    %v6356 = vadd.f32 %v6168, %v6318
    %v6357 = vadd.f32 %v6169, %v6321
    %v6358 = vadd.f32 %v6170, %v6326
    %v6359 = vadd.f32 %v6171, %v6329
    %v6360 = vadd.f32 %v6172, %v6334
    %v6361 = vadd.f32 %v6173, %v6337
    %v6362 = vadd.f32 %v6174, %v6342
    %v6363 = vadd.f32 %v6175, %v6345
    %v6364 = vrot.slane %v2645, 3
    %v6365 = vrot.slane %v2646, 3
    %v6366 = vsel %vm3400, %v6364, %v6365
    %v6367 = vrot.slane %v2669, 3
    %v6368 = vrot.slane %v2670, 3
    %v6369 = vsel %vm3400, %v6367, %v6368
    %v6372 = vpack.c.bf16 %v6366, %v5430
    %v6373 = vpack.c.bf16 %v6369, %v5433
    %s6374 = scalar_lea.vmem %s3, 1152
    %v6375 = vld [vmem:[%s6374] sm:$0xf]
    %v6376 = vld [vmem:[%s6374 + $0x4] sm:$0xf]
    %v6377 = vld [vmem:[%s6374 + $0x8] sm:$0xf]
    %v6378 = vld [vmem:[%s6374 + $0xc] sm:$0xf]
    %v6379 = vld [vmem:[%s6374 + $0x10] sm:$0xf]
    %v6380 = vld [vmem:[%s6374 + $0x14] sm:$0xf]
    %v6381 = vld [vmem:[%s6374 + $0x18] sm:$0xf]
    %v6382 = vld [vmem:[%s6374 + $0x1c] sm:$0xf]
    %v6383 = vld [vmem:[%s6374 + $0x20] sm:$0xf]
    %v6384 = vld [vmem:[%s6374 + $0x24] sm:$0xf]
    %v6385 = vld [vmem:[%s6374 + $0x28] sm:$0xf]
    %v6386 = vld [vmem:[%s6374 + $0x2c] sm:$0xf]
    %v6387 = vld [vmem:[%s6374 + $0x30] sm:$0xf]
    %v6388 = vld [vmem:[%s6374 + $0x34] sm:$0xf]
    %v6389 = vld [vmem:[%s6374 + $0x38] sm:$0xf]
    %v6390 = vld [vmem:[%s6374 + $0x3c] sm:$0xf]
    %v6407 = vunpack.c.l.b16 %v6375
    %v6408 = vunpack.c.l.b16 %v6376
    %v6409 = vunpack.c.l.b16 %v6377
    %v6410 = vunpack.c.l.b16 %v6378
    %v6411 = vunpack.c.l.b16 %v6379
    %v6412 = vunpack.c.l.b16 %v6380
    %v6413 = vunpack.c.l.b16 %v6381
    %v6414 = vunpack.c.l.b16 %v6382
    %v6415 = vunpack.c.l.b16 %v6383
    %v6416 = vunpack.c.l.b16 %v6384
    %v6417 = vunpack.c.l.b16 %v6385
    %v6418 = vunpack.c.l.b16 %v6386
    %v6419 = vunpack.c.l.b16 %v6387
    %v6420 = vunpack.c.l.b16 %v6388
    %v6421 = vunpack.c.l.b16 %v6389
    %v6422 = vunpack.c.l.b16 %v6390
    %v6423 = vpack.c.b16 %v6408, %v6407
    %v6424 = vpack.c.b16 %v6410, %v6409
    %v6425 = vpack.c.b16 %v6412, %v6411
    %v6426 = vpack.c.b16 %v6414, %v6413
    %v6427 = vpack.c.b16 %v6416, %v6415
    %v6428 = vpack.c.b16 %v6418, %v6417
    %v6429 = vpack.c.b16 %v6420, %v6419
    %v6430 = vpack.c.b16 %v6422, %v6421
    %6439 = vmatprep.subr.bf16.mxu0 0
    %6440 = vmatpush1.bf16.msra.mxu0 %v6423
    %6441 = vmatprep.subr.bf16.mxu0 0
    %6442 = vmatpush1.bf16.msra.mxu0 %v6424
    %6443 = vmatprep.subr.bf16.mxu0 0
    %6444 = vmatpush1.bf16.msra.mxu0 %v6425
    %6445 = vmatprep.subr.bf16.mxu0 0
    %6446 = vmatpush1.bf16.msra.mxu0 %v6426
    %6447 = vmatprep.subr.bf16.mxu0 0
    %6448 = vmatpush1.bf16.msra.mxu0 %v6427
    %6449 = vmatprep.subr.bf16.mxu0 0
    %6450 = vmatpush1.bf16.msra.mxu0 %v6428
    %6451 = vmatprep.subr.bf16.mxu0 0
    %6452 = vmatpush1.bf16.msra.mxu0 %v6429
    %6453 = vmatprep.subr.bf16.mxu0 0
    %6454 = vmatpush1.bf16.msra.mxu0 %v6430
    %6455 = vmatprep.subr.bf16.mxu0 0
    %6456 = vmatpush1.bf16.msra.mxu0 0
    %6457 = vmatprep.subr.bf16.mxu0 0
    %6458 = vmatpush1.bf16.msra.mxu0 0
    %6459 = vmatprep.subr.bf16.mxu0 0
    %6460 = vmatpush1.bf16.msra.mxu0 0
    %6461 = vmatprep.subr.bf16.mxu0 0
    %6462 = vmatpush1.bf16.msra.mxu0 0
    %6463 = vmatprep.subr.bf16.mxu0 0
    %6464 = vmatpush1.bf16.msra.mxu0 0
    %6465 = vmatprep.subr.bf16.mxu0 0
    %6466 = vmatpush1.bf16.msra.mxu0 0
    %6467 = vmatprep.subr.bf16.mxu0 0
    %6468 = vmatpush1.bf16.msra.mxu0 0
    %6469 = vmatprep.subr.bf16.mxu0 0
    %6470 = vmatpush1.bf16.msra.mxu0 0
    %6471 = vmatprep.mubr.bf16.mxu0 0
    %6472 = vmatmul.mubr.bf16.gmra.mrb[0].mxu0 %v4489
    %v6473 = vpop.f32.mrb[0].mxu0
    %v6474 = vadd.f32 0.0, %v6473
    %v6475 = vpop.f32.mrb[0].mxu0
    %v6476 = vpop.f32.mrb[0].mxu0
    %v6477 = vadd.f32 0.0, %v6476
    %v6478 = vpop.f32.mrb[0].mxu0
    %6479 = vmatprep.mubr.bf16.mxu0 0
    %6480 = vmatmul.mubr.bf16.gmra.mrb[0].mxu0 %v4490
    %v6481 = vpop.f32.mrb[0].mxu0
    %v6482 = vadd.f32 0.0, %v6481
    %v6483 = vpop.f32.mrb[0].mxu0
    %v6484 = vpop.f32.mrb[0].mxu0
    %v6485 = vadd.f32 0.0, %v6484
    %v6486 = vpop.f32.mrb[0].mxu0
    %6487 = vmatprep.mubr.bf16.mxu0 0
    %6488 = vmatmul.mubr.bf16.gmra.mrb[0].mxu0 %v4491
    %v6489 = vpop.f32.mrb[0].mxu0
    %v6490 = vadd.f32 0.0, %v6489
    %v6491 = vpop.f32.mrb[0].mxu0
    %v6492 = vpop.f32.mrb[0].mxu0
    %v6493 = vadd.f32 0.0, %v6492
    %v6494 = vpop.f32.mrb[0].mxu0
    %6495 = vmatprep.mubr.bf16.mxu0 0
    %6496 = vmatmul.mubr.bf16.gmra.mrb[0].mxu0 %v6372
    %v6497 = vpop.f32.mrb[0].mxu0
    %v6498 = vadd.f32 0.0, %v6497
    %v6499 = vpop.f32.mrb[0].mxu0
    %v6500 = vpop.f32.mrb[0].mxu0
    %v6501 = vadd.f32 0.0, %v6500
    %v6502 = vpop.f32.mrb[0].mxu0
    %6503 = vmatprep.mubr.bf16.mxu0 0
    %6504 = vmatmul.mubr.bf16.gmra.mrb[0].mxu0 %v4493
    %v6505 = vpop.f32.mrb[0].mxu0
    %v6506 = vadd.f32 0.0, %v6505
    %v6507 = vpop.f32.mrb[0].mxu0
    %v6508 = vpop.f32.mrb[0].mxu0
    %v6509 = vadd.f32 0.0, %v6508
    %v6510 = vpop.f32.mrb[0].mxu0
    %6511 = vmatprep.mubr.bf16.mxu0 0
    %6512 = vmatmul.mubr.bf16.gmra.mrb[0].mxu0 %v4494
    %v6513 = vpop.f32.mrb[0].mxu0
    %v6514 = vadd.f32 0.0, %v6513
    %v6515 = vpop.f32.mrb[0].mxu0
    %v6516 = vpop.f32.mrb[0].mxu0
    %v6517 = vadd.f32 0.0, %v6516
    %v6518 = vpop.f32.mrb[0].mxu0
    %6519 = vmatprep.mubr.bf16.mxu0 0
    %6520 = vmatmul.mubr.bf16.gmra.mrb[0].mxu0 %v4495
    %v6521 = vpop.f32.mrb[0].mxu0
    %v6522 = vadd.f32 0.0, %v6521
    %v6523 = vpop.f32.mrb[0].mxu0
    %v6524 = vpop.f32.mrb[0].mxu0
    %v6525 = vadd.f32 0.0, %v6524
    %v6526 = vpop.f32.mrb[0].mxu0
    %6527 = vmatprep.mubr.bf16.mxu0 0
    %6528 = vmatmul.mubr.bf16.gmra.mrb[0].mxu0 %v6373
    %v6529 = vpop.f32.mrb[0].mxu0
    %v6530 = vadd.f32 0.0, %v6529
    %v6531 = vpop.f32.mrb[0].mxu0
    %v6532 = vpop.f32.mrb[0].mxu0
    %v6533 = vadd.f32 0.0, %v6532
    %v6534 = vpop.f32.mrb[0].mxu0
    %6535 = vdwg.mxu0
    %v6536 = vadd.f32 %v6348, %v6474
    %v6537 = vadd.f32 %v6349, %v6477
    %v6538 = vadd.f32 %v6350, %v6482
    %v6539 = vadd.f32 %v6351, %v6485
    %v6540 = vadd.f32 %v6352, %v6490
    %v6541 = vadd.f32 %v6353, %v6493
    %v6542 = vadd.f32 %v6354, %v6498
    %v6543 = vadd.f32 %v6355, %v6501
    %v6544 = vadd.f32 %v6356, %v6506
    %v6545 = vadd.f32 %v6357, %v6509
    %v6546 = vadd.f32 %v6358, %v6514
    %v6547 = vadd.f32 %v6359, %v6517
    %v6548 = vadd.f32 %v6360, %v6522
    %v6549 = vadd.f32 %v6361, %v6525
    %v6550 = vadd.f32 %v6362, %v6530
    %v6551 = vadd.f32 %v6363, %v6533
    %v6552 = vrot.slane %v2645, 4
    %v6553 = vrot.slane %v2646, 4
    %v6554 = vsel %vm3651, %v6552, %v6553
    %v6555 = vrot.slane %v2669, 4
    %v6556 = vrot.slane %v2670, 4
    %v6557 = vsel %vm3651, %v6555, %v6556
    %v6560 = vpack.c.bf16 %v6554, %v5618
    %v6561 = vpack.c.bf16 %v6557, %v5621
    %s6562 = scalar_lea.vmem %s3, 1216
    %v6563 = vld [vmem:[%s6562] sm:$0xf]
    %v6564 = vld [vmem:[%s6562 + $0x4] sm:$0xf]
    %v6565 = vld [vmem:[%s6562 + $0x8] sm:$0xf]
    %v6566 = vld [vmem:[%s6562 + $0xc] sm:$0xf]
    %v6567 = vld [vmem:[%s6562 + $0x10] sm:$0xf]
    %v6568 = vld [vmem:[%s6562 + $0x14] sm:$0xf]
    %v6569 = vld [vmem:[%s6562 + $0x18] sm:$0xf]
    %v6570 = vld [vmem:[%s6562 + $0x1c] sm:$0xf]
    %v6571 = vld [vmem:[%s6562 + $0x20] sm:$0xf]
    %v6572 = vld [vmem:[%s6562 + $0x24] sm:$0xf]
    %v6573 = vld [vmem:[%s6562 + $0x28] sm:$0xf]
    %v6574 = vld [vmem:[%s6562 + $0x2c] sm:$0xf]
    %v6575 = vld [vmem:[%s6562 + $0x30] sm:$0xf]
    %v6576 = vld [vmem:[%s6562 + $0x34] sm:$0xf]
    %v6577 = vld [vmem:[%s6562 + $0x38] sm:$0xf]
    %v6578 = vld [vmem:[%s6562 + $0x3c] sm:$0xf]
    %v6595 = vunpack.c.l.b16 %v6563
    %v6596 = vunpack.c.l.b16 %v6564
    %v6597 = vunpack.c.l.b16 %v6565
    %v6598 = vunpack.c.l.b16 %v6566
    %v6599 = vunpack.c.l.b16 %v6567
    %v6600 = vunpack.c.l.b16 %v6568
    %v6601 = vunpack.c.l.b16 %v6569
    %v6602 = vunpack.c.l.b16 %v6570
    %v6603 = vunpack.c.l.b16 %v6571
    %v6604 = vunpack.c.l.b16 %v6572
    %v6605 = vunpack.c.l.b16 %v6573
    %v6606 = vunpack.c.l.b16 %v6574
    %v6607 = vunpack.c.l.b16 %v6575
    %v6608 = vunpack.c.l.b16 %v6576
    %v6609 = vunpack.c.l.b16 %v6577
    %v6610 = vunpack.c.l.b16 %v6578
    %v6611 = vpack.c.b16 %v6596, %v6595
    %v6612 = vpack.c.b16 %v6598, %v6597
    %v6613 = vpack.c.b16 %v6600, %v6599
    %v6614 = vpack.c.b16 %v6602, %v6601
    %v6615 = vpack.c.b16 %v6604, %v6603
    %v6616 = vpack.c.b16 %v6606, %v6605
    %v6617 = vpack.c.b16 %v6608, %v6607
    %v6618 = vpack.c.b16 %v6610, %v6609
    %6627 = vmatprep.subr.bf16.mxu0 0
    %6628 = vmatpush1.bf16.msra.mxu0 %v6611
    %6629 = vmatprep.subr.bf16.mxu0 0
    %6630 = vmatpush1.bf16.msra.mxu0 %v6612
    %6631 = vmatprep.subr.bf16.mxu0 0
    %6632 = vmatpush1.bf16.msra.mxu0 %v6613
    %6633 = vmatprep.subr.bf16.mxu0 0
    %6634 = vmatpush1.bf16.msra.mxu0 %v6614
    %6635 = vmatprep.subr.bf16.mxu0 0
    %6636 = vmatpush1.bf16.msra.mxu0 %v6615
    %6637 = vmatprep.subr.bf16.mxu0 0
    %6638 = vmatpush1.bf16.msra.mxu0 %v6616
    %6639 = vmatprep.subr.bf16.mxu0 0
    %6640 = vmatpush1.bf16.msra.mxu0 %v6617
    %6641 = vmatprep.subr.bf16.mxu0 0
    %6642 = vmatpush1.bf16.msra.mxu0 %v6618
    %6643 = vmatprep.subr.bf16.mxu0 0
    %6644 = vmatpush1.bf16.msra.mxu0 0
    %6645 = vmatprep.subr.bf16.mxu0 0
    %6646 = vmatpush1.bf16.msra.mxu0 0
    %6647 = vmatprep.subr.bf16.mxu0 0
    %6648 = vmatpush1.bf16.msra.mxu0 0
    %6649 = vmatprep.subr.bf16.mxu0 0
    %6650 = vmatpush1.bf16.msra.mxu0 0
    %6651 = vmatprep.subr.bf16.mxu0 0
    %6652 = vmatpush1.bf16.msra.mxu0 0
    %6653 = vmatprep.subr.bf16.mxu0 0
    %6654 = vmatpush1.bf16.msra.mxu0 0
    %6655 = vmatprep.subr.bf16.mxu0 0
    %6656 = vmatpush1.bf16.msra.mxu0 0
    %6657 = vmatprep.subr.bf16.mxu0 0
    %6658 = vmatpush1.bf16.msra.mxu0 0
    %6659 = vmatprep.mubr.bf16.mxu0 0
    %6660 = vmatmul.mubr.bf16.gmra.mrb[0].mxu0 %v4683
    %v6661 = vpop.f32.mrb[0].mxu0
    %v6662 = vadd.f32 0.0, %v6661
    %v6663 = vpop.f32.mrb[0].mxu0
    %v6664 = vpop.f32.mrb[0].mxu0
    %v6665 = vadd.f32 0.0, %v6664
    %v6666 = vpop.f32.mrb[0].mxu0
    %6667 = vmatprep.mubr.bf16.mxu0 0
    %6668 = vmatmul.mubr.bf16.gmra.mrb[0].mxu0 %v4684
    %v6669 = vpop.f32.mrb[0].mxu0
    %v6670 = vadd.f32 0.0, %v6669
    %v6671 = vpop.f32.mrb[0].mxu0
    %v6672 = vpop.f32.mrb[0].mxu0
    %v6673 = vadd.f32 0.0, %v6672
    %v6674 = vpop.f32.mrb[0].mxu0
    %6675 = vmatprep.mubr.bf16.mxu0 0
    %6676 = vmatmul.mubr.bf16.gmra.mrb[0].mxu0 %v4685
    %v6677 = vpop.f32.mrb[0].mxu0
    %v6678 = vadd.f32 0.0, %v6677
    %v6679 = vpop.f32.mrb[0].mxu0
    %v6680 = vpop.f32.mrb[0].mxu0
    %v6681 = vadd.f32 0.0, %v6680
    %v6682 = vpop.f32.mrb[0].mxu0
    %6683 = vmatprep.mubr.bf16.mxu0 0
    %6684 = vmatmul.mubr.bf16.gmra.mrb[0].mxu0 %v6560
    %v6685 = vpop.f32.mrb[0].mxu0
    %v6686 = vadd.f32 0.0, %v6685
    %v6687 = vpop.f32.mrb[0].mxu0
    %v6688 = vpop.f32.mrb[0].mxu0
    %v6689 = vadd.f32 0.0, %v6688
    %v6690 = vpop.f32.mrb[0].mxu0
    %6691 = vmatprep.mubr.bf16.mxu0 0
    %6692 = vmatmul.mubr.bf16.gmra.mrb[0].mxu0 %v4687
    %v6693 = vpop.f32.mrb[0].mxu0
    %v6694 = vadd.f32 0.0, %v6693
    %v6695 = vpop.f32.mrb[0].mxu0
    %v6696 = vpop.f32.mrb[0].mxu0
    %v6697 = vadd.f32 0.0, %v6696
    %v6698 = vpop.f32.mrb[0].mxu0
    %6699 = vmatprep.mubr.bf16.mxu0 0
    %6700 = vmatmul.mubr.bf16.gmra.mrb[0].mxu0 %v4688
    %v6701 = vpop.f32.mrb[0].mxu0
    %v6702 = vadd.f32 0.0, %v6701
    %v6703 = vpop.f32.mrb[0].mxu0
    %v6704 = vpop.f32.mrb[0].mxu0
    %v6705 = vadd.f32 0.0, %v6704
    %v6706 = vpop.f32.mrb[0].mxu0
    %6707 = vmatprep.mubr.bf16.mxu0 0
    %6708 = vmatmul.mubr.bf16.gmra.mrb[0].mxu0 %v4689
    %v6709 = vpop.f32.mrb[0].mxu0
    %v6710 = vadd.f32 0.0, %v6709
    %v6711 = vpop.f32.mrb[0].mxu0
    %v6712 = vpop.f32.mrb[0].mxu0
    %v6713 = vadd.f32 0.0, %v6712
    %v6714 = vpop.f32.mrb[0].mxu0
    %6715 = vmatprep.mubr.bf16.mxu0 0
    %6716 = vmatmul.mubr.bf16.gmra.mrb[0].mxu0 %v6561
    %v6717 = vpop.f32.mrb[0].mxu0
    %v6718 = vadd.f32 0.0, %v6717
    %v6719 = vpop.f32.mrb[0].mxu0
    %v6720 = vpop.f32.mrb[0].mxu0
    %v6721 = vadd.f32 0.0, %v6720
    %v6722 = vpop.f32.mrb[0].mxu0
    %6723 = vdwg.mxu0
    %v6724 = vadd.f32 %v6536, %v6662
    %v6725 = vadd.f32 %v6537, %v6665
    %v6726 = vadd.f32 %v6538, %v6670
    %v6727 = vadd.f32 %v6539, %v6673
    %v6728 = vadd.f32 %v6540, %v6678
    %v6729 = vadd.f32 %v6541, %v6681
    %v6730 = vadd.f32 %v6542, %v6686
    %v6731 = vadd.f32 %v6543, %v6689
    %v6732 = vadd.f32 %v6544, %v6694
    %v6733 = vadd.f32 %v6545, %v6697
    %v6734 = vadd.f32 %v6546, %v6702
    %v6735 = vadd.f32 %v6547, %v6705
    %v6736 = vadd.f32 %v6548, %v6710
    %v6737 = vadd.f32 %v6549, %v6713
    %v6738 = vadd.f32 %v6550, %v6718
    %v6739 = vadd.f32 %v6551, %v6721
    %v6740 = vpack.c.bf16 %v2647, %v2645
    %v6741 = vpack.c.bf16 %v2671, %v2669
    %s6742 = scalar_lea.vmem %s3, 1280
    %v6743 = vld [vmem:[%s6742] sm:$0xf]
    %v6744 = vld [vmem:[%s6742 + $0x4] sm:$0xf]
    %v6745 = vld [vmem:[%s6742 + $0x8] sm:$0xf]
    %v6746 = vld [vmem:[%s6742 + $0xc] sm:$0xf]
    %v6747 = vld [vmem:[%s6742 + $0x10] sm:$0xf]
    %v6748 = vld [vmem:[%s6742 + $0x14] sm:$0xf]
    %v6749 = vld [vmem:[%s6742 + $0x18] sm:$0xf]
    %v6750 = vld [vmem:[%s6742 + $0x1c] sm:$0xf]
    %v6751 = vld [vmem:[%s6742 + $0x20] sm:$0xf]
    %v6752 = vld [vmem:[%s6742 + $0x24] sm:$0xf]
    %v6753 = vld [vmem:[%s6742 + $0x28] sm:$0xf]
    %v6754 = vld [vmem:[%s6742 + $0x2c] sm:$0xf]
    %v6755 = vld [vmem:[%s6742 + $0x30] sm:$0xf]
    %v6756 = vld [vmem:[%s6742 + $0x34] sm:$0xf]
    %v6757 = vld [vmem:[%s6742 + $0x38] sm:$0xf]
    %v6758 = vld [vmem:[%s6742 + $0x3c] sm:$0xf]
    %v6775 = vunpack.c.l.b16 %v6743
    %v6776 = vunpack.c.l.b16 %v6744
    %v6777 = vunpack.c.l.b16 %v6745
    %v6778 = vunpack.c.l.b16 %v6746
    %v6779 = vunpack.c.l.b16 %v6747
    %v6780 = vunpack.c.l.b16 %v6748
    %v6781 = vunpack.c.l.b16 %v6749
    %v6782 = vunpack.c.l.b16 %v6750
    %v6783 = vunpack.c.l.b16 %v6751
    %v6784 = vunpack.c.l.b16 %v6752
    %v6785 = vunpack.c.l.b16 %v6753
    %v6786 = vunpack.c.l.b16 %v6754
    %v6787 = vunpack.c.l.b16 %v6755
    %v6788 = vunpack.c.l.b16 %v6756
    %v6789 = vunpack.c.l.b16 %v6757
    %v6790 = vunpack.c.l.b16 %v6758
    %v6791 = vpack.c.b16 %v6776, %v6775
    %v6792 = vpack.c.b16 %v6778, %v6777
    %v6793 = vpack.c.b16 %v6780, %v6779
    %v6794 = vpack.c.b16 %v6782, %v6781
    %v6795 = vpack.c.b16 %v6784, %v6783
    %v6796 = vpack.c.b16 %v6786, %v6785
    %v6797 = vpack.c.b16 %v6788, %v6787
    %v6798 = vpack.c.b16 %v6790, %v6789
    %6807 = vmatprep.subr.bf16.mxu0 0
    %6808 = vmatpush1.bf16.msra.mxu0 %v6791
    %6809 = vmatprep.subr.bf16.mxu0 0
    %6810 = vmatpush1.bf16.msra.mxu0 %v6792
    %6811 = vmatprep.subr.bf16.mxu0 0
    %6812 = vmatpush1.bf16.msra.mxu0 %v6793
    %6813 = vmatprep.subr.bf16.mxu0 0
    %6814 = vmatpush1.bf16.msra.mxu0 %v6794
    %6815 = vmatprep.subr.bf16.mxu0 0
    %6816 = vmatpush1.bf16.msra.mxu0 %v6795
    %6817 = vmatprep.subr.bf16.mxu0 0
    %6818 = vmatpush1.bf16.msra.mxu0 %v6796
    %6819 = vmatprep.subr.bf16.mxu0 0
    %6820 = vmatpush1.bf16.msra.mxu0 %v6797
    %6821 = vmatprep.subr.bf16.mxu0 0
    %6822 = vmatpush1.bf16.msra.mxu0 %v6798
    %6823 = vmatprep.subr.bf16.mxu0 0
    %6824 = vmatpush1.bf16.msra.mxu0 0
    %6825 = vmatprep.subr.bf16.mxu0 0
    %6826 = vmatpush1.bf16.msra.mxu0 0
    %6827 = vmatprep.subr.bf16.mxu0 0
    %6828 = vmatpush1.bf16.msra.mxu0 0
    %6829 = vmatprep.subr.bf16.mxu0 0
    %6830 = vmatpush1.bf16.msra.mxu0 0
    %6831 = vmatprep.subr.bf16.mxu0 0
    %6832 = vmatpush1.bf16.msra.mxu0 0
    %6833 = vmatprep.subr.bf16.mxu0 0
    %6834 = vmatpush1.bf16.msra.mxu0 0
    %6835 = vmatprep.subr.bf16.mxu0 0
    %6836 = vmatpush1.bf16.msra.mxu0 0
    %6837 = vmatprep.subr.bf16.mxu0 0
    %6838 = vmatpush1.bf16.msra.mxu0 0
    %6839 = vmatprep.mubr.bf16.mxu0 0
    %6840 = vmatmul.mubr.bf16.gmra.mrb[0].mxu0 %v2683
    %v6841 = vpop.f32.mrb[0].mxu0
    %v6842 = vadd.f32 0.0, %v6841
    %v6843 = vpop.f32.mrb[0].mxu0
    %v6844 = vpop.f32.mrb[0].mxu0
    %v6845 = vadd.f32 0.0, %v6844
    %v6846 = vpop.f32.mrb[0].mxu0
    %6847 = vmatprep.mubr.bf16.mxu0 0
    %6848 = vmatmul.mubr.bf16.gmra.mrb[0].mxu0 %v2684
    %v6849 = vpop.f32.mrb[0].mxu0
    %v6850 = vadd.f32 0.0, %v6849
    %v6851 = vpop.f32.mrb[0].mxu0
    %v6852 = vpop.f32.mrb[0].mxu0
    %v6853 = vadd.f32 0.0, %v6852
    %v6854 = vpop.f32.mrb[0].mxu0
    %6855 = vmatprep.mubr.bf16.mxu0 0
    %6856 = vmatmul.mubr.bf16.gmra.mrb[0].mxu0 %v4868
    %v6857 = vpop.f32.mrb[0].mxu0
    %v6858 = vadd.f32 0.0, %v6857
    %v6859 = vpop.f32.mrb[0].mxu0
    %v6860 = vpop.f32.mrb[0].mxu0
    %v6861 = vadd.f32 0.0, %v6860
    %v6862 = vpop.f32.mrb[0].mxu0
    %6863 = vmatprep.mubr.bf16.mxu0 0
    %6864 = vmatmul.mubr.bf16.gmra.mrb[0].mxu0 %v6740
    %v6865 = vpop.f32.mrb[0].mxu0
    %v6866 = vadd.f32 0.0, %v6865
    %v6867 = vpop.f32.mrb[0].mxu0
    %v6868 = vpop.f32.mrb[0].mxu0
    %v6869 = vadd.f32 0.0, %v6868
    %v6870 = vpop.f32.mrb[0].mxu0
    %6871 = vmatprep.mubr.bf16.mxu0 0
    %6872 = vmatmul.mubr.bf16.gmra.mrb[0].mxu0 %v2687
    %v6873 = vpop.f32.mrb[0].mxu0
    %v6874 = vadd.f32 0.0, %v6873
    %v6875 = vpop.f32.mrb[0].mxu0
    %v6876 = vpop.f32.mrb[0].mxu0
    %v6877 = vadd.f32 0.0, %v6876
    %v6878 = vpop.f32.mrb[0].mxu0
    %6879 = vmatprep.mubr.bf16.mxu0 0
    %6880 = vmatmul.mubr.bf16.gmra.mrb[0].mxu0 %v2688
    %v6881 = vpop.f32.mrb[0].mxu0
    %v6882 = vadd.f32 0.0, %v6881
    %v6883 = vpop.f32.mrb[0].mxu0
    %v6884 = vpop.f32.mrb[0].mxu0
    %v6885 = vadd.f32 0.0, %v6884
    %v6886 = vpop.f32.mrb[0].mxu0
    %6887 = vmatprep.mubr.bf16.mxu0 0
    %6888 = vmatmul.mubr.bf16.gmra.mrb[0].mxu0 %v4869
    %v6889 = vpop.f32.mrb[0].mxu0
    %v6890 = vadd.f32 0.0, %v6889
    %v6891 = vpop.f32.mrb[0].mxu0
    %v6892 = vpop.f32.mrb[0].mxu0
    %v6893 = vadd.f32 0.0, %v6892
    %v6894 = vpop.f32.mrb[0].mxu0
    %6895 = vmatprep.mubr.bf16.mxu0 0
    %6896 = vmatmul.mubr.bf16.gmra.mrb[0].mxu0 %v6741
    %v6897 = vpop.f32.mrb[0].mxu0
    %v6898 = vadd.f32 0.0, %v6897
    %v6899 = vpop.f32.mrb[0].mxu0
    %v6900 = vpop.f32.mrb[0].mxu0
    %v6901 = vadd.f32 0.0, %v6900
    %v6902 = vpop.f32.mrb[0].mxu0
    %6903 = vdwg.mxu0
    %v6904 = vadd.f32 %v6724, %v6842
    %v6905 = vadd.f32 %v6725, %v6845
    %v6906 = vadd.f32 %v6726, %v6850
    %v6907 = vadd.f32 %v6727, %v6853
    %v6908 = vadd.f32 %v6728, %v6858
    %v6909 = vadd.f32 %v6729, %v6861
    %v6910 = vadd.f32 %v6730, %v6866
    %v6911 = vadd.f32 %v6731, %v6869
    %v6912 = vadd.f32 %v6732, %v6874
    %v6913 = vadd.f32 %v6733, %v6877
    %v6914 = vadd.f32 %v6734, %v6882
    %v6915 = vadd.f32 %v6735, %v6885
    %v6916 = vadd.f32 %v6736, %v6890
    %v6917 = vadd.f32 %v6737, %v6893
    %v6918 = vadd.f32 %v6738, %v6898
    %v6919 = vadd.f32 %v6739, %v6901
    %v6924 = vrot.slane %v2647, 1
    %v6925 = vrot.slane %v2648, 1
    %v6926 = vsel %vm2898, %v6924, %v6925
    %v6927 = vrot.slane %v2671, 1
    %v6928 = vrot.slane %v2672, 1
    %v6929 = vsel %vm2898, %v6927, %v6928
    %v6932 = vpack.c.bf16 %v6926, %v5990
    %v6933 = vpack.c.bf16 %v6929, %v5993
    %s6934 = scalar_lea.vmem %s3, 1344
    %v6935 = vld [vmem:[%s6934] sm:$0xf]
    %v6936 = vld [vmem:[%s6934 + $0x4] sm:$0xf]
    %v6937 = vld [vmem:[%s6934 + $0x8] sm:$0xf]
    %v6938 = vld [vmem:[%s6934 + $0xc] sm:$0xf]
    %v6939 = vld [vmem:[%s6934 + $0x10] sm:$0xf]
    %v6940 = vld [vmem:[%s6934 + $0x14] sm:$0xf]
    %v6941 = vld [vmem:[%s6934 + $0x18] sm:$0xf]
    %v6942 = vld [vmem:[%s6934 + $0x1c] sm:$0xf]
    %v6943 = vld [vmem:[%s6934 + $0x20] sm:$0xf]
    %v6944 = vld [vmem:[%s6934 + $0x24] sm:$0xf]
    %v6945 = vld [vmem:[%s6934 + $0x28] sm:$0xf]
    %v6946 = vld [vmem:[%s6934 + $0x2c] sm:$0xf]
    %v6947 = vld [vmem:[%s6934 + $0x30] sm:$0xf]
    %v6948 = vld [vmem:[%s6934 + $0x34] sm:$0xf]
    %v6949 = vld [vmem:[%s6934 + $0x38] sm:$0xf]
    %v6950 = vld [vmem:[%s6934 + $0x3c] sm:$0xf]
    %v6967 = vunpack.c.l.b16 %v6935
    %v6968 = vunpack.c.l.b16 %v6936
    %v6969 = vunpack.c.l.b16 %v6937
    %v6970 = vunpack.c.l.b16 %v6938
    %v6971 = vunpack.c.l.b16 %v6939
    %v6972 = vunpack.c.l.b16 %v6940
    %v6973 = vunpack.c.l.b16 %v6941
    %v6974 = vunpack.c.l.b16 %v6942
    %v6975 = vunpack.c.l.b16 %v6943
    %v6976 = vunpack.c.l.b16 %v6944
    %v6977 = vunpack.c.l.b16 %v6945
    %v6978 = vunpack.c.l.b16 %v6946
    %v6979 = vunpack.c.l.b16 %v6947
    %v6980 = vunpack.c.l.b16 %v6948
    %v6981 = vunpack.c.l.b16 %v6949
    %v6982 = vunpack.c.l.b16 %v6950
    %v6983 = vpack.c.b16 %v6968, %v6967
    %v6984 = vpack.c.b16 %v6970, %v6969
    %v6985 = vpack.c.b16 %v6972, %v6971
    %v6986 = vpack.c.b16 %v6974, %v6973
    %v6987 = vpack.c.b16 %v6976, %v6975
    %v6988 = vpack.c.b16 %v6978, %v6977
    %v6989 = vpack.c.b16 %v6980, %v6979
    %v6990 = vpack.c.b16 %v6982, %v6981
    %6999 = vmatprep.subr.bf16.mxu0 0
    %7000 = vmatpush1.bf16.msra.mxu0 %v6983
    %7001 = vmatprep.subr.bf16.mxu0 0
    %7002 = vmatpush1.bf16.msra.mxu0 %v6984
    %7003 = vmatprep.subr.bf16.mxu0 0
    %7004 = vmatpush1.bf16.msra.mxu0 %v6985
    %7005 = vmatprep.subr.bf16.mxu0 0
    %7006 = vmatpush1.bf16.msra.mxu0 %v6986
    %7007 = vmatprep.subr.bf16.mxu0 0
    %7008 = vmatpush1.bf16.msra.mxu0 %v6987
    %7009 = vmatprep.subr.bf16.mxu0 0
    %7010 = vmatpush1.bf16.msra.mxu0 %v6988
    %7011 = vmatprep.subr.bf16.mxu0 0
    %7012 = vmatpush1.bf16.msra.mxu0 %v6989
    %7013 = vmatprep.subr.bf16.mxu0 0
    %7014 = vmatpush1.bf16.msra.mxu0 %v6990
    %7015 = vmatprep.subr.bf16.mxu0 0
    %7016 = vmatpush1.bf16.msra.mxu0 0
    %7017 = vmatprep.subr.bf16.mxu0 0
    %7018 = vmatpush1.bf16.msra.mxu0 0
    %7019 = vmatprep.subr.bf16.mxu0 0
    %7020 = vmatpush1.bf16.msra.mxu0 0
    %7021 = vmatprep.subr.bf16.mxu0 0
    %7022 = vmatpush1.bf16.msra.mxu0 0
    %7023 = vmatprep.subr.bf16.mxu0 0
    %7024 = vmatpush1.bf16.msra.mxu0 0
    %7025 = vmatprep.subr.bf16.mxu0 0
    %7026 = vmatpush1.bf16.msra.mxu0 0
    %7027 = vmatprep.subr.bf16.mxu0 0
    %7028 = vmatpush1.bf16.msra.mxu0 0
    %7029 = vmatprep.subr.bf16.mxu0 0
    %7030 = vmatpush1.bf16.msra.mxu0 0
    %7031 = vmatprep.mubr.bf16.mxu0 0
    %7032 = vmatmul.mubr.bf16.gmra.mrb[0].mxu0 %v2965
    %v7033 = vpop.f32.mrb[0].mxu0
    %v7034 = vadd.f32 0.0, %v7033
    %v7035 = vpop.f32.mrb[0].mxu0
    %v7036 = vpop.f32.mrb[0].mxu0
    %v7037 = vadd.f32 0.0, %v7036
    %v7038 = vpop.f32.mrb[0].mxu0
    %7039 = vmatprep.mubr.bf16.mxu0 0
    %7040 = vmatmul.mubr.bf16.gmra.mrb[0].mxu0 %v2966
    %v7041 = vpop.f32.mrb[0].mxu0
    %v7042 = vadd.f32 0.0, %v7041
    %v7043 = vpop.f32.mrb[0].mxu0
    %v7044 = vpop.f32.mrb[0].mxu0
    %v7045 = vadd.f32 0.0, %v7044
    %v7046 = vpop.f32.mrb[0].mxu0
    %7047 = vmatprep.mubr.bf16.mxu0 0
    %7048 = vmatmul.mubr.bf16.gmra.mrb[0].mxu0 %v5060
    %v7049 = vpop.f32.mrb[0].mxu0
    %v7050 = vadd.f32 0.0, %v7049
    %v7051 = vpop.f32.mrb[0].mxu0
    %v7052 = vpop.f32.mrb[0].mxu0
    %v7053 = vadd.f32 0.0, %v7052
    %v7054 = vpop.f32.mrb[0].mxu0
    %7055 = vmatprep.mubr.bf16.mxu0 0
    %7056 = vmatmul.mubr.bf16.gmra.mrb[0].mxu0 %v6932
    %v7057 = vpop.f32.mrb[0].mxu0
    %v7058 = vadd.f32 0.0, %v7057
    %v7059 = vpop.f32.mrb[0].mxu0
    %v7060 = vpop.f32.mrb[0].mxu0
    %v7061 = vadd.f32 0.0, %v7060
    %v7062 = vpop.f32.mrb[0].mxu0
    %7063 = vmatprep.mubr.bf16.mxu0 0
    %7064 = vmatmul.mubr.bf16.gmra.mrb[0].mxu0 %v2969
    %v7065 = vpop.f32.mrb[0].mxu0
    %v7066 = vadd.f32 0.0, %v7065
    %v7067 = vpop.f32.mrb[0].mxu0
    %v7068 = vpop.f32.mrb[0].mxu0
    %v7069 = vadd.f32 0.0, %v7068
    %v7070 = vpop.f32.mrb[0].mxu0
    %7071 = vmatprep.mubr.bf16.mxu0 0
    %7072 = vmatmul.mubr.bf16.gmra.mrb[0].mxu0 %v2970
    %v7073 = vpop.f32.mrb[0].mxu0
    %v7074 = vadd.f32 0.0, %v7073
    %v7075 = vpop.f32.mrb[0].mxu0
    %v7076 = vpop.f32.mrb[0].mxu0
    %v7077 = vadd.f32 0.0, %v7076
    %v7078 = vpop.f32.mrb[0].mxu0
    %7079 = vmatprep.mubr.bf16.mxu0 0
    %7080 = vmatmul.mubr.bf16.gmra.mrb[0].mxu0 %v5061
    %v7081 = vpop.f32.mrb[0].mxu0
    %v7082 = vadd.f32 0.0, %v7081
    %v7083 = vpop.f32.mrb[0].mxu0
    %v7084 = vpop.f32.mrb[0].mxu0
    %v7085 = vadd.f32 0.0, %v7084
    %v7086 = vpop.f32.mrb[0].mxu0
    %7087 = vmatprep.mubr.bf16.mxu0 0
    %7088 = vmatmul.mubr.bf16.gmra.mrb[0].mxu0 %v6933
    %v7089 = vpop.f32.mrb[0].mxu0
    %v7090 = vadd.f32 0.0, %v7089
    %v7091 = vpop.f32.mrb[0].mxu0
    %v7092 = vpop.f32.mrb[0].mxu0
    %v7093 = vadd.f32 0.0, %v7092
    %v7094 = vpop.f32.mrb[0].mxu0
    %7095 = vdwg.mxu0
    %v7096 = vadd.f32 %v6904, %v7034
    %v7097 = vadd.f32 %v6905, %v7037
    %v7098 = vadd.f32 %v6906, %v7042
    %v7099 = vadd.f32 %v6907, %v7045
    %v7100 = vadd.f32 %v6908, %v7050
    %v7101 = vadd.f32 %v6909, %v7053
    %v7102 = vadd.f32 %v6910, %v7058
    %v7103 = vadd.f32 %v6911, %v7061
    %v7104 = vadd.f32 %v6912, %v7066
    %v7105 = vadd.f32 %v6913, %v7069
    %v7106 = vadd.f32 %v6914, %v7074
    %v7107 = vadd.f32 %v6915, %v7077
    %v7108 = vadd.f32 %v6916, %v7082
    %v7109 = vadd.f32 %v6917, %v7085
    %v7110 = vadd.f32 %v6918, %v7090
    %v7111 = vadd.f32 %v6919, %v7093
    %v7112 = vrot.slane %v2647, 2
    %v7113 = vrot.slane %v2648, 2
    %v7114 = vsel %vm3149, %v7112, %v7113
    %v7115 = vrot.slane %v2671, 2
    %v7116 = vrot.slane %v2672, 2
    %v7117 = vsel %vm3149, %v7115, %v7116
    %v7120 = vpack.c.bf16 %v7114, %v6178
    %v7121 = vpack.c.bf16 %v7117, %v6181
    %s7122 = scalar_lea.vmem %s3, 1408
    %v7123 = vld [vmem:[%s7122] sm:$0xf]
    %v7124 = vld [vmem:[%s7122 + $0x4] sm:$0xf]
    %v7125 = vld [vmem:[%s7122 + $0x8] sm:$0xf]
    %v7126 = vld [vmem:[%s7122 + $0xc] sm:$0xf]
    %v7127 = vld [vmem:[%s7122 + $0x10] sm:$0xf]
    %v7128 = vld [vmem:[%s7122 + $0x14] sm:$0xf]
    %v7129 = vld [vmem:[%s7122 + $0x18] sm:$0xf]
    %v7130 = vld [vmem:[%s7122 + $0x1c] sm:$0xf]
    %v7131 = vld [vmem:[%s7122 + $0x20] sm:$0xf]
    %v7132 = vld [vmem:[%s7122 + $0x24] sm:$0xf]
    %v7133 = vld [vmem:[%s7122 + $0x28] sm:$0xf]
    %v7134 = vld [vmem:[%s7122 + $0x2c] sm:$0xf]
    %v7135 = vld [vmem:[%s7122 + $0x30] sm:$0xf]
    %v7136 = vld [vmem:[%s7122 + $0x34] sm:$0xf]
    %v7137 = vld [vmem:[%s7122 + $0x38] sm:$0xf]
    %v7138 = vld [vmem:[%s7122 + $0x3c] sm:$0xf]
    %v7155 = vunpack.c.l.b16 %v7123
    %v7156 = vunpack.c.l.b16 %v7124
    %v7157 = vunpack.c.l.b16 %v7125
    %v7158 = vunpack.c.l.b16 %v7126
    %v7159 = vunpack.c.l.b16 %v7127
    %v7160 = vunpack.c.l.b16 %v7128
    %v7161 = vunpack.c.l.b16 %v7129
    %v7162 = vunpack.c.l.b16 %v7130
    %v7163 = vunpack.c.l.b16 %v7131
    %v7164 = vunpack.c.l.b16 %v7132
    %v7165 = vunpack.c.l.b16 %v7133
    %v7166 = vunpack.c.l.b16 %v7134
    %v7167 = vunpack.c.l.b16 %v7135
    %v7168 = vunpack.c.l.b16 %v7136
    %v7169 = vunpack.c.l.b16 %v7137
    %v7170 = vunpack.c.l.b16 %v7138
    %v7171 = vpack.c.b16 %v7156, %v7155
    %v7172 = vpack.c.b16 %v7158, %v7157
    %v7173 = vpack.c.b16 %v7160, %v7159
    %v7174 = vpack.c.b16 %v7162, %v7161
    %v7175 = vpack.c.b16 %v7164, %v7163
    %v7176 = vpack.c.b16 %v7166, %v7165
    %v7177 = vpack.c.b16 %v7168, %v7167
    %v7178 = vpack.c.b16 %v7170, %v7169
    %7187 = vmatprep.subr.bf16.mxu0 0
    %7188 = vmatpush1.bf16.msra.mxu0 %v7171
    %7189 = vmatprep.subr.bf16.mxu0 0
    %7190 = vmatpush1.bf16.msra.mxu0 %v7172
    %7191 = vmatprep.subr.bf16.mxu0 0
    %7192 = vmatpush1.bf16.msra.mxu0 %v7173
    %7193 = vmatprep.subr.bf16.mxu0 0
    %7194 = vmatpush1.bf16.msra.mxu0 %v7174
    %7195 = vmatprep.subr.bf16.mxu0 0
    %7196 = vmatpush1.bf16.msra.mxu0 %v7175
    %7197 = vmatprep.subr.bf16.mxu0 0
    %7198 = vmatpush1.bf16.msra.mxu0 %v7176
    %7199 = vmatprep.subr.bf16.mxu0 0
    %7200 = vmatpush1.bf16.msra.mxu0 %v7177
    %7201 = vmatprep.subr.bf16.mxu0 0
    %7202 = vmatpush1.bf16.msra.mxu0 %v7178
    %7203 = vmatprep.subr.bf16.mxu0 0
    %7204 = vmatpush1.bf16.msra.mxu0 0
    %7205 = vmatprep.subr.bf16.mxu0 0
    %7206 = vmatpush1.bf16.msra.mxu0 0
    %7207 = vmatprep.subr.bf16.mxu0 0
    %7208 = vmatpush1.bf16.msra.mxu0 0
    %7209 = vmatprep.subr.bf16.mxu0 0
    %7210 = vmatpush1.bf16.msra.mxu0 0
    %7211 = vmatprep.subr.bf16.mxu0 0
    %7212 = vmatpush1.bf16.msra.mxu0 0
    %7213 = vmatprep.subr.bf16.mxu0 0
    %7214 = vmatpush1.bf16.msra.mxu0 0
    %7215 = vmatprep.subr.bf16.mxu0 0
    %7216 = vmatpush1.bf16.msra.mxu0 0
    %7217 = vmatprep.subr.bf16.mxu0 0
    %7218 = vmatpush1.bf16.msra.mxu0 0
    %7219 = vmatprep.mubr.bf16.mxu0 0
    %7220 = vmatmul.mubr.bf16.gmra.mrb[0].mxu0 %v3216
    %v7221 = vpop.f32.mrb[0].mxu0
    %v7222 = vadd.f32 0.0, %v7221
    %v7223 = vpop.f32.mrb[0].mxu0
    %v7224 = vpop.f32.mrb[0].mxu0
    %v7225 = vadd.f32 0.0, %v7224
    %v7226 = vpop.f32.mrb[0].mxu0
    %7227 = vmatprep.mubr.bf16.mxu0 0
    %7228 = vmatmul.mubr.bf16.gmra.mrb[0].mxu0 %v3217
    %v7229 = vpop.f32.mrb[0].mxu0
    %v7230 = vadd.f32 0.0, %v7229
    %v7231 = vpop.f32.mrb[0].mxu0
    %v7232 = vpop.f32.mrb[0].mxu0
    %v7233 = vadd.f32 0.0, %v7232
    %v7234 = vpop.f32.mrb[0].mxu0
    %7235 = vmatprep.mubr.bf16.mxu0 0
    %7236 = vmatmul.mubr.bf16.gmra.mrb[0].mxu0 %v5248
    %v7237 = vpop.f32.mrb[0].mxu0
    %v7238 = vadd.f32 0.0, %v7237
    %v7239 = vpop.f32.mrb[0].mxu0
    %v7240 = vpop.f32.mrb[0].mxu0
    %v7241 = vadd.f32 0.0, %v7240
    %v7242 = vpop.f32.mrb[0].mxu0
    %7243 = vmatprep.mubr.bf16.mxu0 0
    %7244 = vmatmul.mubr.bf16.gmra.mrb[0].mxu0 %v7120
    %v7245 = vpop.f32.mrb[0].mxu0
    %v7246 = vadd.f32 0.0, %v7245
    %v7247 = vpop.f32.mrb[0].mxu0
    %v7248 = vpop.f32.mrb[0].mxu0
    %v7249 = vadd.f32 0.0, %v7248
    %v7250 = vpop.f32.mrb[0].mxu0
    %7251 = vmatprep.mubr.bf16.mxu0 0
    %7252 = vmatmul.mubr.bf16.gmra.mrb[0].mxu0 %v3220
    %v7253 = vpop.f32.mrb[0].mxu0
    %v7254 = vadd.f32 0.0, %v7253
    %v7255 = vpop.f32.mrb[0].mxu0
    %v7256 = vpop.f32.mrb[0].mxu0
    %v7257 = vadd.f32 0.0, %v7256
    %v7258 = vpop.f32.mrb[0].mxu0
    %7259 = vmatprep.mubr.bf16.mxu0 0
    %7260 = vmatmul.mubr.bf16.gmra.mrb[0].mxu0 %v3221
    %v7261 = vpop.f32.mrb[0].mxu0
    %v7262 = vadd.f32 0.0, %v7261
    %v7263 = vpop.f32.mrb[0].mxu0
    %v7264 = vpop.f32.mrb[0].mxu0
    %v7265 = vadd.f32 0.0, %v7264
    %v7266 = vpop.f32.mrb[0].mxu0
    %7267 = vmatprep.mubr.bf16.mxu0 0
    %7268 = vmatmul.mubr.bf16.gmra.mrb[0].mxu0 %v5249
    %v7269 = vpop.f32.mrb[0].mxu0
    %v7270 = vadd.f32 0.0, %v7269
    %v7271 = vpop.f32.mrb[0].mxu0
    %v7272 = vpop.f32.mrb[0].mxu0
    %v7273 = vadd.f32 0.0, %v7272
    %v7274 = vpop.f32.mrb[0].mxu0
    %7275 = vmatprep.mubr.bf16.mxu0 0
    %7276 = vmatmul.mubr.bf16.gmra.mrb[0].mxu0 %v7121
    %v7277 = vpop.f32.mrb[0].mxu0
    %v7278 = vadd.f32 0.0, %v7277
    %v7279 = vpop.f32.mrb[0].mxu0
    %v7280 = vpop.f32.mrb[0].mxu0
    %v7281 = vadd.f32 0.0, %v7280
    %v7282 = vpop.f32.mrb[0].mxu0
    %7283 = vdwg.mxu0
    %v7284 = vadd.f32 %v7096, %v7222
    %v7285 = vadd.f32 %v7097, %v7225
    %v7286 = vadd.f32 %v7098, %v7230
    %v7287 = vadd.f32 %v7099, %v7233
    %v7288 = vadd.f32 %v7100, %v7238
    %v7289 = vadd.f32 %v7101, %v7241
    %v7290 = vadd.f32 %v7102, %v7246
    %v7291 = vadd.f32 %v7103, %v7249
    %v7292 = vadd.f32 %v7104, %v7254
    %v7293 = vadd.f32 %v7105, %v7257
    %v7294 = vadd.f32 %v7106, %v7262
    %v7295 = vadd.f32 %v7107, %v7265
    %v7296 = vadd.f32 %v7108, %v7270
    %v7297 = vadd.f32 %v7109, %v7273
    %v7298 = vadd.f32 %v7110, %v7278
    %v7299 = vadd.f32 %v7111, %v7281
    %v7300 = vrot.slane %v2647, 3
    %v7301 = vrot.slane %v2648, 3
    %v7302 = vsel %vm3400, %v7300, %v7301
    %v7303 = vrot.slane %v2671, 3
    %v7304 = vrot.slane %v2672, 3
    %v7305 = vsel %vm3400, %v7303, %v7304
    %v7308 = vpack.c.bf16 %v7302, %v6366
    %v7309 = vpack.c.bf16 %v7305, %v6369
    %s7310 = scalar_lea.vmem %s3, 1472
    %v7311 = vld [vmem:[%s7310] sm:$0xf]
    %v7312 = vld [vmem:[%s7310 + $0x4] sm:$0xf]
    %v7313 = vld [vmem:[%s7310 + $0x8] sm:$0xf]
    %v7314 = vld [vmem:[%s7310 + $0xc] sm:$0xf]
    %v7315 = vld [vmem:[%s7310 + $0x10] sm:$0xf]
    %v7316 = vld [vmem:[%s7310 + $0x14] sm:$0xf]
    %v7317 = vld [vmem:[%s7310 + $0x18] sm:$0xf]
    %v7318 = vld [vmem:[%s7310 + $0x1c] sm:$0xf]
    %v7319 = vld [vmem:[%s7310 + $0x20] sm:$0xf]
    %v7320 = vld [vmem:[%s7310 + $0x24] sm:$0xf]
    %v7321 = vld [vmem:[%s7310 + $0x28] sm:$0xf]
    %v7322 = vld [vmem:[%s7310 + $0x2c] sm:$0xf]
    %v7323 = vld [vmem:[%s7310 + $0x30] sm:$0xf]
    %v7324 = vld [vmem:[%s7310 + $0x34] sm:$0xf]
    %v7325 = vld [vmem:[%s7310 + $0x38] sm:$0xf]
    %v7326 = vld [vmem:[%s7310 + $0x3c] sm:$0xf]
    %v7343 = vunpack.c.l.b16 %v7311
    %v7344 = vunpack.c.l.b16 %v7312
    %v7345 = vunpack.c.l.b16 %v7313
    %v7346 = vunpack.c.l.b16 %v7314
    %v7347 = vunpack.c.l.b16 %v7315
    %v7348 = vunpack.c.l.b16 %v7316
    %v7349 = vunpack.c.l.b16 %v7317
    %v7350 = vunpack.c.l.b16 %v7318
    %v7351 = vunpack.c.l.b16 %v7319
    %v7352 = vunpack.c.l.b16 %v7320
    %v7353 = vunpack.c.l.b16 %v7321
    %v7354 = vunpack.c.l.b16 %v7322
    %v7355 = vunpack.c.l.b16 %v7323
    %v7356 = vunpack.c.l.b16 %v7324
    %v7357 = vunpack.c.l.b16 %v7325
    %v7358 = vunpack.c.l.b16 %v7326
    %v7359 = vpack.c.b16 %v7344, %v7343
    %v7360 = vpack.c.b16 %v7346, %v7345
    %v7361 = vpack.c.b16 %v7348, %v7347
    %v7362 = vpack.c.b16 %v7350, %v7349
    %v7363 = vpack.c.b16 %v7352, %v7351
    %v7364 = vpack.c.b16 %v7354, %v7353
    %v7365 = vpack.c.b16 %v7356, %v7355
    %v7366 = vpack.c.b16 %v7358, %v7357
    %7375 = vmatprep.subr.bf16.mxu0 0
    %7376 = vmatpush1.bf16.msra.mxu0 %v7359
    %7377 = vmatprep.subr.bf16.mxu0 0
    %7378 = vmatpush1.bf16.msra.mxu0 %v7360
    %7379 = vmatprep.subr.bf16.mxu0 0
    %7380 = vmatpush1.bf16.msra.mxu0 %v7361
    %7381 = vmatprep.subr.bf16.mxu0 0
    %7382 = vmatpush1.bf16.msra.mxu0 %v7362
    %7383 = vmatprep.subr.bf16.mxu0 0
    %7384 = vmatpush1.bf16.msra.mxu0 %v7363
    %7385 = vmatprep.subr.bf16.mxu0 0
    %7386 = vmatpush1.bf16.msra.mxu0 %v7364
    %7387 = vmatprep.subr.bf16.mxu0 0
    %7388 = vmatpush1.bf16.msra.mxu0 %v7365
    %7389 = vmatprep.subr.bf16.mxu0 0
    %7390 = vmatpush1.bf16.msra.mxu0 %v7366
    %7391 = vmatprep.subr.bf16.mxu0 0
    %7392 = vmatpush1.bf16.msra.mxu0 0
    %7393 = vmatprep.subr.bf16.mxu0 0
    %7394 = vmatpush1.bf16.msra.mxu0 0
    %7395 = vmatprep.subr.bf16.mxu0 0
    %7396 = vmatpush1.bf16.msra.mxu0 0
    %7397 = vmatprep.subr.bf16.mxu0 0
    %7398 = vmatpush1.bf16.msra.mxu0 0
    %7399 = vmatprep.subr.bf16.mxu0 0
    %7400 = vmatpush1.bf16.msra.mxu0 0
    %7401 = vmatprep.subr.bf16.mxu0 0
    %7402 = vmatpush1.bf16.msra.mxu0 0
    %7403 = vmatprep.subr.bf16.mxu0 0
    %7404 = vmatpush1.bf16.msra.mxu0 0
    %7405 = vmatprep.subr.bf16.mxu0 0
    %7406 = vmatpush1.bf16.msra.mxu0 0
    %7407 = vmatprep.mubr.bf16.mxu0 0
    %7408 = vmatmul.mubr.bf16.gmra.mrb[0].mxu0 %v3467
    %v7409 = vpop.f32.mrb[0].mxu0
    %v7410 = vadd.f32 0.0, %v7409
    %v7411 = vpop.f32.mrb[0].mxu0
    %v7412 = vpop.f32.mrb[0].mxu0
    %v7413 = vadd.f32 0.0, %v7412
    %v7414 = vpop.f32.mrb[0].mxu0
    %7415 = vmatprep.mubr.bf16.mxu0 0
    %7416 = vmatmul.mubr.bf16.gmra.mrb[0].mxu0 %v3468
    %v7417 = vpop.f32.mrb[0].mxu0
    %v7418 = vadd.f32 0.0, %v7417
    %v7419 = vpop.f32.mrb[0].mxu0
    %v7420 = vpop.f32.mrb[0].mxu0
    %v7421 = vadd.f32 0.0, %v7420
    %v7422 = vpop.f32.mrb[0].mxu0
    %7423 = vmatprep.mubr.bf16.mxu0 0
    %7424 = vmatmul.mubr.bf16.gmra.mrb[0].mxu0 %v5436
    %v7425 = vpop.f32.mrb[0].mxu0
    %v7426 = vadd.f32 0.0, %v7425
    %v7427 = vpop.f32.mrb[0].mxu0
    %v7428 = vpop.f32.mrb[0].mxu0
    %v7429 = vadd.f32 0.0, %v7428
    %v7430 = vpop.f32.mrb[0].mxu0
    %7431 = vmatprep.mubr.bf16.mxu0 0
    %7432 = vmatmul.mubr.bf16.gmra.mrb[0].mxu0 %v7308
    %v7433 = vpop.f32.mrb[0].mxu0
    %v7434 = vadd.f32 0.0, %v7433
    %v7435 = vpop.f32.mrb[0].mxu0
    %v7436 = vpop.f32.mrb[0].mxu0
    %v7437 = vadd.f32 0.0, %v7436
    %v7438 = vpop.f32.mrb[0].mxu0
    %7439 = vmatprep.mubr.bf16.mxu0 0
    %7440 = vmatmul.mubr.bf16.gmra.mrb[0].mxu0 %v3471
    %v7441 = vpop.f32.mrb[0].mxu0
    %v7442 = vadd.f32 0.0, %v7441
    %v7443 = vpop.f32.mrb[0].mxu0
    %v7444 = vpop.f32.mrb[0].mxu0
    %v7445 = vadd.f32 0.0, %v7444
    %v7446 = vpop.f32.mrb[0].mxu0
    %7447 = vmatprep.mubr.bf16.mxu0 0
    %7448 = vmatmul.mubr.bf16.gmra.mrb[0].mxu0 %v3472
    %v7449 = vpop.f32.mrb[0].mxu0
    %v7450 = vadd.f32 0.0, %v7449
    %v7451 = vpop.f32.mrb[0].mxu0
    %v7452 = vpop.f32.mrb[0].mxu0
    %v7453 = vadd.f32 0.0, %v7452
    %v7454 = vpop.f32.mrb[0].mxu0
    %7455 = vmatprep.mubr.bf16.mxu0 0
    %7456 = vmatmul.mubr.bf16.gmra.mrb[0].mxu0 %v5437
    %v7457 = vpop.f32.mrb[0].mxu0
    %v7458 = vadd.f32 0.0, %v7457
    %v7459 = vpop.f32.mrb[0].mxu0
    %v7460 = vpop.f32.mrb[0].mxu0
    %v7461 = vadd.f32 0.0, %v7460
    %v7462 = vpop.f32.mrb[0].mxu0
    %7463 = vmatprep.mubr.bf16.mxu0 0
    %7464 = vmatmul.mubr.bf16.gmra.mrb[0].mxu0 %v7309
    %v7465 = vpop.f32.mrb[0].mxu0
    %v7466 = vadd.f32 0.0, %v7465
    %v7467 = vpop.f32.mrb[0].mxu0
    %v7468 = vpop.f32.mrb[0].mxu0
    %v7469 = vadd.f32 0.0, %v7468
    %v7470 = vpop.f32.mrb[0].mxu0
    %7471 = vdwg.mxu0
    %v7472 = vadd.f32 %v7284, %v7410
    %v7473 = vadd.f32 %v7285, %v7413
    %v7474 = vadd.f32 %v7286, %v7418
    %v7475 = vadd.f32 %v7287, %v7421
    %v7476 = vadd.f32 %v7288, %v7426
    %v7477 = vadd.f32 %v7289, %v7429
    %v7478 = vadd.f32 %v7290, %v7434
    %v7479 = vadd.f32 %v7291, %v7437
    %v7480 = vadd.f32 %v7292, %v7442
    %v7481 = vadd.f32 %v7293, %v7445
    %v7482 = vadd.f32 %v7294, %v7450
    %v7483 = vadd.f32 %v7295, %v7453
    %v7484 = vadd.f32 %v7296, %v7458
    %v7485 = vadd.f32 %v7297, %v7461
    %v7486 = vadd.f32 %v7298, %v7466
    %v7487 = vadd.f32 %v7299, %v7469
    %v7488 = vrot.slane %v2647, 4
    %v7489 = vrot.slane %v2648, 4
    %v7490 = vsel %vm3651, %v7488, %v7489
    %v7491 = vrot.slane %v2671, 4
    %v7492 = vrot.slane %v2672, 4
    %v7493 = vsel %vm3651, %v7491, %v7492
    %v7496 = vpack.c.bf16 %v7490, %v6554
    %v7497 = vpack.c.bf16 %v7493, %v6557
    %s7498 = scalar_lea.vmem %s3, 1536
    %v7499 = vld [vmem:[%s7498] sm:$0xf]
    %v7500 = vld [vmem:[%s7498 + $0x4] sm:$0xf]
    %v7501 = vld [vmem:[%s7498 + $0x8] sm:$0xf]
    %v7502 = vld [vmem:[%s7498 + $0xc] sm:$0xf]
    %v7503 = vld [vmem:[%s7498 + $0x10] sm:$0xf]
    %v7504 = vld [vmem:[%s7498 + $0x14] sm:$0xf]
    %v7505 = vld [vmem:[%s7498 + $0x18] sm:$0xf]
    %v7506 = vld [vmem:[%s7498 + $0x1c] sm:$0xf]
    %v7507 = vld [vmem:[%s7498 + $0x20] sm:$0xf]
    %v7508 = vld [vmem:[%s7498 + $0x24] sm:$0xf]
    %v7509 = vld [vmem:[%s7498 + $0x28] sm:$0xf]
    %v7510 = vld [vmem:[%s7498 + $0x2c] sm:$0xf]
    %v7511 = vld [vmem:[%s7498 + $0x30] sm:$0xf]
    %v7512 = vld [vmem:[%s7498 + $0x34] sm:$0xf]
    %v7513 = vld [vmem:[%s7498 + $0x38] sm:$0xf]
    %v7514 = vld [vmem:[%s7498 + $0x3c] sm:$0xf]
    %v7531 = vunpack.c.l.b16 %v7499
    %v7532 = vunpack.c.l.b16 %v7500
    %v7533 = vunpack.c.l.b16 %v7501
    %v7534 = vunpack.c.l.b16 %v7502
    %v7535 = vunpack.c.l.b16 %v7503
    %v7536 = vunpack.c.l.b16 %v7504
    %v7537 = vunpack.c.l.b16 %v7505
    %v7538 = vunpack.c.l.b16 %v7506
    %v7539 = vunpack.c.l.b16 %v7507
    %v7540 = vunpack.c.l.b16 %v7508
    %v7541 = vunpack.c.l.b16 %v7509
    %v7542 = vunpack.c.l.b16 %v7510
    %v7543 = vunpack.c.l.b16 %v7511
    %v7544 = vunpack.c.l.b16 %v7512
    %v7545 = vunpack.c.l.b16 %v7513
    %v7546 = vunpack.c.l.b16 %v7514
    %v7547 = vpack.c.b16 %v7532, %v7531
    %v7548 = vpack.c.b16 %v7534, %v7533
    %v7549 = vpack.c.b16 %v7536, %v7535
    %v7550 = vpack.c.b16 %v7538, %v7537
    %v7551 = vpack.c.b16 %v7540, %v7539
    %v7552 = vpack.c.b16 %v7542, %v7541
    %v7553 = vpack.c.b16 %v7544, %v7543
    %v7554 = vpack.c.b16 %v7546, %v7545
    %7563 = vmatprep.subr.bf16.mxu0 0
    %7564 = vmatpush1.bf16.msra.mxu0 %v7547
    %7565 = vmatprep.subr.bf16.mxu0 0
    %7566 = vmatpush1.bf16.msra.mxu0 %v7548
    %7567 = vmatprep.subr.bf16.mxu0 0
    %7568 = vmatpush1.bf16.msra.mxu0 %v7549
    %7569 = vmatprep.subr.bf16.mxu0 0
    %7570 = vmatpush1.bf16.msra.mxu0 %v7550
    %7571 = vmatprep.subr.bf16.mxu0 0
    %7572 = vmatpush1.bf16.msra.mxu0 %v7551
    %7573 = vmatprep.subr.bf16.mxu0 0
    %7574 = vmatpush1.bf16.msra.mxu0 %v7552
    %7575 = vmatprep.subr.bf16.mxu0 0
    %7576 = vmatpush1.bf16.msra.mxu0 %v7553
    %7577 = vmatprep.subr.bf16.mxu0 0
    %7578 = vmatpush1.bf16.msra.mxu0 %v7554
    %7579 = vmatprep.subr.bf16.mxu0 0
    %7580 = vmatpush1.bf16.msra.mxu0 0
    %7581 = vmatprep.subr.bf16.mxu0 0
    %7582 = vmatpush1.bf16.msra.mxu0 0
    %7583 = vmatprep.subr.bf16.mxu0 0
    %7584 = vmatpush1.bf16.msra.mxu0 0
    %7585 = vmatprep.subr.bf16.mxu0 0
    %7586 = vmatpush1.bf16.msra.mxu0 0
    %7587 = vmatprep.subr.bf16.mxu0 0
    %7588 = vmatpush1.bf16.msra.mxu0 0
    %7589 = vmatprep.subr.bf16.mxu0 0
    %7590 = vmatpush1.bf16.msra.mxu0 0
    %7591 = vmatprep.subr.bf16.mxu0 0
    %7592 = vmatpush1.bf16.msra.mxu0 0
    %7593 = vmatprep.subr.bf16.mxu0 0
    %7594 = vmatpush1.bf16.msra.mxu0 0
    %7595 = vmatprep.mubr.bf16.mxu0 0
    %7596 = vmatmul.mubr.bf16.gmra.mrb[0].mxu0 %v3718
    %v7597 = vpop.f32.mrb[0].mxu0
    %v7598 = vadd.f32 0.0, %v7597
    %v7599 = vpop.f32.mrb[0].mxu0
    %v7600 = vpop.f32.mrb[0].mxu0
    %v7601 = vadd.f32 0.0, %v7600
    %v7602 = vpop.f32.mrb[0].mxu0
    %7603 = vmatprep.mubr.bf16.mxu0 0
    %7604 = vmatmul.mubr.bf16.gmra.mrb[0].mxu0 %v3719
    %v7605 = vpop.f32.mrb[0].mxu0
    %v7606 = vadd.f32 0.0, %v7605
    %v7607 = vpop.f32.mrb[0].mxu0
    %v7608 = vpop.f32.mrb[0].mxu0
    %v7609 = vadd.f32 0.0, %v7608
    %v7610 = vpop.f32.mrb[0].mxu0
    %7611 = vmatprep.mubr.bf16.mxu0 0
    %7612 = vmatmul.mubr.bf16.gmra.mrb[0].mxu0 %v5624
    %v7613 = vpop.f32.mrb[0].mxu0
    %v7614 = vadd.f32 0.0, %v7613
    %v7615 = vpop.f32.mrb[0].mxu0
    %v7616 = vpop.f32.mrb[0].mxu0
    %v7617 = vadd.f32 0.0, %v7616
    %v7618 = vpop.f32.mrb[0].mxu0
    %7619 = vmatprep.mubr.bf16.mxu0 0
    %7620 = vmatmul.mubr.bf16.gmra.mrb[0].mxu0 %v7496
    %v7621 = vpop.f32.mrb[0].mxu0
    %v7622 = vadd.f32 0.0, %v7621
    %v7623 = vpop.f32.mrb[0].mxu0
    %v7624 = vpop.f32.mrb[0].mxu0
    %v7625 = vadd.f32 0.0, %v7624
    %v7626 = vpop.f32.mrb[0].mxu0
    %7627 = vmatprep.mubr.bf16.mxu0 0
    %7628 = vmatmul.mubr.bf16.gmra.mrb[0].mxu0 %v3722
    %v7629 = vpop.f32.mrb[0].mxu0
    %v7630 = vadd.f32 0.0, %v7629
    %v7631 = vpop.f32.mrb[0].mxu0
    %v7632 = vpop.f32.mrb[0].mxu0
    %v7633 = vadd.f32 0.0, %v7632
    %v7634 = vpop.f32.mrb[0].mxu0
    %7635 = vmatprep.mubr.bf16.mxu0 0
    %7636 = vmatmul.mubr.bf16.gmra.mrb[0].mxu0 %v3723
    %v7637 = vpop.f32.mrb[0].mxu0
    %v7638 = vadd.f32 0.0, %v7637
    %v7639 = vpop.f32.mrb[0].mxu0
    %v7640 = vpop.f32.mrb[0].mxu0
    %v7641 = vadd.f32 0.0, %v7640
    %v7642 = vpop.f32.mrb[0].mxu0
    %7643 = vmatprep.mubr.bf16.mxu0 0
    %7644 = vmatmul.mubr.bf16.gmra.mrb[0].mxu0 %v5625
    %v7645 = vpop.f32.mrb[0].mxu0
    %v7646 = vadd.f32 0.0, %v7645
    %v7647 = vpop.f32.mrb[0].mxu0
    %v7648 = vpop.f32.mrb[0].mxu0
    %v7649 = vadd.f32 0.0, %v7648
    %v7650 = vpop.f32.mrb[0].mxu0
    %7651 = vmatprep.mubr.bf16.mxu0 0
    %7652 = vmatmul.mubr.bf16.gmra.mrb[0].mxu0 %v7497
    %v7653 = vpop.f32.mrb[0].mxu0
    %v7654 = vadd.f32 0.0, %v7653
    %v7655 = vpop.f32.mrb[0].mxu0
    %v7656 = vpop.f32.mrb[0].mxu0
    %v7657 = vadd.f32 0.0, %v7656
    %v7658 = vpop.f32.mrb[0].mxu0
    %7659 = vdwg.mxu0
    %v7660 = vadd.f32 %v7472, %v7598
    %v7661 = vadd.f32 %v7473, %v7601
    %v7662 = vadd.f32 %v7474, %v7606
    %v7663 = vadd.f32 %v7475, %v7609
    %v7664 = vadd.f32 %v7476, %v7614
    %v7665 = vadd.f32 %v7477, %v7617
    %v7666 = vadd.f32 %v7478, %v7622
    %v7667 = vadd.f32 %v7479, %v7625
    %v7668 = vadd.f32 %v7480, %v7630
    %v7669 = vadd.f32 %v7481, %v7633
    %v7670 = vadd.f32 %v7482, %v7638
    %v7671 = vadd.f32 %v7483, %v7641
    %v7672 = vadd.f32 %v7484, %v7646
    %v7673 = vadd.f32 %v7485, %v7649
    %v7674 = vadd.f32 %v7486, %v7654
    %v7675 = vadd.f32 %v7487, %v7657
    %v7676 = vld [vmem:[%s6] sm:$0x1]
    %v7678 = vlaneseq
    %v7679 = vshrl.u32 %v7678, 7
    %v7680 = vsub.s32 0, %v7679
    %v7681 = vrot.slane %v7676, %v7680
    %v7683 = vadd.f32 %v7681, 0.0
    %v7686 = vrot.slane %v7660, 1
    %v7687 = vrot.slane %v7668, 1
    %v7690 = vmax.f32 %v7660, %v7686
    %v7691 = vmax.f32 %v7668, %v7687
    %v7694 = vrot.slane %v7661, 1
    %v7695 = vrot.slane %v7669, 1
    %v7698 = vmax.f32 %v7661, %v7694
    %v7699 = vmax.f32 %v7669, %v7695
    %v7700 = vmax.f32 %v7690, %v7698
    %v7701 = vmax.f32 %v7691, %v7699
    %v7702 = vmax.f32 %v7700, 0.0
    %v7703 = vmax.f32 %v7701, 0.0
    %v7704 = vpack.c.bf16 %v7702, %v7702
    %v7705 = vpack.c.bf16 %v7703, %v7703
    %v7706 = vld [vmem:[%s5] sm:$0xf]
    %v7707 = vld [vmem:[%s5 + $0x4] sm:$0xf]
    %v7708 = vld [vmem:[%s5 + $0x8] sm:$0xf]
    %v7709 = vld [vmem:[%s5 + $0xc] sm:$0xf]
    %v7710 = vld [vmem:[%s5 + $0x10] sm:$0xf]
    %v7711 = vld [vmem:[%s5 + $0x14] sm:$0xf]
    %v7712 = vld [vmem:[%s5 + $0x18] sm:$0xf]
    %v7713 = vld [vmem:[%s5 + $0x1c] sm:$0xf]
    %v7714 = vld [vmem:[%s5 + $0x20] sm:$0xf]
    %v7715 = vld [vmem:[%s5 + $0x24] sm:$0xf]
    %v7716 = vld [vmem:[%s5 + $0x28] sm:$0xf]
    %v7717 = vld [vmem:[%s5 + $0x2c] sm:$0xf]
    %v7718 = vld [vmem:[%s5 + $0x30] sm:$0xf]
    %v7719 = vld [vmem:[%s5 + $0x34] sm:$0xf]
    %v7720 = vld [vmem:[%s5 + $0x38] sm:$0xf]
    %v7721 = vld [vmem:[%s5 + $0x3c] sm:$0xf]
    %v7724 = vunpack.c.l.b16 %v7704
    %v7725 = vunpack.c.l.b16 %v7705
    %v7726 = vrot.slane %v7725, 7
    %vm7727 = vcmask 1041409
    %v7728 = vsel %vm7727, %v7726, %v7724
    %v7729 = vpack.c.b16 %v7728, %v7728
    %v7747 = vunpack.c.l.b16 %v7706
    %v7748 = vunpack.c.l.b16 %v7707
    %v7749 = vunpack.c.l.b16 %v7708
    %v7750 = vunpack.c.l.b16 %v7709
    %v7751 = vunpack.c.l.b16 %v7710
    %v7752 = vunpack.c.l.b16 %v7711
    %v7753 = vunpack.c.l.b16 %v7712
    %v7754 = vunpack.c.l.b16 %v7713
    %v7755 = vunpack.c.l.b16 %v7714
    %v7756 = vunpack.c.l.b16 %v7715
    %v7757 = vunpack.c.l.b16 %v7716
    %v7758 = vunpack.c.l.b16 %v7717
    %v7759 = vunpack.c.l.b16 %v7718
    %v7760 = vunpack.c.l.b16 %v7719
    %v7761 = vunpack.c.l.b16 %v7720
    %v7762 = vunpack.c.l.b16 %v7721
    %v7763 = vpack.c.b16 %v7748, %v7747
    %v7764 = vpack.c.b16 %v7750, %v7749
    %v7765 = vpack.c.b16 %v7752, %v7751
    %v7766 = vpack.c.b16 %v7754, %v7753
    %v7767 = vpack.c.b16 %v7756, %v7755
    %v7768 = vpack.c.b16 %v7758, %v7757
    %v7769 = vpack.c.b16 %v7760, %v7759
    %v7770 = vpack.c.b16 %v7762, %v7761
    %7779 = vmatprep.subr.bf16.mxu0 0
    %7780 = vmatpush1.bf16.msra.mxu0 %v7763
    %7781 = vmatprep.subr.bf16.mxu0 0
    %7782 = vmatpush1.bf16.msra.mxu0 %v7764
    %7783 = vmatprep.subr.bf16.mxu0 0
    %7784 = vmatpush1.bf16.msra.mxu0 %v7765
    %7785 = vmatprep.subr.bf16.mxu0 0
    %7786 = vmatpush1.bf16.msra.mxu0 %v7766
    %7787 = vmatprep.subr.bf16.mxu0 0
    %7788 = vmatpush1.bf16.msra.mxu0 %v7767
    %7789 = vmatprep.subr.bf16.mxu0 0
    %7790 = vmatpush1.bf16.msra.mxu0 %v7768
    %7791 = vmatprep.subr.bf16.mxu0 0
    %7792 = vmatpush1.bf16.msra.mxu0 %v7769
    %7793 = vmatprep.subr.bf16.mxu0 0
    %7794 = vmatpush1.bf16.msra.mxu0 %v7770
    %7795 = vmatprep.subr.bf16.mxu0 0
    %7796 = vmatpush1.bf16.msra.mxu0 0
    %7797 = vmatprep.subr.bf16.mxu0 0
    %7798 = vmatpush1.bf16.msra.mxu0 0
    %7799 = vmatprep.subr.bf16.mxu0 0
    %7800 = vmatpush1.bf16.msra.mxu0 0
    %7801 = vmatprep.subr.bf16.mxu0 0
    %7802 = vmatpush1.bf16.msra.mxu0 0
    %7803 = vmatprep.subr.bf16.mxu0 0
    %7804 = vmatpush1.bf16.msra.mxu0 0
    %7805 = vmatprep.subr.bf16.mxu0 0
    %7806 = vmatpush1.bf16.msra.mxu0 0
    %7807 = vmatprep.subr.bf16.mxu0 0
    %7808 = vmatpush1.bf16.msra.mxu0 0
    %7809 = vmatprep.subr.bf16.mxu0 0
    %7810 = vmatpush1.bf16.msra.mxu0 0
    %7811 = vmatprep.mubr.bf16.mxu0 0
    %7812 = vmatmul.mubr.bf16.gmra.mrb[0].mxu0 %v7729
    %v7813 = vpop.f32.mrb[0].mxu0
    %v7814 = vadd.f32 0.0, %v7813
    %v7815 = vpop.f32.mrb[0].mxu0
    %v7816 = vpop.f32.mrb[0].mxu0
    %v7817 = vpop.f32.mrb[0].mxu0
    %7818 = vdwg.mxu0
    %v7819 = vadd.f32 %v7683, %v7814
    %s7820 = scalar_lea.vmem %s5, 64
    %v7821 = vld [vmem:[%s7820] sm:$0xf]
    %v7822 = vld [vmem:[%s7820 + $0x4] sm:$0xf]
    %v7823 = vld [vmem:[%s7820 + $0x8] sm:$0xf]
    %v7824 = vld [vmem:[%s7820 + $0xc] sm:$0xf]
    %v7825 = vld [vmem:[%s7820 + $0x10] sm:$0xf]
    %v7826 = vld [vmem:[%s7820 + $0x14] sm:$0xf]
    %v7827 = vld [vmem:[%s7820 + $0x18] sm:$0xf]
    %v7828 = vld [vmem:[%s7820 + $0x1c] sm:$0xf]
    %v7829 = vld [vmem:[%s7820 + $0x20] sm:$0xf]
    %v7830 = vld [vmem:[%s7820 + $0x24] sm:$0xf]
    %v7831 = vld [vmem:[%s7820 + $0x28] sm:$0xf]
    %v7832 = vld [vmem:[%s7820 + $0x2c] sm:$0xf]
    %v7833 = vld [vmem:[%s7820 + $0x30] sm:$0xf]
    %v7834 = vld [vmem:[%s7820 + $0x34] sm:$0xf]
    %v7835 = vld [vmem:[%s7820 + $0x38] sm:$0xf]
    %v7836 = vld [vmem:[%s7820 + $0x3c] sm:$0xf]
    %v7837 = vrot.slane %v7724, 2
    %v7838 = vrot.slane %v7725, 1
    %v7839 = vsel %vm7727, %v7838, %v7837
    %v7840 = vpack.c.b16 %v7839, %v7839
    %v7858 = vunpack.c.l.b16 %v7821
    %v7859 = vunpack.c.l.b16 %v7822
    %v7860 = vunpack.c.l.b16 %v7823
    %v7861 = vunpack.c.l.b16 %v7824
    %v7862 = vunpack.c.l.b16 %v7825
    %v7863 = vunpack.c.l.b16 %v7826
    %v7864 = vunpack.c.l.b16 %v7827
    %v7865 = vunpack.c.l.b16 %v7828
    %v7866 = vunpack.c.l.b16 %v7829
    %v7867 = vunpack.c.l.b16 %v7830
    %v7868 = vunpack.c.l.b16 %v7831
    %v7869 = vunpack.c.l.b16 %v7832
    %v7870 = vunpack.c.l.b16 %v7833
    %v7871 = vunpack.c.l.b16 %v7834
    %v7872 = vunpack.c.l.b16 %v7835
    %v7873 = vunpack.c.l.b16 %v7836
    %v7874 = vpack.c.b16 %v7859, %v7858
    %v7875 = vpack.c.b16 %v7861, %v7860
    %v7876 = vpack.c.b16 %v7863, %v7862
    %v7877 = vpack.c.b16 %v7865, %v7864
    %v7878 = vpack.c.b16 %v7867, %v7866
    %v7879 = vpack.c.b16 %v7869, %v7868
    %v7880 = vpack.c.b16 %v7871, %v7870
    %v7881 = vpack.c.b16 %v7873, %v7872
    %7890 = vmatprep.subr.bf16.mxu0 0
    %7891 = vmatpush1.bf16.msra.mxu0 %v7874
    %7892 = vmatprep.subr.bf16.mxu0 0
    %7893 = vmatpush1.bf16.msra.mxu0 %v7875
    %7894 = vmatprep.subr.bf16.mxu0 0
    %7895 = vmatpush1.bf16.msra.mxu0 %v7876
    %7896 = vmatprep.subr.bf16.mxu0 0
    %7897 = vmatpush1.bf16.msra.mxu0 %v7877
    %7898 = vmatprep.subr.bf16.mxu0 0
    %7899 = vmatpush1.bf16.msra.mxu0 %v7878
    %7900 = vmatprep.subr.bf16.mxu0 0
    %7901 = vmatpush1.bf16.msra.mxu0 %v7879
    %7902 = vmatprep.subr.bf16.mxu0 0
    %7903 = vmatpush1.bf16.msra.mxu0 %v7880
    %7904 = vmatprep.subr.bf16.mxu0 0
    %7905 = vmatpush1.bf16.msra.mxu0 %v7881
    %7906 = vmatprep.subr.bf16.mxu0 0
    %7907 = vmatpush1.bf16.msra.mxu0 0
    %7908 = vmatprep.subr.bf16.mxu0 0
    %7909 = vmatpush1.bf16.msra.mxu0 0
    %7910 = vmatprep.subr.bf16.mxu0 0
    %7911 = vmatpush1.bf16.msra.mxu0 0
    %7912 = vmatprep.subr.bf16.mxu0 0
    %7913 = vmatpush1.bf16.msra.mxu0 0
    %7914 = vmatprep.subr.bf16.mxu0 0
    %7915 = vmatpush1.bf16.msra.mxu0 0
    %7916 = vmatprep.subr.bf16.mxu0 0
    %7917 = vmatpush1.bf16.msra.mxu0 0
    %7918 = vmatprep.subr.bf16.mxu0 0
    %7919 = vmatpush1.bf16.msra.mxu0 0
    %7920 = vmatprep.subr.bf16.mxu0 0
    %7921 = vmatpush1.bf16.msra.mxu0 0
    %7922 = vmatprep.mubr.bf16.mxu0 0
    %7923 = vmatmul.mubr.bf16.gmra.mrb[0].mxu0 %v7840
    %v7924 = vpop.f32.mrb[0].mxu0
    %v7925 = vadd.f32 0.0, %v7924
    %v7926 = vpop.f32.mrb[0].mxu0
    %v7927 = vpop.f32.mrb[0].mxu0
    %v7928 = vpop.f32.mrb[0].mxu0
    %7929 = vdwg.mxu0
    %v7930 = vadd.f32 %v7819, %v7925
    %s7931 = scalar_lea.vmem %s5, 128
    %v7932 = vld [vmem:[%s7931] sm:$0xf]
    %v7933 = vld [vmem:[%s7931 + $0x4] sm:$0xf]
    %v7934 = vld [vmem:[%s7931 + $0x8] sm:$0xf]
    %v7935 = vld [vmem:[%s7931 + $0xc] sm:$0xf]
    %v7936 = vld [vmem:[%s7931 + $0x10] sm:$0xf]
    %v7937 = vld [vmem:[%s7931 + $0x14] sm:$0xf]
    %v7938 = vld [vmem:[%s7931 + $0x18] sm:$0xf]
    %v7939 = vld [vmem:[%s7931 + $0x1c] sm:$0xf]
    %v7940 = vld [vmem:[%s7931 + $0x20] sm:$0xf]
    %v7941 = vld [vmem:[%s7931 + $0x24] sm:$0xf]
    %v7942 = vld [vmem:[%s7931 + $0x28] sm:$0xf]
    %v7943 = vld [vmem:[%s7931 + $0x2c] sm:$0xf]
    %v7944 = vld [vmem:[%s7931 + $0x30] sm:$0xf]
    %v7945 = vld [vmem:[%s7931 + $0x34] sm:$0xf]
    %v7946 = vld [vmem:[%s7931 + $0x38] sm:$0xf]
    %v7947 = vld [vmem:[%s7931 + $0x3c] sm:$0xf]
    %v7948 = vrot.slane %v7724, 4
    %v7949 = vrot.slane %v7725, 3
    %v7950 = vsel %vm7727, %v7949, %v7948
    %v7951 = vpack.c.b16 %v7950, %v7950
    %v7969 = vunpack.c.l.b16 %v7932
    %v7970 = vunpack.c.l.b16 %v7933
    %v7971 = vunpack.c.l.b16 %v7934
    %v7972 = vunpack.c.l.b16 %v7935
    %v7973 = vunpack.c.l.b16 %v7936
    %v7974 = vunpack.c.l.b16 %v7937
    %v7975 = vunpack.c.l.b16 %v7938
    %v7976 = vunpack.c.l.b16 %v7939
    %v7977 = vunpack.c.l.b16 %v7940
    %v7978 = vunpack.c.l.b16 %v7941
    %v7979 = vunpack.c.l.b16 %v7942
    %v7980 = vunpack.c.l.b16 %v7943
    %v7981 = vunpack.c.l.b16 %v7944
    %v7982 = vunpack.c.l.b16 %v7945
    %v7983 = vunpack.c.l.b16 %v7946
    %v7984 = vunpack.c.l.b16 %v7947
    %v7985 = vpack.c.b16 %v7970, %v7969
    %v7986 = vpack.c.b16 %v7972, %v7971
    %v7987 = vpack.c.b16 %v7974, %v7973
    %v7988 = vpack.c.b16 %v7976, %v7975
    %v7989 = vpack.c.b16 %v7978, %v7977
    %v7990 = vpack.c.b16 %v7980, %v7979
    %v7991 = vpack.c.b16 %v7982, %v7981
    %v7992 = vpack.c.b16 %v7984, %v7983
    %8001 = vmatprep.subr.bf16.mxu0 0
    %8002 = vmatpush1.bf16.msra.mxu0 %v7985
    %8003 = vmatprep.subr.bf16.mxu0 0
    %8004 = vmatpush1.bf16.msra.mxu0 %v7986
    %8005 = vmatprep.subr.bf16.mxu0 0
    %8006 = vmatpush1.bf16.msra.mxu0 %v7987
    %8007 = vmatprep.subr.bf16.mxu0 0
    %8008 = vmatpush1.bf16.msra.mxu0 %v7988
    %8009 = vmatprep.subr.bf16.mxu0 0
    %8010 = vmatpush1.bf16.msra.mxu0 %v7989
    %8011 = vmatprep.subr.bf16.mxu0 0
    %8012 = vmatpush1.bf16.msra.mxu0 %v7990
    %8013 = vmatprep.subr.bf16.mxu0 0
    %8014 = vmatpush1.bf16.msra.mxu0 %v7991
    %8015 = vmatprep.subr.bf16.mxu0 0
    %8016 = vmatpush1.bf16.msra.mxu0 %v7992
    %8017 = vmatprep.subr.bf16.mxu0 0
    %8018 = vmatpush1.bf16.msra.mxu0 0
    %8019 = vmatprep.subr.bf16.mxu0 0
    %8020 = vmatpush1.bf16.msra.mxu0 0
    %8021 = vmatprep.subr.bf16.mxu0 0
    %8022 = vmatpush1.bf16.msra.mxu0 0
    %8023 = vmatprep.subr.bf16.mxu0 0
    %8024 = vmatpush1.bf16.msra.mxu0 0
    %8025 = vmatprep.subr.bf16.mxu0 0
    %8026 = vmatpush1.bf16.msra.mxu0 0
    %8027 = vmatprep.subr.bf16.mxu0 0
    %8028 = vmatpush1.bf16.msra.mxu0 0
    %8029 = vmatprep.subr.bf16.mxu0 0
    %8030 = vmatpush1.bf16.msra.mxu0 0
    %8031 = vmatprep.subr.bf16.mxu0 0
    %8032 = vmatpush1.bf16.msra.mxu0 0
    %8033 = vmatprep.mubr.bf16.mxu0 0
    %8034 = vmatmul.mubr.bf16.gmra.mrb[0].mxu0 %v7951
    %v8035 = vpop.f32.mrb[0].mxu0
    %v8036 = vadd.f32 0.0, %v8035
    %v8037 = vpop.f32.mrb[0].mxu0
    %v8038 = vpop.f32.mrb[0].mxu0
    %v8039 = vpop.f32.mrb[0].mxu0
    %8040 = vdwg.mxu0
    %v8041 = vadd.f32 %v7930, %v8036
    %s8042 = scalar_lea.vmem %s5, 192
    %v8043 = vld [vmem:[%s8042] sm:$0xf]
    %v8044 = vld [vmem:[%s8042 + $0x4] sm:$0xf]
    %v8045 = vld [vmem:[%s8042 + $0x8] sm:$0xf]
    %v8046 = vld [vmem:[%s8042 + $0xc] sm:$0xf]
    %v8047 = vld [vmem:[%s8042 + $0x10] sm:$0xf]
    %v8048 = vld [vmem:[%s8042 + $0x14] sm:$0xf]
    %v8049 = vld [vmem:[%s8042 + $0x18] sm:$0xf]
    %v8050 = vld [vmem:[%s8042 + $0x1c] sm:$0xf]
    %v8051 = vld [vmem:[%s8042 + $0x20] sm:$0xf]
    %v8052 = vld [vmem:[%s8042 + $0x24] sm:$0xf]
    %v8053 = vld [vmem:[%s8042 + $0x28] sm:$0xf]
    %v8054 = vld [vmem:[%s8042 + $0x2c] sm:$0xf]
    %v8055 = vld [vmem:[%s8042 + $0x30] sm:$0xf]
    %v8056 = vld [vmem:[%s8042 + $0x34] sm:$0xf]
    %v8057 = vld [vmem:[%s8042 + $0x38] sm:$0xf]
    %v8058 = vld [vmem:[%s8042 + $0x3c] sm:$0xf]
    %v8059 = vrot.slane %v7724, 6
    %v8060 = vrot.slane %v7725, 5
    %v8061 = vsel %vm7727, %v8060, %v8059
    %v8062 = vpack.c.b16 %v8061, %v8061
    %v8080 = vunpack.c.l.b16 %v8043
    %v8081 = vunpack.c.l.b16 %v8044
    %v8082 = vunpack.c.l.b16 %v8045
    %v8083 = vunpack.c.l.b16 %v8046
    %v8084 = vunpack.c.l.b16 %v8047
    %v8085 = vunpack.c.l.b16 %v8048
    %v8086 = vunpack.c.l.b16 %v8049
    %v8087 = vunpack.c.l.b16 %v8050
    %v8088 = vunpack.c.l.b16 %v8051
    %v8089 = vunpack.c.l.b16 %v8052
    %v8090 = vunpack.c.l.b16 %v8053
    %v8091 = vunpack.c.l.b16 %v8054
    %v8092 = vunpack.c.l.b16 %v8055
    %v8093 = vunpack.c.l.b16 %v8056
    %v8094 = vunpack.c.l.b16 %v8057
    %v8095 = vunpack.c.l.b16 %v8058
    %v8096 = vpack.c.b16 %v8081, %v8080
    %v8097 = vpack.c.b16 %v8083, %v8082
    %v8098 = vpack.c.b16 %v8085, %v8084
    %v8099 = vpack.c.b16 %v8087, %v8086
    %v8100 = vpack.c.b16 %v8089, %v8088
    %v8101 = vpack.c.b16 %v8091, %v8090
    %v8102 = vpack.c.b16 %v8093, %v8092
    %v8103 = vpack.c.b16 %v8095, %v8094
    %8112 = vmatprep.subr.bf16.mxu0 0
    %8113 = vmatpush1.bf16.msra.mxu0 %v8096
    %8114 = vmatprep.subr.bf16.mxu0 0
    %8115 = vmatpush1.bf16.msra.mxu0 %v8097
    %8116 = vmatprep.subr.bf16.mxu0 0
    %8117 = vmatpush1.bf16.msra.mxu0 %v8098
    %8118 = vmatprep.subr.bf16.mxu0 0
    %8119 = vmatpush1.bf16.msra.mxu0 %v8099
    %8120 = vmatprep.subr.bf16.mxu0 0
    %8121 = vmatpush1.bf16.msra.mxu0 %v8100
    %8122 = vmatprep.subr.bf16.mxu0 0
    %8123 = vmatpush1.bf16.msra.mxu0 %v8101
    %8124 = vmatprep.subr.bf16.mxu0 0
    %8125 = vmatpush1.bf16.msra.mxu0 %v8102
    %8126 = vmatprep.subr.bf16.mxu0 0
    %8127 = vmatpush1.bf16.msra.mxu0 %v8103
    %8128 = vmatprep.subr.bf16.mxu0 0
    %8129 = vmatpush1.bf16.msra.mxu0 0
    %8130 = vmatprep.subr.bf16.mxu0 0
    %8131 = vmatpush1.bf16.msra.mxu0 0
    %8132 = vmatprep.subr.bf16.mxu0 0
    %8133 = vmatpush1.bf16.msra.mxu0 0
    %8134 = vmatprep.subr.bf16.mxu0 0
    %8135 = vmatpush1.bf16.msra.mxu0 0
    %8136 = vmatprep.subr.bf16.mxu0 0
    %8137 = vmatpush1.bf16.msra.mxu0 0
    %8138 = vmatprep.subr.bf16.mxu0 0
    %8139 = vmatpush1.bf16.msra.mxu0 0
    %8140 = vmatprep.subr.bf16.mxu0 0
    %8141 = vmatpush1.bf16.msra.mxu0 0
    %8142 = vmatprep.subr.bf16.mxu0 0
    %8143 = vmatpush1.bf16.msra.mxu0 0
    %8144 = vmatprep.mubr.bf16.mxu0 0
    %8145 = vmatmul.mubr.bf16.gmra.mrb[0].mxu0 %v8062
    %v8146 = vpop.f32.mrb[0].mxu0
    %v8147 = vadd.f32 0.0, %v8146
    %v8148 = vpop.f32.mrb[0].mxu0
    %v8149 = vpop.f32.mrb[0].mxu0
    %v8150 = vpop.f32.mrb[0].mxu0
    %8151 = vdwg.mxu0
    %v8152 = vadd.f32 %v8041, %v8147
    %v8155 = vrot.slane %v7662, 1
    %v8156 = vrot.slane %v7670, 1
    %v8159 = vmax.f32 %v7662, %v8155
    %v8160 = vmax.f32 %v7670, %v8156
    %v8163 = vrot.slane %v7663, 1
    %v8164 = vrot.slane %v7671, 1
    %v8167 = vmax.f32 %v7663, %v8163
    %v8168 = vmax.f32 %v7671, %v8164
    %v8169 = vmax.f32 %v8159, %v8167
    %v8170 = vmax.f32 %v8160, %v8168
    %v8171 = vmax.f32 %v8169, 0.0
    %v8172 = vmax.f32 %v8170, 0.0
    %v8173 = vpack.c.bf16 %v8171, %v8171
    %v8174 = vpack.c.bf16 %v8172, %v8172
    %s8175 = scalar_lea.vmem %s5, 256
    %v8176 = vld [vmem:[%s8175] sm:$0xf]
    %v8177 = vld [vmem:[%s8175 + $0x4] sm:$0xf]
    %v8178 = vld [vmem:[%s8175 + $0x8] sm:$0xf]
    %v8179 = vld [vmem:[%s8175 + $0xc] sm:$0xf]
    %v8180 = vld [vmem:[%s8175 + $0x10] sm:$0xf]
    %v8181 = vld [vmem:[%s8175 + $0x14] sm:$0xf]
    %v8182 = vld [vmem:[%s8175 + $0x18] sm:$0xf]
    %v8183 = vld [vmem:[%s8175 + $0x1c] sm:$0xf]
    %v8184 = vld [vmem:[%s8175 + $0x20] sm:$0xf]
    %v8185 = vld [vmem:[%s8175 + $0x24] sm:$0xf]
    %v8186 = vld [vmem:[%s8175 + $0x28] sm:$0xf]
    %v8187 = vld [vmem:[%s8175 + $0x2c] sm:$0xf]
    %v8188 = vld [vmem:[%s8175 + $0x30] sm:$0xf]
    %v8189 = vld [vmem:[%s8175 + $0x34] sm:$0xf]
    %v8190 = vld [vmem:[%s8175 + $0x38] sm:$0xf]
    %v8191 = vld [vmem:[%s8175 + $0x3c] sm:$0xf]
    %v8194 = vunpack.c.l.b16 %v8173
    %v8195 = vunpack.c.l.b16 %v8174
    %v8196 = vrot.slane %v8195, 7
    %v8197 = vsel %vm7727, %v8196, %v8194
    %v8198 = vpack.c.b16 %v8197, %v8197
    %v8216 = vunpack.c.l.b16 %v8176
    %v8217 = vunpack.c.l.b16 %v8177
    %v8218 = vunpack.c.l.b16 %v8178
    %v8219 = vunpack.c.l.b16 %v8179
    %v8220 = vunpack.c.l.b16 %v8180
    %v8221 = vunpack.c.l.b16 %v8181
    %v8222 = vunpack.c.l.b16 %v8182
    %v8223 = vunpack.c.l.b16 %v8183
    %v8224 = vunpack.c.l.b16 %v8184
    %v8225 = vunpack.c.l.b16 %v8185
    %v8226 = vunpack.c.l.b16 %v8186
    %v8227 = vunpack.c.l.b16 %v8187
    %v8228 = vunpack.c.l.b16 %v8188
    %v8229 = vunpack.c.l.b16 %v8189
    %v8230 = vunpack.c.l.b16 %v8190
    %v8231 = vunpack.c.l.b16 %v8191
    %v8232 = vpack.c.b16 %v8217, %v8216
    %v8233 = vpack.c.b16 %v8219, %v8218
    %v8234 = vpack.c.b16 %v8221, %v8220
    %v8235 = vpack.c.b16 %v8223, %v8222
    %v8236 = vpack.c.b16 %v8225, %v8224
    %v8237 = vpack.c.b16 %v8227, %v8226
    %v8238 = vpack.c.b16 %v8229, %v8228
    %v8239 = vpack.c.b16 %v8231, %v8230
    %8248 = vmatprep.subr.bf16.mxu0 0
    %8249 = vmatpush1.bf16.msra.mxu0 %v8232
    %8250 = vmatprep.subr.bf16.mxu0 0
    %8251 = vmatpush1.bf16.msra.mxu0 %v8233
    %8252 = vmatprep.subr.bf16.mxu0 0
    %8253 = vmatpush1.bf16.msra.mxu0 %v8234
    %8254 = vmatprep.subr.bf16.mxu0 0
    %8255 = vmatpush1.bf16.msra.mxu0 %v8235
    %8256 = vmatprep.subr.bf16.mxu0 0
    %8257 = vmatpush1.bf16.msra.mxu0 %v8236
    %8258 = vmatprep.subr.bf16.mxu0 0
    %8259 = vmatpush1.bf16.msra.mxu0 %v8237
    %8260 = vmatprep.subr.bf16.mxu0 0
    %8261 = vmatpush1.bf16.msra.mxu0 %v8238
    %8262 = vmatprep.subr.bf16.mxu0 0
    %8263 = vmatpush1.bf16.msra.mxu0 %v8239
    %8264 = vmatprep.subr.bf16.mxu0 0
    %8265 = vmatpush1.bf16.msra.mxu0 0
    %8266 = vmatprep.subr.bf16.mxu0 0
    %8267 = vmatpush1.bf16.msra.mxu0 0
    %8268 = vmatprep.subr.bf16.mxu0 0
    %8269 = vmatpush1.bf16.msra.mxu0 0
    %8270 = vmatprep.subr.bf16.mxu0 0
    %8271 = vmatpush1.bf16.msra.mxu0 0
    %8272 = vmatprep.subr.bf16.mxu0 0
    %8273 = vmatpush1.bf16.msra.mxu0 0
    %8274 = vmatprep.subr.bf16.mxu0 0
    %8275 = vmatpush1.bf16.msra.mxu0 0
    %8276 = vmatprep.subr.bf16.mxu0 0
    %8277 = vmatpush1.bf16.msra.mxu0 0
    %8278 = vmatprep.subr.bf16.mxu0 0
    %8279 = vmatpush1.bf16.msra.mxu0 0
    %8280 = vmatprep.mubr.bf16.mxu0 0
    %8281 = vmatmul.mubr.bf16.gmra.mrb[0].mxu0 %v8198
    %v8282 = vpop.f32.mrb[0].mxu0
    %v8283 = vadd.f32 0.0, %v8282
    %v8284 = vpop.f32.mrb[0].mxu0
    %v8285 = vpop.f32.mrb[0].mxu0
    %v8286 = vpop.f32.mrb[0].mxu0
    %8287 = vdwg.mxu0
    %v8288 = vadd.f32 %v8152, %v8283
    %s8289 = scalar_lea.vmem %s5, 320
    %v8290 = vld [vmem:[%s8289] sm:$0xf]
    %v8291 = vld [vmem:[%s8289 + $0x4] sm:$0xf]
    %v8292 = vld [vmem:[%s8289 + $0x8] sm:$0xf]
    %v8293 = vld [vmem:[%s8289 + $0xc] sm:$0xf]
    %v8294 = vld [vmem:[%s8289 + $0x10] sm:$0xf]
    %v8295 = vld [vmem:[%s8289 + $0x14] sm:$0xf]
    %v8296 = vld [vmem:[%s8289 + $0x18] sm:$0xf]
    %v8297 = vld [vmem:[%s8289 + $0x1c] sm:$0xf]
    %v8298 = vld [vmem:[%s8289 + $0x20] sm:$0xf]
    %v8299 = vld [vmem:[%s8289 + $0x24] sm:$0xf]
    %v8300 = vld [vmem:[%s8289 + $0x28] sm:$0xf]
    %v8301 = vld [vmem:[%s8289 + $0x2c] sm:$0xf]
    %v8302 = vld [vmem:[%s8289 + $0x30] sm:$0xf]
    %v8303 = vld [vmem:[%s8289 + $0x34] sm:$0xf]
    %v8304 = vld [vmem:[%s8289 + $0x38] sm:$0xf]
    %v8305 = vld [vmem:[%s8289 + $0x3c] sm:$0xf]
    %v8306 = vrot.slane %v8194, 2
    %v8307 = vrot.slane %v8195, 1
    %v8308 = vsel %vm7727, %v8307, %v8306
    %v8309 = vpack.c.b16 %v8308, %v8308
    %v8327 = vunpack.c.l.b16 %v8290
    %v8328 = vunpack.c.l.b16 %v8291
    %v8329 = vunpack.c.l.b16 %v8292
    %v8330 = vunpack.c.l.b16 %v8293
    %v8331 = vunpack.c.l.b16 %v8294
    %v8332 = vunpack.c.l.b16 %v8295
    %v8333 = vunpack.c.l.b16 %v8296
    %v8334 = vunpack.c.l.b16 %v8297
    %v8335 = vunpack.c.l.b16 %v8298
    %v8336 = vunpack.c.l.b16 %v8299
    %v8337 = vunpack.c.l.b16 %v8300
    %v8338 = vunpack.c.l.b16 %v8301
    %v8339 = vunpack.c.l.b16 %v8302
    %v8340 = vunpack.c.l.b16 %v8303
    %v8341 = vunpack.c.l.b16 %v8304
    %v8342 = vunpack.c.l.b16 %v8305
    %v8343 = vpack.c.b16 %v8328, %v8327
    %v8344 = vpack.c.b16 %v8330, %v8329
    %v8345 = vpack.c.b16 %v8332, %v8331
    %v8346 = vpack.c.b16 %v8334, %v8333
    %v8347 = vpack.c.b16 %v8336, %v8335
    %v8348 = vpack.c.b16 %v8338, %v8337
    %v8349 = vpack.c.b16 %v8340, %v8339
    %v8350 = vpack.c.b16 %v8342, %v8341
    %8359 = vmatprep.subr.bf16.mxu0 0
    %8360 = vmatpush1.bf16.msra.mxu0 %v8343
    %8361 = vmatprep.subr.bf16.mxu0 0
    %8362 = vmatpush1.bf16.msra.mxu0 %v8344
    %8363 = vmatprep.subr.bf16.mxu0 0
    %8364 = vmatpush1.bf16.msra.mxu0 %v8345
    %8365 = vmatprep.subr.bf16.mxu0 0
    %8366 = vmatpush1.bf16.msra.mxu0 %v8346
    %8367 = vmatprep.subr.bf16.mxu0 0
    %8368 = vmatpush1.bf16.msra.mxu0 %v8347
    %8369 = vmatprep.subr.bf16.mxu0 0
    %8370 = vmatpush1.bf16.msra.mxu0 %v8348
    %8371 = vmatprep.subr.bf16.mxu0 0
    %8372 = vmatpush1.bf16.msra.mxu0 %v8349
    %8373 = vmatprep.subr.bf16.mxu0 0
    %8374 = vmatpush1.bf16.msra.mxu0 %v8350
    %8375 = vmatprep.subr.bf16.mxu0 0
    %8376 = vmatpush1.bf16.msra.mxu0 0
    %8377 = vmatprep.subr.bf16.mxu0 0
    %8378 = vmatpush1.bf16.msra.mxu0 0
    %8379 = vmatprep.subr.bf16.mxu0 0
    %8380 = vmatpush1.bf16.msra.mxu0 0
    %8381 = vmatprep.subr.bf16.mxu0 0
    %8382 = vmatpush1.bf16.msra.mxu0 0
    %8383 = vmatprep.subr.bf16.mxu0 0
    %8384 = vmatpush1.bf16.msra.mxu0 0
    %8385 = vmatprep.subr.bf16.mxu0 0
    %8386 = vmatpush1.bf16.msra.mxu0 0
    %8387 = vmatprep.subr.bf16.mxu0 0
    %8388 = vmatpush1.bf16.msra.mxu0 0
    %8389 = vmatprep.subr.bf16.mxu0 0
    %8390 = vmatpush1.bf16.msra.mxu0 0
    %8391 = vmatprep.mubr.bf16.mxu0 0
    %8392 = vmatmul.mubr.bf16.gmra.mrb[0].mxu0 %v8309
    %v8393 = vpop.f32.mrb[0].mxu0
    %v8394 = vadd.f32 0.0, %v8393
    %v8395 = vpop.f32.mrb[0].mxu0
    %v8396 = vpop.f32.mrb[0].mxu0
    %v8397 = vpop.f32.mrb[0].mxu0
    %8398 = vdwg.mxu0
    %v8399 = vadd.f32 %v8288, %v8394
    %s8400 = scalar_lea.vmem %s5, 384
    %v8401 = vld [vmem:[%s8400] sm:$0xf]
    %v8402 = vld [vmem:[%s8400 + $0x4] sm:$0xf]
    %v8403 = vld [vmem:[%s8400 + $0x8] sm:$0xf]
    %v8404 = vld [vmem:[%s8400 + $0xc] sm:$0xf]
    %v8405 = vld [vmem:[%s8400 + $0x10] sm:$0xf]
    %v8406 = vld [vmem:[%s8400 + $0x14] sm:$0xf]
    %v8407 = vld [vmem:[%s8400 + $0x18] sm:$0xf]
    %v8408 = vld [vmem:[%s8400 + $0x1c] sm:$0xf]
    %v8409 = vld [vmem:[%s8400 + $0x20] sm:$0xf]
    %v8410 = vld [vmem:[%s8400 + $0x24] sm:$0xf]
    %v8411 = vld [vmem:[%s8400 + $0x28] sm:$0xf]
    %v8412 = vld [vmem:[%s8400 + $0x2c] sm:$0xf]
    %v8413 = vld [vmem:[%s8400 + $0x30] sm:$0xf]
    %v8414 = vld [vmem:[%s8400 + $0x34] sm:$0xf]
    %v8415 = vld [vmem:[%s8400 + $0x38] sm:$0xf]
    %v8416 = vld [vmem:[%s8400 + $0x3c] sm:$0xf]
    %v8417 = vrot.slane %v8194, 4
    %v8418 = vrot.slane %v8195, 3
    %v8419 = vsel %vm7727, %v8418, %v8417
    %v8420 = vpack.c.b16 %v8419, %v8419
    %v8438 = vunpack.c.l.b16 %v8401
    %v8439 = vunpack.c.l.b16 %v8402
    %v8440 = vunpack.c.l.b16 %v8403
    %v8441 = vunpack.c.l.b16 %v8404
    %v8442 = vunpack.c.l.b16 %v8405
    %v8443 = vunpack.c.l.b16 %v8406
    %v8444 = vunpack.c.l.b16 %v8407
    %v8445 = vunpack.c.l.b16 %v8408
    %v8446 = vunpack.c.l.b16 %v8409
    %v8447 = vunpack.c.l.b16 %v8410
    %v8448 = vunpack.c.l.b16 %v8411
    %v8449 = vunpack.c.l.b16 %v8412
    %v8450 = vunpack.c.l.b16 %v8413
    %v8451 = vunpack.c.l.b16 %v8414
    %v8452 = vunpack.c.l.b16 %v8415
    %v8453 = vunpack.c.l.b16 %v8416
    %v8454 = vpack.c.b16 %v8439, %v8438
    %v8455 = vpack.c.b16 %v8441, %v8440
    %v8456 = vpack.c.b16 %v8443, %v8442
    %v8457 = vpack.c.b16 %v8445, %v8444
    %v8458 = vpack.c.b16 %v8447, %v8446
    %v8459 = vpack.c.b16 %v8449, %v8448
    %v8460 = vpack.c.b16 %v8451, %v8450
    %v8461 = vpack.c.b16 %v8453, %v8452
    %8470 = vmatprep.subr.bf16.mxu0 0
    %8471 = vmatpush1.bf16.msra.mxu0 %v8454
    %8472 = vmatprep.subr.bf16.mxu0 0
    %8473 = vmatpush1.bf16.msra.mxu0 %v8455
    %8474 = vmatprep.subr.bf16.mxu0 0
    %8475 = vmatpush1.bf16.msra.mxu0 %v8456
    %8476 = vmatprep.subr.bf16.mxu0 0
    %8477 = vmatpush1.bf16.msra.mxu0 %v8457
    %8478 = vmatprep.subr.bf16.mxu0 0
    %8479 = vmatpush1.bf16.msra.mxu0 %v8458
    %8480 = vmatprep.subr.bf16.mxu0 0
    %8481 = vmatpush1.bf16.msra.mxu0 %v8459
    %8482 = vmatprep.subr.bf16.mxu0 0
    %8483 = vmatpush1.bf16.msra.mxu0 %v8460
    %8484 = vmatprep.subr.bf16.mxu0 0
    %8485 = vmatpush1.bf16.msra.mxu0 %v8461
    %8486 = vmatprep.subr.bf16.mxu0 0
    %8487 = vmatpush1.bf16.msra.mxu0 0
    %8488 = vmatprep.subr.bf16.mxu0 0
    %8489 = vmatpush1.bf16.msra.mxu0 0
    %8490 = vmatprep.subr.bf16.mxu0 0
    %8491 = vmatpush1.bf16.msra.mxu0 0
    %8492 = vmatprep.subr.bf16.mxu0 0
    %8493 = vmatpush1.bf16.msra.mxu0 0
    %8494 = vmatprep.subr.bf16.mxu0 0
    %8495 = vmatpush1.bf16.msra.mxu0 0
    %8496 = vmatprep.subr.bf16.mxu0 0
    %8497 = vmatpush1.bf16.msra.mxu0 0
    %8498 = vmatprep.subr.bf16.mxu0 0
    %8499 = vmatpush1.bf16.msra.mxu0 0
    %8500 = vmatprep.subr.bf16.mxu0 0
    %8501 = vmatpush1.bf16.msra.mxu0 0
    %8502 = vmatprep.mubr.bf16.mxu0 0
    %8503 = vmatmul.mubr.bf16.gmra.mrb[0].mxu0 %v8420
    %v8504 = vpop.f32.mrb[0].mxu0
    %v8505 = vadd.f32 0.0, %v8504
    %v8506 = vpop.f32.mrb[0].mxu0
    %v8507 = vpop.f32.mrb[0].mxu0
    %v8508 = vpop.f32.mrb[0].mxu0
    %8509 = vdwg.mxu0
    %v8510 = vadd.f32 %v8399, %v8505
    %s8511 = scalar_lea.vmem %s5, 448
    %v8512 = vld [vmem:[%s8511] sm:$0xf]
    %v8513 = vld [vmem:[%s8511 + $0x4] sm:$0xf]
    %v8514 = vld [vmem:[%s8511 + $0x8] sm:$0xf]
    %v8515 = vld [vmem:[%s8511 + $0xc] sm:$0xf]
    %v8516 = vld [vmem:[%s8511 + $0x10] sm:$0xf]
    %v8517 = vld [vmem:[%s8511 + $0x14] sm:$0xf]
    %v8518 = vld [vmem:[%s8511 + $0x18] sm:$0xf]
    %v8519 = vld [vmem:[%s8511 + $0x1c] sm:$0xf]
    %v8520 = vld [vmem:[%s8511 + $0x20] sm:$0xf]
    %v8521 = vld [vmem:[%s8511 + $0x24] sm:$0xf]
    %v8522 = vld [vmem:[%s8511 + $0x28] sm:$0xf]
    %v8523 = vld [vmem:[%s8511 + $0x2c] sm:$0xf]
    %v8524 = vld [vmem:[%s8511 + $0x30] sm:$0xf]
    %v8525 = vld [vmem:[%s8511 + $0x34] sm:$0xf]
    %v8526 = vld [vmem:[%s8511 + $0x38] sm:$0xf]
    %v8527 = vld [vmem:[%s8511 + $0x3c] sm:$0xf]
    %v8528 = vrot.slane %v8194, 6
    %v8529 = vrot.slane %v8195, 5
    %v8530 = vsel %vm7727, %v8529, %v8528
    %v8531 = vpack.c.b16 %v8530, %v8530
    %v8549 = vunpack.c.l.b16 %v8512
    %v8550 = vunpack.c.l.b16 %v8513
    %v8551 = vunpack.c.l.b16 %v8514
    %v8552 = vunpack.c.l.b16 %v8515
    %v8553 = vunpack.c.l.b16 %v8516
    %v8554 = vunpack.c.l.b16 %v8517
    %v8555 = vunpack.c.l.b16 %v8518
    %v8556 = vunpack.c.l.b16 %v8519
    %v8557 = vunpack.c.l.b16 %v8520
    %v8558 = vunpack.c.l.b16 %v8521
    %v8559 = vunpack.c.l.b16 %v8522
    %v8560 = vunpack.c.l.b16 %v8523
    %v8561 = vunpack.c.l.b16 %v8524
    %v8562 = vunpack.c.l.b16 %v8525
    %v8563 = vunpack.c.l.b16 %v8526
    %v8564 = vunpack.c.l.b16 %v8527
    %v8565 = vpack.c.b16 %v8550, %v8549
    %v8566 = vpack.c.b16 %v8552, %v8551
    %v8567 = vpack.c.b16 %v8554, %v8553
    %v8568 = vpack.c.b16 %v8556, %v8555
    %v8569 = vpack.c.b16 %v8558, %v8557
    %v8570 = vpack.c.b16 %v8560, %v8559
    %v8571 = vpack.c.b16 %v8562, %v8561
    %v8572 = vpack.c.b16 %v8564, %v8563
    %8581 = vmatprep.subr.bf16.mxu0 0
    %8582 = vmatpush1.bf16.msra.mxu0 %v8565
    %8583 = vmatprep.subr.bf16.mxu0 0
    %8584 = vmatpush1.bf16.msra.mxu0 %v8566
    %8585 = vmatprep.subr.bf16.mxu0 0
    %8586 = vmatpush1.bf16.msra.mxu0 %v8567
    %8587 = vmatprep.subr.bf16.mxu0 0
    %8588 = vmatpush1.bf16.msra.mxu0 %v8568
    %8589 = vmatprep.subr.bf16.mxu0 0
    %8590 = vmatpush1.bf16.msra.mxu0 %v8569
    %8591 = vmatprep.subr.bf16.mxu0 0
    %8592 = vmatpush1.bf16.msra.mxu0 %v8570
    %8593 = vmatprep.subr.bf16.mxu0 0
    %8594 = vmatpush1.bf16.msra.mxu0 %v8571
    %8595 = vmatprep.subr.bf16.mxu0 0
    %8596 = vmatpush1.bf16.msra.mxu0 %v8572
    %8597 = vmatprep.subr.bf16.mxu0 0
    %8598 = vmatpush1.bf16.msra.mxu0 0
    %8599 = vmatprep.subr.bf16.mxu0 0
    %8600 = vmatpush1.bf16.msra.mxu0 0
    %8601 = vmatprep.subr.bf16.mxu0 0
    %8602 = vmatpush1.bf16.msra.mxu0 0
    %8603 = vmatprep.subr.bf16.mxu0 0
    %8604 = vmatpush1.bf16.msra.mxu0 0
    %8605 = vmatprep.subr.bf16.mxu0 0
    %8606 = vmatpush1.bf16.msra.mxu0 0
    %8607 = vmatprep.subr.bf16.mxu0 0
    %8608 = vmatpush1.bf16.msra.mxu0 0
    %8609 = vmatprep.subr.bf16.mxu0 0
    %8610 = vmatpush1.bf16.msra.mxu0 0
    %8611 = vmatprep.subr.bf16.mxu0 0
    %8612 = vmatpush1.bf16.msra.mxu0 0
    %8613 = vmatprep.mubr.bf16.mxu0 0
    %8614 = vmatmul.mubr.bf16.gmra.mrb[0].mxu0 %v8531
    %v8615 = vpop.f32.mrb[0].mxu0
    %v8616 = vadd.f32 0.0, %v8615
    %v8617 = vpop.f32.mrb[0].mxu0
    %v8618 = vpop.f32.mrb[0].mxu0
    %v8619 = vpop.f32.mrb[0].mxu0
    %8620 = vdwg.mxu0
    %v8621 = vadd.f32 %v8510, %v8616
    %v8624 = vrot.slane %v7664, 1
    %v8625 = vrot.slane %v7672, 1
    %v8628 = vmax.f32 %v7664, %v8624
    %v8629 = vmax.f32 %v7672, %v8625
    %v8632 = vrot.slane %v7665, 1
    %v8633 = vrot.slane %v7673, 1
    %v8636 = vmax.f32 %v7665, %v8632
    %v8637 = vmax.f32 %v7673, %v8633
    %v8638 = vmax.f32 %v8628, %v8636
    %v8639 = vmax.f32 %v8629, %v8637
    %v8640 = vmax.f32 %v8638, 0.0
    %v8641 = vmax.f32 %v8639, 0.0
    %v8642 = vpack.c.bf16 %v8640, %v8640
    %v8643 = vpack.c.bf16 %v8641, %v8641
    %s8644 = scalar_lea.vmem %s5, 512
    %v8645 = vld [vmem:[%s8644] sm:$0xf]
    %v8646 = vld [vmem:[%s8644 + $0x4] sm:$0xf]
    %v8647 = vld [vmem:[%s8644 + $0x8] sm:$0xf]
    %v8648 = vld [vmem:[%s8644 + $0xc] sm:$0xf]
    %v8649 = vld [vmem:[%s8644 + $0x10] sm:$0xf]
    %v8650 = vld [vmem:[%s8644 + $0x14] sm:$0xf]
    %v8651 = vld [vmem:[%s8644 + $0x18] sm:$0xf]
    %v8652 = vld [vmem:[%s8644 + $0x1c] sm:$0xf]
    %v8653 = vld [vmem:[%s8644 + $0x20] sm:$0xf]
    %v8654 = vld [vmem:[%s8644 + $0x24] sm:$0xf]
    %v8655 = vld [vmem:[%s8644 + $0x28] sm:$0xf]
    %v8656 = vld [vmem:[%s8644 + $0x2c] sm:$0xf]
    %v8657 = vld [vmem:[%s8644 + $0x30] sm:$0xf]
    %v8658 = vld [vmem:[%s8644 + $0x34] sm:$0xf]
    %v8659 = vld [vmem:[%s8644 + $0x38] sm:$0xf]
    %v8660 = vld [vmem:[%s8644 + $0x3c] sm:$0xf]
    %v8663 = vunpack.c.l.b16 %v8642
    %v8664 = vunpack.c.l.b16 %v8643
    %v8665 = vrot.slane %v8664, 7
    %v8666 = vsel %vm7727, %v8665, %v8663
    %v8667 = vpack.c.b16 %v8666, %v8666
    %v8685 = vunpack.c.l.b16 %v8645
    %v8686 = vunpack.c.l.b16 %v8646
    %v8687 = vunpack.c.l.b16 %v8647
    %v8688 = vunpack.c.l.b16 %v8648
    %v8689 = vunpack.c.l.b16 %v8649
    %v8690 = vunpack.c.l.b16 %v8650
    %v8691 = vunpack.c.l.b16 %v8651
    %v8692 = vunpack.c.l.b16 %v8652
    %v8693 = vunpack.c.l.b16 %v8653
    %v8694 = vunpack.c.l.b16 %v8654
    %v8695 = vunpack.c.l.b16 %v8655
    %v8696 = vunpack.c.l.b16 %v8656
    %v8697 = vunpack.c.l.b16 %v8657
    %v8698 = vunpack.c.l.b16 %v8658
    %v8699 = vunpack.c.l.b16 %v8659
    %v8700 = vunpack.c.l.b16 %v8660
    %v8701 = vpack.c.b16 %v8686, %v8685
    %v8702 = vpack.c.b16 %v8688, %v8687
    %v8703 = vpack.c.b16 %v8690, %v8689
    %v8704 = vpack.c.b16 %v8692, %v8691
    %v8705 = vpack.c.b16 %v8694, %v8693
    %v8706 = vpack.c.b16 %v8696, %v8695
    %v8707 = vpack.c.b16 %v8698, %v8697
    %v8708 = vpack.c.b16 %v8700, %v8699
    %8717 = vmatprep.subr.bf16.mxu0 0
    %8718 = vmatpush1.bf16.msra.mxu0 %v8701
    %8719 = vmatprep.subr.bf16.mxu0 0
    %8720 = vmatpush1.bf16.msra.mxu0 %v8702
    %8721 = vmatprep.subr.bf16.mxu0 0
    %8722 = vmatpush1.bf16.msra.mxu0 %v8703
    %8723 = vmatprep.subr.bf16.mxu0 0
    %8724 = vmatpush1.bf16.msra.mxu0 %v8704
    %8725 = vmatprep.subr.bf16.mxu0 0
    %8726 = vmatpush1.bf16.msra.mxu0 %v8705
    %8727 = vmatprep.subr.bf16.mxu0 0
    %8728 = vmatpush1.bf16.msra.mxu0 %v8706
    %8729 = vmatprep.subr.bf16.mxu0 0
    %8730 = vmatpush1.bf16.msra.mxu0 %v8707
    %8731 = vmatprep.subr.bf16.mxu0 0
    %8732 = vmatpush1.bf16.msra.mxu0 %v8708
    %8733 = vmatprep.subr.bf16.mxu0 0
    %8734 = vmatpush1.bf16.msra.mxu0 0
    %8735 = vmatprep.subr.bf16.mxu0 0
    %8736 = vmatpush1.bf16.msra.mxu0 0
    %8737 = vmatprep.subr.bf16.mxu0 0
    %8738 = vmatpush1.bf16.msra.mxu0 0
    %8739 = vmatprep.subr.bf16.mxu0 0
    %8740 = vmatpush1.bf16.msra.mxu0 0
    %8741 = vmatprep.subr.bf16.mxu0 0
    %8742 = vmatpush1.bf16.msra.mxu0 0
    %8743 = vmatprep.subr.bf16.mxu0 0
    %8744 = vmatpush1.bf16.msra.mxu0 0
    %8745 = vmatprep.subr.bf16.mxu0 0
    %8746 = vmatpush1.bf16.msra.mxu0 0
    %8747 = vmatprep.subr.bf16.mxu0 0
    %8748 = vmatpush1.bf16.msra.mxu0 0
    %8749 = vmatprep.mubr.bf16.mxu0 0
    %8750 = vmatmul.mubr.bf16.gmra.mrb[0].mxu0 %v8667
    %v8751 = vpop.f32.mrb[0].mxu0
    %v8752 = vadd.f32 0.0, %v8751
    %v8753 = vpop.f32.mrb[0].mxu0
    %v8754 = vpop.f32.mrb[0].mxu0
    %v8755 = vpop.f32.mrb[0].mxu0
    %8756 = vdwg.mxu0
    %v8757 = vadd.f32 %v8621, %v8752
    %s8758 = scalar_lea.vmem %s5, 576
    %v8759 = vld [vmem:[%s8758] sm:$0xf]
    %v8760 = vld [vmem:[%s8758 + $0x4] sm:$0xf]
    %v8761 = vld [vmem:[%s8758 + $0x8] sm:$0xf]
    %v8762 = vld [vmem:[%s8758 + $0xc] sm:$0xf]
    %v8763 = vld [vmem:[%s8758 + $0x10] sm:$0xf]
    %v8764 = vld [vmem:[%s8758 + $0x14] sm:$0xf]
    %v8765 = vld [vmem:[%s8758 + $0x18] sm:$0xf]
    %v8766 = vld [vmem:[%s8758 + $0x1c] sm:$0xf]
    %v8767 = vld [vmem:[%s8758 + $0x20] sm:$0xf]
    %v8768 = vld [vmem:[%s8758 + $0x24] sm:$0xf]
    %v8769 = vld [vmem:[%s8758 + $0x28] sm:$0xf]
    %v8770 = vld [vmem:[%s8758 + $0x2c] sm:$0xf]
    %v8771 = vld [vmem:[%s8758 + $0x30] sm:$0xf]
    %v8772 = vld [vmem:[%s8758 + $0x34] sm:$0xf]
    %v8773 = vld [vmem:[%s8758 + $0x38] sm:$0xf]
    %v8774 = vld [vmem:[%s8758 + $0x3c] sm:$0xf]
    %v8775 = vrot.slane %v8663, 2
    %v8776 = vrot.slane %v8664, 1
    %v8777 = vsel %vm7727, %v8776, %v8775
    %v8778 = vpack.c.b16 %v8777, %v8777
    %v8796 = vunpack.c.l.b16 %v8759
    %v8797 = vunpack.c.l.b16 %v8760
    %v8798 = vunpack.c.l.b16 %v8761
    %v8799 = vunpack.c.l.b16 %v8762
    %v8800 = vunpack.c.l.b16 %v8763
    %v8801 = vunpack.c.l.b16 %v8764
    %v8802 = vunpack.c.l.b16 %v8765
    %v8803 = vunpack.c.l.b16 %v8766
    %v8804 = vunpack.c.l.b16 %v8767
    %v8805 = vunpack.c.l.b16 %v8768
    %v8806 = vunpack.c.l.b16 %v8769
    %v8807 = vunpack.c.l.b16 %v8770
    %v8808 = vunpack.c.l.b16 %v8771
    %v8809 = vunpack.c.l.b16 %v8772
    %v8810 = vunpack.c.l.b16 %v8773
    %v8811 = vunpack.c.l.b16 %v8774
    %v8812 = vpack.c.b16 %v8797, %v8796
    %v8813 = vpack.c.b16 %v8799, %v8798
    %v8814 = vpack.c.b16 %v8801, %v8800
    %v8815 = vpack.c.b16 %v8803, %v8802
    %v8816 = vpack.c.b16 %v8805, %v8804
    %v8817 = vpack.c.b16 %v8807, %v8806
    %v8818 = vpack.c.b16 %v8809, %v8808
    %v8819 = vpack.c.b16 %v8811, %v8810
    %8828 = vmatprep.subr.bf16.mxu0 0
    %8829 = vmatpush1.bf16.msra.mxu0 %v8812
    %8830 = vmatprep.subr.bf16.mxu0 0
    %8831 = vmatpush1.bf16.msra.mxu0 %v8813
    %8832 = vmatprep.subr.bf16.mxu0 0
    %8833 = vmatpush1.bf16.msra.mxu0 %v8814
    %8834 = vmatprep.subr.bf16.mxu0 0
    %8835 = vmatpush1.bf16.msra.mxu0 %v8815
    %8836 = vmatprep.subr.bf16.mxu0 0
    %8837 = vmatpush1.bf16.msra.mxu0 %v8816
    %8838 = vmatprep.subr.bf16.mxu0 0
    %8839 = vmatpush1.bf16.msra.mxu0 %v8817
    %8840 = vmatprep.subr.bf16.mxu0 0
    %8841 = vmatpush1.bf16.msra.mxu0 %v8818
    %8842 = vmatprep.subr.bf16.mxu0 0
    %8843 = vmatpush1.bf16.msra.mxu0 %v8819
    %8844 = vmatprep.subr.bf16.mxu0 0
    %8845 = vmatpush1.bf16.msra.mxu0 0
    %8846 = vmatprep.subr.bf16.mxu0 0
    %8847 = vmatpush1.bf16.msra.mxu0 0
    %8848 = vmatprep.subr.bf16.mxu0 0
    %8849 = vmatpush1.bf16.msra.mxu0 0
    %8850 = vmatprep.subr.bf16.mxu0 0
    %8851 = vmatpush1.bf16.msra.mxu0 0
    %8852 = vmatprep.subr.bf16.mxu0 0
    %8853 = vmatpush1.bf16.msra.mxu0 0
    %8854 = vmatprep.subr.bf16.mxu0 0
    %8855 = vmatpush1.bf16.msra.mxu0 0
    %8856 = vmatprep.subr.bf16.mxu0 0
    %8857 = vmatpush1.bf16.msra.mxu0 0
    %8858 = vmatprep.subr.bf16.mxu0 0
    %8859 = vmatpush1.bf16.msra.mxu0 0
    %8860 = vmatprep.mubr.bf16.mxu0 0
    %8861 = vmatmul.mubr.bf16.gmra.mrb[0].mxu0 %v8778
    %v8862 = vpop.f32.mrb[0].mxu0
    %v8863 = vadd.f32 0.0, %v8862
    %v8864 = vpop.f32.mrb[0].mxu0
    %v8865 = vpop.f32.mrb[0].mxu0
    %v8866 = vpop.f32.mrb[0].mxu0
    %8867 = vdwg.mxu0
    %v8868 = vadd.f32 %v8757, %v8863
    %s8869 = scalar_lea.vmem %s5, 640
    %v8870 = vld [vmem:[%s8869] sm:$0xf]
    %v8871 = vld [vmem:[%s8869 + $0x4] sm:$0xf]
    %v8872 = vld [vmem:[%s8869 + $0x8] sm:$0xf]
    %v8873 = vld [vmem:[%s8869 + $0xc] sm:$0xf]
    %v8874 = vld [vmem:[%s8869 + $0x10] sm:$0xf]
    %v8875 = vld [vmem:[%s8869 + $0x14] sm:$0xf]
    %v8876 = vld [vmem:[%s8869 + $0x18] sm:$0xf]
    %v8877 = vld [vmem:[%s8869 + $0x1c] sm:$0xf]
    %v8878 = vld [vmem:[%s8869 + $0x20] sm:$0xf]
    %v8879 = vld [vmem:[%s8869 + $0x24] sm:$0xf]
    %v8880 = vld [vmem:[%s8869 + $0x28] sm:$0xf]
    %v8881 = vld [vmem:[%s8869 + $0x2c] sm:$0xf]
    %v8882 = vld [vmem:[%s8869 + $0x30] sm:$0xf]
    %v8883 = vld [vmem:[%s8869 + $0x34] sm:$0xf]
    %v8884 = vld [vmem:[%s8869 + $0x38] sm:$0xf]
    %v8885 = vld [vmem:[%s8869 + $0x3c] sm:$0xf]
    %v8886 = vrot.slane %v8663, 4
    %v8887 = vrot.slane %v8664, 3
    %v8888 = vsel %vm7727, %v8887, %v8886
    %v8889 = vpack.c.b16 %v8888, %v8888
    %v8907 = vunpack.c.l.b16 %v8870
    %v8908 = vunpack.c.l.b16 %v8871
    %v8909 = vunpack.c.l.b16 %v8872
    %v8910 = vunpack.c.l.b16 %v8873
    %v8911 = vunpack.c.l.b16 %v8874
    %v8912 = vunpack.c.l.b16 %v8875
    %v8913 = vunpack.c.l.b16 %v8876
    %v8914 = vunpack.c.l.b16 %v8877
    %v8915 = vunpack.c.l.b16 %v8878
    %v8916 = vunpack.c.l.b16 %v8879
    %v8917 = vunpack.c.l.b16 %v8880
    %v8918 = vunpack.c.l.b16 %v8881
    %v8919 = vunpack.c.l.b16 %v8882
    %v8920 = vunpack.c.l.b16 %v8883
    %v8921 = vunpack.c.l.b16 %v8884
    %v8922 = vunpack.c.l.b16 %v8885
    %v8923 = vpack.c.b16 %v8908, %v8907
    %v8924 = vpack.c.b16 %v8910, %v8909
    %v8925 = vpack.c.b16 %v8912, %v8911
    %v8926 = vpack.c.b16 %v8914, %v8913
    %v8927 = vpack.c.b16 %v8916, %v8915
    %v8928 = vpack.c.b16 %v8918, %v8917
    %v8929 = vpack.c.b16 %v8920, %v8919
    %v8930 = vpack.c.b16 %v8922, %v8921
    %8939 = vmatprep.subr.bf16.mxu0 0
    %8940 = vmatpush1.bf16.msra.mxu0 %v8923
    %8941 = vmatprep.subr.bf16.mxu0 0
    %8942 = vmatpush1.bf16.msra.mxu0 %v8924
    %8943 = vmatprep.subr.bf16.mxu0 0
    %8944 = vmatpush1.bf16.msra.mxu0 %v8925
    %8945 = vmatprep.subr.bf16.mxu0 0
    %8946 = vmatpush1.bf16.msra.mxu0 %v8926
    %8947 = vmatprep.subr.bf16.mxu0 0
    %8948 = vmatpush1.bf16.msra.mxu0 %v8927
    %8949 = vmatprep.subr.bf16.mxu0 0
    %8950 = vmatpush1.bf16.msra.mxu0 %v8928
    %8951 = vmatprep.subr.bf16.mxu0 0
    %8952 = vmatpush1.bf16.msra.mxu0 %v8929
    %8953 = vmatprep.subr.bf16.mxu0 0
    %8954 = vmatpush1.bf16.msra.mxu0 %v8930
    %8955 = vmatprep.subr.bf16.mxu0 0
    %8956 = vmatpush1.bf16.msra.mxu0 0
    %8957 = vmatprep.subr.bf16.mxu0 0
    %8958 = vmatpush1.bf16.msra.mxu0 0
    %8959 = vmatprep.subr.bf16.mxu0 0
    %8960 = vmatpush1.bf16.msra.mxu0 0
    %8961 = vmatprep.subr.bf16.mxu0 0
    %8962 = vmatpush1.bf16.msra.mxu0 0
    %8963 = vmatprep.subr.bf16.mxu0 0
    %8964 = vmatpush1.bf16.msra.mxu0 0
    %8965 = vmatprep.subr.bf16.mxu0 0
    %8966 = vmatpush1.bf16.msra.mxu0 0
    %8967 = vmatprep.subr.bf16.mxu0 0
    %8968 = vmatpush1.bf16.msra.mxu0 0
    %8969 = vmatprep.subr.bf16.mxu0 0
    %8970 = vmatpush1.bf16.msra.mxu0 0
    %8971 = vmatprep.mubr.bf16.mxu0 0
    %8972 = vmatmul.mubr.bf16.gmra.mrb[0].mxu0 %v8889
    %v8973 = vpop.f32.mrb[0].mxu0
    %v8974 = vadd.f32 0.0, %v8973
    %v8975 = vpop.f32.mrb[0].mxu0
    %v8976 = vpop.f32.mrb[0].mxu0
    %v8977 = vpop.f32.mrb[0].mxu0
    %8978 = vdwg.mxu0
    %v8979 = vadd.f32 %v8868, %v8974
    %s8980 = scalar_lea.vmem %s5, 704
    %v8981 = vld [vmem:[%s8980] sm:$0xf]
    %v8982 = vld [vmem:[%s8980 + $0x4] sm:$0xf]
    %v8983 = vld [vmem:[%s8980 + $0x8] sm:$0xf]
    %v8984 = vld [vmem:[%s8980 + $0xc] sm:$0xf]
    %v8985 = vld [vmem:[%s8980 + $0x10] sm:$0xf]
    %v8986 = vld [vmem:[%s8980 + $0x14] sm:$0xf]
    %v8987 = vld [vmem:[%s8980 + $0x18] sm:$0xf]
    %v8988 = vld [vmem:[%s8980 + $0x1c] sm:$0xf]
    %v8989 = vld [vmem:[%s8980 + $0x20] sm:$0xf]
    %v8990 = vld [vmem:[%s8980 + $0x24] sm:$0xf]
    %v8991 = vld [vmem:[%s8980 + $0x28] sm:$0xf]
    %v8992 = vld [vmem:[%s8980 + $0x2c] sm:$0xf]
    %v8993 = vld [vmem:[%s8980 + $0x30] sm:$0xf]
    %v8994 = vld [vmem:[%s8980 + $0x34] sm:$0xf]
    %v8995 = vld [vmem:[%s8980 + $0x38] sm:$0xf]
    %v8996 = vld [vmem:[%s8980 + $0x3c] sm:$0xf]
    %v8997 = vrot.slane %v8663, 6
    %v8998 = vrot.slane %v8664, 5
    %v8999 = vsel %vm7727, %v8998, %v8997
    %v9000 = vpack.c.b16 %v8999, %v8999
    %v9018 = vunpack.c.l.b16 %v8981
    %v9019 = vunpack.c.l.b16 %v8982
    %v9020 = vunpack.c.l.b16 %v8983
    %v9021 = vunpack.c.l.b16 %v8984
    %v9022 = vunpack.c.l.b16 %v8985
    %v9023 = vunpack.c.l.b16 %v8986
    %v9024 = vunpack.c.l.b16 %v8987
    %v9025 = vunpack.c.l.b16 %v8988
    %v9026 = vunpack.c.l.b16 %v8989
    %v9027 = vunpack.c.l.b16 %v8990
    %v9028 = vunpack.c.l.b16 %v8991
    %v9029 = vunpack.c.l.b16 %v8992
    %v9030 = vunpack.c.l.b16 %v8993
    %v9031 = vunpack.c.l.b16 %v8994
    %v9032 = vunpack.c.l.b16 %v8995
    %v9033 = vunpack.c.l.b16 %v8996
    %v9034 = vpack.c.b16 %v9019, %v9018
    %v9035 = vpack.c.b16 %v9021, %v9020
    %v9036 = vpack.c.b16 %v9023, %v9022
    %v9037 = vpack.c.b16 %v9025, %v9024
    %v9038 = vpack.c.b16 %v9027, %v9026
    %v9039 = vpack.c.b16 %v9029, %v9028
    %v9040 = vpack.c.b16 %v9031, %v9030
    %v9041 = vpack.c.b16 %v9033, %v9032
    %9050 = vmatprep.subr.bf16.mxu0 0
    %9051 = vmatpush1.bf16.msra.mxu0 %v9034
    %9052 = vmatprep.subr.bf16.mxu0 0
    %9053 = vmatpush1.bf16.msra.mxu0 %v9035
    %9054 = vmatprep.subr.bf16.mxu0 0
    %9055 = vmatpush1.bf16.msra.mxu0 %v9036
    %9056 = vmatprep.subr.bf16.mxu0 0
    %9057 = vmatpush1.bf16.msra.mxu0 %v9037
    %9058 = vmatprep.subr.bf16.mxu0 0
    %9059 = vmatpush1.bf16.msra.mxu0 %v9038
    %9060 = vmatprep.subr.bf16.mxu0 0
    %9061 = vmatpush1.bf16.msra.mxu0 %v9039
    %9062 = vmatprep.subr.bf16.mxu0 0
    %9063 = vmatpush1.bf16.msra.mxu0 %v9040
    %9064 = vmatprep.subr.bf16.mxu0 0
    %9065 = vmatpush1.bf16.msra.mxu0 %v9041
    %9066 = vmatprep.subr.bf16.mxu0 0
    %9067 = vmatpush1.bf16.msra.mxu0 0
    %9068 = vmatprep.subr.bf16.mxu0 0
    %9069 = vmatpush1.bf16.msra.mxu0 0
    %9070 = vmatprep.subr.bf16.mxu0 0
    %9071 = vmatpush1.bf16.msra.mxu0 0
    %9072 = vmatprep.subr.bf16.mxu0 0
    %9073 = vmatpush1.bf16.msra.mxu0 0
    %9074 = vmatprep.subr.bf16.mxu0 0
    %9075 = vmatpush1.bf16.msra.mxu0 0
    %9076 = vmatprep.subr.bf16.mxu0 0
    %9077 = vmatpush1.bf16.msra.mxu0 0
    %9078 = vmatprep.subr.bf16.mxu0 0
    %9079 = vmatpush1.bf16.msra.mxu0 0
    %9080 = vmatprep.subr.bf16.mxu0 0
    %9081 = vmatpush1.bf16.msra.mxu0 0
    %9082 = vmatprep.mubr.bf16.mxu0 0
    %9083 = vmatmul.mubr.bf16.gmra.mrb[0].mxu0 %v9000
    %v9084 = vpop.f32.mrb[0].mxu0
    %v9085 = vadd.f32 0.0, %v9084
    %v9086 = vpop.f32.mrb[0].mxu0
    %v9087 = vpop.f32.mrb[0].mxu0
    %v9088 = vpop.f32.mrb[0].mxu0
    %9089 = vdwg.mxu0
    %v9090 = vadd.f32 %v8979, %v9085
    %v9093 = vrot.slane %v7666, 1
    %v9094 = vrot.slane %v7674, 1
    %v9097 = vmax.f32 %v7666, %v9093
    %v9098 = vmax.f32 %v7674, %v9094
    %v9101 = vrot.slane %v7667, 1
    %v9102 = vrot.slane %v7675, 1
    %v9105 = vmax.f32 %v7667, %v9101
    %v9106 = vmax.f32 %v7675, %v9102
    %v9107 = vmax.f32 %v9097, %v9105
    %v9108 = vmax.f32 %v9098, %v9106
    %v9109 = vmax.f32 %v9107, 0.0
    %v9110 = vmax.f32 %v9108, 0.0
    %v9111 = vpack.c.bf16 %v9109, %v9109
    %v9112 = vpack.c.bf16 %v9110, %v9110
    %s9113 = scalar_lea.vmem %s5, 768
    %v9114 = vld [vmem:[%s9113] sm:$0xf]
    %v9115 = vld [vmem:[%s9113 + $0x4] sm:$0xf]
    %v9116 = vld [vmem:[%s9113 + $0x8] sm:$0xf]
    %v9117 = vld [vmem:[%s9113 + $0xc] sm:$0xf]
    %v9118 = vld [vmem:[%s9113 + $0x10] sm:$0xf]
    %v9119 = vld [vmem:[%s9113 + $0x14] sm:$0xf]
    %v9120 = vld [vmem:[%s9113 + $0x18] sm:$0xf]
    %v9121 = vld [vmem:[%s9113 + $0x1c] sm:$0xf]
    %v9122 = vld [vmem:[%s9113 + $0x20] sm:$0xf]
    %v9123 = vld [vmem:[%s9113 + $0x24] sm:$0xf]
    %v9124 = vld [vmem:[%s9113 + $0x28] sm:$0xf]
    %v9125 = vld [vmem:[%s9113 + $0x2c] sm:$0xf]
    %v9126 = vld [vmem:[%s9113 + $0x30] sm:$0xf]
    %v9127 = vld [vmem:[%s9113 + $0x34] sm:$0xf]
    %v9128 = vld [vmem:[%s9113 + $0x38] sm:$0xf]
    %v9129 = vld [vmem:[%s9113 + $0x3c] sm:$0xf]
    %v9132 = vunpack.c.l.b16 %v9111
    %v9133 = vunpack.c.l.b16 %v9112
    %v9134 = vrot.slane %v9133, 7
    %v9135 = vsel %vm7727, %v9134, %v9132
    %v9136 = vpack.c.b16 %v9135, %v9135
    %v9154 = vunpack.c.l.b16 %v9114
    %v9155 = vunpack.c.l.b16 %v9115
    %v9156 = vunpack.c.l.b16 %v9116
    %v9157 = vunpack.c.l.b16 %v9117
    %v9158 = vunpack.c.l.b16 %v9118
    %v9159 = vunpack.c.l.b16 %v9119
    %v9160 = vunpack.c.l.b16 %v9120
    %v9161 = vunpack.c.l.b16 %v9121
    %v9162 = vunpack.c.l.b16 %v9122
    %v9163 = vunpack.c.l.b16 %v9123
    %v9164 = vunpack.c.l.b16 %v9124
    %v9165 = vunpack.c.l.b16 %v9125
    %v9166 = vunpack.c.l.b16 %v9126
    %v9167 = vunpack.c.l.b16 %v9127
    %v9168 = vunpack.c.l.b16 %v9128
    %v9169 = vunpack.c.l.b16 %v9129
    %v9170 = vpack.c.b16 %v9155, %v9154
    %v9171 = vpack.c.b16 %v9157, %v9156
    %v9172 = vpack.c.b16 %v9159, %v9158
    %v9173 = vpack.c.b16 %v9161, %v9160
    %v9174 = vpack.c.b16 %v9163, %v9162
    %v9175 = vpack.c.b16 %v9165, %v9164
    %v9176 = vpack.c.b16 %v9167, %v9166
    %v9177 = vpack.c.b16 %v9169, %v9168
    %9186 = vmatprep.subr.bf16.mxu0 0
    %9187 = vmatpush1.bf16.msra.mxu0 %v9170
    %9188 = vmatprep.subr.bf16.mxu0 0
    %9189 = vmatpush1.bf16.msra.mxu0 %v9171
    %9190 = vmatprep.subr.bf16.mxu0 0
    %9191 = vmatpush1.bf16.msra.mxu0 %v9172
    %9192 = vmatprep.subr.bf16.mxu0 0
    %9193 = vmatpush1.bf16.msra.mxu0 %v9173
    %9194 = vmatprep.subr.bf16.mxu0 0
    %9195 = vmatpush1.bf16.msra.mxu0 %v9174
    %9196 = vmatprep.subr.bf16.mxu0 0
    %9197 = vmatpush1.bf16.msra.mxu0 %v9175
    %9198 = vmatprep.subr.bf16.mxu0 0
    %9199 = vmatpush1.bf16.msra.mxu0 %v9176
    %9200 = vmatprep.subr.bf16.mxu0 0
    %9201 = vmatpush1.bf16.msra.mxu0 %v9177
    %9202 = vmatprep.subr.bf16.mxu0 0
    %9203 = vmatpush1.bf16.msra.mxu0 0
    %9204 = vmatprep.subr.bf16.mxu0 0
    %9205 = vmatpush1.bf16.msra.mxu0 0
    %9206 = vmatprep.subr.bf16.mxu0 0
    %9207 = vmatpush1.bf16.msra.mxu0 0
    %9208 = vmatprep.subr.bf16.mxu0 0
    %9209 = vmatpush1.bf16.msra.mxu0 0
    %9210 = vmatprep.subr.bf16.mxu0 0
    %9211 = vmatpush1.bf16.msra.mxu0 0
    %9212 = vmatprep.subr.bf16.mxu0 0
    %9213 = vmatpush1.bf16.msra.mxu0 0
    %9214 = vmatprep.subr.bf16.mxu0 0
    %9215 = vmatpush1.bf16.msra.mxu0 0
    %9216 = vmatprep.subr.bf16.mxu0 0
    %9217 = vmatpush1.bf16.msra.mxu0 0
    %9218 = vmatprep.mubr.bf16.mxu0 0
    %9219 = vmatmul.mubr.bf16.gmra.mrb[0].mxu0 %v9136
    %v9220 = vpop.f32.mrb[0].mxu0
    %v9221 = vadd.f32 0.0, %v9220
    %v9222 = vpop.f32.mrb[0].mxu0
    %v9223 = vpop.f32.mrb[0].mxu0
    %v9224 = vpop.f32.mrb[0].mxu0
    %9225 = vdwg.mxu0
    %v9226 = vadd.f32 %v9090, %v9221
    %s9227 = scalar_lea.vmem %s5, 832
    %v9228 = vld [vmem:[%s9227] sm:$0xf]
    %v9229 = vld [vmem:[%s9227 + $0x4] sm:$0xf]
    %v9230 = vld [vmem:[%s9227 + $0x8] sm:$0xf]
    %v9231 = vld [vmem:[%s9227 + $0xc] sm:$0xf]
    %v9232 = vld [vmem:[%s9227 + $0x10] sm:$0xf]
    %v9233 = vld [vmem:[%s9227 + $0x14] sm:$0xf]
    %v9234 = vld [vmem:[%s9227 + $0x18] sm:$0xf]
    %v9235 = vld [vmem:[%s9227 + $0x1c] sm:$0xf]
    %v9236 = vld [vmem:[%s9227 + $0x20] sm:$0xf]
    %v9237 = vld [vmem:[%s9227 + $0x24] sm:$0xf]
    %v9238 = vld [vmem:[%s9227 + $0x28] sm:$0xf]
    %v9239 = vld [vmem:[%s9227 + $0x2c] sm:$0xf]
    %v9240 = vld [vmem:[%s9227 + $0x30] sm:$0xf]
    %v9241 = vld [vmem:[%s9227 + $0x34] sm:$0xf]
    %v9242 = vld [vmem:[%s9227 + $0x38] sm:$0xf]
    %v9243 = vld [vmem:[%s9227 + $0x3c] sm:$0xf]
    %v9244 = vrot.slane %v9132, 2
    %v9245 = vrot.slane %v9133, 1
    %v9246 = vsel %vm7727, %v9245, %v9244
    %v9247 = vpack.c.b16 %v9246, %v9246
    %v9265 = vunpack.c.l.b16 %v9228
    %v9266 = vunpack.c.l.b16 %v9229
    %v9267 = vunpack.c.l.b16 %v9230
    %v9268 = vunpack.c.l.b16 %v9231
    %v9269 = vunpack.c.l.b16 %v9232
    %v9270 = vunpack.c.l.b16 %v9233
    %v9271 = vunpack.c.l.b16 %v9234
    %v9272 = vunpack.c.l.b16 %v9235
    %v9273 = vunpack.c.l.b16 %v9236
    %v9274 = vunpack.c.l.b16 %v9237
    %v9275 = vunpack.c.l.b16 %v9238
    %v9276 = vunpack.c.l.b16 %v9239
    %v9277 = vunpack.c.l.b16 %v9240
    %v9278 = vunpack.c.l.b16 %v9241
    %v9279 = vunpack.c.l.b16 %v9242
    %v9280 = vunpack.c.l.b16 %v9243
    %v9281 = vpack.c.b16 %v9266, %v9265
    %v9282 = vpack.c.b16 %v9268, %v9267
    %v9283 = vpack.c.b16 %v9270, %v9269
    %v9284 = vpack.c.b16 %v9272, %v9271
    %v9285 = vpack.c.b16 %v9274, %v9273
    %v9286 = vpack.c.b16 %v9276, %v9275
    %v9287 = vpack.c.b16 %v9278, %v9277
    %v9288 = vpack.c.b16 %v9280, %v9279
    %9297 = vmatprep.subr.bf16.mxu0 0
    %9298 = vmatpush1.bf16.msra.mxu0 %v9281
    %9299 = vmatprep.subr.bf16.mxu0 0
    %9300 = vmatpush1.bf16.msra.mxu0 %v9282
    %9301 = vmatprep.subr.bf16.mxu0 0
    %9302 = vmatpush1.bf16.msra.mxu0 %v9283
    %9303 = vmatprep.subr.bf16.mxu0 0
    %9304 = vmatpush1.bf16.msra.mxu0 %v9284
    %9305 = vmatprep.subr.bf16.mxu0 0
    %9306 = vmatpush1.bf16.msra.mxu0 %v9285
    %9307 = vmatprep.subr.bf16.mxu0 0
    %9308 = vmatpush1.bf16.msra.mxu0 %v9286
    %9309 = vmatprep.subr.bf16.mxu0 0
    %9310 = vmatpush1.bf16.msra.mxu0 %v9287
    %9311 = vmatprep.subr.bf16.mxu0 0
    %9312 = vmatpush1.bf16.msra.mxu0 %v9288
    %9313 = vmatprep.subr.bf16.mxu0 0
    %9314 = vmatpush1.bf16.msra.mxu0 0
    %9315 = vmatprep.subr.bf16.mxu0 0
    %9316 = vmatpush1.bf16.msra.mxu0 0
    %9317 = vmatprep.subr.bf16.mxu0 0
    %9318 = vmatpush1.bf16.msra.mxu0 0
    %9319 = vmatprep.subr.bf16.mxu0 0
    %9320 = vmatpush1.bf16.msra.mxu0 0
    %9321 = vmatprep.subr.bf16.mxu0 0
    %9322 = vmatpush1.bf16.msra.mxu0 0
    %9323 = vmatprep.subr.bf16.mxu0 0
    %9324 = vmatpush1.bf16.msra.mxu0 0
    %9325 = vmatprep.subr.bf16.mxu0 0
    %9326 = vmatpush1.bf16.msra.mxu0 0
    %9327 = vmatprep.subr.bf16.mxu0 0
    %9328 = vmatpush1.bf16.msra.mxu0 0
    %9329 = vmatprep.mubr.bf16.mxu0 0
    %9330 = vmatmul.mubr.bf16.gmra.mrb[0].mxu0 %v9247
    %v9331 = vpop.f32.mrb[0].mxu0
    %v9332 = vadd.f32 0.0, %v9331
    %v9333 = vpop.f32.mrb[0].mxu0
    %v9334 = vpop.f32.mrb[0].mxu0
    %v9335 = vpop.f32.mrb[0].mxu0
    %9336 = vdwg.mxu0
    %v9337 = vadd.f32 %v9226, %v9332
    %s9338 = scalar_lea.vmem %s5, 896
    %v9339 = vld [vmem:[%s9338] sm:$0xf]
    %v9340 = vld [vmem:[%s9338 + $0x4] sm:$0xf]
    %v9341 = vld [vmem:[%s9338 + $0x8] sm:$0xf]
    %v9342 = vld [vmem:[%s9338 + $0xc] sm:$0xf]
    %v9343 = vld [vmem:[%s9338 + $0x10] sm:$0xf]
    %v9344 = vld [vmem:[%s9338 + $0x14] sm:$0xf]
    %v9345 = vld [vmem:[%s9338 + $0x18] sm:$0xf]
    %v9346 = vld [vmem:[%s9338 + $0x1c] sm:$0xf]
    %v9347 = vld [vmem:[%s9338 + $0x20] sm:$0xf]
    %v9348 = vld [vmem:[%s9338 + $0x24] sm:$0xf]
    %v9349 = vld [vmem:[%s9338 + $0x28] sm:$0xf]
    %v9350 = vld [vmem:[%s9338 + $0x2c] sm:$0xf]
    %v9351 = vld [vmem:[%s9338 + $0x30] sm:$0xf]
    %v9352 = vld [vmem:[%s9338 + $0x34] sm:$0xf]
    %v9353 = vld [vmem:[%s9338 + $0x38] sm:$0xf]
    %v9354 = vld [vmem:[%s9338 + $0x3c] sm:$0xf]
    %v9355 = vrot.slane %v9132, 4
    %v9356 = vrot.slane %v9133, 3
    %v9357 = vsel %vm7727, %v9356, %v9355
    %v9358 = vpack.c.b16 %v9357, %v9357
    %v9376 = vunpack.c.l.b16 %v9339
    %v9377 = vunpack.c.l.b16 %v9340
    %v9378 = vunpack.c.l.b16 %v9341
    %v9379 = vunpack.c.l.b16 %v9342
    %v9380 = vunpack.c.l.b16 %v9343
    %v9381 = vunpack.c.l.b16 %v9344
    %v9382 = vunpack.c.l.b16 %v9345
    %v9383 = vunpack.c.l.b16 %v9346
    %v9384 = vunpack.c.l.b16 %v9347
    %v9385 = vunpack.c.l.b16 %v9348
    %v9386 = vunpack.c.l.b16 %v9349
    %v9387 = vunpack.c.l.b16 %v9350
    %v9388 = vunpack.c.l.b16 %v9351
    %v9389 = vunpack.c.l.b16 %v9352
    %v9390 = vunpack.c.l.b16 %v9353
    %v9391 = vunpack.c.l.b16 %v9354
    %v9392 = vpack.c.b16 %v9377, %v9376
    %v9393 = vpack.c.b16 %v9379, %v9378
    %v9394 = vpack.c.b16 %v9381, %v9380
    %v9395 = vpack.c.b16 %v9383, %v9382
    %v9396 = vpack.c.b16 %v9385, %v9384
    %v9397 = vpack.c.b16 %v9387, %v9386
    %v9398 = vpack.c.b16 %v9389, %v9388
    %v9399 = vpack.c.b16 %v9391, %v9390
    %9408 = vmatprep.subr.bf16.mxu0 0
    %9409 = vmatpush1.bf16.msra.mxu0 %v9392
    %9410 = vmatprep.subr.bf16.mxu0 0
    %9411 = vmatpush1.bf16.msra.mxu0 %v9393
    %9412 = vmatprep.subr.bf16.mxu0 0
    %9413 = vmatpush1.bf16.msra.mxu0 %v9394
    %9414 = vmatprep.subr.bf16.mxu0 0
    %9415 = vmatpush1.bf16.msra.mxu0 %v9395
    %9416 = vmatprep.subr.bf16.mxu0 0
    %9417 = vmatpush1.bf16.msra.mxu0 %v9396
    %9418 = vmatprep.subr.bf16.mxu0 0
    %9419 = vmatpush1.bf16.msra.mxu0 %v9397
    %9420 = vmatprep.subr.bf16.mxu0 0
    %9421 = vmatpush1.bf16.msra.mxu0 %v9398
    %9422 = vmatprep.subr.bf16.mxu0 0
    %9423 = vmatpush1.bf16.msra.mxu0 %v9399
    %9424 = vmatprep.subr.bf16.mxu0 0
    %9425 = vmatpush1.bf16.msra.mxu0 0
    %9426 = vmatprep.subr.bf16.mxu0 0
    %9427 = vmatpush1.bf16.msra.mxu0 0
    %9428 = vmatprep.subr.bf16.mxu0 0
    %9429 = vmatpush1.bf16.msra.mxu0 0
    %9430 = vmatprep.subr.bf16.mxu0 0
    %9431 = vmatpush1.bf16.msra.mxu0 0
    %9432 = vmatprep.subr.bf16.mxu0 0
    %9433 = vmatpush1.bf16.msra.mxu0 0
    %9434 = vmatprep.subr.bf16.mxu0 0
    %9435 = vmatpush1.bf16.msra.mxu0 0
    %9436 = vmatprep.subr.bf16.mxu0 0
    %9437 = vmatpush1.bf16.msra.mxu0 0
    %9438 = vmatprep.subr.bf16.mxu0 0
    %9439 = vmatpush1.bf16.msra.mxu0 0
    %9440 = vmatprep.mubr.bf16.mxu0 0
    %9441 = vmatmul.mubr.bf16.gmra.mrb[0].mxu0 %v9358
    %v9442 = vpop.f32.mrb[0].mxu0
    %v9443 = vadd.f32 0.0, %v9442
    %v9444 = vpop.f32.mrb[0].mxu0
    %v9445 = vpop.f32.mrb[0].mxu0
    %v9446 = vpop.f32.mrb[0].mxu0
    %9447 = vdwg.mxu0
    %v9448 = vadd.f32 %v9337, %v9443
    %s9449 = scalar_lea.vmem %s5, 960
    %v9450 = vld [vmem:[%s9449] sm:$0xf]
    %v9451 = vld [vmem:[%s9449 + $0x4] sm:$0xf]
    %v9452 = vld [vmem:[%s9449 + $0x8] sm:$0xf]
    %v9453 = vld [vmem:[%s9449 + $0xc] sm:$0xf]
    %v9454 = vld [vmem:[%s9449 + $0x10] sm:$0xf]
    %v9455 = vld [vmem:[%s9449 + $0x14] sm:$0xf]
    %v9456 = vld [vmem:[%s9449 + $0x18] sm:$0xf]
    %v9457 = vld [vmem:[%s9449 + $0x1c] sm:$0xf]
    %v9458 = vld [vmem:[%s9449 + $0x20] sm:$0xf]
    %v9459 = vld [vmem:[%s9449 + $0x24] sm:$0xf]
    %v9460 = vld [vmem:[%s9449 + $0x28] sm:$0xf]
    %v9461 = vld [vmem:[%s9449 + $0x2c] sm:$0xf]
    %v9462 = vld [vmem:[%s9449 + $0x30] sm:$0xf]
    %v9463 = vld [vmem:[%s9449 + $0x34] sm:$0xf]
    %v9464 = vld [vmem:[%s9449 + $0x38] sm:$0xf]
    %v9465 = vld [vmem:[%s9449 + $0x3c] sm:$0xf]
    %v9466 = vrot.slane %v9132, 6
    %v9467 = vrot.slane %v9133, 5
    %v9468 = vsel %vm7727, %v9467, %v9466
    %v9469 = vpack.c.b16 %v9468, %v9468
    %v9487 = vunpack.c.l.b16 %v9450
    %v9488 = vunpack.c.l.b16 %v9451
    %v9489 = vunpack.c.l.b16 %v9452
    %v9490 = vunpack.c.l.b16 %v9453
    %v9491 = vunpack.c.l.b16 %v9454
    %v9492 = vunpack.c.l.b16 %v9455
    %v9493 = vunpack.c.l.b16 %v9456
    %v9494 = vunpack.c.l.b16 %v9457
    %v9495 = vunpack.c.l.b16 %v9458
    %v9496 = vunpack.c.l.b16 %v9459
    %v9497 = vunpack.c.l.b16 %v9460
    %v9498 = vunpack.c.l.b16 %v9461
    %v9499 = vunpack.c.l.b16 %v9462
    %v9500 = vunpack.c.l.b16 %v9463
    %v9501 = vunpack.c.l.b16 %v9464
    %v9502 = vunpack.c.l.b16 %v9465
    %v9503 = vpack.c.b16 %v9488, %v9487
    %v9504 = vpack.c.b16 %v9490, %v9489
    %v9505 = vpack.c.b16 %v9492, %v9491
    %v9506 = vpack.c.b16 %v9494, %v9493
    %v9507 = vpack.c.b16 %v9496, %v9495
    %v9508 = vpack.c.b16 %v9498, %v9497
    %v9509 = vpack.c.b16 %v9500, %v9499
    %v9510 = vpack.c.b16 %v9502, %v9501
    %9519 = vmatprep.subr.bf16.mxu0 0
    %9520 = vmatpush1.bf16.msra.mxu0 %v9503
    %9521 = vmatprep.subr.bf16.mxu0 0
    %9522 = vmatpush1.bf16.msra.mxu0 %v9504
    %9523 = vmatprep.subr.bf16.mxu0 0
    %9524 = vmatpush1.bf16.msra.mxu0 %v9505
    %9525 = vmatprep.subr.bf16.mxu0 0
    %9526 = vmatpush1.bf16.msra.mxu0 %v9506
    %9527 = vmatprep.subr.bf16.mxu0 0
    %9528 = vmatpush1.bf16.msra.mxu0 %v9507
    %9529 = vmatprep.subr.bf16.mxu0 0
    %9530 = vmatpush1.bf16.msra.mxu0 %v9508
    %9531 = vmatprep.subr.bf16.mxu0 0
    %9532 = vmatpush1.bf16.msra.mxu0 %v9509
    %9533 = vmatprep.subr.bf16.mxu0 0
    %9534 = vmatpush1.bf16.msra.mxu0 %v9510
    %9535 = vmatprep.subr.bf16.mxu0 0
    %9536 = vmatpush1.bf16.msra.mxu0 0
    %9537 = vmatprep.subr.bf16.mxu0 0
    %9538 = vmatpush1.bf16.msra.mxu0 0
    %9539 = vmatprep.subr.bf16.mxu0 0
    %9540 = vmatpush1.bf16.msra.mxu0 0
    %9541 = vmatprep.subr.bf16.mxu0 0
    %9542 = vmatpush1.bf16.msra.mxu0 0
    %9543 = vmatprep.subr.bf16.mxu0 0
    %9544 = vmatpush1.bf16.msra.mxu0 0
    %9545 = vmatprep.subr.bf16.mxu0 0
    %9546 = vmatpush1.bf16.msra.mxu0 0
    %9547 = vmatprep.subr.bf16.mxu0 0
    %9548 = vmatpush1.bf16.msra.mxu0 0
    %9549 = vmatprep.subr.bf16.mxu0 0
    %9550 = vmatpush1.bf16.msra.mxu0 0
    %9551 = vmatprep.mubr.bf16.mxu0 0
    %9552 = vmatmul.mubr.bf16.gmra.mrb[0].mxu0 %v9469
    %v9553 = vpop.f32.mrb[0].mxu0
    %v9554 = vadd.f32 0.0, %v9553
    %v9555 = vpop.f32.mrb[0].mxu0
    %v9556 = vpop.f32.mrb[0].mxu0
    %v9557 = vpop.f32.mrb[0].mxu0
    %9558 = vdwg.mxu0
    %v9559 = vadd.f32 %v9448, %v9554
    %v9560 = vmax.f32 %v9559, 0.0
    %v9561 = vpack.c.bf16 %v9560, %v9560
    %v9562 = vld [vmem:[%s7] sm:$0xf]
    %v9563 = vld [vmem:[%s7 + $0x4] sm:$0xf]
    %v9564 = vld [vmem:[%s7 + $0x8] sm:$0xf]
    %v9565 = vld [vmem:[%s7 + $0xc] sm:$0xf]
    %v9566 = vld [vmem:[%s7 + $0x10] sm:$0xf]
    %v9567 = vld [vmem:[%s7 + $0x14] sm:$0xf]
    %v9568 = vld [vmem:[%s7 + $0x18] sm:$0xf]
    %v9569 = vld [vmem:[%s7 + $0x1c] sm:$0xf]
    %v9570 = vld [vmem:[%s7 + $0x20] sm:$0xf]
    %v9571 = vld [vmem:[%s7 + $0x24] sm:$0xf]
    %v9572 = vld [vmem:[%s7 + $0x28] sm:$0xf]
    %v9573 = vld [vmem:[%s7 + $0x2c] sm:$0xf]
    %v9574 = vld [vmem:[%s7 + $0x30] sm:$0xf]
    %v9575 = vld [vmem:[%s7 + $0x34] sm:$0xf]
    %v9576 = vld [vmem:[%s7 + $0x38] sm:$0xf]
    %v9577 = vld [vmem:[%s7 + $0x3c] sm:$0xf]
    %v9578 = vld [vmem:[%s8] sm:$0x1]
    %v9580 = vlaneseq
    %v9581 = vshrl.u32 %v9580, 7
    %v9582 = vsub.s32 0, %v9581
    %v9583 = vrot.slane %v9578, %v9582
    %v9601 = vunpack.c.l.b16 %v9562
    %v9602 = vunpack.c.l.b16 %v9563
    %v9603 = vunpack.c.l.b16 %v9564
    %v9604 = vunpack.c.l.b16 %v9565
    %v9605 = vunpack.c.l.b16 %v9566
    %v9606 = vunpack.c.l.b16 %v9567
    %v9607 = vunpack.c.l.b16 %v9568
    %v9608 = vunpack.c.l.b16 %v9569
    %v9609 = vunpack.c.l.b16 %v9570
    %v9610 = vunpack.c.l.b16 %v9571
    %v9611 = vunpack.c.l.b16 %v9572
    %v9612 = vunpack.c.l.b16 %v9573
    %v9613 = vunpack.c.l.b16 %v9574
    %v9614 = vunpack.c.l.b16 %v9575
    %v9615 = vunpack.c.l.b16 %v9576
    %v9616 = vunpack.c.l.b16 %v9577
    %v9617 = vpack.c.b16 %v9602, %v9601
    %v9618 = vpack.c.b16 %v9604, %v9603
    %v9619 = vpack.c.b16 %v9606, %v9605
    %v9620 = vpack.c.b16 %v9608, %v9607
    %v9621 = vpack.c.b16 %v9610, %v9609
    %v9622 = vpack.c.b16 %v9612, %v9611
    %v9623 = vpack.c.b16 %v9614, %v9613
    %v9624 = vpack.c.b16 %v9616, %v9615
    %9633 = vmatprep.subr.bf16.mxu0 0
    %9634 = vmatpush1.bf16.msra.mxu0 %v9617
    %9635 = vmatprep.subr.bf16.mxu0 0
    %9636 = vmatpush1.bf16.msra.mxu0 %v9618
    %9637 = vmatprep.subr.bf16.mxu0 0
    %9638 = vmatpush1.bf16.msra.mxu0 %v9619
    %9639 = vmatprep.subr.bf16.mxu0 0
    %9640 = vmatpush1.bf16.msra.mxu0 %v9620
    %9641 = vmatprep.subr.bf16.mxu0 0
    %9642 = vmatpush1.bf16.msra.mxu0 %v9621
    %9643 = vmatprep.subr.bf16.mxu0 0
    %9644 = vmatpush1.bf16.msra.mxu0 %v9622
    %9645 = vmatprep.subr.bf16.mxu0 0
    %9646 = vmatpush1.bf16.msra.mxu0 %v9623
    %9647 = vmatprep.subr.bf16.mxu0 0
    %9648 = vmatpush1.bf16.msra.mxu0 %v9624
    %9649 = vmatprep.subr.bf16.mxu0 0
    %9650 = vmatpush1.bf16.msra.mxu0 0
    %9651 = vmatprep.subr.bf16.mxu0 0
    %9652 = vmatpush1.bf16.msra.mxu0 0
    %9653 = vmatprep.subr.bf16.mxu0 0
    %9654 = vmatpush1.bf16.msra.mxu0 0
    %9655 = vmatprep.subr.bf16.mxu0 0
    %9656 = vmatpush1.bf16.msra.mxu0 0
    %9657 = vmatprep.subr.bf16.mxu0 0
    %9658 = vmatpush1.bf16.msra.mxu0 0
    %9659 = vmatprep.subr.bf16.mxu0 0
    %9660 = vmatpush1.bf16.msra.mxu0 0
    %9661 = vmatprep.subr.bf16.mxu0 0
    %9662 = vmatpush1.bf16.msra.mxu0 0
    %9663 = vmatprep.subr.bf16.mxu0 0
    %9664 = vmatpush1.bf16.msra.mxu0 0
    %9665 = vmatprep.mubr.bf16.mxu0 0
    %9666 = vmatmul.mubr.bf16.gmra.mrb[0].mxu0 %v9561
    %v9667 = vpop.f32.mrb[0].mxu0
    %v9668 = vadd.f32 %v9583, %v9667
    %v9669 = vpop.f32.mrb[0].mxu0
    %v9670 = vpop.f32.mrb[0].mxu0
    %v9671 = vpop.f32.mrb[0].mxu0
    %9672 = vdwg.mxu0
    %v9673 = vlaneseq
    %v9674 = vand.u32 %v9673, 127
    %vm9675 = vcmp.lt.s32.totalorder %v9674, 10
    %v9676 = vsel %vm9675, %v9668, -1e+30
    %vm9677 = vcmask 1041408
    %v9678 = vsel %vm9677, %v9676, -inf
    %9679 = vmax.xlane.f32.xlu0 %v9678
    %v9680 = vpop.xlane.xlu0 %9679
    %v9681 = vsub.f32 %v9676, %v9680
    %v9682 = vmul.f32 %v9681, 1.442695
    %v9683 = vpow.pop %v9682
    %v9684 = vsel %vm9677, %v9683, 0.0
    %9685 = vadd.xlane.f32.xlu0 %v9684
    %v9686 = vpop.xlane.xlu0 %9685
    %v9687 = vlog2.pop %v9686
    %v9688 = vmul.f32 %v9687, 0.6931472
    %v9689 = vsub.f32 %v9681, %v9688
    %9690 = vst [vmem:[#allocation2] sm:$0x3] %v9689
    // Predicated region
    $region38: #{net_forward.1} parent=1 // pred_check
      _
    $region39: #{net_forward.1} parent=1 // pred_check_branch
      %9692 = sbr.rel (0) target = $region41
    $region40: #{net_forward.1} parent=1 // pred_region
      %s9694 = ssub.s32 32, 32
      %9695 = vsyncadd [#allocation3], %s9694
      %s9697 = sshll.u32 [#allocation2], 4
      %s9698 = int_to_ptr.vmem [resolvable:$true] %s9697
      %9700 = dma.vmem_to_hbm [thread:$0]  %s9698, 32, %s9, [#allocation3]
    $region41: #{net_forward.1} parent=1 // pred_fallthru
      _
    // Predicated region
    $region42: #{net_forward.1} parent=1 // pred_check
      _
    $region43: #{net_forward.1} parent=1 // pred_check_branch
      %9702 = sbr.rel (0) target = $region45
    $region44: #{net_forward.1} parent=1 // pred_region
      %9703 = dma.done [#allocation3], 32
    $region45: #{net_forward.1} parent=1 // pred_fallthru
      _
    %9704 = vsyncpa [#allocation3], 1

</llo_original>
